<compile_context>
chip_gen: v6e
topology: v6e:2x2x1
jax: 0.10.0
libtpu: 0.0.40
codegen_flags: <defaults>
</compile_context>

<pallas_src>
import numpy as np
import jax
import jax.numpy as jnp
from jax.experimental import pallas as pl
from jax.experimental.pallas import tpu as pltpu


# Lane-aligned column-slab widths (multiples of 128).
_C1_SLAB = 768            # 5 ch * 144 pooled positions (12x12), 720 padded -> 768
_C1_COLS = 4 * _C1_SLAB   # 4 pool offsets (u, v)
_C2_SLAB = 128            # 5 ch * 16 pooled positions (4x4),   80 padded -> 128
_C2_COLS = 4 * _C2_SLAB


# ---------------------------------------------------------------------------
# Fused forward kernel: one batch tile (T images) per grid step.
# ---------------------------------------------------------------------------
def _lenet_kernel(x_ref, w1_ref, b1_ref, w2_ref, b2_ref,
                  wl1_ref, bl1_ref, wl2_ref, bl2_ref, o_ref):
    xb = x_ref[...].astype(jnp.bfloat16)                        # (T, 784)

    # ---- conv1 as Toeplitz matmul; columns ordered (u, v | c, a, b) so that
    # pool1 is a max over 4 aligned 768-lane slabs. ---------------------------
    y1 = jnp.dot(xb, w1_ref[...], preferred_element_type=jnp.float32)
    y1 = jnp.maximum(y1 + b1_ref[...], 0.0)                     # (T, 3072)
    m1 = jnp.maximum(
        jnp.maximum(y1[:, 0 * _C1_SLAB:1 * _C1_SLAB],
                    y1[:, 1 * _C1_SLAB:2 * _C1_SLAB]),
        jnp.maximum(y1[:, 2 * _C1_SLAB:3 * _C1_SLAB],
                    y1[:, 3 * _C1_SLAB:4 * _C1_SLAB]))          # (T, 768)

    # ---- conv2 on the pooled 12x12 grid; columns (u2, v2 | oc, a2, b2). -----
    y2 = jnp.dot(m1.astype(jnp.bfloat16), w2_ref[...],
                 preferred_element_type=jnp.float32)
    y2 = jnp.maximum(y2 + b2_ref[...], 0.0)                     # (T, 512)
    m2 = jnp.maximum(
        jnp.maximum(y2[:, 0 * _C2_SLAB:1 * _C2_SLAB],
                    y2[:, 1 * _C2_SLAB:2 * _C2_SLAB]),
        jnp.maximum(y2[:, 2 * _C2_SLAB:3 * _C2_SLAB],
                    y2[:, 3 * _C2_SLAB:4 * _C2_SLAB]))          # (T, 128)
    # Lanes 0..79 of m2 are the NCHW-flattened (5,4,4) features in PyTorch
    # order; lanes 80..127 are identically zero by construction.

    # ---- head: compact K=128 / K=40 MXU matmuls. ----------------------------
    h = jnp.maximum(
        jnp.dot(m2.astype(jnp.bfloat16), wl1_ref[...],
                preferred_element_type=jnp.float32) + bl1_ref[...], 0.0)  # (T,40)
    z = jnp.maximum(
        jnp.dot(h.astype(jnp.bfloat16), wl2_ref[...],
                preferred_element_type=jnp.float32) + bl2_ref[...], 0.0)  # (T,10)

    # ---- softmax over classes (exact normalization). ------------------------
    z = z - jnp.max(z, axis=1, keepdims=True)
    e = jnp.exp(z)
    o_ref[...] = (e / jnp.sum(e, axis=1, keepdims=True)).astype(o_ref.dtype)


# ---------------------------------------------------------------------------
# Host-side weight preparation (depends only on params; in deployment this
# would be computed once and cached, not rebuilt per forward call).
# ---------------------------------------------------------------------------
def _prep_weights(params):
    f32, bf16 = jnp.float32, jnp.bfloat16

    # conv1 Toeplitz: (784, 3072).  Column (u,v,c,a,b) = conv1 output at
    # spatial (2a+u, 2b+v), channel c; row = flat input pixel (i*28 + j).
    u, v, c, a, b, di, dj = np.meshgrid(
        np.arange(2), np.arange(2), np.arange(5), np.arange(12), np.arange(12),
        np.arange(5), np.arange(5), indexing="ij")
    cols = ((u * 2 + v) * _C1_SLAB + c * 144 + a * 12 + b).ravel()
    rows = ((2 * a + u + di) * 28 + (2 * b + v + dj)).ravel()
    vals = params["conv1_w"].reshape(5, 25)[c.ravel(), (di * 5 + dj).ravel()]
    w1t = jnp.zeros((784, _C1_COLS), bf16).at[rows, cols].set(vals.astype(bf16))

    u, v, c, q = np.meshgrid(np.arange(2), np.arange(2), np.arange(5),
                             np.arange(144), indexing="ij")
    bcols = ((u * 2 + v) * _C1_SLAB + c * 144 + q).ravel()
    b1r = jnp.zeros((1, _C1_COLS), f32).at[0, bcols].set(
        params["conv1_b"][c.ravel()])

    # conv2 Toeplitz: (768, 512).  Row = pooled conv1 feature (ic, y, x) at
    # lane ic*144 + y*12 + x; column (u2,v2,oc,a2,b2) = conv2 output at
    # spatial (2a2+u2, 2b2+v2), channel oc.
    u2, v2, oc, a2, b2, ic, di, dj = np.meshgrid(
        np.arange(2), np.arange(2), np.arange(5), np.arange(4), np.arange(4),
        np.arange(5), np.arange(5), np.arange(5), indexing="ij")
    cols = ((u2 * 2 + v2) * _C2_SLAB + oc * 16 + a2 * 4 + b2).ravel()
    rows = (ic * 144 + (2 * a2 + u2 + di) * 12 + (2 * b2 + v2 + dj)).ravel()
    vals = params["conv2_w"][oc.ravel(), ic.ravel(), di.ravel(), dj.ravel()]
    w2t = jnp.zeros((_C1_SLAB, _C2_COLS), bf16).at[rows, cols].set(
        vals.astype(bf16))

    u2, v2, oc, q2 = np.meshgrid(np.arange(2), np.arange(2), np.arange(5),
                                 np.arange(16), indexing="ij")
    bcols = ((u2 * 2 + v2) * _C2_SLAB + oc * 16 + q2).ravel()
    b2r = jnp.zeros((1, _C2_COLS), f32).at[0, bcols].set(
        params["conv2_b"][oc.ravel()])

    # head: pad l1's K from 80 -> 128 (rows 80..127 multiply exact zeros).
    wl1 = jnp.zeros((_C2_SLAB, 40), bf16).at[:80, :].set(
        params["l1_w"].astype(bf16))
    bl1 = params["l1_b"].reshape(1, 40).astype(f32)
    wl2 = params["l2_w"].astype(bf16)
    bl2 = params["l2_b"].reshape(1, 10).astype(f32)
    return w1t, b1r, w2t, b2r, wl1, bl1, wl2, bl2


# ---------------------------------------------------------------------------
# Wrapper: weight prep + single gridded pallas_call.
# ---------------------------------------------------------------------------
def net_forward(x_nchw, params, tile_n=128):
    N = x_nchw.shape[0]
    # Sublane-aligned tile; keep >= 2 grid steps so both TensorCores get work
    # on dual-core chips (v7x).
    half_up8 = ((max(N + 1, 2) // 2 + 7) // 8) * 8
    tile_n = int(max(8, min(tile_n, half_up8)))
    G = (N + tile_n - 1) // tile_n
    Np = G * tile_n

    xf = x_nchw.reshape(N, 28 * 28).astype(jnp.float32)
    if Np != N:
        xf = jnp.pad(xf, ((0, Np - N), (0, 0)))

    w1t, b1r, w2t, b2r, wl1, bl1, wl2, bl2 = _prep_weights(params)

    def full(arr):  # small grid-invariant operand, resident in VMEM
        nd = arr.ndim
        return pl.BlockSpec(arr.shape, lambda i, _nd=nd: (0,) * _nd)

    flops = 2 * Np * (784 * _C1_COLS + _C1_SLAB * _C2_COLS
                      + _C2_SLAB * 40 + 40 * 10)
    bytes_accessed = (Np * (784 + 10) * 4
                      + (784 * _C1_COLS + _C1_SLAB * _C2_COLS
                         + _C2_SLAB * 40 + 40 * 10) * 2
                      + (_C1_COLS + _C2_COLS + 40 + 10) * 4)

    out = pl.pallas_call(
        _lenet_kernel,
        out_shape=jax.ShapeDtypeStruct((Np, 10), jnp.float32),
        grid=(G,),
        in_specs=[
            pl.BlockSpec((tile_n, 784), lambda i: (i, 0)),
            full(w1t), full(b1r), full(w2t), full(b2r),
            full(wl1), full(bl1), full(wl2), full(bl2),
        ],
        out_specs=pl.BlockSpec((tile_n, 10), lambda i: (i, 0)),
        compiler_params=pltpu.CompilerParams(
            dimension_semantics=("parallel",)),
        cost_estimate=pl.CostEstimate(
            flops=flops, transcendentals=Np * 10,
            bytes_accessed=bytes_accessed),
    )(xf, w1t, b1r, w2t, b2r, wl1, bl1, wl2, bl2)
    return out[:N]


# ---------------------------------------------------------------------------
# Pure-JAX reference (for correctness check)
# ---------------------------------------------------------------------------
def ref_forward(x_nchw, params):
    x = jnp.transpose(x_nchw, (0, 2, 3, 1))

    def conv(x, w, b):
        y = jax.lax.conv_general_dilated(
            x, jnp.transpose(w, (2, 3, 1, 0)), (1, 1), "VALID",
            dimension_numbers=("NHWC", "HWIO", "NHWC"))
        return jax.nn.relu(y + b)

    def pool(x):
        return jnp.maximum(
            jnp.maximum(x[:, 0::2, 0::2, :], x[:, 0::2, 1::2, :]),
            jnp.maximum(x[:, 1::2, 0::2, :], x[:, 1::2, 1::2, :]))

    x = pool(conv(x, params["conv1_w"], params["conv1_b"]))
    x = pool(conv(x, params["conv2_w"], params["conv2_b"]))
    x = jnp.transpose(x, (0, 3, 1, 2)).reshape(x.shape[0], -1)
    x = jax.nn.relu(x @ params["l1_w"] + params["l1_b"])
    x = jax.nn.relu(x @ params["l2_w"] + params["l2_b"])
    return jax.nn.softmax(x, axis=1)


def init_params(key):
    ks = jax.random.split(key, 8)
    s = 0.1
    return {
        "conv1_w": s * jax.random.normal(ks[0], (5, 1, 5, 5), jnp.float32),
        "conv1_b": s * jax.random.normal(ks[1], (5,), jnp.float32),
        "conv2_w": s * jax.random.normal(ks[2], (5, 5, 5, 5), jnp.float32),
        "conv2_b": s * jax.random.normal(ks[3], (5,), jnp.float32),
        "l1_w": s * jax.random.normal(ks[4], (80, 40), jnp.float32),   # (in, out)
        "l1_b": s * jax.random.normal(ks[5], (40,), jnp.float32),
        "l2_w": s * jax.random.normal(ks[6], (40, 10), jnp.float32),
        "l2_b": s * jax.random.normal(ks[7], (10,), jnp.float32),
    }


if __name__ == "__main__":
    key = jax.random.PRNGKey(0)
    k_x, k_p = jax.random.split(key)
    params = init_params(k_p)
    # Input shape forced to (N, 1, 28, 28) by the 5*4*4 flatten in the module.
    x = jax.random.normal(k_x, (16, 1, 28, 28), jnp.float32)

    out = jax.block_until_ready(jax.jit(net_forward)(x, params))
    ref = jax.block_until_ready(jax.jit(ref_forward)(x, params))

    assert out.shape == (16, 10)
    # bf16 matmul operands (f32 accumulation) -> slightly looser tolerance.
    assert jnp.allclose(out, ref, rtol=2e-2, atol=3e-3), "mismatch vs reference"
    assert jnp.allclose(jnp.sum(out, axis=1), 1.0, atol=1e-3)

    print("KERNEL_OK")
</pallas_src>

<mosaic_0001>
module attributes {stable_mosaic.version = 11 : i64} {
  func.func @_lenet_kernel(%arg0: i32, %arg1: memref<8x784xf32, #tpu.memory_space<vmem>>, %arg2: memref<784x3072xbf16, #tpu.memory_space<vmem>>, %arg3: memref<1x3072xf32, #tpu.memory_space<vmem>>, %arg4: memref<768x512xbf16, #tpu.memory_space<vmem>>, %arg5: memref<1x512xf32, #tpu.memory_space<vmem>>, %arg6: memref<128x40xbf16, #tpu.memory_space<vmem>>, %arg7: memref<1x40xf32, #tpu.memory_space<vmem>>, %arg8: memref<40x10xbf16, #tpu.memory_space<vmem>>, %arg9: memref<1x10xf32, #tpu.memory_space<vmem>>, %arg10: memref<8x10xf32, #tpu.memory_space<vmem>>) attributes {dimension_semantics = [#tpu.dimension_semantics<parallel>], iteration_bounds = array<i64: 2>, scalar_prefetch = 0 : i64, scratch_operands = 0 : i64, tpu.core_type = #tpu.core_type<tc>, window_params = [{transform_indices = @transform_0, window_bounds = array<i64: 8, 784>}, {pipeline_mode = #tpu.pipeline_mode<synchronous>, transform_indices = @transform_1, window_bounds = array<i64: 784, 3072>}, {pipeline_mode = #tpu.pipeline_mode<synchronous>, transform_indices = @transform_2, window_bounds = array<i64: 1, 3072>}, {pipeline_mode = #tpu.pipeline_mode<synchronous>, transform_indices = @transform_3, window_bounds = array<i64: 768, 512>}, {pipeline_mode = #tpu.pipeline_mode<synchronous>, transform_indices = @transform_4, window_bounds = array<i64: 1, 512>}, {pipeline_mode = #tpu.pipeline_mode<synchronous>, transform_indices = @transform_5, window_bounds = array<i64: 128, 40>}, {pipeline_mode = #tpu.pipeline_mode<synchronous>, transform_indices = @transform_6, window_bounds = array<i64: 1, 40>}, {pipeline_mode = #tpu.pipeline_mode<synchronous>, transform_indices = @transform_7, window_bounds = array<i64: 40, 10>}, {pipeline_mode = #tpu.pipeline_mode<synchronous>, transform_indices = @transform_8, window_bounds = array<i64: 1, 10>}, {transform_indices = @transform_9, window_bounds = array<i64: 8, 10>}]} {
    %c0 = arith.constant 0 : index
    %c0_0 = arith.constant 0 : index
    %0 = vector.load %arg1[%c0, %c0_0] : memref<8x784xf32, #tpu.memory_space<vmem>>, vector<8x784xf32>
    %1 = arith.truncf %0 : vector<8x784xf32> to vector<8x784xbf16>
    %c0_1 = arith.constant 0 : index
    %c0_2 = arith.constant 0 : index
    %2 = vector.load %arg2[%c0_1, %c0_2] : memref<784x3072xbf16, #tpu.memory_space<vmem>>, vector<784x3072xbf16>
    %cst = arith.constant dense<0.000000e+00> : vector<8x3072xf32>
    %3 = tpu.matmul %1, %2, %cst {dimension_numbers = #tpu.dot_dimension_numbers<[1], [0], [0], [1], [0, 0, 1, 1], [], []>} : vector<8x784xbf16>, vector<784x3072xbf16>, vector<8x3072xf32> -> vector<8x3072xf32>
    %c0_3 = arith.constant 0 : index
    %c0_4 = arith.constant 0 : index
    %4 = vector.load %arg3[%c0_3, %c0_4] : memref<1x3072xf32, #tpu.memory_space<vmem>>, vector<1x3072xf32>
    %5 = vector.broadcast %4 : vector<1x3072xf32> to vector<8x3072xf32>
    %6 = arith.addf %3, %5 : vector<8x3072xf32>
    %cst_5 = arith.constant 0.000000e+00 : f32
    %7 = vector.broadcast %cst_5 : f32 to vector<8x3072xf32>
    %8 = arith.maximumf %6, %7 : vector<8x3072xf32>
    %9 = vector.extract_strided_slice %8 {offsets = [0, 0], sizes = [8, 768], strides = [1, 1]} : vector<8x3072xf32> to vector<8x768xf32>
    %10 = vector.extract_strided_slice %8 {offsets = [0, 768], sizes = [8, 768], strides = [1, 1]} : vector<8x3072xf32> to vector<8x768xf32>
    %11 = arith.maximumf %9, %10 : vector<8x768xf32>
    %12 = vector.extract_strided_slice %8 {offsets = [0, 1536], sizes = [8, 768], strides = [1, 1]} : vector<8x3072xf32> to vector<8x768xf32>
    %13 = vector.extract_strided_slice %8 {offsets = [0, 2304], sizes = [8, 768], strides = [1, 1]} : vector<8x3072xf32> to vector<8x768xf32>
    %14 = arith.maximumf %12, %13 : vector<8x768xf32>
    %15 = arith.maximumf %11, %14 : vector<8x768xf32>
    %16 = arith.truncf %15 : vector<8x768xf32> to vector<8x768xbf16>
    %c0_6 = arith.constant 0 : index
    %c0_7 = arith.constant 0 : index
    %17 = vector.load %arg4[%c0_6, %c0_7] : memref<768x512xbf16, #tpu.memory_space<vmem>>, vector<768x512xbf16>
    %cst_8 = arith.constant dense<0.000000e+00> : vector<8x512xf32>
    %18 = tpu.matmul %16, %17, %cst_8 {dimension_numbers = #tpu.dot_dimension_numbers<[1], [0], [0], [1], [0, 0, 1, 1], [], []>} : vector<8x768xbf16>, vector<768x512xbf16>, vector<8x512xf32> -> vector<8x512xf32>
    %c0_9 = arith.constant 0 : index
    %c0_10 = arith.constant 0 : index
    %19 = vector.load %arg5[%c0_9, %c0_10] : memref<1x512xf32, #tpu.memory_space<vmem>>, vector<1x512xf32>
    %20 = vector.broadcast %19 : vector<1x512xf32> to vector<8x512xf32>
    %21 = arith.addf %18, %20 : vector<8x512xf32>
    %cst_11 = arith.constant 0.000000e+00 : f32
    %22 = vector.broadcast %cst_11 : f32 to vector<8x512xf32>
    %23 = arith.maximumf %21, %22 : vector<8x512xf32>
    %24 = vector.extract_strided_slice %23 {offsets = [0, 0], sizes = [8, 128], strides = [1, 1]} : vector<8x512xf32> to vector<8x128xf32>
    %25 = vector.extract_strided_slice %23 {offsets = [0, 128], sizes = [8, 128], strides = [1, 1]} : vector<8x512xf32> to vector<8x128xf32>
    %26 = arith.maximumf %24, %25 : vector<8x128xf32>
    %27 = vector.extract_strided_slice %23 {offsets = [0, 256], sizes = [8, 128], strides = [1, 1]} : vector<8x512xf32> to vector<8x128xf32>
    %28 = vector.extract_strided_slice %23 {offsets = [0, 384], sizes = [8, 128], strides = [1, 1]} : vector<8x512xf32> to vector<8x128xf32>
    %29 = arith.maximumf %27, %28 : vector<8x128xf32>
    %30 = arith.maximumf %26, %29 : vector<8x128xf32>
    %31 = arith.truncf %30 : vector<8x128xf32> to vector<8x128xbf16>
    %c0_12 = arith.constant 0 : index
    %c0_13 = arith.constant 0 : index
    %32 = vector.load %arg6[%c0_12, %c0_13] : memref<128x40xbf16, #tpu.memory_space<vmem>>, vector<128x40xbf16>
    %cst_14 = arith.constant dense<0.000000e+00> : vector<8x40xf32>
    %33 = tpu.matmul %31, %32, %cst_14 {dimension_numbers = #tpu.dot_dimension_numbers<[1], [0], [0], [1], [0, 0, 1, 1], [], []>} : vector<8x128xbf16>, vector<128x40xbf16>, vector<8x40xf32> -> vector<8x40xf32>
    %c0_15 = arith.constant 0 : index
    %c0_16 = arith.constant 0 : index
    %34 = vector.load %arg7[%c0_15, %c0_16] : memref<1x40xf32, #tpu.memory_space<vmem>>, vector<1x40xf32>
    %35 = vector.broadcast %34 : vector<1x40xf32> to vector<8x40xf32>
    %36 = arith.addf %33, %35 : vector<8x40xf32>
    %cst_17 = arith.constant 0.000000e+00 : f32
    %37 = vector.broadcast %cst_17 : f32 to vector<8x40xf32>
    %38 = arith.maximumf %36, %37 : vector<8x40xf32>
    %39 = arith.truncf %38 : vector<8x40xf32> to vector<8x40xbf16>
    %c0_18 = arith.constant 0 : index
    %c0_19 = arith.constant 0 : index
    %40 = vector.load %arg8[%c0_18, %c0_19] : memref<40x10xbf16, #tpu.memory_space<vmem>>, vector<40x10xbf16>
    %cst_20 = arith.constant dense<0.000000e+00> : vector<8x10xf32>
    %41 = tpu.matmul %39, %40, %cst_20 {dimension_numbers = #tpu.dot_dimension_numbers<[1], [0], [0], [1], [0, 0, 1, 1], [], []>} : vector<8x40xbf16>, vector<40x10xbf16>, vector<8x10xf32> -> vector<8x10xf32>
    %c0_21 = arith.constant 0 : index
    %c0_22 = arith.constant 0 : index
    %42 = vector.load %arg9[%c0_21, %c0_22] : memref<1x10xf32, #tpu.memory_space<vmem>>, vector<1x10xf32>
    %43 = vector.broadcast %42 : vector<1x10xf32> to vector<8x10xf32>
    %44 = arith.addf %41, %43 : vector<8x10xf32>
    %cst_23 = arith.constant 0.000000e+00 : f32
    %45 = vector.broadcast %cst_23 : f32 to vector<8x10xf32>
    %46 = arith.maximumf %44, %45 : vector<8x10xf32>
    %cst_24 = arith.constant dense<0xFF800000> : vector<8xf32>
    %47 = vector.multi_reduction <maximumf>, %46, %cst_24 [1] : vector<8x10xf32> to vector<8xf32>
    %48 = vector.shape_cast %47 : vector<8xf32> to vector<8x1xf32>
    %49 = vector.broadcast %48 : vector<8x1xf32> to vector<8x10xf32>
    %50 = arith.subf %46, %49 : vector<8x10xf32>
    %51 = math.exp %50 : vector<8x10xf32>
    %cst_25 = arith.constant dense<0.000000e+00> : vector<8xf32>
    %52 = vector.multi_reduction <add>, %51, %cst_25 [1] : vector<8x10xf32> to vector<8xf32>
    %53 = vector.shape_cast %52 : vector<8xf32> to vector<8x1xf32>
    %54 = vector.broadcast %53 : vector<8x1xf32> to vector<8x10xf32>
    %55 = arith.divf %51, %54 : vector<8x10xf32>
    %c0_26 = arith.constant 0 : index
    %c0_27 = arith.constant 0 : index
    %56 = vector.load %arg10[%c0_26, %c0_27] : memref<8x10xf32, #tpu.memory_space<vmem>>, vector<8x10xf32>
    tpu.vector_store %arg10[%c0_26, %c0_27], %55 {strides = array<i32>} : memref<8x10xf32, #tpu.memory_space<vmem>>, vector<8x10xf32>,
    return
  }
  func.func @transform_0(%arg0: i32) -> (i32, i32) {
    %c0_i32 = arith.constant 0 : i32
    %c0_i32_0 = arith.constant 0 : i32
    return %arg0, %c0_i32 : i32, i32
  }
  func.func @transform_1(%arg0: i32) -> (i32, i32) {
    %c0_i32 = arith.constant 0 : i32
    %c0_i32_0 = arith.constant 0 : i32
    %c0_i32_1 = arith.constant 0 : i32
    return %c0_i32, %c0_i32_0 : i32, i32
  }
  func.func @transform_2(%arg0: i32) -> (i32, i32) {
    %c0_i32 = arith.constant 0 : i32
    %c0_i32_0 = arith.constant 0 : i32
    %c0_i32_1 = arith.constant 0 : i32
    return %c0_i32, %c0_i32_0 : i32, i32
  }
  func.func @transform_3(%arg0: i32) -> (i32, i32) {
    %c0_i32 = arith.constant 0 : i32
    %c0_i32_0 = arith.constant 0 : i32
    %c0_i32_1 = arith.constant 0 : i32
    return %c0_i32, %c0_i32_0 : i32, i32
  }
  func.func @transform_4(%arg0: i32) -> (i32, i32) {
    %c0_i32 = arith.constant 0 : i32
    %c0_i32_0 = arith.constant 0 : i32
    %c0_i32_1 = arith.constant 0 : i32
    return %c0_i32, %c0_i32_0 : i32, i32
  }
  func.func @transform_5(%arg0: i32) -> (i32, i32) {
    %c0_i32 = arith.constant 0 : i32
    %c0_i32_0 = arith.constant 0 : i32
    %c0_i32_1 = arith.constant 0 : i32
    return %c0_i32, %c0_i32_0 : i32, i32
  }
  func.func @transform_6(%arg0: i32) -> (i32, i32) {
    %c0_i32 = arith.constant 0 : i32
    %c0_i32_0 = arith.constant 0 : i32
    %c0_i32_1 = arith.constant 0 : i32
    return %c0_i32, %c0_i32_0 : i32, i32
  }
  func.func @transform_7(%arg0: i32) -> (i32, i32) {
    %c0_i32 = arith.constant 0 : i32
    %c0_i32_0 = arith.constant 0 : i32
    %c0_i32_1 = arith.constant 0 : i32
    return %c0_i32, %c0_i32_0 : i32, i32
  }
  func.func @transform_8(%arg0: i32) -> (i32, i32) {
    %c0_i32 = arith.constant 0 : i32
    %c0_i32_0 = arith.constant 0 : i32
    %c0_i32_1 = arith.constant 0 : i32
    return %c0_i32, %c0_i32_0 : i32, i32
  }
  func.func @transform_9(%arg0: i32) -> (i32, i32) {
    %c0_i32 = arith.constant 0 : i32
    %c0_i32_0 = arith.constant 0 : i32
    return %arg0, %c0_i32 : i32, i32
  }
}

</mosaic_0001>

<llo_original>
// kernel: net_forward.1
$region0: #{net_forward.1}
  #allocation0 [shape = 'u32[]', space=smem, size = 0x4, offset = 0x4, fixed_abs, tag = 'smem constant byte address 0x4 - core index']
  #allocation1 [shape = 'u32[144,128]{1,0:T(1,128)}', space=vmem, size = 0x12000, scoped, tag = 'internal scratch']
  %s0 = inlined_call_operand.vmem [shape: f32[16,784], index: 0, kind: input, shape index: {}]
  %s1 = inlined_call_operand.vmem [shape: bf16[784,3072], index: 1, kind: input, shape index: {}]
  %s2 = inlined_call_operand.vmem [shape: f32[1,3072], index: 2, kind: input, shape index: {}]
  %s3 = inlined_call_operand.vmem [shape: bf16[768,512], index: 3, kind: input, shape index: {}]
  %s4 = inlined_call_operand.vmem [shape: f32[1,512], index: 4, kind: input, shape index: {}]
  %s5 = inlined_call_operand.vmem [shape: bf16[128,40], index: 5, kind: input, shape index: {}]
  %s6 = inlined_call_operand.vmem [shape: f32[1,40], index: 6, kind: input, shape index: {}]
  %s7 = inlined_call_operand.vmem [shape: bf16[40,10], index: 7, kind: input, shape index: {}]
  %s8 = inlined_call_operand.vmem [shape: f32[1,10], index: 8, kind: input, shape index: {}]
  %s9 = inlined_call_operand.hbm [shape: f32[16,10], index: 9, kind: output, shape index: {}]
  %s10 = sld [smem:[#allocation0]]
  $region69: #{net_forward.1} parent=0
    _
  %s12 = ssub.s32 1, %s10
  %s13 = scalar_select 0, %s12, %s10
  $region1: #{net_forward.1} parent=0
    #allocation2 [shape = 'u8[8192]{0}', space=vmem, size = 0x2000, scoped, tag = 'output window, operand 0']
    #allocation3 [shape = 's32[2]{0}', space=sflag, size = 0x8, scoped, tag = 'scoped memory for net_forward.1']
    %14 = vsyncpa [#allocation3], 0
    %s15 = scalar_lea.sflag [#allocation3], 1
    %16 = vsyncpa %s15, 0
    loop: start=0, step=1, limit=4
    $region2: #{net_forward.1} parent=1 // loop_pre_header
      _
    $region3: #{net_forward.1} parent=1 // loop_header
      %s18 = sphi 0, %s22
      %p19 = scmp.ge.s32.totalorder %s18, 4
      %s28 = sphi 0, %s30
      %s31 = sphi 0, %s28
      %s32 = sphi 0, %s31
      %s48 = sphi 0, %s32
      %s52 = sphi 0, %s52
      %s54 = sphi 0, %s52
      %s55 = sphi 0, %s54
      %s69 = sphi 0, %s55
      %s73 = sphi 0, %s73
      %s75 = sphi 0, %s73
      %s76 = sphi 0, %s75
      %s90 = sphi 0, %s76
      %s94 = sphi 0, %s94
      %s96 = sphi 0, %s94
      %s97 = sphi 0, %s96
      %s111 = sphi 0, %s97
      %s115 = sphi 0, %s115
      %s117 = sphi 0, %s115
      %s118 = sphi 0, %s117
      %s132 = sphi 0, %s118
      %s136 = sphi 0, %s136
      %s138 = sphi 0, %s136
      %s139 = sphi 0, %s138
      %s153 = sphi 0, %s139
      %s157 = sphi 0, %s157
      %s159 = sphi 0, %s157
      %s160 = sphi 0, %s159
      %s174 = sphi 0, %s160
      %s178 = sphi 0, %s178
      %s180 = sphi 0, %s178
      %s181 = sphi 0, %s180
      %s195 = sphi 0, %s181
      %s199 = sphi 0, %s199
      %s201 = sphi 0, %s199
      %s202 = sphi 0, %s201
      %s216 = sphi 0, %s202
      %s222 = sphi 0, %s224
      %s225 = sphi 0, %s222
      %s226 = sphi 0, %s225
      %s242 = sphi 0, %s226
    $region4: #{net_forward.1} parent=1 // loop_header_branch
      %21 = sbr.rel (%p19) target = $region8
    $region5: #{net_forward.1} parent=1 // loop_body
      %s23 = ssub.s32 %s18, 1
      %s24 = ssub.s32 %s18, 2
      %s25 = sadd.s32 %s18, 1
      %s26 = ssub.s32 %s18, %s25
      %p27 = scmp.eq.s32.totalorder %s26, 0
      %s29 = sadd.s32 %s28, 1
      %s30 = scalar_select %p27, %s28, %s29
      %p33 = pneg %p27
      %p34 = scmp.eq.s32.totalorder %s18, 1
      %p35 = por %p33, %p34
      %p36 = scmp.ne.s32.totalorder %s28, %s31
      %p37 = scmp.eq.s32.totalorder %s18, 0
      %p38 = por %p36, %p37
      %p39 = scmp.ne.s32.totalorder %s28, %s31
      %p40 = scmp.eq.s32.totalorder %s23, 1
      %p41 = por %p39, %p40
      %p42 = scmp.ne.s32.totalorder %s31, %s32
      %p43 = scmp.eq.s32.totalorder %s23, 0
      %p44 = por %p42, %p43
      %p45 = scmp.ne.s32.totalorder %s31, %s32
      %p46 = scmp.eq.s32.totalorder %s24, 1
      %p47 = por %p45, %p46
      %p49 = scmp.ne.s32.totalorder %s32, %s48
      %p50 = scmp.eq.s32.totalorder %s24, 0
      %p51 = por %p49, %p50
      %s53 = sadd.s32 %s52, 1
      %p56 = scmp.eq.s32.totalorder %s18, 1
      %p57 = scmp.ne.s32.totalorder %s52, %s54
      %p58 = scmp.eq.s32.totalorder %s18, 0
      %p59 = por %p57, %p58
      %p60 = scmp.ne.s32.totalorder %s52, %s54
      %p61 = scmp.eq.s32.totalorder %s23, 1
      %p62 = por %p60, %p61
      %p63 = scmp.ne.s32.totalorder %s54, %s55
      %p64 = scmp.eq.s32.totalorder %s23, 0
      %p65 = por %p63, %p64
      %p66 = scmp.ne.s32.totalorder %s54, %s55
      %p67 = scmp.eq.s32.totalorder %s24, 1
      %p68 = por %p66, %p67
      %p70 = scmp.ne.s32.totalorder %s55, %s69
      %p71 = scmp.eq.s32.totalorder %s24, 0
      %p72 = por %p70, %p71
      %s74 = sadd.s32 %s73, 1
      %p77 = scmp.eq.s32.totalorder %s18, 1
      %p78 = scmp.ne.s32.totalorder %s73, %s75
      %p79 = scmp.eq.s32.totalorder %s18, 0
      %p80 = por %p78, %p79
      %p81 = scmp.ne.s32.totalorder %s73, %s75
      %p82 = scmp.eq.s32.totalorder %s23, 1
      %p83 = por %p81, %p82
      %p84 = scmp.ne.s32.totalorder %s75, %s76
      %p85 = scmp.eq.s32.totalorder %s23, 0
      %p86 = por %p84, %p85
      %p87 = scmp.ne.s32.totalorder %s75, %s76
      %p88 = scmp.eq.s32.totalorder %s24, 1
      %p89 = por %p87, %p88
      %p91 = scmp.ne.s32.totalorder %s76, %s90
      %p92 = scmp.eq.s32.totalorder %s24, 0
      %p93 = por %p91, %p92
      %s95 = sadd.s32 %s94, 1
      %p98 = scmp.eq.s32.totalorder %s18, 1
      %p99 = scmp.ne.s32.totalorder %s94, %s96
      %p100 = scmp.eq.s32.totalorder %s18, 0
      %p101 = por %p99, %p100
      %p102 = scmp.ne.s32.totalorder %s94, %s96
      %p103 = scmp.eq.s32.totalorder %s23, 1
      %p104 = por %p102, %p103
      %p105 = scmp.ne.s32.totalorder %s96, %s97
      %p106 = scmp.eq.s32.totalorder %s23, 0
      %p107 = por %p105, %p106
      %p108 = scmp.ne.s32.totalorder %s96, %s97
      %p109 = scmp.eq.s32.totalorder %s24, 1
      %p110 = por %p108, %p109
      %p112 = scmp.ne.s32.totalorder %s97, %s111
      %p113 = scmp.eq.s32.totalorder %s24, 0
      %p114 = por %p112, %p113
      %s116 = sadd.s32 %s115, 1
      %p119 = scmp.eq.s32.totalorder %s18, 1
      %p120 = scmp.ne.s32.totalorder %s115, %s117
      %p121 = scmp.eq.s32.totalorder %s18, 0
      %p122 = por %p120, %p121
      %p123 = scmp.ne.s32.totalorder %s115, %s117
      %p124 = scmp.eq.s32.totalorder %s23, 1
      %p125 = por %p123, %p124
      %p126 = scmp.ne.s32.totalorder %s117, %s118
      %p127 = scmp.eq.s32.totalorder %s23, 0
      %p128 = por %p126, %p127
      %p129 = scmp.ne.s32.totalorder %s117, %s118
      %p130 = scmp.eq.s32.totalorder %s24, 1
      %p131 = por %p129, %p130
      %p133 = scmp.ne.s32.totalorder %s118, %s132
      %p134 = scmp.eq.s32.totalorder %s24, 0
      %p135 = por %p133, %p134
      %s137 = sadd.s32 %s136, 1
      %p140 = scmp.eq.s32.totalorder %s18, 1
      %p141 = scmp.ne.s32.totalorder %s136, %s138
      %p142 = scmp.eq.s32.totalorder %s18, 0
      %p143 = por %p141, %p142
      %p144 = scmp.ne.s32.totalorder %s136, %s138
      %p145 = scmp.eq.s32.totalorder %s23, 1
      %p146 = por %p144, %p145
      %p147 = scmp.ne.s32.totalorder %s138, %s139
      %p148 = scmp.eq.s32.totalorder %s23, 0
      %p149 = por %p147, %p148
      %p150 = scmp.ne.s32.totalorder %s138, %s139
      %p151 = scmp.eq.s32.totalorder %s24, 1
      %p152 = por %p150, %p151
      %p154 = scmp.ne.s32.totalorder %s139, %s153
      %p155 = scmp.eq.s32.totalorder %s24, 0
      %p156 = por %p154, %p155
      %s158 = sadd.s32 %s157, 1
      %p161 = scmp.eq.s32.totalorder %s18, 1
      %p162 = scmp.ne.s32.totalorder %s157, %s159
      %p163 = scmp.eq.s32.totalorder %s18, 0
      %p164 = por %p162, %p163
      %p165 = scmp.ne.s32.totalorder %s157, %s159
      %p166 = scmp.eq.s32.totalorder %s23, 1
      %p167 = por %p165, %p166
      %p168 = scmp.ne.s32.totalorder %s159, %s160
      %p169 = scmp.eq.s32.totalorder %s23, 0
      %p170 = por %p168, %p169
      %p171 = scmp.ne.s32.totalorder %s159, %s160
      %p172 = scmp.eq.s32.totalorder %s24, 1
      %p173 = por %p171, %p172
      %p175 = scmp.ne.s32.totalorder %s160, %s174
      %p176 = scmp.eq.s32.totalorder %s24, 0
      %p177 = por %p175, %p176
      %s179 = sadd.s32 %s178, 1
      %p182 = scmp.eq.s32.totalorder %s18, 1
      %p183 = scmp.ne.s32.totalorder %s178, %s180
      %p184 = scmp.eq.s32.totalorder %s18, 0
      %p185 = por %p183, %p184
      %p186 = scmp.ne.s32.totalorder %s178, %s180
      %p187 = scmp.eq.s32.totalorder %s23, 1
      %p188 = por %p186, %p187
      %p189 = scmp.ne.s32.totalorder %s180, %s181
      %p190 = scmp.eq.s32.totalorder %s23, 0
      %p191 = por %p189, %p190
      %p192 = scmp.ne.s32.totalorder %s180, %s181
      %p193 = scmp.eq.s32.totalorder %s24, 1
      %p194 = por %p192, %p193
      %p196 = scmp.ne.s32.totalorder %s181, %s195
      %p197 = scmp.eq.s32.totalorder %s24, 0
      %p198 = por %p196, %p197
      %s200 = sadd.s32 %s199, 1
      %p203 = scmp.eq.s32.totalorder %s18, 1
      %p204 = scmp.ne.s32.totalorder %s199, %s201
      %p205 = scmp.eq.s32.totalorder %s18, 0
      %p206 = por %p204, %p205
      %p207 = scmp.ne.s32.totalorder %s199, %s201
      %p208 = scmp.eq.s32.totalorder %s23, 1
      %p209 = por %p207, %p208
      %p210 = scmp.ne.s32.totalorder %s201, %s202
      %p211 = scmp.eq.s32.totalorder %s23, 0
      %p212 = por %p210, %p211
      %p213 = scmp.ne.s32.totalorder %s201, %s202
      %p214 = scmp.eq.s32.totalorder %s24, 1
      %p215 = por %p213, %p214
      %p217 = scmp.ne.s32.totalorder %s202, %s216
      %p218 = scmp.eq.s32.totalorder %s24, 0
      %p219 = por %p217, %p218
      %s220 = ssub.s32 %s18, %s25
      %p221 = scmp.eq.s32.totalorder %s220, 0
      %s223 = sadd.s32 %s222, 1
      %s224 = scalar_select %p221, %s222, %s223
      %p227 = pneg %p221
      %p228 = scmp.eq.s32.totalorder %s18, 1
      %p229 = por %p227, %p228
      %p230 = scmp.ne.s32.totalorder %s222, %s225
      %p231 = scmp.eq.s32.totalorder %s18, 0
      %p232 = por %p230, %p231
      %p233 = scmp.ne.s32.totalorder %s222, %s225
      %p234 = scmp.eq.s32.totalorder %s23, 1
      %p235 = por %p233, %p234
      %p236 = scmp.ne.s32.totalorder %s225, %s226
      %p237 = scmp.eq.s32.totalorder %s23, 0
      %p238 = por %p236, %p237
      %p239 = scmp.ne.s32.totalorder %s225, %s226
      %p240 = scmp.eq.s32.totalorder %s24, 1
      %p241 = por %p239, %p240
      %p243 = scmp.ne.s32.totalorder %s226, %s242
      %p244 = scmp.eq.s32.totalorder %s24, 0
      %p245 = por %p243, %p244
      %p246 = scmp.le.s32.totalorder 1, %s18
      %p247 = scmp.lt.s32.totalorder %s18, 3
      %p248 = pnand %p246, %p247
      %p249 = pneg %p248
      // Predicated region
      $region9: #{net_forward.1} parent=5 // pred_check
        _
      $region10: #{net_forward.1} parent=5 // pred_check_branch
        %251 = sbr.rel (%p248) target = $region12
      $region11: #{net_forward.1} parent=5 // pred_region
        %s252 = ssub.s32 %s18, 1
        // Predicated region
        $region13: #{net_forward.1} parent=11 // pred_check
          %p253 = pneg %p65
        $region14: #{net_forward.1} parent=11 // pred_check_branch
          %255 = sbr.rel (%p253) target = $region16
        $region15: #{net_forward.1} parent=11 // pred_region
          _
        $region16: #{net_forward.1} parent=11 // pred_fallthru
          _
        // Predicated region
        $region17: #{net_forward.1} parent=11 // pred_check
          %p256 = pneg %p86
        $region18: #{net_forward.1} parent=11 // pred_check_branch
          %258 = sbr.rel (%p256) target = $region20
        $region19: #{net_forward.1} parent=11 // pred_region
          _
        $region20: #{net_forward.1} parent=11 // pred_fallthru
          _
        // Predicated region
        $region21: #{net_forward.1} parent=11 // pred_check
          %p259 = pneg %p107
        $region22: #{net_forward.1} parent=11 // pred_check_branch
          %261 = sbr.rel (%p259) target = $region24
        $region23: #{net_forward.1} parent=11 // pred_region
          _
        $region24: #{net_forward.1} parent=11 // pred_fallthru
          _
        // Predicated region
        $region25: #{net_forward.1} parent=11 // pred_check
          %p262 = pneg %p128
        $region26: #{net_forward.1} parent=11 // pred_check_branch
          %264 = sbr.rel (%p262) target = $region28
        $region27: #{net_forward.1} parent=11 // pred_region
          _
        $region28: #{net_forward.1} parent=11 // pred_fallthru
          _
        // Predicated region
        $region29: #{net_forward.1} parent=11 // pred_check
          %p265 = pneg %p149
        $region30: #{net_forward.1} parent=11 // pred_check_branch
          %267 = sbr.rel (%p265) target = $region32
        $region31: #{net_forward.1} parent=11 // pred_region
          _
        $region32: #{net_forward.1} parent=11 // pred_fallthru
          _
        // Predicated region
        $region33: #{net_forward.1} parent=11 // pred_check
          %p268 = pneg %p170
        $region34: #{net_forward.1} parent=11 // pred_check_branch
          %270 = sbr.rel (%p268) target = $region36
        $region35: #{net_forward.1} parent=11 // pred_region
          _
        $region36: #{net_forward.1} parent=11 // pred_fallthru
          _
        // Predicated region
        $region37: #{net_forward.1} parent=11 // pred_check
          %p271 = pneg %p191
        $region38: #{net_forward.1} parent=11 // pred_check_branch
          %273 = sbr.rel (%p271) target = $region40
        $region39: #{net_forward.1} parent=11 // pred_region
          _
        $region40: #{net_forward.1} parent=11 // pred_fallthru
          _
        // Predicated region
        $region41: #{net_forward.1} parent=11 // pred_check
          %p274 = pneg %p212
        $region42: #{net_forward.1} parent=11 // pred_check_branch
          %276 = sbr.rel (%p274) target = $region44
        $region43: #{net_forward.1} parent=11 // pred_region
          _
        $region44: #{net_forward.1} parent=11 // pred_fallthru
          _
      $region12: #{net_forward.1} parent=5 // pred_fallthru
        _
      %p277 = scmp.lt.s32.totalorder %s18, 2
      // Predicated region
      $region45: #{net_forward.1} parent=5 // pred_check
        %p278 = pneg %p277
      $region46: #{net_forward.1} parent=5 // pred_check_branch
        %280 = sbr.rel (%p278) target = $region48
      $region47: #{net_forward.1} parent=5 // pred_region
        // Predicated region
        $region49: #{net_forward.1} parent=47 // pred_check
          %p281 = pneg %p38
        $region50: #{net_forward.1} parent=47 // pred_check_branch
          %283 = sbr.rel (%p281) target = $region52
        $region51: #{net_forward.1} parent=47 // pred_region
          %p284 = scmp.lt.s32.totalorder %s18, 1
          %s285 = scalar_select %p284, %s18, 1
          %s286 = smul.addr %s285, 7
          %s287 = smul.addr %s286, 8
          %s288 = scalar_lea.vmem %s0, %s287
        $region52: #{net_forward.1} parent=47 // pred_fallthru
          _
      $region48: #{net_forward.1} parent=5 // pred_fallthru
        _
      %p289 = scmp.le.s32.totalorder 1, %s18
      %p290 = scmp.lt.s32.totalorder %s18, 3
      %p291 = pnand %p289, %p290
      %p292 = pneg %p291
      // Predicated region
      $region53: #{net_forward.1} parent=5 // pred_check
        _
      $region54: #{net_forward.1} parent=5 // pred_check_branch
        %294 = sbr.rel (%p291) target = $region56
      $region55: #{net_forward.1} parent=5 // pred_region
        %s295 = ssub.s32 %s18, 1
        %p296 = scmp.lt.s32.totalorder %s23, 1
        %s297 = scalar_select %p296, %s23, 1
        %s298 = smul.addr %s297, 7
        %s299 = smul.addr %s298, 8
        %s300 = scalar_lea.vmem %s0, %s299
        %p301 = pneg %p44
        %p302 = pneg %p41
        %p303 = pneg %p65
        %p304 = pneg %p62
        %p305 = pneg %p86
        %p306 = pneg %p83
        %p307 = pneg %p107
        %p308 = pneg %p104
        %p309 = pneg %p128
        %p310 = pneg %p125
        %p311 = pneg %p149
        %p312 = pneg %p146
        %p313 = pneg %p170
        %p314 = pneg %p167
        %p315 = pneg %p191
        %p316 = pneg %p188
        %p317 = pneg %p212
        %p318 = pneg %p209
        %p319 = pneg %p238
        %p320 = pneg %p235
        %s321 = sand.u32 %s225, 1
        %s322 = scalar_lea.sflag [#allocation3], %s321
        %s323 = sand.u32 %s225, 1
        %s324 = smul.addr %s323, 8
        %s325 = scalar_lea.vmem [#allocation2], %s324
        %p326 = scmp.lt.s32.totalorder %s23, 1
        %s327 = scalar_select %p326, %s23, 1
        %s328 = smul.addr %s327, 7
        %s329 = smul.addr %s328, 8
        %s330 = scalar_lea.vmem %s0, %s329
        %v332 = vld [vmem:[%s330] sm:$0xff]
        %v333 = vld [vmem:[%s330 + $0x8] sm:$0xff]
        %v334 = vld [vmem:[%s330 + $0x10] sm:$0xff]
        %v335 = vld [vmem:[%s330 + $0x18] sm:$0xff]
        %v336 = vld [vmem:[%s330 + $0x20] sm:$0xff]
        %v337 = vld [vmem:[%s330 + $0x28] sm:$0xff]
        %v338 = vld [vmem:[%s330 + $0x30] sm:$0xff]
        %v339 = vpack.c.bf16 %v332, %v332
        %v340 = vpack.c.bf16 %v333, %v333
        %v341 = vpack.c.bf16 %v334, %v334
        %v342 = vpack.c.bf16 %v335, %v335
        %v343 = vpack.c.bf16 %v336, %v336
        %v344 = vpack.c.bf16 %v337, %v337
        %v345 = vpack.c.bf16 %v338, %v338
        %v346 = vld [vmem:[%s1] sm:$0xff]
        %v347 = vld [vmem:[%s1 + $0x8] sm:$0xff]
        %v348 = vld [vmem:[%s1 + $0x10] sm:$0xff]
        %v349 = vld [vmem:[%s1 + $0x18] sm:$0xff]
        %v350 = vld [vmem:[%s1 + $0x20] sm:$0xff]
        %v351 = vld [vmem:[%s1 + $0x28] sm:$0xff]
        %v352 = vld [vmem:[%s1 + $0x30] sm:$0xff]
        %v353 = vld [vmem:[%s1 + $0x38] sm:$0xff]
        %v354 = vld [vmem:[%s1 + $0x40] sm:$0xff]
        %v355 = vld [vmem:[%s1 + $0x48] sm:$0xff]
        %v356 = vld [vmem:[%s1 + $0x50] sm:$0xff]
        %v357 = vld [vmem:[%s1 + $0x58] sm:$0xff]
        %v358 = vld [vmem:[%s1 + $0x60] sm:$0xff]
        %v359 = vld [vmem:[%s1 + $0x68] sm:$0xff]
        %v360 = vld [vmem:[%s1 + $0x70] sm:$0xff]
        %v361 = vld [vmem:[%s1 + $0x78] sm:$0xff]
        %v362 = vld [vmem:[%s1 + $0x80] sm:$0xff]
        %v363 = vld [vmem:[%s1 + $0x88] sm:$0xff]
        %v364 = vld [vmem:[%s1 + $0x90] sm:$0xff]
        %v365 = vld [vmem:[%s1 + $0x98] sm:$0xff]
        %v366 = vld [vmem:[%s1 + $0xa0] sm:$0xff]
        %v367 = vld [vmem:[%s1 + $0xa8] sm:$0xff]
        %v368 = vld [vmem:[%s1 + $0xb0] sm:$0xff]
        %v369 = vld [vmem:[%s1 + $0xb8] sm:$0xff]
        %v370 = vld [vmem:[%s1 + $0xc0] sm:$0xff]
        %v371 = vld [vmem:[%s1 + $0xc8] sm:$0xff]
        %v372 = vld [vmem:[%s1 + $0xd0] sm:$0xff]
        %v373 = vld [vmem:[%s1 + $0xd8] sm:$0xff]
        %v374 = vld [vmem:[%s1 + $0xe0] sm:$0xff]
        %v375 = vld [vmem:[%s1 + $0xe8] sm:$0xff]
        %v376 = vld [vmem:[%s1 + $0xf0] sm:$0xff]
        %v377 = vld [vmem:[%s1 + $0xf8] sm:$0xff]
        %v378 = vld [vmem:[%s1 + $0x100] sm:$0xff]
        %v379 = vld [vmem:[%s1 + $0x108] sm:$0xff]
        %v380 = vld [vmem:[%s1 + $0x110] sm:$0xff]
        %v381 = vld [vmem:[%s1 + $0x118] sm:$0xff]
        %v382 = vld [vmem:[%s1 + $0x120] sm:$0xff]
        %v383 = vld [vmem:[%s1 + $0x128] sm:$0xff]
        %v384 = vld [vmem:[%s1 + $0x130] sm:$0xff]
        %v385 = vld [vmem:[%s1 + $0x138] sm:$0xff]
        %v386 = vld [vmem:[%s1 + $0x140] sm:$0xff]
        %v387 = vld [vmem:[%s1 + $0x148] sm:$0xff]
        %v388 = vld [vmem:[%s1 + $0x150] sm:$0xff]
        %v389 = vld [vmem:[%s1 + $0x158] sm:$0xff]
        %v390 = vld [vmem:[%s1 + $0x160] sm:$0xff]
        %v391 = vld [vmem:[%s1 + $0x168] sm:$0xff]
        %v392 = vld [vmem:[%s1 + $0x170] sm:$0xff]
        %v393 = vld [vmem:[%s1 + $0x178] sm:$0xff]
        %v394 = vld [vmem:[%s1 + $0x180] sm:$0xff]
        %v395 = vld [vmem:[%s1 + $0x188] sm:$0xff]
        %v396 = vld [vmem:[%s1 + $0x190] sm:$0xff]
        %v397 = vld [vmem:[%s1 + $0x198] sm:$0xff]
        %v398 = vld [vmem:[%s1 + $0x1a0] sm:$0xff]
        %v399 = vld [vmem:[%s1 + $0x1a8] sm:$0xff]
        %v400 = vld [vmem:[%s1 + $0x1b0] sm:$0xff]
        %v401 = vld [vmem:[%s1 + $0x1b8] sm:$0xff]
        %v402 = vld [vmem:[%s1 + $0x1c0] sm:$0xff]
        %v403 = vld [vmem:[%s1 + $0x1c8] sm:$0xff]
        %v404 = vld [vmem:[%s1 + $0x1d0] sm:$0xff]
        %v405 = vld [vmem:[%s1 + $0x1d8] sm:$0xff]
        %v406 = vld [vmem:[%s1 + $0x1e0] sm:$0xff]
        %v407 = vld [vmem:[%s1 + $0x1e8] sm:$0xff]
        %v408 = vld [vmem:[%s1 + $0x1f0] sm:$0xff]
        %v409 = vld [vmem:[%s1 + $0x1f8] sm:$0xff]
        %v410 = vld [vmem:[%s1 + $0x200] sm:$0xff]
        %v411 = vld [vmem:[%s1 + $0x208] sm:$0xff]
        %v412 = vld [vmem:[%s1 + $0x210] sm:$0xff]
        %v413 = vld [vmem:[%s1 + $0x218] sm:$0xff]
        %v414 = vld [vmem:[%s1 + $0x220] sm:$0xff]
        %v415 = vld [vmem:[%s1 + $0x228] sm:$0xff]
        %v416 = vld [vmem:[%s1 + $0x230] sm:$0xff]
        %v417 = vld [vmem:[%s1 + $0x238] sm:$0xff]
        %v418 = vld [vmem:[%s1 + $0x240] sm:$0xff]
        %v419 = vld [vmem:[%s1 + $0x248] sm:$0xff]
        %v420 = vld [vmem:[%s1 + $0x250] sm:$0xff]
        %v421 = vld [vmem:[%s1 + $0x258] sm:$0xff]
        %v422 = vld [vmem:[%s1 + $0x260] sm:$0xff]
        %v423 = vld [vmem:[%s1 + $0x268] sm:$0xff]
        %v424 = vld [vmem:[%s1 + $0x270] sm:$0xff]
        %v425 = vld [vmem:[%s1 + $0x278] sm:$0xff]
        %v426 = vld [vmem:[%s1 + $0x280] sm:$0xff]
        %v427 = vld [vmem:[%s1 + $0x288] sm:$0xff]
        %v428 = vld [vmem:[%s1 + $0x290] sm:$0xff]
        %v429 = vld [vmem:[%s1 + $0x298] sm:$0xff]
        %v430 = vld [vmem:[%s1 + $0x2a0] sm:$0xff]
        %v431 = vld [vmem:[%s1 + $0x2a8] sm:$0xff]
        %v432 = vld [vmem:[%s1 + $0x2b0] sm:$0xff]
        %v433 = vld [vmem:[%s1 + $0x2b8] sm:$0xff]
        %v434 = vld [vmem:[%s1 + $0x2c0] sm:$0xff]
        %v435 = vld [vmem:[%s1 + $0x2c8] sm:$0xff]
        %v436 = vld [vmem:[%s1 + $0x2d0] sm:$0xff]
        %v437 = vld [vmem:[%s1 + $0x2d8] sm:$0xff]
        %v438 = vld [vmem:[%s1 + $0x2e0] sm:$0xff]
        %v439 = vld [vmem:[%s1 + $0x2e8] sm:$0xff]
        %v440 = vld [vmem:[%s1 + $0x2f0] sm:$0xff]
        %v441 = vld [vmem:[%s1 + $0x2f8] sm:$0xff]
        %v442 = vld [vmem:[%s1 + $0x300] sm:$0xff]
        %v443 = vld [vmem:[%s1 + $0x308] sm:$0xff]
        %v444 = vld [vmem:[%s1 + $0x310] sm:$0xff]
        %v445 = vld [vmem:[%s1 + $0x318] sm:$0xff]
        %v446 = vld [vmem:[%s1 + $0x320] sm:$0xff]
        %v447 = vld [vmem:[%s1 + $0x328] sm:$0xff]
        %v448 = vld [vmem:[%s1 + $0x330] sm:$0xff]
        %v449 = vld [vmem:[%s1 + $0x338] sm:$0xff]
        %v450 = vld [vmem:[%s1 + $0x340] sm:$0xff]
        %v451 = vld [vmem:[%s1 + $0x348] sm:$0xff]
        %v452 = vld [vmem:[%s1 + $0x350] sm:$0xff]
        %v453 = vld [vmem:[%s1 + $0x358] sm:$0xff]
        %v454 = vld [vmem:[%s1 + $0x360] sm:$0xff]
        %v455 = vld [vmem:[%s1 + $0x368] sm:$0xff]
        %v456 = vld [vmem:[%s1 + $0x370] sm:$0xff]
        %v457 = vld [vmem:[%s1 + $0x378] sm:$0xff]
        %v458 = vld [vmem:[%s1 + $0x380] sm:$0xff]
        %v459 = vld [vmem:[%s1 + $0x388] sm:$0xff]
        %v460 = vld [vmem:[%s1 + $0x390] sm:$0xff]
        %v461 = vld [vmem:[%s1 + $0x398] sm:$0xff]
        %v462 = vld [vmem:[%s1 + $0x3a0] sm:$0xff]
        %v463 = vld [vmem:[%s1 + $0x3a8] sm:$0xff]
        %v464 = vld [vmem:[%s1 + $0x3b0] sm:$0xff]
        %v465 = vld [vmem:[%s1 + $0x3b8] sm:$0xff]
        %v466 = vld [vmem:[%s1 + $0x3c0] sm:$0xff]
        %v467 = vld [vmem:[%s1 + $0x3c8] sm:$0xff]
        %v468 = vld [vmem:[%s1 + $0x3d0] sm:$0xff]
        %v469 = vld [vmem:[%s1 + $0x3d8] sm:$0xff]
        %v470 = vld [vmem:[%s1 + $0x3e0] sm:$0xff]
        %v471 = vld [vmem:[%s1 + $0x3e8] sm:$0xff]
        %v472 = vld [vmem:[%s1 + $0x3f0] sm:$0xff]
        %v473 = vld [vmem:[%s1 + $0x3f8] sm:$0xff]
        %v474 = vld [vmem:[%s1 + $0x400] sm:$0xff]
        %v475 = vld [vmem:[%s1 + $0x408] sm:$0xff]
        %v476 = vld [vmem:[%s1 + $0x410] sm:$0xff]
        %v477 = vld [vmem:[%s1 + $0x418] sm:$0xff]
        %v478 = vld [vmem:[%s1 + $0x420] sm:$0xff]
        %v479 = vld [vmem:[%s1 + $0x428] sm:$0xff]
        %v480 = vld [vmem:[%s1 + $0x430] sm:$0xff]
        %v481 = vld [vmem:[%s1 + $0x438] sm:$0xff]
        %v482 = vld [vmem:[%s1 + $0x440] sm:$0xff]
        %v483 = vld [vmem:[%s1 + $0x448] sm:$0xff]
        %v484 = vld [vmem:[%s1 + $0x450] sm:$0xff]
        %v485 = vld [vmem:[%s1 + $0x458] sm:$0xff]
        %v486 = vld [vmem:[%s1 + $0x460] sm:$0xff]
        %v487 = vld [vmem:[%s1 + $0x468] sm:$0xff]
        %v488 = vld [vmem:[%s1 + $0x470] sm:$0xff]
        %v489 = vld [vmem:[%s1 + $0x478] sm:$0xff]
        %v490 = vld [vmem:[%s1 + $0x480] sm:$0xff]
        %v491 = vld [vmem:[%s1 + $0x488] sm:$0xff]
        %v492 = vld [vmem:[%s1 + $0x490] sm:$0xff]
        %v493 = vld [vmem:[%s1 + $0x498] sm:$0xff]
        %v494 = vld [vmem:[%s1 + $0x4a0] sm:$0xff]
        %v495 = vld [vmem:[%s1 + $0x4a8] sm:$0xff]
        %v496 = vld [vmem:[%s1 + $0x4b0] sm:$0xff]
        %v497 = vld [vmem:[%s1 + $0x4b8] sm:$0xff]
        %v498 = vld [vmem:[%s1 + $0x4c0] sm:$0xff]
        %v499 = vld [vmem:[%s1 + $0x4c8] sm:$0xff]
        %v500 = vld [vmem:[%s1 + $0x4d0] sm:$0xff]
        %v501 = vld [vmem:[%s1 + $0x4d8] sm:$0xff]
        %v502 = vld [vmem:[%s1 + $0x4e0] sm:$0xff]
        %v503 = vld [vmem:[%s1 + $0x4e8] sm:$0xff]
        %v504 = vld [vmem:[%s1 + $0x4f0] sm:$0xff]
        %v505 = vld [vmem:[%s1 + $0x4f8] sm:$0xff]
        %v506 = vld [vmem:[%s1 + $0x500] sm:$0xff]
        %v507 = vld [vmem:[%s1 + $0x508] sm:$0xff]
        %v508 = vld [vmem:[%s1 + $0x510] sm:$0xff]
        %v509 = vld [vmem:[%s1 + $0x518] sm:$0xff]
        %v510 = vld [vmem:[%s1 + $0x520] sm:$0xff]
        %v511 = vld [vmem:[%s1 + $0x528] sm:$0xff]
        %v512 = vld [vmem:[%s1 + $0x530] sm:$0xff]
        %v513 = vld [vmem:[%s1 + $0x538] sm:$0xff]
        %v514 = vld [vmem:[%s1 + $0x540] sm:$0xff]
        %v515 = vld [vmem:[%s1 + $0x548] sm:$0xff]
        %v516 = vld [vmem:[%s1 + $0x550] sm:$0xff]
        %v517 = vld [vmem:[%s1 + $0x558] sm:$0xff]
        %v518 = vld [vmem:[%s1 + $0x560] sm:$0xff]
        %v519 = vld [vmem:[%s1 + $0x568] sm:$0xff]
        %v520 = vld [vmem:[%s1 + $0x570] sm:$0xff]
        %v521 = vld [vmem:[%s1 + $0x578] sm:$0xff]
        %v522 = vld [vmem:[%s1 + $0x580] sm:$0xff]
        %v523 = vld [vmem:[%s1 + $0x588] sm:$0xff]
        %v524 = vld [vmem:[%s1 + $0x590] sm:$0xff]
        %v525 = vld [vmem:[%s1 + $0x598] sm:$0xff]
        %v526 = vld [vmem:[%s1 + $0x5a0] sm:$0xff]
        %v527 = vld [vmem:[%s1 + $0x5a8] sm:$0xff]
        %v528 = vld [vmem:[%s1 + $0x5b0] sm:$0xff]
        %v529 = vld [vmem:[%s1 + $0x5b8] sm:$0xff]
        %v530 = vld [vmem:[%s1 + $0x5c0] sm:$0xff]
        %v531 = vld [vmem:[%s1 + $0x5c8] sm:$0xff]
        %v532 = vld [vmem:[%s1 + $0x5d0] sm:$0xff]
        %v533 = vld [vmem:[%s1 + $0x5d8] sm:$0xff]
        %v534 = vld [vmem:[%s1 + $0x5e0] sm:$0xff]
        %v535 = vld [vmem:[%s1 + $0x5e8] sm:$0xff]
        %v536 = vld [vmem:[%s1 + $0x5f0] sm:$0xff]
        %v537 = vld [vmem:[%s1 + $0x5f8] sm:$0xff]
        %v538 = vld [vmem:[%s1 + $0x600] sm:$0xff]
        %v539 = vld [vmem:[%s1 + $0x608] sm:$0xff]
        %v540 = vld [vmem:[%s1 + $0x610] sm:$0xff]
        %v541 = vld [vmem:[%s1 + $0x618] sm:$0xff]
        %v542 = vld [vmem:[%s1 + $0x620] sm:$0xff]
        %v543 = vld [vmem:[%s1 + $0x628] sm:$0xff]
        %v544 = vld [vmem:[%s1 + $0x630] sm:$0xff]
        %v545 = vld [vmem:[%s1 + $0x638] sm:$0xff]
        %v546 = vld [vmem:[%s1 + $0x640] sm:$0xff]
        %v547 = vld [vmem:[%s1 + $0x648] sm:$0xff]
        %v548 = vld [vmem:[%s1 + $0x650] sm:$0xff]
        %v549 = vld [vmem:[%s1 + $0x658] sm:$0xff]
        %v550 = vld [vmem:[%s1 + $0x660] sm:$0xff]
        %v551 = vld [vmem:[%s1 + $0x668] sm:$0xff]
        %v552 = vld [vmem:[%s1 + $0x670] sm:$0xff]
        %v553 = vld [vmem:[%s1 + $0x678] sm:$0xff]
        %v554 = vld [vmem:[%s1 + $0x680] sm:$0xff]
        %v555 = vld [vmem:[%s1 + $0x688] sm:$0xff]
        %v556 = vld [vmem:[%s1 + $0x690] sm:$0xff]
        %v557 = vld [vmem:[%s1 + $0x698] sm:$0xff]
        %v558 = vld [vmem:[%s1 + $0x6a0] sm:$0xff]
        %v559 = vld [vmem:[%s1 + $0x6a8] sm:$0xff]
        %v560 = vld [vmem:[%s1 + $0x6b0] sm:$0xff]
        %v561 = vld [vmem:[%s1 + $0x6b8] sm:$0xff]
        %v562 = vld [vmem:[%s1 + $0x6c0] sm:$0xff]
        %v563 = vld [vmem:[%s1 + $0x6c8] sm:$0xff]
        %v564 = vld [vmem:[%s1 + $0x6d0] sm:$0xff]
        %v565 = vld [vmem:[%s1 + $0x6d8] sm:$0xff]
        %v566 = vld [vmem:[%s1 + $0x6e0] sm:$0xff]
        %v567 = vld [vmem:[%s1 + $0x6e8] sm:$0xff]
        %v568 = vld [vmem:[%s1 + $0x6f0] sm:$0xff]
        %v569 = vld [vmem:[%s1 + $0x6f8] sm:$0xff]
        %v570 = vld [vmem:[%s1 + $0x700] sm:$0xff]
        %v571 = vld [vmem:[%s1 + $0x708] sm:$0xff]
        %v572 = vld [vmem:[%s1 + $0x710] sm:$0xff]
        %v573 = vld [vmem:[%s1 + $0x718] sm:$0xff]
        %v574 = vld [vmem:[%s1 + $0x720] sm:$0xff]
        %v575 = vld [vmem:[%s1 + $0x728] sm:$0xff]
        %v576 = vld [vmem:[%s1 + $0x730] sm:$0xff]
        %v577 = vld [vmem:[%s1 + $0x738] sm:$0xff]
        %v578 = vld [vmem:[%s1 + $0x740] sm:$0xff]
        %v579 = vld [vmem:[%s1 + $0x748] sm:$0xff]
        %v580 = vld [vmem:[%s1 + $0x750] sm:$0xff]
        %v581 = vld [vmem:[%s1 + $0x758] sm:$0xff]
        %v582 = vld [vmem:[%s1 + $0x760] sm:$0xff]
        %v583 = vld [vmem:[%s1 + $0x768] sm:$0xff]
        %v584 = vld [vmem:[%s1 + $0x770] sm:$0xff]
        %v585 = vld [vmem:[%s1 + $0x778] sm:$0xff]
        %v586 = vld [vmem:[%s1 + $0x780] sm:$0xff]
        %v587 = vld [vmem:[%s1 + $0x788] sm:$0xff]
        %v588 = vld [vmem:[%s1 + $0x790] sm:$0xff]
        %v589 = vld [vmem:[%s1 + $0x798] sm:$0xff]
        %v590 = vld [vmem:[%s1 + $0x7a0] sm:$0xff]
        %v591 = vld [vmem:[%s1 + $0x7a8] sm:$0xff]
        %v592 = vld [vmem:[%s1 + $0x7b0] sm:$0xff]
        %v593 = vld [vmem:[%s1 + $0x7b8] sm:$0xff]
        %v594 = vld [vmem:[%s1 + $0x7c0] sm:$0xff]
        %v595 = vld [vmem:[%s1 + $0x7c8] sm:$0xff]
        %v596 = vld [vmem:[%s1 + $0x7d0] sm:$0xff]
        %v597 = vld [vmem:[%s1 + $0x7d8] sm:$0xff]
        %v598 = vld [vmem:[%s1 + $0x7e0] sm:$0xff]
        %v599 = vld [vmem:[%s1 + $0x7e8] sm:$0xff]
        %v600 = vld [vmem:[%s1 + $0x7f0] sm:$0xff]
        %v601 = vld [vmem:[%s1 + $0x7f8] sm:$0xff]
        %v602 = vld [vmem:[%s1 + $0x800] sm:$0xff]
        %v603 = vld [vmem:[%s1 + $0x808] sm:$0xff]
        %v604 = vld [vmem:[%s1 + $0x810] sm:$0xff]
        %v605 = vld [vmem:[%s1 + $0x818] sm:$0xff]
        %v606 = vld [vmem:[%s1 + $0x820] sm:$0xff]
        %v607 = vld [vmem:[%s1 + $0x828] sm:$0xff]
        %v608 = vld [vmem:[%s1 + $0x830] sm:$0xff]
        %v609 = vld [vmem:[%s1 + $0x838] sm:$0xff]
        %v610 = vld [vmem:[%s1 + $0x840] sm:$0xff]
        %v611 = vld [vmem:[%s1 + $0x848] sm:$0xff]
        %v612 = vld [vmem:[%s1 + $0x850] sm:$0xff]
        %v613 = vld [vmem:[%s1 + $0x858] sm:$0xff]
        %v614 = vld [vmem:[%s1 + $0x860] sm:$0xff]
        %v615 = vld [vmem:[%s1 + $0x868] sm:$0xff]
        %v616 = vld [vmem:[%s1 + $0x870] sm:$0xff]
        %v617 = vld [vmem:[%s1 + $0x878] sm:$0xff]
        %v618 = vld [vmem:[%s1 + $0x880] sm:$0xff]
        %v619 = vld [vmem:[%s1 + $0x888] sm:$0xff]
        %v620 = vld [vmem:[%s1 + $0x890] sm:$0xff]
        %v621 = vld [vmem:[%s1 + $0x898] sm:$0xff]
        %v622 = vld [vmem:[%s1 + $0x8a0] sm:$0xff]
        %v623 = vld [vmem:[%s1 + $0x8a8] sm:$0xff]
        %v624 = vld [vmem:[%s1 + $0x8b0] sm:$0xff]
        %v625 = vld [vmem:[%s1 + $0x8b8] sm:$0xff]
        %v626 = vld [vmem:[%s1 + $0x8c0] sm:$0xff]
        %v627 = vld [vmem:[%s1 + $0x8c8] sm:$0xff]
        %v628 = vld [vmem:[%s1 + $0x8d0] sm:$0xff]
        %v629 = vld [vmem:[%s1 + $0x8d8] sm:$0xff]
        %v630 = vld [vmem:[%s1 + $0x8e0] sm:$0xff]
        %v631 = vld [vmem:[%s1 + $0x8e8] sm:$0xff]
        %v632 = vld [vmem:[%s1 + $0x8f0] sm:$0xff]
        %v633 = vld [vmem:[%s1 + $0x8f8] sm:$0xff]
        %v634 = vld [vmem:[%s1 + $0x900] sm:$0xff]
        %v635 = vld [vmem:[%s1 + $0x908] sm:$0xff]
        %v636 = vld [vmem:[%s1 + $0x910] sm:$0xff]
        %v637 = vld [vmem:[%s1 + $0x918] sm:$0xff]
        %v638 = vld [vmem:[%s1 + $0x920] sm:$0xff]
        %v639 = vld [vmem:[%s1 + $0x928] sm:$0xff]
        %v640 = vld [vmem:[%s1 + $0x930] sm:$0xff]
        %v641 = vld [vmem:[%s1 + $0x938] sm:$0xff]
        %v642 = vld [vmem:[%s1 + $0x940] sm:$0xff]
        %v643 = vld [vmem:[%s1 + $0x948] sm:$0xff]
        %v644 = vld [vmem:[%s1 + $0x950] sm:$0xff]
        %v645 = vld [vmem:[%s1 + $0x958] sm:$0xff]
        %v646 = vld [vmem:[%s1 + $0x960] sm:$0xff]
        %v647 = vld [vmem:[%s1 + $0x968] sm:$0xff]
        %v648 = vld [vmem:[%s1 + $0x970] sm:$0xff]
        %v649 = vld [vmem:[%s1 + $0x978] sm:$0xff]
        %v650 = vld [vmem:[%s1 + $0x980] sm:$0xff]
        %v651 = vld [vmem:[%s1 + $0x988] sm:$0xff]
        %v652 = vld [vmem:[%s1 + $0x990] sm:$0xff]
        %v653 = vld [vmem:[%s1 + $0x998] sm:$0xff]
        %v654 = vld [vmem:[%s1 + $0x9a0] sm:$0xff]
        %v655 = vld [vmem:[%s1 + $0x9a8] sm:$0xff]
        %v656 = vld [vmem:[%s1 + $0x9b0] sm:$0xff]
        %v657 = vld [vmem:[%s1 + $0x9b8] sm:$0xff]
        %v658 = vld [vmem:[%s1 + $0x9c0] sm:$0xff]
        %v659 = vld [vmem:[%s1 + $0x9c8] sm:$0xff]
        %v660 = vld [vmem:[%s1 + $0x9d0] sm:$0xff]
        %v661 = vld [vmem:[%s1 + $0x9d8] sm:$0xff]
        %v662 = vld [vmem:[%s1 + $0x9e0] sm:$0xff]
        %v663 = vld [vmem:[%s1 + $0x9e8] sm:$0xff]
        %v664 = vld [vmem:[%s1 + $0x9f0] sm:$0xff]
        %v665 = vld [vmem:[%s1 + $0x9f8] sm:$0xff]
        %v666 = vld [vmem:[%s1 + $0xa00] sm:$0xff]
        %v667 = vld [vmem:[%s1 + $0xa08] sm:$0xff]
        %v668 = vld [vmem:[%s1 + $0xa10] sm:$0xff]
        %v669 = vld [vmem:[%s1 + $0xa18] sm:$0xff]
        %v670 = vld [vmem:[%s1 + $0xa20] sm:$0xff]
        %v671 = vld [vmem:[%s1 + $0xa28] sm:$0xff]
        %v672 = vld [vmem:[%s1 + $0xa30] sm:$0xff]
        %v673 = vld [vmem:[%s1 + $0xa38] sm:$0xff]
        %v674 = vld [vmem:[%s1 + $0xa40] sm:$0xff]
        %v675 = vld [vmem:[%s1 + $0xa48] sm:$0xff]
        %v676 = vld [vmem:[%s1 + $0xa50] sm:$0xff]
        %v677 = vld [vmem:[%s1 + $0xa58] sm:$0xff]
        %v678 = vld [vmem:[%s1 + $0xa60] sm:$0xff]
        %v679 = vld [vmem:[%s1 + $0xa68] sm:$0xff]
        %v680 = vld [vmem:[%s1 + $0xa70] sm:$0xff]
        %v681 = vld [vmem:[%s1 + $0xa78] sm:$0xff]
        %v682 = vld [vmem:[%s1 + $0xa80] sm:$0xff]
        %v683 = vld [vmem:[%s1 + $0xa88] sm:$0xff]
        %v684 = vld [vmem:[%s1 + $0xa90] sm:$0xff]
        %v685 = vld [vmem:[%s1 + $0xa98] sm:$0xff]
        %v686 = vld [vmem:[%s1 + $0xaa0] sm:$0xff]
        %v687 = vld [vmem:[%s1 + $0xaa8] sm:$0xff]
        %v688 = vld [vmem:[%s1 + $0xab0] sm:$0xff]
        %v689 = vld [vmem:[%s1 + $0xab8] sm:$0xff]
        %v690 = vld [vmem:[%s1 + $0xac0] sm:$0xff]
        %v691 = vld [vmem:[%s1 + $0xac8] sm:$0xff]
        %v692 = vld [vmem:[%s1 + $0xad0] sm:$0xff]
        %v693 = vld [vmem:[%s1 + $0xad8] sm:$0xff]
        %v694 = vld [vmem:[%s1 + $0xae0] sm:$0xff]
        %v695 = vld [vmem:[%s1 + $0xae8] sm:$0xff]
        %v696 = vld [vmem:[%s1 + $0xaf0] sm:$0xff]
        %v697 = vld [vmem:[%s1 + $0xaf8] sm:$0xff]
        %v698 = vld [vmem:[%s1 + $0xb00] sm:$0xff]
        %v699 = vld [vmem:[%s1 + $0xb08] sm:$0xff]
        %v700 = vld [vmem:[%s1 + $0xb10] sm:$0xff]
        %v701 = vld [vmem:[%s1 + $0xb18] sm:$0xff]
        %v702 = vld [vmem:[%s1 + $0xb20] sm:$0xff]
        %v703 = vld [vmem:[%s1 + $0xb28] sm:$0xff]
        %v704 = vld [vmem:[%s1 + $0xb30] sm:$0xff]
        %v705 = vld [vmem:[%s1 + $0xb38] sm:$0xff]
        %v706 = vld [vmem:[%s1 + $0xb40] sm:$0xff]
        %v707 = vld [vmem:[%s1 + $0xb48] sm:$0xff]
        %v708 = vld [vmem:[%s1 + $0xb50] sm:$0xff]
        %v709 = vld [vmem:[%s1 + $0xb58] sm:$0xff]
        %v710 = vld [vmem:[%s1 + $0xb60] sm:$0xff]
        %v711 = vld [vmem:[%s1 + $0xb68] sm:$0xff]
        %v712 = vld [vmem:[%s1 + $0xb70] sm:$0xff]
        %v713 = vld [vmem:[%s1 + $0xb78] sm:$0xff]
        %v714 = vld [vmem:[%s1 + $0xb80] sm:$0xff]
        %v715 = vld [vmem:[%s1 + $0xb88] sm:$0xff]
        %v716 = vld [vmem:[%s1 + $0xb90] sm:$0xff]
        %v717 = vld [vmem:[%s1 + $0xb98] sm:$0xff]
        %v718 = vld [vmem:[%s1 + $0xba0] sm:$0xff]
        %v719 = vld [vmem:[%s1 + $0xba8] sm:$0xff]
        %v720 = vld [vmem:[%s1 + $0xbb0] sm:$0xff]
        %v721 = vld [vmem:[%s1 + $0xbb8] sm:$0xff]
        %v722 = vld [vmem:[%s1 + $0xbc0] sm:$0xff]
        %v723 = vld [vmem:[%s1 + $0xbc8] sm:$0xff]
        %v724 = vld [vmem:[%s1 + $0xbd0] sm:$0xff]
        %v725 = vld [vmem:[%s1 + $0xbd8] sm:$0xff]
        %v726 = vld [vmem:[%s1 + $0xbe0] sm:$0xff]
        %v727 = vld [vmem:[%s1 + $0xbe8] sm:$0xff]
        %v728 = vld [vmem:[%s1 + $0xbf0] sm:$0xff]
        %v729 = vld [vmem:[%s1 + $0xbf8] sm:$0xff]
        %v730 = vld [vmem:[%s1 + $0xc00] sm:$0xff]
        %v731 = vld [vmem:[%s1 + $0xc08] sm:$0xff]
        %v732 = vld [vmem:[%s1 + $0xc10] sm:$0xff]
        %v733 = vld [vmem:[%s1 + $0xc18] sm:$0xff]
        %v734 = vld [vmem:[%s1 + $0xc20] sm:$0xff]
        %v735 = vld [vmem:[%s1 + $0xc28] sm:$0xff]
        %v736 = vld [vmem:[%s1 + $0xc30] sm:$0xff]
        %v737 = vld [vmem:[%s1 + $0xc38] sm:$0xff]
        %v738 = vld [vmem:[%s1 + $0xc40] sm:$0xff]
        %v739 = vld [vmem:[%s1 + $0xc48] sm:$0xff]
        %v740 = vld [vmem:[%s1 + $0xc50] sm:$0xff]
        %v741 = vld [vmem:[%s1 + $0xc58] sm:$0xff]
        %v742 = vld [vmem:[%s1 + $0xc60] sm:$0xff]
        %v743 = vld [vmem:[%s1 + $0xc68] sm:$0xff]
        %v744 = vld [vmem:[%s1 + $0xc70] sm:$0xff]
        %v745 = vld [vmem:[%s1 + $0xc78] sm:$0xff]
        %v746 = vld [vmem:[%s1 + $0xc80] sm:$0xff]
        %v747 = vld [vmem:[%s1 + $0xc88] sm:$0xff]
        %v748 = vld [vmem:[%s1 + $0xc90] sm:$0xff]
        %v749 = vld [vmem:[%s1 + $0xc98] sm:$0xff]
        %v750 = vld [vmem:[%s1 + $0xca0] sm:$0xff]
        %v751 = vld [vmem:[%s1 + $0xca8] sm:$0xff]
        %v752 = vld [vmem:[%s1 + $0xcb0] sm:$0xff]
        %v753 = vld [vmem:[%s1 + $0xcb8] sm:$0xff]
        %v754 = vld [vmem:[%s1 + $0xcc0] sm:$0xff]
        %v755 = vld [vmem:[%s1 + $0xcc8] sm:$0xff]
        %v756 = vld [vmem:[%s1 + $0xcd0] sm:$0xff]
        %v757 = vld [vmem:[%s1 + $0xcd8] sm:$0xff]
        %v758 = vld [vmem:[%s1 + $0xce0] sm:$0xff]
        %v759 = vld [vmem:[%s1 + $0xce8] sm:$0xff]
        %v760 = vld [vmem:[%s1 + $0xcf0] sm:$0xff]
        %v761 = vld [vmem:[%s1 + $0xcf8] sm:$0xff]
        %v762 = vld [vmem:[%s1 + $0xd00] sm:$0xff]
        %v763 = vld [vmem:[%s1 + $0xd08] sm:$0xff]
        %v764 = vld [vmem:[%s1 + $0xd10] sm:$0xff]
        %v765 = vld [vmem:[%s1 + $0xd18] sm:$0xff]
        %v766 = vld [vmem:[%s1 + $0xd20] sm:$0xff]
        %v767 = vld [vmem:[%s1 + $0xd28] sm:$0xff]
        %v768 = vld [vmem:[%s1 + $0xd30] sm:$0xff]
        %v769 = vld [vmem:[%s1 + $0xd38] sm:$0xff]
        %v770 = vld [vmem:[%s1 + $0xd40] sm:$0xff]
        %v771 = vld [vmem:[%s1 + $0xd48] sm:$0xff]
        %v772 = vld [vmem:[%s1 + $0xd50] sm:$0xff]
        %v773 = vld [vmem:[%s1 + $0xd58] sm:$0xff]
        %v774 = vld [vmem:[%s1 + $0xd60] sm:$0xff]
        %v775 = vld [vmem:[%s1 + $0xd68] sm:$0xff]
        %v776 = vld [vmem:[%s1 + $0xd70] sm:$0xff]
        %v777 = vld [vmem:[%s1 + $0xd78] sm:$0xff]
        %v778 = vld [vmem:[%s1 + $0xd80] sm:$0xff]
        %v779 = vld [vmem:[%s1 + $0xd88] sm:$0xff]
        %v780 = vld [vmem:[%s1 + $0xd90] sm:$0xff]
        %v781 = vld [vmem:[%s1 + $0xd98] sm:$0xff]
        %v782 = vld [vmem:[%s1 + $0xda0] sm:$0xff]
        %v783 = vld [vmem:[%s1 + $0xda8] sm:$0xff]
        %v784 = vld [vmem:[%s1 + $0xdb0] sm:$0xff]
        %v785 = vld [vmem:[%s1 + $0xdb8] sm:$0xff]
        %v786 = vld [vmem:[%s1 + $0xdc0] sm:$0xff]
        %v787 = vld [vmem:[%s1 + $0xdc8] sm:$0xff]
        %v788 = vld [vmem:[%s1 + $0xdd0] sm:$0xff]
        %v789 = vld [vmem:[%s1 + $0xdd8] sm:$0xff]
        %v790 = vld [vmem:[%s1 + $0xde0] sm:$0xff]
        %v791 = vld [vmem:[%s1 + $0xde8] sm:$0xff]
        %v792 = vld [vmem:[%s1 + $0xdf0] sm:$0xff]
        %v793 = vld [vmem:[%s1 + $0xdf8] sm:$0xff]
        %v794 = vld [vmem:[%s1 + $0xe00] sm:$0xff]
        %v795 = vld [vmem:[%s1 + $0xe08] sm:$0xff]
        %v796 = vld [vmem:[%s1 + $0xe10] sm:$0xff]
        %v797 = vld [vmem:[%s1 + $0xe18] sm:$0xff]
        %v798 = vld [vmem:[%s1 + $0xe20] sm:$0xff]
        %v799 = vld [vmem:[%s1 + $0xe28] sm:$0xff]
        %v800 = vld [vmem:[%s1 + $0xe30] sm:$0xff]
        %v801 = vld [vmem:[%s1 + $0xe38] sm:$0xff]
        %v802 = vld [vmem:[%s1 + $0xe40] sm:$0xff]
        %v803 = vld [vmem:[%s1 + $0xe48] sm:$0xff]
        %v804 = vld [vmem:[%s1 + $0xe50] sm:$0xff]
        %v805 = vld [vmem:[%s1 + $0xe58] sm:$0xff]
        %v806 = vld [vmem:[%s1 + $0xe60] sm:$0xff]
        %v807 = vld [vmem:[%s1 + $0xe68] sm:$0xff]
        %v808 = vld [vmem:[%s1 + $0xe70] sm:$0xff]
        %v809 = vld [vmem:[%s1 + $0xe78] sm:$0xff]
        %v810 = vld [vmem:[%s1 + $0xe80] sm:$0xff]
        %v811 = vld [vmem:[%s1 + $0xe88] sm:$0xff]
        %v812 = vld [vmem:[%s1 + $0xe90] sm:$0xff]
        %v813 = vld [vmem:[%s1 + $0xe98] sm:$0xff]
        %v814 = vld [vmem:[%s1 + $0xea0] sm:$0xff]
        %v815 = vld [vmem:[%s1 + $0xea8] sm:$0xff]
        %v816 = vld [vmem:[%s1 + $0xeb0] sm:$0xff]
        %v817 = vld [vmem:[%s1 + $0xeb8] sm:$0xff]
        %v818 = vld [vmem:[%s1 + $0xec0] sm:$0xff]
        %v819 = vld [vmem:[%s1 + $0xec8] sm:$0xff]
        %v820 = vld [vmem:[%s1 + $0xed0] sm:$0xff]
        %v821 = vld [vmem:[%s1 + $0xed8] sm:$0xff]
        %v822 = vld [vmem:[%s1 + $0xee0] sm:$0xff]
        %v823 = vld [vmem:[%s1 + $0xee8] sm:$0xff]
        %v824 = vld [vmem:[%s1 + $0xef0] sm:$0xff]
        %v825 = vld [vmem:[%s1 + $0xef8] sm:$0xff]
        %v826 = vld [vmem:[%s1 + $0xf00] sm:$0xff]
        %v827 = vld [vmem:[%s1 + $0xf08] sm:$0xff]
        %v828 = vld [vmem:[%s1 + $0xf10] sm:$0xff]
        %v829 = vld [vmem:[%s1 + $0xf18] sm:$0xff]
        %v830 = vld [vmem:[%s1 + $0xf20] sm:$0xff]
        %v831 = vld [vmem:[%s1 + $0xf28] sm:$0xff]
        %v832 = vld [vmem:[%s1 + $0xf30] sm:$0xff]
        %v833 = vld [vmem:[%s1 + $0xf38] sm:$0xff]
        %v834 = vld [vmem:[%s1 + $0xf40] sm:$0xff]
        %v835 = vld [vmem:[%s1 + $0xf48] sm:$0xff]
        %v836 = vld [vmem:[%s1 + $0xf50] sm:$0xff]
        %v837 = vld [vmem:[%s1 + $0xf58] sm:$0xff]
        %v838 = vld [vmem:[%s1 + $0xf60] sm:$0xff]
        %v839 = vld [vmem:[%s1 + $0xf68] sm:$0xff]
        %v840 = vld [vmem:[%s1 + $0xf70] sm:$0xff]
        %v841 = vld [vmem:[%s1 + $0xf78] sm:$0xff]
        %v842 = vld [vmem:[%s1 + $0xf80] sm:$0xff]
        %v843 = vld [vmem:[%s1 + $0xf88] sm:$0xff]
        %v844 = vld [vmem:[%s1 + $0xf90] sm:$0xff]
        %v845 = vld [vmem:[%s1 + $0xf98] sm:$0xff]
        %v846 = vld [vmem:[%s1 + $0xfa0] sm:$0xff]
        %v847 = vld [vmem:[%s1 + $0xfa8] sm:$0xff]
        %v848 = vld [vmem:[%s1 + $0xfb0] sm:$0xff]
        %v849 = vld [vmem:[%s1 + $0xfb8] sm:$0xff]
        %v850 = vld [vmem:[%s1 + $0xfc0] sm:$0xff]
        %v851 = vld [vmem:[%s1 + $0xfc8] sm:$0xff]
        %v852 = vld [vmem:[%s1 + $0xfd0] sm:$0xff]
        %v853 = vld [vmem:[%s1 + $0xfd8] sm:$0xff]
        %v854 = vld [vmem:[%s1 + $0xfe0] sm:$0xff]
        %v855 = vld [vmem:[%s1 + $0xfe8] sm:$0xff]
        %v856 = vld [vmem:[%s1 + $0xff0] sm:$0xff]
        %v857 = vld [vmem:[%s1 + $0xff8] sm:$0xff]
        %v858 = vld [vmem:[%s1 + $0x1000] sm:$0xff]
        %v859 = vld [vmem:[%s1 + $0x1008] sm:$0xff]
        %v860 = vld [vmem:[%s1 + $0x1010] sm:$0xff]
        %v861 = vld [vmem:[%s1 + $0x1018] sm:$0xff]
        %v862 = vld [vmem:[%s1 + $0x1020] sm:$0xff]
        %v863 = vld [vmem:[%s1 + $0x1028] sm:$0xff]
        %v864 = vld [vmem:[%s1 + $0x1030] sm:$0xff]
        %v865 = vld [vmem:[%s1 + $0x1038] sm:$0xff]
        %v866 = vld [vmem:[%s1 + $0x1040] sm:$0xff]
        %v867 = vld [vmem:[%s1 + $0x1048] sm:$0xff]
        %v868 = vld [vmem:[%s1 + $0x1050] sm:$0xff]
        %v869 = vld [vmem:[%s1 + $0x1058] sm:$0xff]
        %v870 = vld [vmem:[%s1 + $0x1060] sm:$0xff]
        %v871 = vld [vmem:[%s1 + $0x1068] sm:$0xff]
        %v872 = vld [vmem:[%s1 + $0x1070] sm:$0xff]
        %v873 = vld [vmem:[%s1 + $0x1078] sm:$0xff]
        %v874 = vld [vmem:[%s1 + $0x1080] sm:$0xff]
        %v875 = vld [vmem:[%s1 + $0x1088] sm:$0xff]
        %v876 = vld [vmem:[%s1 + $0x1090] sm:$0xff]
        %v877 = vld [vmem:[%s1 + $0x1098] sm:$0xff]
        %v878 = vld [vmem:[%s1 + $0x10a0] sm:$0xff]
        %v879 = vld [vmem:[%s1 + $0x10a8] sm:$0xff]
        %v880 = vld [vmem:[%s1 + $0x10b0] sm:$0xff]
        %v881 = vld [vmem:[%s1 + $0x10b8] sm:$0xff]
        %v882 = vld [vmem:[%s1 + $0x10c0] sm:$0xff]
        %v883 = vld [vmem:[%s1 + $0x10c8] sm:$0xff]
        %v884 = vld [vmem:[%s1 + $0x10d0] sm:$0xff]
        %v885 = vld [vmem:[%s1 + $0x10d8] sm:$0xff]
        %v886 = vld [vmem:[%s1 + $0x10e0] sm:$0xff]
        %v887 = vld [vmem:[%s1 + $0x10e8] sm:$0xff]
        %v888 = vld [vmem:[%s1 + $0x10f0] sm:$0xff]
        %v889 = vld [vmem:[%s1 + $0x10f8] sm:$0xff]
        %v890 = vld [vmem:[%s1 + $0x1100] sm:$0xff]
        %v891 = vld [vmem:[%s1 + $0x1108] sm:$0xff]
        %v892 = vld [vmem:[%s1 + $0x1110] sm:$0xff]
        %v893 = vld [vmem:[%s1 + $0x1118] sm:$0xff]
        %v894 = vld [vmem:[%s1 + $0x1120] sm:$0xff]
        %v895 = vld [vmem:[%s1 + $0x1128] sm:$0xff]
        %v896 = vld [vmem:[%s1 + $0x1130] sm:$0xff]
        %v897 = vld [vmem:[%s1 + $0x1138] sm:$0xff]
        %v898 = vld [vmem:[%s1 + $0x1140] sm:$0xff]
        %v899 = vld [vmem:[%s1 + $0x1148] sm:$0xff]
        %v900 = vld [vmem:[%s1 + $0x1150] sm:$0xff]
        %v901 = vld [vmem:[%s1 + $0x1158] sm:$0xff]
        %v902 = vld [vmem:[%s1 + $0x1160] sm:$0xff]
        %v903 = vld [vmem:[%s1 + $0x1168] sm:$0xff]
        %v904 = vld [vmem:[%s1 + $0x1170] sm:$0xff]
        %v905 = vld [vmem:[%s1 + $0x1178] sm:$0xff]
        %v906 = vld [vmem:[%s1 + $0x1180] sm:$0xff]
        %v907 = vld [vmem:[%s1 + $0x1188] sm:$0xff]
        %v908 = vld [vmem:[%s1 + $0x1190] sm:$0xff]
        %v909 = vld [vmem:[%s1 + $0x1198] sm:$0xff]
        %v910 = vld [vmem:[%s1 + $0x11a0] sm:$0xff]
        %v911 = vld [vmem:[%s1 + $0x11a8] sm:$0xff]
        %v912 = vld [vmem:[%s1 + $0x11b0] sm:$0xff]
        %v913 = vld [vmem:[%s1 + $0x11b8] sm:$0xff]
        %v914 = vld [vmem:[%s1 + $0x11c0] sm:$0xff]
        %v915 = vld [vmem:[%s1 + $0x11c8] sm:$0xff]
        %v916 = vld [vmem:[%s1 + $0x11d0] sm:$0xff]
        %v917 = vld [vmem:[%s1 + $0x11d8] sm:$0xff]
        %v918 = vld [vmem:[%s1 + $0x11e0] sm:$0xff]
        %v919 = vld [vmem:[%s1 + $0x11e8] sm:$0xff]
        %v920 = vld [vmem:[%s1 + $0x11f0] sm:$0xff]
        %v921 = vld [vmem:[%s1 + $0x11f8] sm:$0xff]
        %v922 = vld [vmem:[%s1 + $0x1200] sm:$0xff]
        %v923 = vld [vmem:[%s1 + $0x1208] sm:$0xff]
        %v924 = vld [vmem:[%s1 + $0x1210] sm:$0xff]
        %v925 = vld [vmem:[%s1 + $0x1218] sm:$0xff]
        %v926 = vld [vmem:[%s1 + $0x1220] sm:$0xff]
        %v927 = vld [vmem:[%s1 + $0x1228] sm:$0xff]
        %v928 = vld [vmem:[%s1 + $0x1230] sm:$0xff]
        %v929 = vld [vmem:[%s1 + $0x1238] sm:$0xff]
        %v930 = vld [vmem:[%s1 + $0x1240] sm:$0xff]
        %v931 = vld [vmem:[%s1 + $0x1248] sm:$0xff]
        %v932 = vld [vmem:[%s1 + $0x1250] sm:$0xff]
        %v933 = vld [vmem:[%s1 + $0x1258] sm:$0xff]
        %v934 = vld [vmem:[%s1 + $0x1260] sm:$0xff]
        %v935 = vld [vmem:[%s1 + $0x1268] sm:$0xff]
        %v936 = vld [vmem:[%s1 + $0x1270] sm:$0xff]
        %v937 = vld [vmem:[%s1 + $0x1278] sm:$0xff]
        %v938 = vld [vmem:[%s1 + $0x1280] sm:$0xff]
        %v939 = vld [vmem:[%s1 + $0x1288] sm:$0xff]
        %v940 = vld [vmem:[%s1 + $0x1290] sm:$0xff]
        %v941 = vld [vmem:[%s1 + $0x1298] sm:$0xff]
        %v942 = vld [vmem:[%s1 + $0x12a0] sm:$0xff]
        %v943 = vld [vmem:[%s1 + $0x12a8] sm:$0xff]
        %v944 = vld [vmem:[%s1 + $0x12b0] sm:$0xff]
        %v945 = vld [vmem:[%s1 + $0x12b8] sm:$0xff]
        %v946 = vld [vmem:[%s1 + $0x12c0] sm:$0xff]
        %v947 = vld [vmem:[%s1 + $0x12c8] sm:$0xff]
        %v948 = vld [vmem:[%s1 + $0x12d0] sm:$0xff]
        %v949 = vld [vmem:[%s1 + $0x12d8] sm:$0xff]
        %v950 = vld [vmem:[%s1 + $0x12e0] sm:$0xff]
        %v951 = vld [vmem:[%s1 + $0x12e8] sm:$0xff]
        %v952 = vld [vmem:[%s1 + $0x12f0] sm:$0xff]
        %v953 = vld [vmem:[%s1 + $0x12f8] sm:$0xff]
        %v954 = vld [vmem:[%s1 + $0x1300] sm:$0xff]
        %v955 = vld [vmem:[%s1 + $0x1308] sm:$0xff]
        %v956 = vld [vmem:[%s1 + $0x1310] sm:$0xff]
        %v957 = vld [vmem:[%s1 + $0x1318] sm:$0xff]
        %v958 = vld [vmem:[%s1 + $0x1320] sm:$0xff]
        %v959 = vld [vmem:[%s1 + $0x1328] sm:$0xff]
        %v960 = vld [vmem:[%s1 + $0x1330] sm:$0xff]
        %v961 = vld [vmem:[%s1 + $0x1338] sm:$0xff]
        %v962 = vld [vmem:[%s1 + $0x1340] sm:$0xff]
        %v963 = vld [vmem:[%s1 + $0x1348] sm:$0xff]
        %v964 = vld [vmem:[%s1 + $0x1350] sm:$0xff]
        %v965 = vld [vmem:[%s1 + $0x1358] sm:$0xff]
        %v966 = vld [vmem:[%s1 + $0x1360] sm:$0xff]
        %v967 = vld [vmem:[%s1 + $0x1368] sm:$0xff]
        %v968 = vld [vmem:[%s1 + $0x1370] sm:$0xff]
        %v969 = vld [vmem:[%s1 + $0x1378] sm:$0xff]
        %v970 = vld [vmem:[%s1 + $0x1380] sm:$0xff]
        %v971 = vld [vmem:[%s1 + $0x1388] sm:$0xff]
        %v972 = vld [vmem:[%s1 + $0x1390] sm:$0xff]
        %v973 = vld [vmem:[%s1 + $0x1398] sm:$0xff]
        %v974 = vld [vmem:[%s1 + $0x13a0] sm:$0xff]
        %v975 = vld [vmem:[%s1 + $0x13a8] sm:$0xff]
        %v976 = vld [vmem:[%s1 + $0x13b0] sm:$0xff]
        %v977 = vld [vmem:[%s1 + $0x13b8] sm:$0xff]
        %v978 = vld [vmem:[%s1 + $0x13c0] sm:$0xff]
        %v979 = vld [vmem:[%s1 + $0x13c8] sm:$0xff]
        %v980 = vld [vmem:[%s1 + $0x13d0] sm:$0xff]
        %v981 = vld [vmem:[%s1 + $0x13d8] sm:$0xff]
        %v982 = vld [vmem:[%s1 + $0x13e0] sm:$0xff]
        %v983 = vld [vmem:[%s1 + $0x13e8] sm:$0xff]
        %v984 = vld [vmem:[%s1 + $0x13f0] sm:$0xff]
        %v985 = vld [vmem:[%s1 + $0x13f8] sm:$0xff]
        %v986 = vld [vmem:[%s1 + $0x1400] sm:$0xff]
        %v987 = vld [vmem:[%s1 + $0x1408] sm:$0xff]
        %v988 = vld [vmem:[%s1 + $0x1410] sm:$0xff]
        %v989 = vld [vmem:[%s1 + $0x1418] sm:$0xff]
        %v990 = vld [vmem:[%s1 + $0x1420] sm:$0xff]
        %v991 = vld [vmem:[%s1 + $0x1428] sm:$0xff]
        %v992 = vld [vmem:[%s1 + $0x1430] sm:$0xff]
        %v993 = vld [vmem:[%s1 + $0x1438] sm:$0xff]
        %v994 = vld [vmem:[%s1 + $0x1440] sm:$0xff]
        %v995 = vld [vmem:[%s1 + $0x1448] sm:$0xff]
        %v996 = vld [vmem:[%s1 + $0x1450] sm:$0xff]
        %v997 = vld [vmem:[%s1 + $0x1458] sm:$0xff]
        %v998 = vld [vmem:[%s1 + $0x1460] sm:$0xff]
        %v999 = vld [vmem:[%s1 + $0x1468] sm:$0xff]
        %v1000 = vld [vmem:[%s1 + $0x1470] sm:$0xff]
        %v1001 = vld [vmem:[%s1 + $0x1478] sm:$0xff]
        %v1002 = vld [vmem:[%s1 + $0x1480] sm:$0xff]
        %v1003 = vld [vmem:[%s1 + $0x1488] sm:$0xff]
        %v1004 = vld [vmem:[%s1 + $0x1490] sm:$0xff]
        %v1005 = vld [vmem:[%s1 + $0x1498] sm:$0xff]
        %v1006 = vld [vmem:[%s1 + $0x14a0] sm:$0xff]
        %v1007 = vld [vmem:[%s1 + $0x14a8] sm:$0xff]
        %v1008 = vld [vmem:[%s1 + $0x14b0] sm:$0xff]
        %v1009 = vld [vmem:[%s1 + $0x14b8] sm:$0xff]
        %v1010 = vld [vmem:[%s1 + $0x14c0] sm:$0xff]
        %v1011 = vld [vmem:[%s1 + $0x14c8] sm:$0xff]
        %v1012 = vld [vmem:[%s1 + $0x14d0] sm:$0xff]
        %v1013 = vld [vmem:[%s1 + $0x14d8] sm:$0xff]
        %v1014 = vld [vmem:[%s1 + $0x14e0] sm:$0xff]
        %v1015 = vld [vmem:[%s1 + $0x14e8] sm:$0xff]
        %v1016 = vld [vmem:[%s1 + $0x14f0] sm:$0xff]
        %v1017 = vld [vmem:[%s1 + $0x14f8] sm:$0xff]
        %v1018 = vld [vmem:[%s1 + $0x1500] sm:$0xff]
        %v1019 = vld [vmem:[%s1 + $0x1508] sm:$0xff]
        %v1020 = vld [vmem:[%s1 + $0x1510] sm:$0xff]
        %v1021 = vld [vmem:[%s1 + $0x1518] sm:$0xff]
        %v1022 = vld [vmem:[%s1 + $0x1520] sm:$0xff]
        %v1023 = vld [vmem:[%s1 + $0x1528] sm:$0xff]
        %v1024 = vld [vmem:[%s1 + $0x1530] sm:$0xff]
        %v1025 = vld [vmem:[%s1 + $0x1538] sm:$0xff]
        %v1026 = vld [vmem:[%s1 + $0x1540] sm:$0xff]
        %v1027 = vld [vmem:[%s1 + $0x1548] sm:$0xff]
        %v1028 = vld [vmem:[%s1 + $0x1550] sm:$0xff]
        %v1029 = vld [vmem:[%s1 + $0x1558] sm:$0xff]
        %v1030 = vld [vmem:[%s1 + $0x1560] sm:$0xff]
        %v1031 = vld [vmem:[%s1 + $0x1568] sm:$0xff]
        %v1032 = vld [vmem:[%s1 + $0x1570] sm:$0xff]
        %v1033 = vld [vmem:[%s1 + $0x1578] sm:$0xff]
        %v1034 = vld [vmem:[%s1 + $0x1580] sm:$0xff]
        %v1035 = vld [vmem:[%s1 + $0x1588] sm:$0xff]
        %v1036 = vld [vmem:[%s1 + $0x1590] sm:$0xff]
        %v1037 = vld [vmem:[%s1 + $0x1598] sm:$0xff]
        %v1038 = vld [vmem:[%s1 + $0x15a0] sm:$0xff]
        %v1039 = vld [vmem:[%s1 + $0x15a8] sm:$0xff]
        %v1040 = vld [vmem:[%s1 + $0x15b0] sm:$0xff]
        %v1041 = vld [vmem:[%s1 + $0x15b8] sm:$0xff]
        %v1042 = vld [vmem:[%s1 + $0x15c0] sm:$0xff]
        %v1043 = vld [vmem:[%s1 + $0x15c8] sm:$0xff]
        %v1044 = vld [vmem:[%s1 + $0x15d0] sm:$0xff]
        %v1045 = vld [vmem:[%s1 + $0x15d8] sm:$0xff]
        %v1046 = vld [vmem:[%s1 + $0x15e0] sm:$0xff]
        %v1047 = vld [vmem:[%s1 + $0x15e8] sm:$0xff]
        %v1048 = vld [vmem:[%s1 + $0x15f0] sm:$0xff]
        %v1049 = vld [vmem:[%s1 + $0x15f8] sm:$0xff]
        %v1050 = vld [vmem:[%s1 + $0x1600] sm:$0xff]
        %v1051 = vld [vmem:[%s1 + $0x1608] sm:$0xff]
        %v1052 = vld [vmem:[%s1 + $0x1610] sm:$0xff]
        %v1053 = vld [vmem:[%s1 + $0x1618] sm:$0xff]
        %v1054 = vld [vmem:[%s1 + $0x1620] sm:$0xff]
        %v1055 = vld [vmem:[%s1 + $0x1628] sm:$0xff]
        %v1056 = vld [vmem:[%s1 + $0x1630] sm:$0xff]
        %v1057 = vld [vmem:[%s1 + $0x1638] sm:$0xff]
        %v1058 = vld [vmem:[%s1 + $0x1640] sm:$0xff]
        %v1059 = vld [vmem:[%s1 + $0x1648] sm:$0xff]
        %v1060 = vld [vmem:[%s1 + $0x1650] sm:$0xff]
        %v1061 = vld [vmem:[%s1 + $0x1658] sm:$0xff]
        %v1062 = vld [vmem:[%s1 + $0x1660] sm:$0xff]
        %v1063 = vld [vmem:[%s1 + $0x1668] sm:$0xff]
        %v1064 = vld [vmem:[%s1 + $0x1670] sm:$0xff]
        %v1065 = vld [vmem:[%s1 + $0x1678] sm:$0xff]
        %v1066 = vld [vmem:[%s1 + $0x1680] sm:$0xff]
        %v1067 = vld [vmem:[%s1 + $0x1688] sm:$0xff]
        %v1068 = vld [vmem:[%s1 + $0x1690] sm:$0xff]
        %v1069 = vld [vmem:[%s1 + $0x1698] sm:$0xff]
        %v1070 = vld [vmem:[%s1 + $0x16a0] sm:$0xff]
        %v1071 = vld [vmem:[%s1 + $0x16a8] sm:$0xff]
        %v1072 = vld [vmem:[%s1 + $0x16b0] sm:$0xff]
        %v1073 = vld [vmem:[%s1 + $0x16b8] sm:$0xff]
        %v1074 = vld [vmem:[%s1 + $0x16c0] sm:$0xff]
        %v1075 = vld [vmem:[%s1 + $0x16c8] sm:$0xff]
        %v1076 = vld [vmem:[%s1 + $0x16d0] sm:$0xff]
        %v1077 = vld [vmem:[%s1 + $0x16d8] sm:$0xff]
        %v1078 = vld [vmem:[%s1 + $0x16e0] sm:$0xff]
        %v1079 = vld [vmem:[%s1 + $0x16e8] sm:$0xff]
        %v1080 = vld [vmem:[%s1 + $0x16f0] sm:$0xff]
        %v1081 = vld [vmem:[%s1 + $0x16f8] sm:$0xff]
        %v1082 = vld [vmem:[%s1 + $0x1700] sm:$0xff]
        %v1083 = vld [vmem:[%s1 + $0x1708] sm:$0xff]
        %v1084 = vld [vmem:[%s1 + $0x1710] sm:$0xff]
        %v1085 = vld [vmem:[%s1 + $0x1718] sm:$0xff]
        %v1086 = vld [vmem:[%s1 + $0x1720] sm:$0xff]
        %v1087 = vld [vmem:[%s1 + $0x1728] sm:$0xff]
        %v1088 = vld [vmem:[%s1 + $0x1730] sm:$0xff]
        %v1089 = vld [vmem:[%s1 + $0x1738] sm:$0xff]
        %v1090 = vld [vmem:[%s1 + $0x1740] sm:$0xff]
        %v1091 = vld [vmem:[%s1 + $0x1748] sm:$0xff]
        %v1092 = vld [vmem:[%s1 + $0x1750] sm:$0xff]
        %v1093 = vld [vmem:[%s1 + $0x1758] sm:$0xff]
        %v1094 = vld [vmem:[%s1 + $0x1760] sm:$0xff]
        %v1095 = vld [vmem:[%s1 + $0x1768] sm:$0xff]
        %v1096 = vld [vmem:[%s1 + $0x1770] sm:$0xff]
        %v1097 = vld [vmem:[%s1 + $0x1778] sm:$0xff]
        %v1098 = vld [vmem:[%s1 + $0x1780] sm:$0xff]
        %v1099 = vld [vmem:[%s1 + $0x1788] sm:$0xff]
        %v1100 = vld [vmem:[%s1 + $0x1790] sm:$0xff]
        %v1101 = vld [vmem:[%s1 + $0x1798] sm:$0xff]
        %v1102 = vld [vmem:[%s1 + $0x17a0] sm:$0xff]
        %v1103 = vld [vmem:[%s1 + $0x17a8] sm:$0xff]
        %v1104 = vld [vmem:[%s1 + $0x17b0] sm:$0xff]
        %v1105 = vld [vmem:[%s1 + $0x17b8] sm:$0xff]
        %v1106 = vld [vmem:[%s1 + $0x17c0] sm:$0xff]
        %v1107 = vld [vmem:[%s1 + $0x17c8] sm:$0xff]
        %v1108 = vld [vmem:[%s1 + $0x17d0] sm:$0xff]
        %v1109 = vld [vmem:[%s1 + $0x17d8] sm:$0xff]
        %v1110 = vld [vmem:[%s1 + $0x17e0] sm:$0xff]
        %v1111 = vld [vmem:[%s1 + $0x17e8] sm:$0xff]
        %v1112 = vld [vmem:[%s1 + $0x17f0] sm:$0xff]
        %v1113 = vld [vmem:[%s1 + $0x17f8] sm:$0xff]
        %v1114 = vld [vmem:[%s1 + $0x1800] sm:$0xff]
        %v1115 = vld [vmem:[%s1 + $0x1808] sm:$0xff]
        %v1116 = vld [vmem:[%s1 + $0x1810] sm:$0xff]
        %v1117 = vld [vmem:[%s1 + $0x1818] sm:$0xff]
        %v1118 = vld [vmem:[%s1 + $0x1820] sm:$0xff]
        %v1119 = vld [vmem:[%s1 + $0x1828] sm:$0xff]
        %v1120 = vld [vmem:[%s1 + $0x1830] sm:$0xff]
        %v1121 = vld [vmem:[%s1 + $0x1838] sm:$0xff]
        %v1122 = vld [vmem:[%s1 + $0x1840] sm:$0xff]
        %v1123 = vld [vmem:[%s1 + $0x1848] sm:$0xff]
        %v1124 = vld [vmem:[%s1 + $0x1850] sm:$0xff]
        %v1125 = vld [vmem:[%s1 + $0x1858] sm:$0xff]
        %v1126 = vld [vmem:[%s1 + $0x1860] sm:$0xff]
        %v1127 = vld [vmem:[%s1 + $0x1868] sm:$0xff]
        %v1128 = vld [vmem:[%s1 + $0x1870] sm:$0xff]
        %v1129 = vld [vmem:[%s1 + $0x1878] sm:$0xff]
        %v1130 = vld [vmem:[%s1 + $0x1880] sm:$0xff]
        %v1131 = vld [vmem:[%s1 + $0x1888] sm:$0xff]
        %v1132 = vld [vmem:[%s1 + $0x1890] sm:$0xff]
        %v1133 = vld [vmem:[%s1 + $0x1898] sm:$0xff]
        %v1134 = vld [vmem:[%s1 + $0x18a0] sm:$0xff]
        %v1135 = vld [vmem:[%s1 + $0x18a8] sm:$0xff]
        %v1136 = vld [vmem:[%s1 + $0x18b0] sm:$0xff]
        %v1137 = vld [vmem:[%s1 + $0x18b8] sm:$0xff]
        %v1138 = vld [vmem:[%s1 + $0x18c0] sm:$0xff]
        %v1139 = vld [vmem:[%s1 + $0x18c8] sm:$0xff]
        %v1140 = vld [vmem:[%s1 + $0x18d0] sm:$0xff]
        %v1141 = vld [vmem:[%s1 + $0x18d8] sm:$0xff]
        %v1142 = vld [vmem:[%s1 + $0x18e0] sm:$0xff]
        %v1143 = vld [vmem:[%s1 + $0x18e8] sm:$0xff]
        %v1144 = vld [vmem:[%s1 + $0x18f0] sm:$0xff]
        %v1145 = vld [vmem:[%s1 + $0x18f8] sm:$0xff]
        %v1146 = vld [vmem:[%s1 + $0x1900] sm:$0xff]
        %v1147 = vld [vmem:[%s1 + $0x1908] sm:$0xff]
        %v1148 = vld [vmem:[%s1 + $0x1910] sm:$0xff]
        %v1149 = vld [vmem:[%s1 + $0x1918] sm:$0xff]
        %v1150 = vld [vmem:[%s1 + $0x1920] sm:$0xff]
        %v1151 = vld [vmem:[%s1 + $0x1928] sm:$0xff]
        %v1152 = vld [vmem:[%s1 + $0x1930] sm:$0xff]
        %v1153 = vld [vmem:[%s1 + $0x1938] sm:$0xff]
        %v1154 = vld [vmem:[%s1 + $0x1940] sm:$0xff]
        %v1155 = vld [vmem:[%s1 + $0x1948] sm:$0xff]
        %v1156 = vld [vmem:[%s1 + $0x1950] sm:$0xff]
        %v1157 = vld [vmem:[%s1 + $0x1958] sm:$0xff]
        %v1158 = vld [vmem:[%s1 + $0x1960] sm:$0xff]
        %v1159 = vld [vmem:[%s1 + $0x1968] sm:$0xff]
        %v1160 = vld [vmem:[%s1 + $0x1970] sm:$0xff]
        %v1161 = vld [vmem:[%s1 + $0x1978] sm:$0xff]
        %v1162 = vld [vmem:[%s1 + $0x1980] sm:$0xff]
        %v1163 = vld [vmem:[%s1 + $0x1988] sm:$0xff]
        %v1164 = vld [vmem:[%s1 + $0x1990] sm:$0xff]
        %v1165 = vld [vmem:[%s1 + $0x1998] sm:$0xff]
        %v1166 = vld [vmem:[%s1 + $0x19a0] sm:$0xff]
        %v1167 = vld [vmem:[%s1 + $0x19a8] sm:$0xff]
        %v1168 = vld [vmem:[%s1 + $0x19b0] sm:$0xff]
        %v1169 = vld [vmem:[%s1 + $0x19b8] sm:$0xff]
        %v1170 = vld [vmem:[%s1 + $0x19c0] sm:$0xff]
        %v1171 = vld [vmem:[%s1 + $0x19c8] sm:$0xff]
        %v1172 = vld [vmem:[%s1 + $0x19d0] sm:$0xff]
        %v1173 = vld [vmem:[%s1 + $0x19d8] sm:$0xff]
        %v1174 = vld [vmem:[%s1 + $0x19e0] sm:$0xff]
        %v1175 = vld [vmem:[%s1 + $0x19e8] sm:$0xff]
        %v1176 = vld [vmem:[%s1 + $0x19f0] sm:$0xff]
        %v1177 = vld [vmem:[%s1 + $0x19f8] sm:$0xff]
        %v1178 = vld [vmem:[%s1 + $0x1a00] sm:$0xff]
        %v1179 = vld [vmem:[%s1 + $0x1a08] sm:$0xff]
        %v1180 = vld [vmem:[%s1 + $0x1a10] sm:$0xff]
        %v1181 = vld [vmem:[%s1 + $0x1a18] sm:$0xff]
        %v1182 = vld [vmem:[%s1 + $0x1a20] sm:$0xff]
        %v1183 = vld [vmem:[%s1 + $0x1a28] sm:$0xff]
        %v1184 = vld [vmem:[%s1 + $0x1a30] sm:$0xff]
        %v1185 = vld [vmem:[%s1 + $0x1a38] sm:$0xff]
        %v1186 = vld [vmem:[%s1 + $0x1a40] sm:$0xff]
        %v1187 = vld [vmem:[%s1 + $0x1a48] sm:$0xff]
        %v1188 = vld [vmem:[%s1 + $0x1a50] sm:$0xff]
        %v1189 = vld [vmem:[%s1 + $0x1a58] sm:$0xff]
        %v1190 = vld [vmem:[%s1 + $0x1a60] sm:$0xff]
        %v1191 = vld [vmem:[%s1 + $0x1a68] sm:$0xff]
        %v1192 = vld [vmem:[%s1 + $0x1a70] sm:$0xff]
        %v1193 = vld [vmem:[%s1 + $0x1a78] sm:$0xff]
        %v1194 = vld [vmem:[%s1 + $0x1a80] sm:$0xff]
        %v1195 = vld [vmem:[%s1 + $0x1a88] sm:$0xff]
        %v1196 = vld [vmem:[%s1 + $0x1a90] sm:$0xff]
        %v1197 = vld [vmem:[%s1 + $0x1a98] sm:$0xff]
        %v1198 = vld [vmem:[%s1 + $0x1aa0] sm:$0xff]
        %v1199 = vld [vmem:[%s1 + $0x1aa8] sm:$0xff]
        %v1200 = vld [vmem:[%s1 + $0x1ab0] sm:$0xff]
        %v1201 = vld [vmem:[%s1 + $0x1ab8] sm:$0xff]
        %v1202 = vld [vmem:[%s1 + $0x1ac0] sm:$0xff]
        %v1203 = vld [vmem:[%s1 + $0x1ac8] sm:$0xff]
        %v1204 = vld [vmem:[%s1 + $0x1ad0] sm:$0xff]
        %v1205 = vld [vmem:[%s1 + $0x1ad8] sm:$0xff]
        %v1206 = vld [vmem:[%s1 + $0x1ae0] sm:$0xff]
        %v1207 = vld [vmem:[%s1 + $0x1ae8] sm:$0xff]
        %v1208 = vld [vmem:[%s1 + $0x1af0] sm:$0xff]
        %v1209 = vld [vmem:[%s1 + $0x1af8] sm:$0xff]
        %v1210 = vld [vmem:[%s1 + $0x1b00] sm:$0xff]
        %v1211 = vld [vmem:[%s1 + $0x1b08] sm:$0xff]
        %v1212 = vld [vmem:[%s1 + $0x1b10] sm:$0xff]
        %v1213 = vld [vmem:[%s1 + $0x1b18] sm:$0xff]
        %v1214 = vld [vmem:[%s1 + $0x1b20] sm:$0xff]
        %v1215 = vld [vmem:[%s1 + $0x1b28] sm:$0xff]
        %v1216 = vld [vmem:[%s1 + $0x1b30] sm:$0xff]
        %v1217 = vld [vmem:[%s1 + $0x1b38] sm:$0xff]
        %v1218 = vld [vmem:[%s1 + $0x1b40] sm:$0xff]
        %v1219 = vld [vmem:[%s1 + $0x1b48] sm:$0xff]
        %v1220 = vld [vmem:[%s1 + $0x1b50] sm:$0xff]
        %v1221 = vld [vmem:[%s1 + $0x1b58] sm:$0xff]
        %v1222 = vld [vmem:[%s1 + $0x1b60] sm:$0xff]
        %v1223 = vld [vmem:[%s1 + $0x1b68] sm:$0xff]
        %v1224 = vld [vmem:[%s1 + $0x1b70] sm:$0xff]
        %v1225 = vld [vmem:[%s1 + $0x1b78] sm:$0xff]
        %v1226 = vld [vmem:[%s1 + $0x1b80] sm:$0xff]
        %v1227 = vld [vmem:[%s1 + $0x1b88] sm:$0xff]
        %v1228 = vld [vmem:[%s1 + $0x1b90] sm:$0xff]
        %v1229 = vld [vmem:[%s1 + $0x1b98] sm:$0xff]
        %v1230 = vld [vmem:[%s1 + $0x1ba0] sm:$0xff]
        %v1231 = vld [vmem:[%s1 + $0x1ba8] sm:$0xff]
        %v1232 = vld [vmem:[%s1 + $0x1bb0] sm:$0xff]
        %v1233 = vld [vmem:[%s1 + $0x1bb8] sm:$0xff]
        %v1234 = vld [vmem:[%s1 + $0x1bc0] sm:$0xff]
        %v1235 = vld [vmem:[%s1 + $0x1bc8] sm:$0xff]
        %v1236 = vld [vmem:[%s1 + $0x1bd0] sm:$0xff]
        %v1237 = vld [vmem:[%s1 + $0x1bd8] sm:$0xff]
        %v1238 = vld [vmem:[%s1 + $0x1be0] sm:$0xff]
        %v1239 = vld [vmem:[%s1 + $0x1be8] sm:$0xff]
        %v1240 = vld [vmem:[%s1 + $0x1bf0] sm:$0xff]
        %v1241 = vld [vmem:[%s1 + $0x1bf8] sm:$0xff]
        %v1242 = vld [vmem:[%s1 + $0x1c00] sm:$0xff]
        %v1243 = vld [vmem:[%s1 + $0x1c08] sm:$0xff]
        %v1244 = vld [vmem:[%s1 + $0x1c10] sm:$0xff]
        %v1245 = vld [vmem:[%s1 + $0x1c18] sm:$0xff]
        %v1246 = vld [vmem:[%s1 + $0x1c20] sm:$0xff]
        %v1247 = vld [vmem:[%s1 + $0x1c28] sm:$0xff]
        %v1248 = vld [vmem:[%s1 + $0x1c30] sm:$0xff]
        %v1249 = vld [vmem:[%s1 + $0x1c38] sm:$0xff]
        %v1250 = vld [vmem:[%s1 + $0x1c40] sm:$0xff]
        %v1251 = vld [vmem:[%s1 + $0x1c48] sm:$0xff]
        %v1252 = vld [vmem:[%s1 + $0x1c50] sm:$0xff]
        %v1253 = vld [vmem:[%s1 + $0x1c58] sm:$0xff]
        %v1254 = vld [vmem:[%s1 + $0x1c60] sm:$0xff]
        %v1255 = vld [vmem:[%s1 + $0x1c68] sm:$0xff]
        %v1256 = vld [vmem:[%s1 + $0x1c70] sm:$0xff]
        %v1257 = vld [vmem:[%s1 + $0x1c78] sm:$0xff]
        %v1258 = vld [vmem:[%s1 + $0x1c80] sm:$0xff]
        %v1259 = vld [vmem:[%s1 + $0x1c88] sm:$0xff]
        %v1260 = vld [vmem:[%s1 + $0x1c90] sm:$0xff]
        %v1261 = vld [vmem:[%s1 + $0x1c98] sm:$0xff]
        %v1262 = vld [vmem:[%s1 + $0x1ca0] sm:$0xff]
        %v1263 = vld [vmem:[%s1 + $0x1ca8] sm:$0xff]
        %v1264 = vld [vmem:[%s1 + $0x1cb0] sm:$0xff]
        %v1265 = vld [vmem:[%s1 + $0x1cb8] sm:$0xff]
        %v1266 = vld [vmem:[%s1 + $0x1cc0] sm:$0xff]
        %v1267 = vld [vmem:[%s1 + $0x1cc8] sm:$0xff]
        %v1268 = vld [vmem:[%s1 + $0x1cd0] sm:$0xff]
        %v1269 = vld [vmem:[%s1 + $0x1cd8] sm:$0xff]
        %v1270 = vld [vmem:[%s1 + $0x1ce0] sm:$0xff]
        %v1271 = vld [vmem:[%s1 + $0x1ce8] sm:$0xff]
        %v1272 = vld [vmem:[%s1 + $0x1cf0] sm:$0xff]
        %v1273 = vld [vmem:[%s1 + $0x1cf8] sm:$0xff]
        %v1274 = vld [vmem:[%s1 + $0x1d00] sm:$0xff]
        %v1275 = vld [vmem:[%s1 + $0x1d08] sm:$0xff]
        %v1276 = vld [vmem:[%s1 + $0x1d10] sm:$0xff]
        %v1277 = vld [vmem:[%s1 + $0x1d18] sm:$0xff]
        %v1278 = vld [vmem:[%s1 + $0x1d20] sm:$0xff]
        %v1279 = vld [vmem:[%s1 + $0x1d28] sm:$0xff]
        %v1280 = vld [vmem:[%s1 + $0x1d30] sm:$0xff]
        %v1281 = vld [vmem:[%s1 + $0x1d38] sm:$0xff]
        %v1282 = vld [vmem:[%s1 + $0x1d40] sm:$0xff]
        %v1283 = vld [vmem:[%s1 + $0x1d48] sm:$0xff]
        %v1284 = vld [vmem:[%s1 + $0x1d50] sm:$0xff]
        %v1285 = vld [vmem:[%s1 + $0x1d58] sm:$0xff]
        %v1286 = vld [vmem:[%s1 + $0x1d60] sm:$0xff]
        %v1287 = vld [vmem:[%s1 + $0x1d68] sm:$0xff]
        %v1288 = vld [vmem:[%s1 + $0x1d70] sm:$0xff]
        %v1289 = vld [vmem:[%s1 + $0x1d78] sm:$0xff]
        %v1290 = vld [vmem:[%s1 + $0x1d80] sm:$0xff]
        %v1291 = vld [vmem:[%s1 + $0x1d88] sm:$0xff]
        %v1292 = vld [vmem:[%s1 + $0x1d90] sm:$0xff]
        %v1293 = vld [vmem:[%s1 + $0x1d98] sm:$0xff]
        %v1294 = vld [vmem:[%s1 + $0x1da0] sm:$0xff]
        %v1295 = vld [vmem:[%s1 + $0x1da8] sm:$0xff]
        %v1296 = vld [vmem:[%s1 + $0x1db0] sm:$0xff]
        %v1297 = vld [vmem:[%s1 + $0x1db8] sm:$0xff]
        %v1298 = vld [vmem:[%s1 + $0x1dc0] sm:$0xff]
        %v1299 = vld [vmem:[%s1 + $0x1dc8] sm:$0xff]
        %v1300 = vld [vmem:[%s1 + $0x1dd0] sm:$0xff]
        %v1301 = vld [vmem:[%s1 + $0x1dd8] sm:$0xff]
        %v1302 = vld [vmem:[%s1 + $0x1de0] sm:$0xff]
        %v1303 = vld [vmem:[%s1 + $0x1de8] sm:$0xff]
        %v1304 = vld [vmem:[%s1 + $0x1df0] sm:$0xff]
        %v1305 = vld [vmem:[%s1 + $0x1df8] sm:$0xff]
        %v1306 = vld [vmem:[%s1 + $0x1e00] sm:$0xff]
        %v1307 = vld [vmem:[%s1 + $0x1e08] sm:$0xff]
        %v1308 = vld [vmem:[%s1 + $0x1e10] sm:$0xff]
        %v1309 = vld [vmem:[%s1 + $0x1e18] sm:$0xff]
        %v1310 = vld [vmem:[%s1 + $0x1e20] sm:$0xff]
        %v1311 = vld [vmem:[%s1 + $0x1e28] sm:$0xff]
        %v1312 = vld [vmem:[%s1 + $0x1e30] sm:$0xff]
        %v1313 = vld [vmem:[%s1 + $0x1e38] sm:$0xff]
        %v1314 = vld [vmem:[%s1 + $0x1e40] sm:$0xff]
        %v1315 = vld [vmem:[%s1 + $0x1e48] sm:$0xff]
        %v1316 = vld [vmem:[%s1 + $0x1e50] sm:$0xff]
        %v1317 = vld [vmem:[%s1 + $0x1e58] sm:$0xff]
        %v1318 = vld [vmem:[%s1 + $0x1e60] sm:$0xff]
        %v1319 = vld [vmem:[%s1 + $0x1e68] sm:$0xff]
        %v1320 = vld [vmem:[%s1 + $0x1e70] sm:$0xff]
        %v1321 = vld [vmem:[%s1 + $0x1e78] sm:$0xff]
        %v1322 = vld [vmem:[%s1 + $0x1e80] sm:$0xff]
        %v1323 = vld [vmem:[%s1 + $0x1e88] sm:$0xff]
        %v1324 = vld [vmem:[%s1 + $0x1e90] sm:$0xff]
        %v1325 = vld [vmem:[%s1 + $0x1e98] sm:$0xff]
        %v1326 = vld [vmem:[%s1 + $0x1ea0] sm:$0xff]
        %v1327 = vld [vmem:[%s1 + $0x1ea8] sm:$0xff]
        %v1328 = vld [vmem:[%s1 + $0x1eb0] sm:$0xff]
        %v1329 = vld [vmem:[%s1 + $0x1eb8] sm:$0xff]
        %v1330 = vld [vmem:[%s1 + $0x1ec0] sm:$0xff]
        %v1331 = vld [vmem:[%s1 + $0x1ec8] sm:$0xff]
        %v1332 = vld [vmem:[%s1 + $0x1ed0] sm:$0xff]
        %v1333 = vld [vmem:[%s1 + $0x1ed8] sm:$0xff]
        %v1334 = vld [vmem:[%s1 + $0x1ee0] sm:$0xff]
        %v1335 = vld [vmem:[%s1 + $0x1ee8] sm:$0xff]
        %v1336 = vld [vmem:[%s1 + $0x1ef0] sm:$0xff]
        %v1337 = vld [vmem:[%s1 + $0x1ef8] sm:$0xff]
        %v1338 = vld [vmem:[%s1 + $0x1f00] sm:$0xff]
        %v1339 = vld [vmem:[%s1 + $0x1f08] sm:$0xff]
        %v1340 = vld [vmem:[%s1 + $0x1f10] sm:$0xff]
        %v1341 = vld [vmem:[%s1 + $0x1f18] sm:$0xff]
        %v1342 = vld [vmem:[%s1 + $0x1f20] sm:$0xff]
        %v1343 = vld [vmem:[%s1 + $0x1f28] sm:$0xff]
        %v1344 = vld [vmem:[%s1 + $0x1f30] sm:$0xff]
        %v1345 = vld [vmem:[%s1 + $0x1f38] sm:$0xff]
        %v1346 = vld [vmem:[%s1 + $0x1f40] sm:$0xff]
        %v1347 = vld [vmem:[%s1 + $0x1f48] sm:$0xff]
        %v1348 = vld [vmem:[%s1 + $0x1f50] sm:$0xff]
        %v1349 = vld [vmem:[%s1 + $0x1f58] sm:$0xff]
        %v1350 = vld [vmem:[%s1 + $0x1f60] sm:$0xff]
        %v1351 = vld [vmem:[%s1 + $0x1f68] sm:$0xff]
        %v1352 = vld [vmem:[%s1 + $0x1f70] sm:$0xff]
        %v1353 = vld [vmem:[%s1 + $0x1f78] sm:$0xff]
        %v1354 = vld [vmem:[%s1 + $0x1f80] sm:$0xff]
        %v1355 = vld [vmem:[%s1 + $0x1f88] sm:$0xff]
        %v1356 = vld [vmem:[%s1 + $0x1f90] sm:$0xff]
        %v1357 = vld [vmem:[%s1 + $0x1f98] sm:$0xff]
        %v1358 = vld [vmem:[%s1 + $0x1fa0] sm:$0xff]
        %v1359 = vld [vmem:[%s1 + $0x1fa8] sm:$0xff]
        %v1360 = vld [vmem:[%s1 + $0x1fb0] sm:$0xff]
        %v1361 = vld [vmem:[%s1 + $0x1fb8] sm:$0xff]
        %v1362 = vld [vmem:[%s1 + $0x1fc0] sm:$0xff]
        %v1363 = vld [vmem:[%s1 + $0x1fc8] sm:$0xff]
        %v1364 = vld [vmem:[%s1 + $0x1fd0] sm:$0xff]
        %v1365 = vld [vmem:[%s1 + $0x1fd8] sm:$0xff]
        %v1366 = vld [vmem:[%s1 + $0x1fe0] sm:$0xff]
        %v1367 = vld [vmem:[%s1 + $0x1fe8] sm:$0xff]
        %v1368 = vld [vmem:[%s1 + $0x1ff0] sm:$0xff]
        %v1369 = vld [vmem:[%s1 + $0x1ff8] sm:$0xff]
        %v1370 = vld [vmem:[%s1 + $0x2000] sm:$0xff]
        %v1371 = vld [vmem:[%s1 + $0x2008] sm:$0xff]
        %v1372 = vld [vmem:[%s1 + $0x2010] sm:$0xff]
        %v1373 = vld [vmem:[%s1 + $0x2018] sm:$0xff]
        %v1374 = vld [vmem:[%s1 + $0x2020] sm:$0xff]
        %v1375 = vld [vmem:[%s1 + $0x2028] sm:$0xff]
        %v1376 = vld [vmem:[%s1 + $0x2030] sm:$0xff]
        %v1377 = vld [vmem:[%s1 + $0x2038] sm:$0xff]
        %v1378 = vld [vmem:[%s1 + $0x2040] sm:$0xff]
        %v1379 = vld [vmem:[%s1 + $0x2048] sm:$0xff]
        %v1380 = vld [vmem:[%s1 + $0x2050] sm:$0xff]
        %v1381 = vld [vmem:[%s1 + $0x2058] sm:$0xff]
        %v1382 = vld [vmem:[%s1 + $0x2060] sm:$0xff]
        %v1383 = vld [vmem:[%s1 + $0x2068] sm:$0xff]
        %v1384 = vld [vmem:[%s1 + $0x2070] sm:$0xff]
        %v1385 = vld [vmem:[%s1 + $0x2078] sm:$0xff]
        %v1386 = vld [vmem:[%s1 + $0x2080] sm:$0xff]
        %v1387 = vld [vmem:[%s1 + $0x2088] sm:$0xff]
        %v1388 = vld [vmem:[%s1 + $0x2090] sm:$0xff]
        %v1389 = vld [vmem:[%s1 + $0x2098] sm:$0xff]
        %v1390 = vld [vmem:[%s1 + $0x20a0] sm:$0xff]
        %v1391 = vld [vmem:[%s1 + $0x20a8] sm:$0xff]
        %v1392 = vld [vmem:[%s1 + $0x20b0] sm:$0xff]
        %v1393 = vld [vmem:[%s1 + $0x20b8] sm:$0xff]
        %v1394 = vld [vmem:[%s1 + $0x20c0] sm:$0xff]
        %v1395 = vld [vmem:[%s1 + $0x20c8] sm:$0xff]
        %v1396 = vld [vmem:[%s1 + $0x20d0] sm:$0xff]
        %v1397 = vld [vmem:[%s1 + $0x20d8] sm:$0xff]
        %v1398 = vld [vmem:[%s1 + $0x20e0] sm:$0xff]
        %v1399 = vld [vmem:[%s1 + $0x20e8] sm:$0xff]
        %v1400 = vld [vmem:[%s1 + $0x20f0] sm:$0xff]
        %v1401 = vld [vmem:[%s1 + $0x20f8] sm:$0xff]
        %v1402 = vld [vmem:[%s1 + $0x2100] sm:$0xff]
        %v1403 = vld [vmem:[%s1 + $0x2108] sm:$0xff]
        %v1404 = vld [vmem:[%s1 + $0x2110] sm:$0xff]
        %v1405 = vld [vmem:[%s1 + $0x2118] sm:$0xff]
        %v1406 = vld [vmem:[%s1 + $0x2120] sm:$0xff]
        %v1407 = vld [vmem:[%s1 + $0x2128] sm:$0xff]
        %v1408 = vld [vmem:[%s1 + $0x2130] sm:$0xff]
        %v1409 = vld [vmem:[%s1 + $0x2138] sm:$0xff]
        %v1410 = vld [vmem:[%s1 + $0x2140] sm:$0xff]
        %v1411 = vld [vmem:[%s1 + $0x2148] sm:$0xff]
        %v1412 = vld [vmem:[%s1 + $0x2150] sm:$0xff]
        %v1413 = vld [vmem:[%s1 + $0x2158] sm:$0xff]
        %v1414 = vld [vmem:[%s1 + $0x2160] sm:$0xff]
        %v1415 = vld [vmem:[%s1 + $0x2168] sm:$0xff]
        %v1416 = vld [vmem:[%s1 + $0x2170] sm:$0xff]
        %v1417 = vld [vmem:[%s1 + $0x2178] sm:$0xff]
        %v1418 = vld [vmem:[%s1 + $0x2180] sm:$0xff]
        %v1419 = vld [vmem:[%s1 + $0x2188] sm:$0xff]
        %v1420 = vld [vmem:[%s1 + $0x2190] sm:$0xff]
        %v1421 = vld [vmem:[%s1 + $0x2198] sm:$0xff]
        %v1422 = vld [vmem:[%s1 + $0x21a0] sm:$0xff]
        %v1423 = vld [vmem:[%s1 + $0x21a8] sm:$0xff]
        %v1424 = vld [vmem:[%s1 + $0x21b0] sm:$0xff]
        %v1425 = vld [vmem:[%s1 + $0x21b8] sm:$0xff]
        %v1426 = vld [vmem:[%s1 + $0x21c0] sm:$0xff]
        %v1427 = vld [vmem:[%s1 + $0x21c8] sm:$0xff]
        %v1428 = vld [vmem:[%s1 + $0x21d0] sm:$0xff]
        %v1429 = vld [vmem:[%s1 + $0x21d8] sm:$0xff]
        %v1430 = vld [vmem:[%s1 + $0x21e0] sm:$0xff]
        %v1431 = vld [vmem:[%s1 + $0x21e8] sm:$0xff]
        %v1432 = vld [vmem:[%s1 + $0x21f0] sm:$0xff]
        %v1433 = vld [vmem:[%s1 + $0x21f8] sm:$0xff]
        %v1434 = vld [vmem:[%s1 + $0x2200] sm:$0xff]
        %v1435 = vld [vmem:[%s1 + $0x2208] sm:$0xff]
        %v1436 = vld [vmem:[%s1 + $0x2210] sm:$0xff]
        %v1437 = vld [vmem:[%s1 + $0x2218] sm:$0xff]
        %v1438 = vld [vmem:[%s1 + $0x2220] sm:$0xff]
        %v1439 = vld [vmem:[%s1 + $0x2228] sm:$0xff]
        %v1440 = vld [vmem:[%s1 + $0x2230] sm:$0xff]
        %v1441 = vld [vmem:[%s1 + $0x2238] sm:$0xff]
        %v1442 = vld [vmem:[%s1 + $0x2240] sm:$0xff]
        %v1443 = vld [vmem:[%s1 + $0x2248] sm:$0xff]
        %v1444 = vld [vmem:[%s1 + $0x2250] sm:$0xff]
        %v1445 = vld [vmem:[%s1 + $0x2258] sm:$0xff]
        %v1446 = vld [vmem:[%s1 + $0x2260] sm:$0xff]
        %v1447 = vld [vmem:[%s1 + $0x2268] sm:$0xff]
        %v1448 = vld [vmem:[%s1 + $0x2270] sm:$0xff]
        %v1449 = vld [vmem:[%s1 + $0x2278] sm:$0xff]
        %v1450 = vld [vmem:[%s1 + $0x2280] sm:$0xff]
        %v1451 = vld [vmem:[%s1 + $0x2288] sm:$0xff]
        %v1452 = vld [vmem:[%s1 + $0x2290] sm:$0xff]
        %v1453 = vld [vmem:[%s1 + $0x2298] sm:$0xff]
        %v1454 = vld [vmem:[%s1 + $0x22a0] sm:$0xff]
        %v1455 = vld [vmem:[%s1 + $0x22a8] sm:$0xff]
        %v1456 = vld [vmem:[%s1 + $0x22b0] sm:$0xff]
        %v1457 = vld [vmem:[%s1 + $0x22b8] sm:$0xff]
        %v1458 = vld [vmem:[%s1 + $0x22c0] sm:$0xff]
        %v1459 = vld [vmem:[%s1 + $0x22c8] sm:$0xff]
        %v1460 = vld [vmem:[%s1 + $0x22d0] sm:$0xff]
        %v1461 = vld [vmem:[%s1 + $0x22d8] sm:$0xff]
        %v1462 = vld [vmem:[%s1 + $0x22e0] sm:$0xff]
        %v1463 = vld [vmem:[%s1 + $0x22e8] sm:$0xff]
        %v1464 = vld [vmem:[%s1 + $0x22f0] sm:$0xff]
        %v1465 = vld [vmem:[%s1 + $0x22f8] sm:$0xff]
        %v1466 = vld [vmem:[%s1 + $0x2300] sm:$0xff]
        %v1467 = vld [vmem:[%s1 + $0x2308] sm:$0xff]
        %v1468 = vld [vmem:[%s1 + $0x2310] sm:$0xff]
        %v1469 = vld [vmem:[%s1 + $0x2318] sm:$0xff]
        %v1470 = vld [vmem:[%s1 + $0x2320] sm:$0xff]
        %v1471 = vld [vmem:[%s1 + $0x2328] sm:$0xff]
        %v1472 = vld [vmem:[%s1 + $0x2330] sm:$0xff]
        %v1473 = vld [vmem:[%s1 + $0x2338] sm:$0xff]
        %v1474 = vld [vmem:[%s1 + $0x2340] sm:$0xff]
        %v1475 = vld [vmem:[%s1 + $0x2348] sm:$0xff]
        %v1476 = vld [vmem:[%s1 + $0x2350] sm:$0xff]
        %v1477 = vld [vmem:[%s1 + $0x2358] sm:$0xff]
        %v1478 = vld [vmem:[%s1 + $0x2360] sm:$0xff]
        %v1479 = vld [vmem:[%s1 + $0x2368] sm:$0xff]
        %v1480 = vld [vmem:[%s1 + $0x2370] sm:$0xff]
        %v1481 = vld [vmem:[%s1 + $0x2378] sm:$0xff]
        %v1482 = vld [vmem:[%s1 + $0x2380] sm:$0xff]
        %v1483 = vld [vmem:[%s1 + $0x2388] sm:$0xff]
        %v1484 = vld [vmem:[%s1 + $0x2390] sm:$0xff]
        %v1485 = vld [vmem:[%s1 + $0x2398] sm:$0xff]
        %v1486 = vld [vmem:[%s1 + $0x23a0] sm:$0xff]
        %v1487 = vld [vmem:[%s1 + $0x23a8] sm:$0xff]
        %v1488 = vld [vmem:[%s1 + $0x23b0] sm:$0xff]
        %v1489 = vld [vmem:[%s1 + $0x23b8] sm:$0xff]
        %v1490 = vld [vmem:[%s1 + $0x23c0] sm:$0xff]
        %v1491 = vld [vmem:[%s1 + $0x23c8] sm:$0xff]
        %v1492 = vld [vmem:[%s1 + $0x23d0] sm:$0xff]
        %v1493 = vld [vmem:[%s1 + $0x23d8] sm:$0xff]
        %v1494 = vld [vmem:[%s1 + $0x23e0] sm:$0xff]
        %v1495 = vld [vmem:[%s1 + $0x23e8] sm:$0xff]
        %v1496 = vld [vmem:[%s1 + $0x23f0] sm:$0xff]
        %v1497 = vld [vmem:[%s1 + $0x23f8] sm:$0xff]
        %v1498 = vld [vmem:[%s1 + $0x2400] sm:$0xff]
        %v1499 = vld [vmem:[%s1 + $0x2408] sm:$0xff]
        %v1500 = vld [vmem:[%s1 + $0x2410] sm:$0xff]
        %v1501 = vld [vmem:[%s1 + $0x2418] sm:$0xff]
        %v1502 = vld [vmem:[%s1 + $0x2420] sm:$0xff]
        %v1503 = vld [vmem:[%s1 + $0x2428] sm:$0xff]
        %v1504 = vld [vmem:[%s1 + $0x2430] sm:$0xff]
        %v1505 = vld [vmem:[%s1 + $0x2438] sm:$0xff]
        %v1506 = vld [vmem:[%s1 + $0x2440] sm:$0xff]
        %v1507 = vld [vmem:[%s1 + $0x2448] sm:$0xff]
        %v1508 = vld [vmem:[%s1 + $0x2450] sm:$0xff]
        %v1509 = vld [vmem:[%s1 + $0x2458] sm:$0xff]
        %v1510 = vld [vmem:[%s1 + $0x2460] sm:$0xff]
        %v1511 = vld [vmem:[%s1 + $0x2468] sm:$0xff]
        %v1512 = vld [vmem:[%s1 + $0x2470] sm:$0xff]
        %v1513 = vld [vmem:[%s1 + $0x2478] sm:$0xff]
        %v1514 = vld [vmem:[%s1 + $0x2480] sm:$0xff]
        %v1515 = vld [vmem:[%s1 + $0x2488] sm:$0xff]
        %v1516 = vld [vmem:[%s1 + $0x2490] sm:$0xff]
        %v1517 = vld [vmem:[%s1 + $0x2498] sm:$0xff]
        %v1518 = vld [vmem:[%s1 + $0x24a0] sm:$0xff]
        %v1519 = vld [vmem:[%s1 + $0x24a8] sm:$0xff]
        %v1520 = vld [vmem:[%s1 + $0x24b0] sm:$0xff]
        %v1521 = vld [vmem:[%s1 + $0x24b8] sm:$0xff]
        %v1522 = vld [vmem:[%s2] sm:$0xff]
        %v1523 = vld [vmem:[%s2 + $0x8] sm:$0xff]
        %v1524 = vld [vmem:[%s2 + $0x10] sm:$0xff]
        %v1528 = vlaneseq
        %v1529 = vshrl.u32 %v1528, 7
        %v1530 = vsub.s32 0, %v1529
        %v1531 = vrot.slane %v1522, %v1530
        %v1532 = vlaneseq
        %v1533 = vshrl.u32 %v1532, 7
        %v1534 = vsub.s32 1, %v1533
        %v1535 = vrot.slane %v1522, %v1534
        %v1536 = vlaneseq
        %v1537 = vshrl.u32 %v1536, 7
        %v1538 = vsub.s32 2, %v1537
        %v1539 = vrot.slane %v1522, %v1538
        %v1540 = vlaneseq
        %v1541 = vshrl.u32 %v1540, 7
        %v1542 = vsub.s32 3, %v1541
        %v1543 = vrot.slane %v1522, %v1542
        %v1544 = vlaneseq
        %v1545 = vshrl.u32 %v1544, 7
        %v1546 = vsub.s32 4, %v1545
        %v1547 = vrot.slane %v1522, %v1546
        %v1548 = vlaneseq
        %v1549 = vshrl.u32 %v1548, 7
        %v1550 = vsub.s32 5, %v1549
        %v1551 = vrot.slane %v1522, %v1550
        %v1552 = vlaneseq
        %v1553 = vshrl.u32 %v1552, 7
        %v1554 = vsub.s32 6, %v1553
        %v1555 = vrot.slane %v1522, %v1554
        %v1556 = vlaneseq
        %v1557 = vshrl.u32 %v1556, 7
        %v1558 = vsub.s32 7, %v1557
        %v1559 = vrot.slane %v1522, %v1558
        %v1560 = vlaneseq
        %v1561 = vshrl.u32 %v1560, 7
        %v1562 = vsub.s32 0, %v1561
        %v1563 = vrot.slane %v1523, %v1562
        %v1564 = vlaneseq
        %v1565 = vshrl.u32 %v1564, 7
        %v1566 = vsub.s32 1, %v1565
        %v1567 = vrot.slane %v1523, %v1566
        %v1568 = vlaneseq
        %v1569 = vshrl.u32 %v1568, 7
        %v1570 = vsub.s32 2, %v1569
        %v1571 = vrot.slane %v1523, %v1570
        %v1572 = vlaneseq
        %v1573 = vshrl.u32 %v1572, 7
        %v1574 = vsub.s32 3, %v1573
        %v1575 = vrot.slane %v1523, %v1574
        %v1576 = vlaneseq
        %v1577 = vshrl.u32 %v1576, 7
        %v1578 = vsub.s32 4, %v1577
        %v1579 = vrot.slane %v1523, %v1578
        %v1580 = vlaneseq
        %v1581 = vshrl.u32 %v1580, 7
        %v1582 = vsub.s32 5, %v1581
        %v1583 = vrot.slane %v1523, %v1582
        %v1584 = vlaneseq
        %v1585 = vshrl.u32 %v1584, 7
        %v1586 = vsub.s32 6, %v1585
        %v1587 = vrot.slane %v1523, %v1586
        %v1588 = vlaneseq
        %v1589 = vshrl.u32 %v1588, 7
        %v1590 = vsub.s32 7, %v1589
        %v1591 = vrot.slane %v1523, %v1590
        %v1592 = vlaneseq
        %v1593 = vshrl.u32 %v1592, 7
        %v1594 = vsub.s32 0, %v1593
        %v1595 = vrot.slane %v1524, %v1594
        %v1596 = vlaneseq
        %v1597 = vshrl.u32 %v1596, 7
        %v1598 = vsub.s32 1, %v1597
        %v1599 = vrot.slane %v1524, %v1598
        %v1600 = vlaneseq
        %v1601 = vshrl.u32 %v1600, 7
        %v1602 = vsub.s32 2, %v1601
        %v1603 = vrot.slane %v1524, %v1602
        %v1604 = vlaneseq
        %v1605 = vshrl.u32 %v1604, 7
        %v1606 = vsub.s32 3, %v1605
        %v1607 = vrot.slane %v1524, %v1606
        %v1608 = vlaneseq
        %v1609 = vshrl.u32 %v1608, 7
        %v1610 = vsub.s32 4, %v1609
        %v1611 = vrot.slane %v1524, %v1610
        %v1612 = vlaneseq
        %v1613 = vshrl.u32 %v1612, 7
        %v1614 = vsub.s32 5, %v1613
        %v1615 = vrot.slane %v1524, %v1614
        %v1616 = vlaneseq
        %v1617 = vshrl.u32 %v1616, 7
        %v1618 = vsub.s32 6, %v1617
        %v1619 = vrot.slane %v1524, %v1618
        %v1620 = vlaneseq
        %v1621 = vshrl.u32 %v1620, 7
        %v1622 = vsub.s32 7, %v1621
        %v1623 = vrot.slane %v1524, %v1622
        %v2824 = vunpack.c.l.b16 %v346
        %v2825 = vunpack.c.h.b16 %v346
        %v2826 = vunpack.c.l.b16 %v347
        %v2827 = vunpack.c.h.b16 %v347
        %v2828 = vunpack.c.l.b16 %v348
        %v2829 = vunpack.c.h.b16 %v348
        %v2830 = vunpack.c.l.b16 %v349
        %v2831 = vunpack.c.h.b16 %v349
        %v2832 = vunpack.c.l.b16 %v350
        %v2833 = vunpack.c.h.b16 %v350
        %v2834 = vunpack.c.l.b16 %v351
        %v2835 = vunpack.c.h.b16 %v351
        %v2836 = vunpack.c.l.b16 %v352
        %v2837 = vunpack.c.h.b16 %v352
        %v2838 = vunpack.c.l.b16 %v353
        %v2839 = vunpack.c.h.b16 %v353
        %v2840 = vunpack.c.l.b16 %v354
        %v2841 = vunpack.c.h.b16 %v354
        %v2842 = vunpack.c.l.b16 %v355
        %v2843 = vunpack.c.h.b16 %v355
        %v2844 = vunpack.c.l.b16 %v356
        %v2845 = vunpack.c.h.b16 %v356
        %v2846 = vunpack.c.l.b16 %v357
        %v2847 = vunpack.c.h.b16 %v357
        %v2848 = vunpack.c.l.b16 %v358
        %v2849 = vunpack.c.h.b16 %v358
        %v2850 = vunpack.c.l.b16 %v359
        %v2851 = vunpack.c.h.b16 %v359
        %v2852 = vunpack.c.l.b16 %v360
        %v2853 = vunpack.c.h.b16 %v360
        %v2854 = vunpack.c.l.b16 %v361
        %v2855 = vunpack.c.h.b16 %v361
        %v2856 = vunpack.c.l.b16 %v362
        %v2857 = vunpack.c.h.b16 %v362
        %v2858 = vunpack.c.l.b16 %v363
        %v2859 = vunpack.c.h.b16 %v363
        %v2860 = vunpack.c.l.b16 %v364
        %v2861 = vunpack.c.h.b16 %v364
        %v2862 = vunpack.c.l.b16 %v365
        %v2863 = vunpack.c.h.b16 %v365
        %v2864 = vunpack.c.l.b16 %v366
        %v2865 = vunpack.c.h.b16 %v366
        %v2866 = vunpack.c.l.b16 %v367
        %v2867 = vunpack.c.h.b16 %v367
        %v2868 = vunpack.c.l.b16 %v368
        %v2869 = vunpack.c.h.b16 %v368
        %v2870 = vunpack.c.l.b16 %v369
        %v2871 = vunpack.c.h.b16 %v369
        %v2872 = vunpack.c.l.b16 %v370
        %v2873 = vunpack.c.h.b16 %v370
        %v2874 = vunpack.c.l.b16 %v371
        %v2875 = vunpack.c.h.b16 %v371
        %v2876 = vunpack.c.l.b16 %v372
        %v2877 = vunpack.c.h.b16 %v372
        %v2878 = vunpack.c.l.b16 %v373
        %v2879 = vunpack.c.h.b16 %v373
        %v2880 = vunpack.c.l.b16 %v374
        %v2881 = vunpack.c.h.b16 %v374
        %v2882 = vunpack.c.l.b16 %v375
        %v2883 = vunpack.c.h.b16 %v375
        %v2884 = vunpack.c.l.b16 %v376
        %v2885 = vunpack.c.h.b16 %v376
        %v2886 = vunpack.c.l.b16 %v377
        %v2887 = vunpack.c.h.b16 %v377
        %v2888 = vunpack.c.l.b16 %v378
        %v2889 = vunpack.c.h.b16 %v378
        %v2890 = vunpack.c.l.b16 %v379
        %v2891 = vunpack.c.h.b16 %v379
        %v2892 = vunpack.c.l.b16 %v380
        %v2893 = vunpack.c.h.b16 %v380
        %v2894 = vunpack.c.l.b16 %v381
        %v2895 = vunpack.c.h.b16 %v381
        %v2896 = vunpack.c.l.b16 %v382
        %v2897 = vunpack.c.h.b16 %v382
        %v2898 = vunpack.c.l.b16 %v383
        %v2899 = vunpack.c.h.b16 %v383
        %v2900 = vunpack.c.l.b16 %v384
        %v2901 = vunpack.c.h.b16 %v384
        %v2902 = vunpack.c.l.b16 %v385
        %v2903 = vunpack.c.h.b16 %v385
        %v2904 = vunpack.c.l.b16 %v386
        %v2905 = vunpack.c.h.b16 %v386
        %v2906 = vunpack.c.l.b16 %v387
        %v2907 = vunpack.c.h.b16 %v387
        %v2908 = vunpack.c.l.b16 %v388
        %v2909 = vunpack.c.h.b16 %v388
        %v2910 = vunpack.c.l.b16 %v389
        %v2911 = vunpack.c.h.b16 %v389
        %v2912 = vunpack.c.l.b16 %v390
        %v2913 = vunpack.c.h.b16 %v390
        %v2914 = vunpack.c.l.b16 %v391
        %v2915 = vunpack.c.h.b16 %v391
        %v2916 = vunpack.c.l.b16 %v392
        %v2917 = vunpack.c.h.b16 %v392
        %v2918 = vunpack.c.l.b16 %v393
        %v2919 = vunpack.c.h.b16 %v393
        %v2920 = vunpack.c.l.b16 %v394
        %v2921 = vunpack.c.h.b16 %v394
        %v2922 = vunpack.c.l.b16 %v395
        %v2923 = vunpack.c.h.b16 %v395
        %v2924 = vunpack.c.l.b16 %v396
        %v2925 = vunpack.c.h.b16 %v396
        %v2926 = vunpack.c.l.b16 %v397
        %v2927 = vunpack.c.h.b16 %v397
        %v2928 = vunpack.c.l.b16 %v398
        %v2929 = vunpack.c.h.b16 %v398
        %v2930 = vunpack.c.l.b16 %v399
        %v2931 = vunpack.c.h.b16 %v399
        %v2932 = vunpack.c.l.b16 %v400
        %v2933 = vunpack.c.h.b16 %v400
        %v2934 = vunpack.c.l.b16 %v401
        %v2935 = vunpack.c.h.b16 %v401
        %v2936 = vunpack.c.l.b16 %v402
        %v2937 = vunpack.c.h.b16 %v402
        %v2938 = vunpack.c.l.b16 %v403
        %v2939 = vunpack.c.h.b16 %v403
        %v2940 = vunpack.c.l.b16 %v404
        %v2941 = vunpack.c.h.b16 %v404
        %v2942 = vunpack.c.l.b16 %v405
        %v2943 = vunpack.c.h.b16 %v405
        %v2944 = vunpack.c.l.b16 %v406
        %v2945 = vunpack.c.h.b16 %v406
        %v2946 = vunpack.c.l.b16 %v407
        %v2947 = vunpack.c.h.b16 %v407
        %v2948 = vunpack.c.l.b16 %v408
        %v2949 = vunpack.c.h.b16 %v408
        %v2950 = vunpack.c.l.b16 %v409
        %v2951 = vunpack.c.h.b16 %v409
        %v2952 = vunpack.c.l.b16 %v410
        %v2953 = vunpack.c.h.b16 %v410
        %v2954 = vunpack.c.l.b16 %v411
        %v2955 = vunpack.c.h.b16 %v411
        %v2956 = vunpack.c.l.b16 %v412
        %v2957 = vunpack.c.h.b16 %v412
        %v2958 = vunpack.c.l.b16 %v413
        %v2959 = vunpack.c.h.b16 %v413
        %v2960 = vunpack.c.l.b16 %v414
        %v2961 = vunpack.c.h.b16 %v414
        %v2962 = vunpack.c.l.b16 %v415
        %v2963 = vunpack.c.h.b16 %v415
        %v2964 = vunpack.c.l.b16 %v416
        %v2965 = vunpack.c.h.b16 %v416
        %v2966 = vunpack.c.l.b16 %v417
        %v2967 = vunpack.c.h.b16 %v417
        %v2968 = vunpack.c.l.b16 %v418
        %v2969 = vunpack.c.h.b16 %v418
        %v2970 = vunpack.c.l.b16 %v419
        %v2971 = vunpack.c.h.b16 %v419
        %v2972 = vunpack.c.l.b16 %v420
        %v2973 = vunpack.c.h.b16 %v420
        %v2974 = vunpack.c.l.b16 %v421
        %v2975 = vunpack.c.h.b16 %v421
        %v2976 = vunpack.c.l.b16 %v422
        %v2977 = vunpack.c.h.b16 %v422
        %v2978 = vunpack.c.l.b16 %v423
        %v2979 = vunpack.c.h.b16 %v423
        %v2980 = vunpack.c.l.b16 %v424
        %v2981 = vunpack.c.h.b16 %v424
        %v2982 = vunpack.c.l.b16 %v425
        %v2983 = vunpack.c.h.b16 %v425
        %v2984 = vunpack.c.l.b16 %v426
        %v2985 = vunpack.c.h.b16 %v426
        %v2986 = vunpack.c.l.b16 %v427
        %v2987 = vunpack.c.h.b16 %v427
        %v2988 = vunpack.c.l.b16 %v428
        %v2989 = vunpack.c.h.b16 %v428
        %v2990 = vunpack.c.l.b16 %v429
        %v2991 = vunpack.c.h.b16 %v429
        %v2992 = vunpack.c.l.b16 %v430
        %v2993 = vunpack.c.h.b16 %v430
        %v2994 = vunpack.c.l.b16 %v431
        %v2995 = vunpack.c.h.b16 %v431
        %v2996 = vunpack.c.l.b16 %v432
        %v2997 = vunpack.c.h.b16 %v432
        %v2998 = vunpack.c.l.b16 %v433
        %v2999 = vunpack.c.h.b16 %v433
        %v3000 = vunpack.c.l.b16 %v434
        %v3001 = vunpack.c.h.b16 %v434
        %v3002 = vunpack.c.l.b16 %v435
        %v3003 = vunpack.c.h.b16 %v435
        %v3004 = vunpack.c.l.b16 %v436
        %v3005 = vunpack.c.h.b16 %v436
        %v3006 = vunpack.c.l.b16 %v437
        %v3007 = vunpack.c.h.b16 %v437
        %v3008 = vunpack.c.l.b16 %v438
        %v3009 = vunpack.c.h.b16 %v438
        %v3010 = vunpack.c.l.b16 %v439
        %v3011 = vunpack.c.h.b16 %v439
        %v3012 = vunpack.c.l.b16 %v440
        %v3013 = vunpack.c.h.b16 %v440
        %v3014 = vunpack.c.l.b16 %v441
        %v3015 = vunpack.c.h.b16 %v441
        %v3016 = vunpack.c.l.b16 %v442
        %v3017 = vunpack.c.h.b16 %v442
        %v3018 = vunpack.c.l.b16 %v443
        %v3019 = vunpack.c.h.b16 %v443
        %v3020 = vunpack.c.l.b16 %v444
        %v3021 = vunpack.c.h.b16 %v444
        %v3022 = vunpack.c.l.b16 %v445
        %v3023 = vunpack.c.h.b16 %v445
        %v3024 = vunpack.c.l.b16 %v446
        %v3025 = vunpack.c.h.b16 %v446
        %v3026 = vunpack.c.l.b16 %v447
        %v3027 = vunpack.c.h.b16 %v447
        %v3028 = vunpack.c.l.b16 %v448
        %v3029 = vunpack.c.h.b16 %v448
        %v3030 = vunpack.c.l.b16 %v449
        %v3031 = vunpack.c.h.b16 %v449
        %v3032 = vunpack.c.l.b16 %v450
        %v3033 = vunpack.c.h.b16 %v450
        %v3034 = vunpack.c.l.b16 %v451
        %v3035 = vunpack.c.h.b16 %v451
        %v3036 = vunpack.c.l.b16 %v452
        %v3037 = vunpack.c.h.b16 %v452
        %v3038 = vunpack.c.l.b16 %v453
        %v3039 = vunpack.c.h.b16 %v453
        %v3040 = vunpack.c.l.b16 %v454
        %v3041 = vunpack.c.h.b16 %v454
        %v3042 = vunpack.c.l.b16 %v455
        %v3043 = vunpack.c.h.b16 %v455
        %v3044 = vunpack.c.l.b16 %v456
        %v3045 = vunpack.c.h.b16 %v456
        %v3046 = vunpack.c.l.b16 %v457
        %v3047 = vunpack.c.h.b16 %v457
        %v3048 = vunpack.c.l.b16 %v458
        %v3049 = vunpack.c.h.b16 %v458
        %v3050 = vunpack.c.l.b16 %v459
        %v3051 = vunpack.c.h.b16 %v459
        %v3052 = vunpack.c.l.b16 %v460
        %v3053 = vunpack.c.h.b16 %v460
        %v3054 = vunpack.c.l.b16 %v461
        %v3055 = vunpack.c.h.b16 %v461
        %v3056 = vunpack.c.l.b16 %v462
        %v3057 = vunpack.c.h.b16 %v462
        %v3058 = vunpack.c.l.b16 %v463
        %v3059 = vunpack.c.h.b16 %v463
        %v3060 = vunpack.c.l.b16 %v464
        %v3061 = vunpack.c.h.b16 %v464
        %v3062 = vunpack.c.l.b16 %v465
        %v3063 = vunpack.c.h.b16 %v465
        %v3064 = vunpack.c.l.b16 %v466
        %v3065 = vunpack.c.h.b16 %v466
        %v3066 = vunpack.c.l.b16 %v467
        %v3067 = vunpack.c.h.b16 %v467
        %v3068 = vunpack.c.l.b16 %v468
        %v3069 = vunpack.c.h.b16 %v468
        %v3070 = vunpack.c.l.b16 %v469
        %v3071 = vunpack.c.h.b16 %v469
        %v3072 = vunpack.c.l.b16 %v470
        %v3073 = vunpack.c.h.b16 %v470
        %v3074 = vunpack.c.l.b16 %v471
        %v3075 = vunpack.c.h.b16 %v471
        %v3076 = vunpack.c.l.b16 %v472
        %v3077 = vunpack.c.h.b16 %v472
        %v3078 = vunpack.c.l.b16 %v473
        %v3079 = vunpack.c.h.b16 %v473
        %v3080 = vunpack.c.l.b16 %v474
        %v3081 = vunpack.c.h.b16 %v474
        %v3082 = vunpack.c.l.b16 %v475
        %v3083 = vunpack.c.h.b16 %v475
        %v3084 = vunpack.c.l.b16 %v476
        %v3085 = vunpack.c.h.b16 %v476
        %v3086 = vunpack.c.l.b16 %v477
        %v3087 = vunpack.c.h.b16 %v477
        %v3088 = vunpack.c.l.b16 %v478
        %v3089 = vunpack.c.h.b16 %v478
        %v3090 = vunpack.c.l.b16 %v479
        %v3091 = vunpack.c.h.b16 %v479
        %v3092 = vunpack.c.l.b16 %v480
        %v3093 = vunpack.c.h.b16 %v480
        %v3094 = vunpack.c.l.b16 %v481
        %v3095 = vunpack.c.h.b16 %v481
        %v3096 = vunpack.c.l.b16 %v482
        %v3097 = vunpack.c.h.b16 %v482
        %v3098 = vunpack.c.l.b16 %v483
        %v3099 = vunpack.c.h.b16 %v483
        %v3100 = vunpack.c.l.b16 %v484
        %v3101 = vunpack.c.h.b16 %v484
        %v3102 = vunpack.c.l.b16 %v485
        %v3103 = vunpack.c.h.b16 %v485
        %v3104 = vunpack.c.l.b16 %v486
        %v3105 = vunpack.c.h.b16 %v486
        %v3106 = vunpack.c.l.b16 %v487
        %v3107 = vunpack.c.h.b16 %v487
        %v3108 = vunpack.c.l.b16 %v488
        %v3109 = vunpack.c.h.b16 %v488
        %v3110 = vunpack.c.l.b16 %v489
        %v3111 = vunpack.c.h.b16 %v489
        %v3112 = vunpack.c.l.b16 %v490
        %v3113 = vunpack.c.h.b16 %v490
        %v3114 = vunpack.c.l.b16 %v491
        %v3115 = vunpack.c.h.b16 %v491
        %v3116 = vunpack.c.l.b16 %v492
        %v3117 = vunpack.c.h.b16 %v492
        %v3118 = vunpack.c.l.b16 %v493
        %v3119 = vunpack.c.h.b16 %v493
        %v3120 = vunpack.c.l.b16 %v494
        %v3121 = vunpack.c.h.b16 %v494
        %v3122 = vunpack.c.l.b16 %v495
        %v3123 = vunpack.c.h.b16 %v495
        %v3124 = vunpack.c.l.b16 %v496
        %v3125 = vunpack.c.h.b16 %v496
        %v3126 = vunpack.c.l.b16 %v497
        %v3127 = vunpack.c.h.b16 %v497
        %v3128 = vunpack.c.l.b16 %v498
        %v3129 = vunpack.c.h.b16 %v498
        %v3130 = vunpack.c.l.b16 %v499
        %v3131 = vunpack.c.h.b16 %v499
        %v3132 = vunpack.c.l.b16 %v500
        %v3133 = vunpack.c.h.b16 %v500
        %v3134 = vunpack.c.l.b16 %v501
        %v3135 = vunpack.c.h.b16 %v501
        %v3136 = vunpack.c.l.b16 %v502
        %v3137 = vunpack.c.h.b16 %v502
        %v3138 = vunpack.c.l.b16 %v503
        %v3139 = vunpack.c.h.b16 %v503
        %v3140 = vunpack.c.l.b16 %v504
        %v3141 = vunpack.c.h.b16 %v504
        %v3142 = vunpack.c.l.b16 %v505
        %v3143 = vunpack.c.h.b16 %v505
        %v3144 = vunpack.c.l.b16 %v506
        %v3145 = vunpack.c.h.b16 %v506
        %v3146 = vunpack.c.l.b16 %v507
        %v3147 = vunpack.c.h.b16 %v507
        %v3148 = vunpack.c.l.b16 %v508
        %v3149 = vunpack.c.h.b16 %v508
        %v3150 = vunpack.c.l.b16 %v509
        %v3151 = vunpack.c.h.b16 %v509
        %v3152 = vunpack.c.l.b16 %v510
        %v3153 = vunpack.c.h.b16 %v510
        %v3154 = vunpack.c.l.b16 %v511
        %v3155 = vunpack.c.h.b16 %v511
        %v3156 = vunpack.c.l.b16 %v512
        %v3157 = vunpack.c.h.b16 %v512
        %v3158 = vunpack.c.l.b16 %v513
        %v3159 = vunpack.c.h.b16 %v513
        %v3160 = vunpack.c.l.b16 %v514
        %v3161 = vunpack.c.h.b16 %v514
        %v3162 = vunpack.c.l.b16 %v515
        %v3163 = vunpack.c.h.b16 %v515
        %v3164 = vunpack.c.l.b16 %v516
        %v3165 = vunpack.c.h.b16 %v516
        %v3166 = vunpack.c.l.b16 %v517
        %v3167 = vunpack.c.h.b16 %v517
        %v3168 = vunpack.c.l.b16 %v518
        %v3169 = vunpack.c.h.b16 %v518
        %v3170 = vunpack.c.l.b16 %v519
        %v3171 = vunpack.c.h.b16 %v519
        %v3172 = vunpack.c.l.b16 %v520
        %v3173 = vunpack.c.h.b16 %v520
        %v3174 = vunpack.c.l.b16 %v521
        %v3175 = vunpack.c.h.b16 %v521
        %v3176 = vunpack.c.l.b16 %v522
        %v3177 = vunpack.c.h.b16 %v522
        %v3178 = vunpack.c.l.b16 %v523
        %v3179 = vunpack.c.h.b16 %v523
        %v3180 = vunpack.c.l.b16 %v524
        %v3181 = vunpack.c.h.b16 %v524
        %v3182 = vunpack.c.l.b16 %v525
        %v3183 = vunpack.c.h.b16 %v525
        %v3184 = vunpack.c.l.b16 %v526
        %v3185 = vunpack.c.h.b16 %v526
        %v3186 = vunpack.c.l.b16 %v527
        %v3187 = vunpack.c.h.b16 %v527
        %v3188 = vunpack.c.l.b16 %v528
        %v3189 = vunpack.c.h.b16 %v528
        %v3190 = vunpack.c.l.b16 %v529
        %v3191 = vunpack.c.h.b16 %v529
        %v3192 = vunpack.c.l.b16 %v530
        %v3193 = vunpack.c.h.b16 %v530
        %v3194 = vunpack.c.l.b16 %v531
        %v3195 = vunpack.c.h.b16 %v531
        %v3196 = vunpack.c.l.b16 %v532
        %v3197 = vunpack.c.h.b16 %v532
        %v3198 = vunpack.c.l.b16 %v533
        %v3199 = vunpack.c.h.b16 %v533
        %v3200 = vunpack.c.l.b16 %v534
        %v3201 = vunpack.c.h.b16 %v534
        %v3202 = vunpack.c.l.b16 %v535
        %v3203 = vunpack.c.h.b16 %v535
        %v3204 = vunpack.c.l.b16 %v536
        %v3205 = vunpack.c.h.b16 %v536
        %v3206 = vunpack.c.l.b16 %v537
        %v3207 = vunpack.c.h.b16 %v537
        %v3208 = vunpack.c.l.b16 %v538
        %v3209 = vunpack.c.h.b16 %v538
        %v3210 = vunpack.c.l.b16 %v539
        %v3211 = vunpack.c.h.b16 %v539
        %v3212 = vunpack.c.l.b16 %v540
        %v3213 = vunpack.c.h.b16 %v540
        %v3214 = vunpack.c.l.b16 %v541
        %v3215 = vunpack.c.h.b16 %v541
        %v3216 = vunpack.c.l.b16 %v542
        %v3217 = vunpack.c.h.b16 %v542
        %v3218 = vunpack.c.l.b16 %v543
        %v3219 = vunpack.c.h.b16 %v543
        %v3220 = vunpack.c.l.b16 %v544
        %v3221 = vunpack.c.h.b16 %v544
        %v3222 = vunpack.c.l.b16 %v545
        %v3223 = vunpack.c.h.b16 %v545
        %v3224 = vunpack.c.l.b16 %v546
        %v3225 = vunpack.c.h.b16 %v546
        %v3226 = vunpack.c.l.b16 %v547
        %v3227 = vunpack.c.h.b16 %v547
        %v3228 = vunpack.c.l.b16 %v548
        %v3229 = vunpack.c.h.b16 %v548
        %v3230 = vunpack.c.l.b16 %v549
        %v3231 = vunpack.c.h.b16 %v549
        %v3232 = vunpack.c.l.b16 %v550
        %v3233 = vunpack.c.h.b16 %v550
        %v3234 = vunpack.c.l.b16 %v551
        %v3235 = vunpack.c.h.b16 %v551
        %v3236 = vunpack.c.l.b16 %v552
        %v3237 = vunpack.c.h.b16 %v552
        %v3238 = vunpack.c.l.b16 %v553
        %v3239 = vunpack.c.h.b16 %v553
        %v3240 = vunpack.c.l.b16 %v554
        %v3241 = vunpack.c.h.b16 %v554
        %v3242 = vunpack.c.l.b16 %v555
        %v3243 = vunpack.c.h.b16 %v555
        %v3244 = vunpack.c.l.b16 %v556
        %v3245 = vunpack.c.h.b16 %v556
        %v3246 = vunpack.c.l.b16 %v557
        %v3247 = vunpack.c.h.b16 %v557
        %v3248 = vunpack.c.l.b16 %v558
        %v3249 = vunpack.c.h.b16 %v558
        %v3250 = vunpack.c.l.b16 %v559
        %v3251 = vunpack.c.h.b16 %v559
        %v3252 = vunpack.c.l.b16 %v560
        %v3253 = vunpack.c.h.b16 %v560
        %v3254 = vunpack.c.l.b16 %v561
        %v3255 = vunpack.c.h.b16 %v561
        %v3256 = vunpack.c.l.b16 %v562
        %v3257 = vunpack.c.h.b16 %v562
        %v3258 = vunpack.c.l.b16 %v563
        %v3259 = vunpack.c.h.b16 %v563
        %v3260 = vunpack.c.l.b16 %v564
        %v3261 = vunpack.c.h.b16 %v564
        %v3262 = vunpack.c.l.b16 %v565
        %v3263 = vunpack.c.h.b16 %v565
        %v3264 = vunpack.c.l.b16 %v566
        %v3265 = vunpack.c.h.b16 %v566
        %v3266 = vunpack.c.l.b16 %v567
        %v3267 = vunpack.c.h.b16 %v567
        %v3268 = vunpack.c.l.b16 %v568
        %v3269 = vunpack.c.h.b16 %v568
        %v3270 = vunpack.c.l.b16 %v569
        %v3271 = vunpack.c.h.b16 %v569
        %v3272 = vunpack.c.l.b16 %v570
        %v3273 = vunpack.c.h.b16 %v570
        %v3274 = vunpack.c.l.b16 %v571
        %v3275 = vunpack.c.h.b16 %v571
        %v3276 = vunpack.c.l.b16 %v572
        %v3277 = vunpack.c.h.b16 %v572
        %v3278 = vunpack.c.l.b16 %v573
        %v3279 = vunpack.c.h.b16 %v573
        %v3280 = vunpack.c.l.b16 %v574
        %v3281 = vunpack.c.h.b16 %v574
        %v3282 = vunpack.c.l.b16 %v575
        %v3283 = vunpack.c.h.b16 %v575
        %v3284 = vunpack.c.l.b16 %v576
        %v3285 = vunpack.c.h.b16 %v576
        %v3286 = vunpack.c.l.b16 %v577
        %v3287 = vunpack.c.h.b16 %v577
        %v3288 = vunpack.c.l.b16 %v578
        %v3289 = vunpack.c.h.b16 %v578
        %v3290 = vunpack.c.l.b16 %v579
        %v3291 = vunpack.c.h.b16 %v579
        %v3292 = vunpack.c.l.b16 %v580
        %v3293 = vunpack.c.h.b16 %v580
        %v3294 = vunpack.c.l.b16 %v581
        %v3295 = vunpack.c.h.b16 %v581
        %v3296 = vunpack.c.l.b16 %v582
        %v3297 = vunpack.c.h.b16 %v582
        %v3298 = vunpack.c.l.b16 %v583
        %v3299 = vunpack.c.h.b16 %v583
        %v3300 = vunpack.c.l.b16 %v584
        %v3301 = vunpack.c.h.b16 %v584
        %v3302 = vunpack.c.l.b16 %v585
        %v3303 = vunpack.c.h.b16 %v585
        %v3304 = vunpack.c.l.b16 %v586
        %v3305 = vunpack.c.h.b16 %v586
        %v3306 = vunpack.c.l.b16 %v587
        %v3307 = vunpack.c.h.b16 %v587
        %v3308 = vunpack.c.l.b16 %v588
        %v3309 = vunpack.c.h.b16 %v588
        %v3310 = vunpack.c.l.b16 %v589
        %v3311 = vunpack.c.h.b16 %v589
        %v3312 = vunpack.c.l.b16 %v590
        %v3313 = vunpack.c.h.b16 %v590
        %v3314 = vunpack.c.l.b16 %v591
        %v3315 = vunpack.c.h.b16 %v591
        %v3316 = vunpack.c.l.b16 %v592
        %v3317 = vunpack.c.h.b16 %v592
        %v3318 = vunpack.c.l.b16 %v593
        %v3319 = vunpack.c.h.b16 %v593
        %v3320 = vunpack.c.l.b16 %v594
        %v3321 = vunpack.c.h.b16 %v594
        %v3322 = vunpack.c.l.b16 %v595
        %v3323 = vunpack.c.h.b16 %v595
        %v3324 = vunpack.c.l.b16 %v596
        %v3325 = vunpack.c.h.b16 %v596
        %v3326 = vunpack.c.l.b16 %v597
        %v3327 = vunpack.c.h.b16 %v597
        %v3328 = vunpack.c.l.b16 %v598
        %v3329 = vunpack.c.h.b16 %v598
        %v3330 = vunpack.c.l.b16 %v599
        %v3331 = vunpack.c.h.b16 %v599
        %v3332 = vunpack.c.l.b16 %v600
        %v3333 = vunpack.c.h.b16 %v600
        %v3334 = vunpack.c.l.b16 %v601
        %v3335 = vunpack.c.h.b16 %v601
        %v3336 = vunpack.c.l.b16 %v602
        %v3337 = vunpack.c.h.b16 %v602
        %v3338 = vunpack.c.l.b16 %v603
        %v3339 = vunpack.c.h.b16 %v603
        %v3340 = vunpack.c.l.b16 %v604
        %v3341 = vunpack.c.h.b16 %v604
        %v3342 = vunpack.c.l.b16 %v605
        %v3343 = vunpack.c.h.b16 %v605
        %v3344 = vunpack.c.l.b16 %v606
        %v3345 = vunpack.c.h.b16 %v606
        %v3346 = vunpack.c.l.b16 %v607
        %v3347 = vunpack.c.h.b16 %v607
        %v3348 = vunpack.c.l.b16 %v608
        %v3349 = vunpack.c.h.b16 %v608
        %v3350 = vunpack.c.l.b16 %v609
        %v3351 = vunpack.c.h.b16 %v609
        %v3352 = vunpack.c.l.b16 %v610
        %v3353 = vunpack.c.h.b16 %v610
        %v3354 = vunpack.c.l.b16 %v611
        %v3355 = vunpack.c.h.b16 %v611
        %v3356 = vunpack.c.l.b16 %v612
        %v3357 = vunpack.c.h.b16 %v612
        %v3358 = vunpack.c.l.b16 %v613
        %v3359 = vunpack.c.h.b16 %v613
        %v3360 = vunpack.c.l.b16 %v614
        %v3361 = vunpack.c.h.b16 %v614
        %v3362 = vunpack.c.l.b16 %v615
        %v3363 = vunpack.c.h.b16 %v615
        %v3364 = vunpack.c.l.b16 %v616
        %v3365 = vunpack.c.h.b16 %v616
        %v3366 = vunpack.c.l.b16 %v617
        %v3367 = vunpack.c.h.b16 %v617
        %v3368 = vunpack.c.l.b16 %v618
        %v3369 = vunpack.c.h.b16 %v618
        %v3370 = vunpack.c.l.b16 %v619
        %v3371 = vunpack.c.h.b16 %v619
        %v3372 = vunpack.c.l.b16 %v620
        %v3373 = vunpack.c.h.b16 %v620
        %v3374 = vunpack.c.l.b16 %v621
        %v3375 = vunpack.c.h.b16 %v621
        %v3376 = vunpack.c.l.b16 %v622
        %v3377 = vunpack.c.h.b16 %v622
        %v3378 = vunpack.c.l.b16 %v623
        %v3379 = vunpack.c.h.b16 %v623
        %v3380 = vunpack.c.l.b16 %v624
        %v3381 = vunpack.c.h.b16 %v624
        %v3382 = vunpack.c.l.b16 %v625
        %v3383 = vunpack.c.h.b16 %v625
        %v3384 = vunpack.c.l.b16 %v626
        %v3385 = vunpack.c.h.b16 %v626
        %v3386 = vunpack.c.l.b16 %v627
        %v3387 = vunpack.c.h.b16 %v627
        %v3388 = vunpack.c.l.b16 %v628
        %v3389 = vunpack.c.h.b16 %v628
        %v3390 = vunpack.c.l.b16 %v629
        %v3391 = vunpack.c.h.b16 %v629
        %v3392 = vunpack.c.l.b16 %v630
        %v3393 = vunpack.c.h.b16 %v630
        %v3394 = vunpack.c.l.b16 %v631
        %v3395 = vunpack.c.h.b16 %v631
        %v3396 = vunpack.c.l.b16 %v632
        %v3397 = vunpack.c.h.b16 %v632
        %v3398 = vunpack.c.l.b16 %v633
        %v3399 = vunpack.c.h.b16 %v633
        %v3400 = vunpack.c.l.b16 %v634
        %v3401 = vunpack.c.h.b16 %v634
        %v3402 = vunpack.c.l.b16 %v635
        %v3403 = vunpack.c.h.b16 %v635
        %v3404 = vunpack.c.l.b16 %v636
        %v3405 = vunpack.c.h.b16 %v636
        %v3406 = vunpack.c.l.b16 %v637
        %v3407 = vunpack.c.h.b16 %v637
        %v3408 = vunpack.c.l.b16 %v638
        %v3409 = vunpack.c.h.b16 %v638
        %v3410 = vunpack.c.l.b16 %v639
        %v3411 = vunpack.c.h.b16 %v639
        %v3412 = vunpack.c.l.b16 %v640
        %v3413 = vunpack.c.h.b16 %v640
        %v3414 = vunpack.c.l.b16 %v641
        %v3415 = vunpack.c.h.b16 %v641
        %v3416 = vunpack.c.l.b16 %v642
        %v3417 = vunpack.c.h.b16 %v642
        %v3418 = vunpack.c.l.b16 %v643
        %v3419 = vunpack.c.h.b16 %v643
        %v3420 = vunpack.c.l.b16 %v644
        %v3421 = vunpack.c.h.b16 %v644
        %v3422 = vunpack.c.l.b16 %v645
        %v3423 = vunpack.c.h.b16 %v645
        %v3424 = vunpack.c.l.b16 %v646
        %v3425 = vunpack.c.h.b16 %v646
        %v3426 = vunpack.c.l.b16 %v647
        %v3427 = vunpack.c.h.b16 %v647
        %v3428 = vunpack.c.l.b16 %v648
        %v3429 = vunpack.c.h.b16 %v648
        %v3430 = vunpack.c.l.b16 %v649
        %v3431 = vunpack.c.h.b16 %v649
        %v3432 = vunpack.c.l.b16 %v650
        %v3433 = vunpack.c.h.b16 %v650
        %v3434 = vunpack.c.l.b16 %v651
        %v3435 = vunpack.c.h.b16 %v651
        %v3436 = vunpack.c.l.b16 %v652
        %v3437 = vunpack.c.h.b16 %v652
        %v3438 = vunpack.c.l.b16 %v653
        %v3439 = vunpack.c.h.b16 %v653
        %v3440 = vunpack.c.l.b16 %v654
        %v3441 = vunpack.c.h.b16 %v654
        %v3442 = vunpack.c.l.b16 %v655
        %v3443 = vunpack.c.h.b16 %v655
        %v3444 = vunpack.c.l.b16 %v656
        %v3445 = vunpack.c.h.b16 %v656
        %v3446 = vunpack.c.l.b16 %v657
        %v3447 = vunpack.c.h.b16 %v657
        %v3448 = vunpack.c.l.b16 %v658
        %v3449 = vunpack.c.h.b16 %v658
        %v3450 = vunpack.c.l.b16 %v659
        %v3451 = vunpack.c.h.b16 %v659
        %v3452 = vunpack.c.l.b16 %v660
        %v3453 = vunpack.c.h.b16 %v660
        %v3454 = vunpack.c.l.b16 %v661
        %v3455 = vunpack.c.h.b16 %v661
        %v3456 = vunpack.c.l.b16 %v662
        %v3457 = vunpack.c.h.b16 %v662
        %v3458 = vunpack.c.l.b16 %v663
        %v3459 = vunpack.c.h.b16 %v663
        %v3460 = vunpack.c.l.b16 %v664
        %v3461 = vunpack.c.h.b16 %v664
        %v3462 = vunpack.c.l.b16 %v665
        %v3463 = vunpack.c.h.b16 %v665
        %v3464 = vunpack.c.l.b16 %v666
        %v3465 = vunpack.c.h.b16 %v666
        %v3466 = vunpack.c.l.b16 %v667
        %v3467 = vunpack.c.h.b16 %v667
        %v3468 = vunpack.c.l.b16 %v668
        %v3469 = vunpack.c.h.b16 %v668
        %v3470 = vunpack.c.l.b16 %v669
        %v3471 = vunpack.c.h.b16 %v669
        %v3472 = vunpack.c.l.b16 %v670
        %v3473 = vunpack.c.h.b16 %v670
        %v3474 = vunpack.c.l.b16 %v671
        %v3475 = vunpack.c.h.b16 %v671
        %v3476 = vunpack.c.l.b16 %v672
        %v3477 = vunpack.c.h.b16 %v672
        %v3478 = vunpack.c.l.b16 %v673
        %v3479 = vunpack.c.h.b16 %v673
        %v3480 = vunpack.c.l.b16 %v674
        %v3481 = vunpack.c.h.b16 %v674
        %v3482 = vunpack.c.l.b16 %v675
        %v3483 = vunpack.c.h.b16 %v675
        %v3484 = vunpack.c.l.b16 %v676
        %v3485 = vunpack.c.h.b16 %v676
        %v3486 = vunpack.c.l.b16 %v677
        %v3487 = vunpack.c.h.b16 %v677
        %v3488 = vunpack.c.l.b16 %v678
        %v3489 = vunpack.c.h.b16 %v678
        %v3490 = vunpack.c.l.b16 %v679
        %v3491 = vunpack.c.h.b16 %v679
        %v3492 = vunpack.c.l.b16 %v680
        %v3493 = vunpack.c.h.b16 %v680
        %v3494 = vunpack.c.l.b16 %v681
        %v3495 = vunpack.c.h.b16 %v681
        %v3496 = vunpack.c.l.b16 %v682
        %v3497 = vunpack.c.h.b16 %v682
        %v3498 = vunpack.c.l.b16 %v683
        %v3499 = vunpack.c.h.b16 %v683
        %v3500 = vunpack.c.l.b16 %v684
        %v3501 = vunpack.c.h.b16 %v684
        %v3502 = vunpack.c.l.b16 %v685
        %v3503 = vunpack.c.h.b16 %v685
        %v3504 = vunpack.c.l.b16 %v686
        %v3505 = vunpack.c.h.b16 %v686
        %v3506 = vunpack.c.l.b16 %v687
        %v3507 = vunpack.c.h.b16 %v687
        %v3508 = vunpack.c.l.b16 %v688
        %v3509 = vunpack.c.h.b16 %v688
        %v3510 = vunpack.c.l.b16 %v689
        %v3511 = vunpack.c.h.b16 %v689
        %v3512 = vunpack.c.l.b16 %v690
        %v3513 = vunpack.c.h.b16 %v690
        %v3514 = vunpack.c.l.b16 %v691
        %v3515 = vunpack.c.h.b16 %v691
        %v3516 = vunpack.c.l.b16 %v692
        %v3517 = vunpack.c.h.b16 %v692
        %v3518 = vunpack.c.l.b16 %v693
        %v3519 = vunpack.c.h.b16 %v693
        %v3520 = vunpack.c.l.b16 %v694
        %v3521 = vunpack.c.h.b16 %v694
        %v3522 = vunpack.c.l.b16 %v695
        %v3523 = vunpack.c.h.b16 %v695
        %v3524 = vunpack.c.l.b16 %v696
        %v3525 = vunpack.c.h.b16 %v696
        %v3526 = vunpack.c.l.b16 %v697
        %v3527 = vunpack.c.h.b16 %v697
        %v3528 = vunpack.c.l.b16 %v698
        %v3529 = vunpack.c.h.b16 %v698
        %v3530 = vunpack.c.l.b16 %v699
        %v3531 = vunpack.c.h.b16 %v699
        %v3532 = vunpack.c.l.b16 %v700
        %v3533 = vunpack.c.h.b16 %v700
        %v3534 = vunpack.c.l.b16 %v701
        %v3535 = vunpack.c.h.b16 %v701
        %v3536 = vunpack.c.l.b16 %v702
        %v3537 = vunpack.c.h.b16 %v702
        %v3538 = vunpack.c.l.b16 %v703
        %v3539 = vunpack.c.h.b16 %v703
        %v3540 = vunpack.c.l.b16 %v704
        %v3541 = vunpack.c.h.b16 %v704
        %v3542 = vunpack.c.l.b16 %v705
        %v3543 = vunpack.c.h.b16 %v705
        %v3544 = vunpack.c.l.b16 %v706
        %v3545 = vunpack.c.h.b16 %v706
        %v3546 = vunpack.c.l.b16 %v707
        %v3547 = vunpack.c.h.b16 %v707
        %v3548 = vunpack.c.l.b16 %v708
        %v3549 = vunpack.c.h.b16 %v708
        %v3550 = vunpack.c.l.b16 %v709
        %v3551 = vunpack.c.h.b16 %v709
        %v3552 = vunpack.c.l.b16 %v710
        %v3553 = vunpack.c.h.b16 %v710
        %v3554 = vunpack.c.l.b16 %v711
        %v3555 = vunpack.c.h.b16 %v711
        %v3556 = vunpack.c.l.b16 %v712
        %v3557 = vunpack.c.h.b16 %v712
        %v3558 = vunpack.c.l.b16 %v713
        %v3559 = vunpack.c.h.b16 %v713
        %v3560 = vunpack.c.l.b16 %v714
        %v3561 = vunpack.c.h.b16 %v714
        %v3562 = vunpack.c.l.b16 %v715
        %v3563 = vunpack.c.h.b16 %v715
        %v3564 = vunpack.c.l.b16 %v716
        %v3565 = vunpack.c.h.b16 %v716
        %v3566 = vunpack.c.l.b16 %v717
        %v3567 = vunpack.c.h.b16 %v717
        %v3568 = vunpack.c.l.b16 %v718
        %v3569 = vunpack.c.h.b16 %v718
        %v3570 = vunpack.c.l.b16 %v719
        %v3571 = vunpack.c.h.b16 %v719
        %v3572 = vunpack.c.l.b16 %v720
        %v3573 = vunpack.c.h.b16 %v720
        %v3574 = vunpack.c.l.b16 %v721
        %v3575 = vunpack.c.h.b16 %v721
        %v3576 = vunpack.c.l.b16 %v722
        %v3577 = vunpack.c.h.b16 %v722
        %v3578 = vunpack.c.l.b16 %v723
        %v3579 = vunpack.c.h.b16 %v723
        %v3580 = vunpack.c.l.b16 %v724
        %v3581 = vunpack.c.h.b16 %v724
        %v3582 = vunpack.c.l.b16 %v725
        %v3583 = vunpack.c.h.b16 %v725
        %v3584 = vunpack.c.l.b16 %v726
        %v3585 = vunpack.c.h.b16 %v726
        %v3586 = vunpack.c.l.b16 %v727
        %v3587 = vunpack.c.h.b16 %v727
        %v3588 = vunpack.c.l.b16 %v728
        %v3589 = vunpack.c.h.b16 %v728
        %v3590 = vunpack.c.l.b16 %v729
        %v3591 = vunpack.c.h.b16 %v729
        %v3592 = vunpack.c.l.b16 %v730
        %v3593 = vunpack.c.h.b16 %v730
        %v3594 = vunpack.c.l.b16 %v731
        %v3595 = vunpack.c.h.b16 %v731
        %v3596 = vunpack.c.l.b16 %v732
        %v3597 = vunpack.c.h.b16 %v732
        %v3598 = vunpack.c.l.b16 %v733
        %v3599 = vunpack.c.h.b16 %v733
        %v3600 = vunpack.c.l.b16 %v734
        %v3601 = vunpack.c.h.b16 %v734
        %v3602 = vunpack.c.l.b16 %v735
        %v3603 = vunpack.c.h.b16 %v735
        %v3604 = vunpack.c.l.b16 %v736
        %v3605 = vunpack.c.h.b16 %v736
        %v3606 = vunpack.c.l.b16 %v737
        %v3607 = vunpack.c.h.b16 %v737
        %v3608 = vunpack.c.l.b16 %v738
        %v3609 = vunpack.c.h.b16 %v738
        %v3610 = vunpack.c.l.b16 %v739
        %v3611 = vunpack.c.h.b16 %v739
        %v3612 = vunpack.c.l.b16 %v740
        %v3613 = vunpack.c.h.b16 %v740
        %v3614 = vunpack.c.l.b16 %v741
        %v3615 = vunpack.c.h.b16 %v741
        %v3616 = vunpack.c.l.b16 %v742
        %v3617 = vunpack.c.h.b16 %v742
        %v3618 = vunpack.c.l.b16 %v743
        %v3619 = vunpack.c.h.b16 %v743
        %v3620 = vunpack.c.l.b16 %v744
        %v3621 = vunpack.c.h.b16 %v744
        %v3622 = vunpack.c.l.b16 %v745
        %v3623 = vunpack.c.h.b16 %v745
        %v3624 = vunpack.c.l.b16 %v746
        %v3625 = vunpack.c.h.b16 %v746
        %v3626 = vunpack.c.l.b16 %v747
        %v3627 = vunpack.c.h.b16 %v747
        %v3628 = vunpack.c.l.b16 %v748
        %v3629 = vunpack.c.h.b16 %v748
        %v3630 = vunpack.c.l.b16 %v749
        %v3631 = vunpack.c.h.b16 %v749
        %v3632 = vunpack.c.l.b16 %v750
        %v3633 = vunpack.c.h.b16 %v750
        %v3634 = vunpack.c.l.b16 %v751
        %v3635 = vunpack.c.h.b16 %v751
        %v3636 = vunpack.c.l.b16 %v752
        %v3637 = vunpack.c.h.b16 %v752
        %v3638 = vunpack.c.l.b16 %v753
        %v3639 = vunpack.c.h.b16 %v753
        %v3640 = vunpack.c.l.b16 %v754
        %v3641 = vunpack.c.h.b16 %v754
        %v3642 = vunpack.c.l.b16 %v755
        %v3643 = vunpack.c.h.b16 %v755
        %v3644 = vunpack.c.l.b16 %v756
        %v3645 = vunpack.c.h.b16 %v756
        %v3646 = vunpack.c.l.b16 %v757
        %v3647 = vunpack.c.h.b16 %v757
        %v3648 = vunpack.c.l.b16 %v758
        %v3649 = vunpack.c.h.b16 %v758
        %v3650 = vunpack.c.l.b16 %v759
        %v3651 = vunpack.c.h.b16 %v759
        %v3652 = vunpack.c.l.b16 %v760
        %v3653 = vunpack.c.h.b16 %v760
        %v3654 = vunpack.c.l.b16 %v761
        %v3655 = vunpack.c.h.b16 %v761
        %v3656 = vunpack.c.l.b16 %v762
        %v3657 = vunpack.c.h.b16 %v762
        %v3658 = vunpack.c.l.b16 %v763
        %v3659 = vunpack.c.h.b16 %v763
        %v3660 = vunpack.c.l.b16 %v764
        %v3661 = vunpack.c.h.b16 %v764
        %v3662 = vunpack.c.l.b16 %v765
        %v3663 = vunpack.c.h.b16 %v765
        %v3664 = vunpack.c.l.b16 %v766
        %v3665 = vunpack.c.h.b16 %v766
        %v3666 = vunpack.c.l.b16 %v767
        %v3667 = vunpack.c.h.b16 %v767
        %v3668 = vunpack.c.l.b16 %v768
        %v3669 = vunpack.c.h.b16 %v768
        %v3670 = vunpack.c.l.b16 %v769
        %v3671 = vunpack.c.h.b16 %v769
        %v3672 = vunpack.c.l.b16 %v770
        %v3673 = vunpack.c.h.b16 %v770
        %v3674 = vunpack.c.l.b16 %v771
        %v3675 = vunpack.c.h.b16 %v771
        %v3676 = vunpack.c.l.b16 %v772
        %v3677 = vunpack.c.h.b16 %v772
        %v3678 = vunpack.c.l.b16 %v773
        %v3679 = vunpack.c.h.b16 %v773
        %v3680 = vunpack.c.l.b16 %v774
        %v3681 = vunpack.c.h.b16 %v774
        %v3682 = vunpack.c.l.b16 %v775
        %v3683 = vunpack.c.h.b16 %v775
        %v3684 = vunpack.c.l.b16 %v776
        %v3685 = vunpack.c.h.b16 %v776
        %v3686 = vunpack.c.l.b16 %v777
        %v3687 = vunpack.c.h.b16 %v777
        %v3688 = vunpack.c.l.b16 %v778
        %v3689 = vunpack.c.h.b16 %v778
        %v3690 = vunpack.c.l.b16 %v779
        %v3691 = vunpack.c.h.b16 %v779
        %v3692 = vunpack.c.l.b16 %v780
        %v3693 = vunpack.c.h.b16 %v780
        %v3694 = vunpack.c.l.b16 %v781
        %v3695 = vunpack.c.h.b16 %v781
        %v3696 = vunpack.c.l.b16 %v782
        %v3697 = vunpack.c.h.b16 %v782
        %v3698 = vunpack.c.l.b16 %v783
        %v3699 = vunpack.c.h.b16 %v783
        %v3700 = vunpack.c.l.b16 %v784
        %v3701 = vunpack.c.h.b16 %v784
        %v3702 = vunpack.c.l.b16 %v785
        %v3703 = vunpack.c.h.b16 %v785
        %v3704 = vunpack.c.l.b16 %v786
        %v3705 = vunpack.c.h.b16 %v786
        %v3706 = vunpack.c.l.b16 %v787
        %v3707 = vunpack.c.h.b16 %v787
        %v3708 = vunpack.c.l.b16 %v788
        %v3709 = vunpack.c.h.b16 %v788
        %v3710 = vunpack.c.l.b16 %v789
        %v3711 = vunpack.c.h.b16 %v789
        %v3712 = vunpack.c.l.b16 %v790
        %v3713 = vunpack.c.h.b16 %v790
        %v3714 = vunpack.c.l.b16 %v791
        %v3715 = vunpack.c.h.b16 %v791
        %v3716 = vunpack.c.l.b16 %v792
        %v3717 = vunpack.c.h.b16 %v792
        %v3718 = vunpack.c.l.b16 %v793
        %v3719 = vunpack.c.h.b16 %v793
        %v3720 = vunpack.c.l.b16 %v794
        %v3721 = vunpack.c.h.b16 %v794
        %v3722 = vunpack.c.l.b16 %v795
        %v3723 = vunpack.c.h.b16 %v795
        %v3724 = vunpack.c.l.b16 %v796
        %v3725 = vunpack.c.h.b16 %v796
        %v3726 = vunpack.c.l.b16 %v797
        %v3727 = vunpack.c.h.b16 %v797
        %v3728 = vunpack.c.l.b16 %v798
        %v3729 = vunpack.c.h.b16 %v798
        %v3730 = vunpack.c.l.b16 %v799
        %v3731 = vunpack.c.h.b16 %v799
        %v3732 = vunpack.c.l.b16 %v800
        %v3733 = vunpack.c.h.b16 %v800
        %v3734 = vunpack.c.l.b16 %v801
        %v3735 = vunpack.c.h.b16 %v801
        %v3736 = vunpack.c.l.b16 %v802
        %v3737 = vunpack.c.h.b16 %v802
        %v3738 = vunpack.c.l.b16 %v803
        %v3739 = vunpack.c.h.b16 %v803
        %v3740 = vunpack.c.l.b16 %v804
        %v3741 = vunpack.c.h.b16 %v804
        %v3742 = vunpack.c.l.b16 %v805
        %v3743 = vunpack.c.h.b16 %v805
        %v3744 = vunpack.c.l.b16 %v806
        %v3745 = vunpack.c.h.b16 %v806
        %v3746 = vunpack.c.l.b16 %v807
        %v3747 = vunpack.c.h.b16 %v807
        %v3748 = vunpack.c.l.b16 %v808
        %v3749 = vunpack.c.h.b16 %v808
        %v3750 = vunpack.c.l.b16 %v809
        %v3751 = vunpack.c.h.b16 %v809
        %v3752 = vunpack.c.l.b16 %v810
        %v3753 = vunpack.c.h.b16 %v810
        %v3754 = vunpack.c.l.b16 %v811
        %v3755 = vunpack.c.h.b16 %v811
        %v3756 = vunpack.c.l.b16 %v812
        %v3757 = vunpack.c.h.b16 %v812
        %v3758 = vunpack.c.l.b16 %v813
        %v3759 = vunpack.c.h.b16 %v813
        %v3760 = vunpack.c.l.b16 %v814
        %v3761 = vunpack.c.h.b16 %v814
        %v3762 = vunpack.c.l.b16 %v815
        %v3763 = vunpack.c.h.b16 %v815
        %v3764 = vunpack.c.l.b16 %v816
        %v3765 = vunpack.c.h.b16 %v816
        %v3766 = vunpack.c.l.b16 %v817
        %v3767 = vunpack.c.h.b16 %v817
        %v3768 = vunpack.c.l.b16 %v818
        %v3769 = vunpack.c.h.b16 %v818
        %v3770 = vunpack.c.l.b16 %v819
        %v3771 = vunpack.c.h.b16 %v819
        %v3772 = vunpack.c.l.b16 %v820
        %v3773 = vunpack.c.h.b16 %v820
        %v3774 = vunpack.c.l.b16 %v821
        %v3775 = vunpack.c.h.b16 %v821
        %v3776 = vunpack.c.l.b16 %v822
        %v3777 = vunpack.c.h.b16 %v822
        %v3778 = vunpack.c.l.b16 %v823
        %v3779 = vunpack.c.h.b16 %v823
        %v3780 = vunpack.c.l.b16 %v824
        %v3781 = vunpack.c.h.b16 %v824
        %v3782 = vunpack.c.l.b16 %v825
        %v3783 = vunpack.c.h.b16 %v825
        %v3784 = vunpack.c.l.b16 %v826
        %v3785 = vunpack.c.h.b16 %v826
        %v3786 = vunpack.c.l.b16 %v827
        %v3787 = vunpack.c.h.b16 %v827
        %v3788 = vunpack.c.l.b16 %v828
        %v3789 = vunpack.c.h.b16 %v828
        %v3790 = vunpack.c.l.b16 %v829
        %v3791 = vunpack.c.h.b16 %v829
        %v3792 = vunpack.c.l.b16 %v830
        %v3793 = vunpack.c.h.b16 %v830
        %v3794 = vunpack.c.l.b16 %v831
        %v3795 = vunpack.c.h.b16 %v831
        %v3796 = vunpack.c.l.b16 %v832
        %v3797 = vunpack.c.h.b16 %v832
        %v3798 = vunpack.c.l.b16 %v833
        %v3799 = vunpack.c.h.b16 %v833
        %v3800 = vunpack.c.l.b16 %v834
        %v3801 = vunpack.c.h.b16 %v834
        %v3802 = vunpack.c.l.b16 %v835
        %v3803 = vunpack.c.h.b16 %v835
        %v3804 = vunpack.c.l.b16 %v836
        %v3805 = vunpack.c.h.b16 %v836
        %v3806 = vunpack.c.l.b16 %v837
        %v3807 = vunpack.c.h.b16 %v837
        %v3808 = vunpack.c.l.b16 %v838
        %v3809 = vunpack.c.h.b16 %v838
        %v3810 = vunpack.c.l.b16 %v839
        %v3811 = vunpack.c.h.b16 %v839
        %v3812 = vunpack.c.l.b16 %v840
        %v3813 = vunpack.c.h.b16 %v840
        %v3814 = vunpack.c.l.b16 %v841
        %v3815 = vunpack.c.h.b16 %v841
        %v3816 = vunpack.c.l.b16 %v842
        %v3817 = vunpack.c.h.b16 %v842
        %v3818 = vunpack.c.l.b16 %v843
        %v3819 = vunpack.c.h.b16 %v843
        %v3820 = vunpack.c.l.b16 %v844
        %v3821 = vunpack.c.h.b16 %v844
        %v3822 = vunpack.c.l.b16 %v845
        %v3823 = vunpack.c.h.b16 %v845
        %v3824 = vunpack.c.l.b16 %v846
        %v3825 = vunpack.c.h.b16 %v846
        %v3826 = vunpack.c.l.b16 %v847
        %v3827 = vunpack.c.h.b16 %v847
        %v3828 = vunpack.c.l.b16 %v848
        %v3829 = vunpack.c.h.b16 %v848
        %v3830 = vunpack.c.l.b16 %v849
        %v3831 = vunpack.c.h.b16 %v849
        %v3832 = vunpack.c.l.b16 %v850
        %v3833 = vunpack.c.h.b16 %v850
        %v3834 = vunpack.c.l.b16 %v851
        %v3835 = vunpack.c.h.b16 %v851
        %v3836 = vunpack.c.l.b16 %v852
        %v3837 = vunpack.c.h.b16 %v852
        %v3838 = vunpack.c.l.b16 %v853
        %v3839 = vunpack.c.h.b16 %v853
        %v3840 = vunpack.c.l.b16 %v854
        %v3841 = vunpack.c.h.b16 %v854
        %v3842 = vunpack.c.l.b16 %v855
        %v3843 = vunpack.c.h.b16 %v855
        %v3844 = vunpack.c.l.b16 %v856
        %v3845 = vunpack.c.h.b16 %v856
        %v3846 = vunpack.c.l.b16 %v857
        %v3847 = vunpack.c.h.b16 %v857
        %v3848 = vunpack.c.l.b16 %v858
        %v3849 = vunpack.c.h.b16 %v858
        %v3850 = vunpack.c.l.b16 %v859
        %v3851 = vunpack.c.h.b16 %v859
        %v3852 = vunpack.c.l.b16 %v860
        %v3853 = vunpack.c.h.b16 %v860
        %v3854 = vunpack.c.l.b16 %v861
        %v3855 = vunpack.c.h.b16 %v861
        %v3856 = vunpack.c.l.b16 %v862
        %v3857 = vunpack.c.h.b16 %v862
        %v3858 = vunpack.c.l.b16 %v863
        %v3859 = vunpack.c.h.b16 %v863
        %v3860 = vunpack.c.l.b16 %v864
        %v3861 = vunpack.c.h.b16 %v864
        %v3862 = vunpack.c.l.b16 %v865
        %v3863 = vunpack.c.h.b16 %v865
        %v3864 = vunpack.c.l.b16 %v866
        %v3865 = vunpack.c.h.b16 %v866
        %v3866 = vunpack.c.l.b16 %v867
        %v3867 = vunpack.c.h.b16 %v867
        %v3868 = vunpack.c.l.b16 %v868
        %v3869 = vunpack.c.h.b16 %v868
        %v3870 = vunpack.c.l.b16 %v869
        %v3871 = vunpack.c.h.b16 %v869
        %v3872 = vunpack.c.l.b16 %v870
        %v3873 = vunpack.c.h.b16 %v870
        %v3874 = vunpack.c.l.b16 %v871
        %v3875 = vunpack.c.h.b16 %v871
        %v3876 = vunpack.c.l.b16 %v872
        %v3877 = vunpack.c.h.b16 %v872
        %v3878 = vunpack.c.l.b16 %v873
        %v3879 = vunpack.c.h.b16 %v873
        %v3880 = vunpack.c.l.b16 %v874
        %v3881 = vunpack.c.h.b16 %v874
        %v3882 = vunpack.c.l.b16 %v875
        %v3883 = vunpack.c.h.b16 %v875
        %v3884 = vunpack.c.l.b16 %v876
        %v3885 = vunpack.c.h.b16 %v876
        %v3886 = vunpack.c.l.b16 %v877
        %v3887 = vunpack.c.h.b16 %v877
        %v3888 = vunpack.c.l.b16 %v878
        %v3889 = vunpack.c.h.b16 %v878
        %v3890 = vunpack.c.l.b16 %v879
        %v3891 = vunpack.c.h.b16 %v879
        %v3892 = vunpack.c.l.b16 %v880
        %v3893 = vunpack.c.h.b16 %v880
        %v3894 = vunpack.c.l.b16 %v881
        %v3895 = vunpack.c.h.b16 %v881
        %v3896 = vunpack.c.l.b16 %v882
        %v3897 = vunpack.c.h.b16 %v882
        %v3898 = vunpack.c.l.b16 %v883
        %v3899 = vunpack.c.h.b16 %v883
        %v3900 = vunpack.c.l.b16 %v884
        %v3901 = vunpack.c.h.b16 %v884
        %v3902 = vunpack.c.l.b16 %v885
        %v3903 = vunpack.c.h.b16 %v885
        %v3904 = vunpack.c.l.b16 %v886
        %v3905 = vunpack.c.h.b16 %v886
        %v3906 = vunpack.c.l.b16 %v887
        %v3907 = vunpack.c.h.b16 %v887
        %v3908 = vunpack.c.l.b16 %v888
        %v3909 = vunpack.c.h.b16 %v888
        %v3910 = vunpack.c.l.b16 %v889
        %v3911 = vunpack.c.h.b16 %v889
        %v3912 = vunpack.c.l.b16 %v890
        %v3913 = vunpack.c.h.b16 %v890
        %v3914 = vunpack.c.l.b16 %v891
        %v3915 = vunpack.c.h.b16 %v891
        %v3916 = vunpack.c.l.b16 %v892
        %v3917 = vunpack.c.h.b16 %v892
        %v3918 = vunpack.c.l.b16 %v893
        %v3919 = vunpack.c.h.b16 %v893
        %v3920 = vunpack.c.l.b16 %v894
        %v3921 = vunpack.c.h.b16 %v894
        %v3922 = vunpack.c.l.b16 %v895
        %v3923 = vunpack.c.h.b16 %v895
        %v3924 = vunpack.c.l.b16 %v896
        %v3925 = vunpack.c.h.b16 %v896
        %v3926 = vunpack.c.l.b16 %v897
        %v3927 = vunpack.c.h.b16 %v897
        %v3928 = vunpack.c.l.b16 %v898
        %v3929 = vunpack.c.h.b16 %v898
        %v3930 = vunpack.c.l.b16 %v899
        %v3931 = vunpack.c.h.b16 %v899
        %v3932 = vunpack.c.l.b16 %v900
        %v3933 = vunpack.c.h.b16 %v900
        %v3934 = vunpack.c.l.b16 %v901
        %v3935 = vunpack.c.h.b16 %v901
        %v3936 = vunpack.c.l.b16 %v902
        %v3937 = vunpack.c.h.b16 %v902
        %v3938 = vunpack.c.l.b16 %v903
        %v3939 = vunpack.c.h.b16 %v903
        %v3940 = vunpack.c.l.b16 %v904
        %v3941 = vunpack.c.h.b16 %v904
        %v3942 = vunpack.c.l.b16 %v905
        %v3943 = vunpack.c.h.b16 %v905
        %v3944 = vunpack.c.l.b16 %v906
        %v3945 = vunpack.c.h.b16 %v906
        %v3946 = vunpack.c.l.b16 %v907
        %v3947 = vunpack.c.h.b16 %v907
        %v3948 = vunpack.c.l.b16 %v908
        %v3949 = vunpack.c.h.b16 %v908
        %v3950 = vunpack.c.l.b16 %v909
        %v3951 = vunpack.c.h.b16 %v909
        %v3952 = vunpack.c.l.b16 %v910
        %v3953 = vunpack.c.h.b16 %v910
        %v3954 = vunpack.c.l.b16 %v911
        %v3955 = vunpack.c.h.b16 %v911
        %v3956 = vunpack.c.l.b16 %v912
        %v3957 = vunpack.c.h.b16 %v912
        %v3958 = vunpack.c.l.b16 %v913
        %v3959 = vunpack.c.h.b16 %v913
        %v3960 = vunpack.c.l.b16 %v914
        %v3961 = vunpack.c.h.b16 %v914
        %v3962 = vunpack.c.l.b16 %v915
        %v3963 = vunpack.c.h.b16 %v915
        %v3964 = vunpack.c.l.b16 %v916
        %v3965 = vunpack.c.h.b16 %v916
        %v3966 = vunpack.c.l.b16 %v917
        %v3967 = vunpack.c.h.b16 %v917
        %v3968 = vunpack.c.l.b16 %v918
        %v3969 = vunpack.c.h.b16 %v918
        %v3970 = vunpack.c.l.b16 %v919
        %v3971 = vunpack.c.h.b16 %v919
        %v3972 = vunpack.c.l.b16 %v920
        %v3973 = vunpack.c.h.b16 %v920
        %v3974 = vunpack.c.l.b16 %v921
        %v3975 = vunpack.c.h.b16 %v921
        %v3976 = vunpack.c.l.b16 %v922
        %v3977 = vunpack.c.h.b16 %v922
        %v3978 = vunpack.c.l.b16 %v923
        %v3979 = vunpack.c.h.b16 %v923
        %v3980 = vunpack.c.l.b16 %v924
        %v3981 = vunpack.c.h.b16 %v924
        %v3982 = vunpack.c.l.b16 %v925
        %v3983 = vunpack.c.h.b16 %v925
        %v3984 = vunpack.c.l.b16 %v926
        %v3985 = vunpack.c.h.b16 %v926
        %v3986 = vunpack.c.l.b16 %v927
        %v3987 = vunpack.c.h.b16 %v927
        %v3988 = vunpack.c.l.b16 %v928
        %v3989 = vunpack.c.h.b16 %v928
        %v3990 = vunpack.c.l.b16 %v929
        %v3991 = vunpack.c.h.b16 %v929
        %v3992 = vunpack.c.l.b16 %v930
        %v3993 = vunpack.c.h.b16 %v930
        %v3994 = vunpack.c.l.b16 %v931
        %v3995 = vunpack.c.h.b16 %v931
        %v3996 = vunpack.c.l.b16 %v932
        %v3997 = vunpack.c.h.b16 %v932
        %v3998 = vunpack.c.l.b16 %v933
        %v3999 = vunpack.c.h.b16 %v933
        %v4000 = vunpack.c.l.b16 %v934
        %v4001 = vunpack.c.h.b16 %v934
        %v4002 = vunpack.c.l.b16 %v935
        %v4003 = vunpack.c.h.b16 %v935
        %v4004 = vunpack.c.l.b16 %v936
        %v4005 = vunpack.c.h.b16 %v936
        %v4006 = vunpack.c.l.b16 %v937
        %v4007 = vunpack.c.h.b16 %v937
        %v4008 = vunpack.c.l.b16 %v938
        %v4009 = vunpack.c.h.b16 %v938
        %v4010 = vunpack.c.l.b16 %v939
        %v4011 = vunpack.c.h.b16 %v939
        %v4012 = vunpack.c.l.b16 %v940
        %v4013 = vunpack.c.h.b16 %v940
        %v4014 = vunpack.c.l.b16 %v941
        %v4015 = vunpack.c.h.b16 %v941
        %v4016 = vunpack.c.l.b16 %v942
        %v4017 = vunpack.c.h.b16 %v942
        %v4018 = vunpack.c.l.b16 %v943
        %v4019 = vunpack.c.h.b16 %v943
        %v4020 = vunpack.c.l.b16 %v944
        %v4021 = vunpack.c.h.b16 %v944
        %v4022 = vunpack.c.l.b16 %v945
        %v4023 = vunpack.c.h.b16 %v945
        %v4024 = vunpack.c.l.b16 %v946
        %v4025 = vunpack.c.h.b16 %v946
        %v4026 = vunpack.c.l.b16 %v947
        %v4027 = vunpack.c.h.b16 %v947
        %v4028 = vunpack.c.l.b16 %v948
        %v4029 = vunpack.c.h.b16 %v948
        %v4030 = vunpack.c.l.b16 %v949
        %v4031 = vunpack.c.h.b16 %v949
        %v4032 = vunpack.c.l.b16 %v950
        %v4033 = vunpack.c.h.b16 %v950
        %v4034 = vunpack.c.l.b16 %v951
        %v4035 = vunpack.c.h.b16 %v951
        %v4036 = vunpack.c.l.b16 %v952
        %v4037 = vunpack.c.h.b16 %v952
        %v4038 = vunpack.c.l.b16 %v953
        %v4039 = vunpack.c.h.b16 %v953
        %v4040 = vunpack.c.l.b16 %v954
        %v4041 = vunpack.c.h.b16 %v954
        %v4042 = vunpack.c.l.b16 %v955
        %v4043 = vunpack.c.h.b16 %v955
        %v4044 = vunpack.c.l.b16 %v956
        %v4045 = vunpack.c.h.b16 %v956
        %v4046 = vunpack.c.l.b16 %v957
        %v4047 = vunpack.c.h.b16 %v957
        %v4048 = vunpack.c.l.b16 %v958
        %v4049 = vunpack.c.h.b16 %v958
        %v4050 = vunpack.c.l.b16 %v959
        %v4051 = vunpack.c.h.b16 %v959
        %v4052 = vunpack.c.l.b16 %v960
        %v4053 = vunpack.c.h.b16 %v960
        %v4054 = vunpack.c.l.b16 %v961
        %v4055 = vunpack.c.h.b16 %v961
        %v4056 = vunpack.c.l.b16 %v962
        %v4057 = vunpack.c.h.b16 %v962
        %v4058 = vunpack.c.l.b16 %v963
        %v4059 = vunpack.c.h.b16 %v963
        %v4060 = vunpack.c.l.b16 %v964
        %v4061 = vunpack.c.h.b16 %v964
        %v4062 = vunpack.c.l.b16 %v965
        %v4063 = vunpack.c.h.b16 %v965
        %v4064 = vunpack.c.l.b16 %v966
        %v4065 = vunpack.c.h.b16 %v966
        %v4066 = vunpack.c.l.b16 %v967
        %v4067 = vunpack.c.h.b16 %v967
        %v4068 = vunpack.c.l.b16 %v968
        %v4069 = vunpack.c.h.b16 %v968
        %v4070 = vunpack.c.l.b16 %v969
        %v4071 = vunpack.c.h.b16 %v969
        %v4072 = vunpack.c.l.b16 %v970
        %v4073 = vunpack.c.h.b16 %v970
        %v4074 = vunpack.c.l.b16 %v971
        %v4075 = vunpack.c.h.b16 %v971
        %v4076 = vunpack.c.l.b16 %v972
        %v4077 = vunpack.c.h.b16 %v972
        %v4078 = vunpack.c.l.b16 %v973
        %v4079 = vunpack.c.h.b16 %v973
        %v4080 = vunpack.c.l.b16 %v974
        %v4081 = vunpack.c.h.b16 %v974
        %v4082 = vunpack.c.l.b16 %v975
        %v4083 = vunpack.c.h.b16 %v975
        %v4084 = vunpack.c.l.b16 %v976
        %v4085 = vunpack.c.h.b16 %v976
        %v4086 = vunpack.c.l.b16 %v977
        %v4087 = vunpack.c.h.b16 %v977
        %v4088 = vunpack.c.l.b16 %v978
        %v4089 = vunpack.c.h.b16 %v978
        %v4090 = vunpack.c.l.b16 %v979
        %v4091 = vunpack.c.h.b16 %v979
        %v4092 = vunpack.c.l.b16 %v980
        %v4093 = vunpack.c.h.b16 %v980
        %v4094 = vunpack.c.l.b16 %v981
        %v4095 = vunpack.c.h.b16 %v981
        %v4096 = vunpack.c.l.b16 %v982
        %v4097 = vunpack.c.h.b16 %v982
        %v4098 = vunpack.c.l.b16 %v983
        %v4099 = vunpack.c.h.b16 %v983
        %v4100 = vunpack.c.l.b16 %v984
        %v4101 = vunpack.c.h.b16 %v984
        %v4102 = vunpack.c.l.b16 %v985
        %v4103 = vunpack.c.h.b16 %v985
        %v4104 = vunpack.c.l.b16 %v986
        %v4105 = vunpack.c.h.b16 %v986
        %v4106 = vunpack.c.l.b16 %v987
        %v4107 = vunpack.c.h.b16 %v987
        %v4108 = vunpack.c.l.b16 %v988
        %v4109 = vunpack.c.h.b16 %v988
        %v4110 = vunpack.c.l.b16 %v989
        %v4111 = vunpack.c.h.b16 %v989
        %v4112 = vunpack.c.l.b16 %v990
        %v4113 = vunpack.c.h.b16 %v990
        %v4114 = vunpack.c.l.b16 %v991
        %v4115 = vunpack.c.h.b16 %v991
        %v4116 = vunpack.c.l.b16 %v992
        %v4117 = vunpack.c.h.b16 %v992
        %v4118 = vunpack.c.l.b16 %v993
        %v4119 = vunpack.c.h.b16 %v993
        %v4120 = vunpack.c.l.b16 %v994
        %v4121 = vunpack.c.h.b16 %v994
        %v4122 = vunpack.c.l.b16 %v995
        %v4123 = vunpack.c.h.b16 %v995
        %v4124 = vunpack.c.l.b16 %v996
        %v4125 = vunpack.c.h.b16 %v996
        %v4126 = vunpack.c.l.b16 %v997
        %v4127 = vunpack.c.h.b16 %v997
        %v4128 = vunpack.c.l.b16 %v998
        %v4129 = vunpack.c.h.b16 %v998
        %v4130 = vunpack.c.l.b16 %v999
        %v4131 = vunpack.c.h.b16 %v999
        %v4132 = vunpack.c.l.b16 %v1000
        %v4133 = vunpack.c.h.b16 %v1000
        %v4134 = vunpack.c.l.b16 %v1001
        %v4135 = vunpack.c.h.b16 %v1001
        %v4136 = vunpack.c.l.b16 %v1002
        %v4137 = vunpack.c.h.b16 %v1002
        %v4138 = vunpack.c.l.b16 %v1003
        %v4139 = vunpack.c.h.b16 %v1003
        %v4140 = vunpack.c.l.b16 %v1004
        %v4141 = vunpack.c.h.b16 %v1004
        %v4142 = vunpack.c.l.b16 %v1005
        %v4143 = vunpack.c.h.b16 %v1005
        %v4144 = vunpack.c.l.b16 %v1006
        %v4145 = vunpack.c.h.b16 %v1006
        %v4146 = vunpack.c.l.b16 %v1007
        %v4147 = vunpack.c.h.b16 %v1007
        %v4148 = vunpack.c.l.b16 %v1008
        %v4149 = vunpack.c.h.b16 %v1008
        %v4150 = vunpack.c.l.b16 %v1009
        %v4151 = vunpack.c.h.b16 %v1009
        %v4152 = vunpack.c.l.b16 %v1010
        %v4153 = vunpack.c.h.b16 %v1010
        %v4154 = vunpack.c.l.b16 %v1011
        %v4155 = vunpack.c.h.b16 %v1011
        %v4156 = vunpack.c.l.b16 %v1012
        %v4157 = vunpack.c.h.b16 %v1012
        %v4158 = vunpack.c.l.b16 %v1013
        %v4159 = vunpack.c.h.b16 %v1013
        %v4160 = vunpack.c.l.b16 %v1014
        %v4161 = vunpack.c.h.b16 %v1014
        %v4162 = vunpack.c.l.b16 %v1015
        %v4163 = vunpack.c.h.b16 %v1015
        %v4164 = vunpack.c.l.b16 %v1016
        %v4165 = vunpack.c.h.b16 %v1016
        %v4166 = vunpack.c.l.b16 %v1017
        %v4167 = vunpack.c.h.b16 %v1017
        %v4168 = vunpack.c.l.b16 %v1018
        %v4169 = vunpack.c.h.b16 %v1018
        %v4170 = vunpack.c.l.b16 %v1019
        %v4171 = vunpack.c.h.b16 %v1019
        %v4172 = vunpack.c.l.b16 %v1020
        %v4173 = vunpack.c.h.b16 %v1020
        %v4174 = vunpack.c.l.b16 %v1021
        %v4175 = vunpack.c.h.b16 %v1021
        %v4176 = vunpack.c.l.b16 %v1022
        %v4177 = vunpack.c.h.b16 %v1022
        %v4178 = vunpack.c.l.b16 %v1023
        %v4179 = vunpack.c.h.b16 %v1023
        %v4180 = vunpack.c.l.b16 %v1024
        %v4181 = vunpack.c.h.b16 %v1024
        %v4182 = vunpack.c.l.b16 %v1025
        %v4183 = vunpack.c.h.b16 %v1025
        %v4184 = vunpack.c.l.b16 %v1026
        %v4185 = vunpack.c.h.b16 %v1026
        %v4186 = vunpack.c.l.b16 %v1027
        %v4187 = vunpack.c.h.b16 %v1027
        %v4188 = vunpack.c.l.b16 %v1028
        %v4189 = vunpack.c.h.b16 %v1028
        %v4190 = vunpack.c.l.b16 %v1029
        %v4191 = vunpack.c.h.b16 %v1029
        %v4192 = vunpack.c.l.b16 %v1030
        %v4193 = vunpack.c.h.b16 %v1030
        %v4194 = vunpack.c.l.b16 %v1031
        %v4195 = vunpack.c.h.b16 %v1031
        %v4196 = vunpack.c.l.b16 %v1032
        %v4197 = vunpack.c.h.b16 %v1032
        %v4198 = vunpack.c.l.b16 %v1033
        %v4199 = vunpack.c.h.b16 %v1033
        %v4200 = vunpack.c.l.b16 %v1034
        %v4201 = vunpack.c.h.b16 %v1034
        %v4202 = vunpack.c.l.b16 %v1035
        %v4203 = vunpack.c.h.b16 %v1035
        %v4204 = vunpack.c.l.b16 %v1036
        %v4205 = vunpack.c.h.b16 %v1036
        %v4206 = vunpack.c.l.b16 %v1037
        %v4207 = vunpack.c.h.b16 %v1037
        %v4208 = vunpack.c.l.b16 %v1038
        %v4209 = vunpack.c.h.b16 %v1038
        %v4210 = vunpack.c.l.b16 %v1039
        %v4211 = vunpack.c.h.b16 %v1039
        %v4212 = vunpack.c.l.b16 %v1040
        %v4213 = vunpack.c.h.b16 %v1040
        %v4214 = vunpack.c.l.b16 %v1041
        %v4215 = vunpack.c.h.b16 %v1041
        %v4216 = vunpack.c.l.b16 %v1042
        %v4217 = vunpack.c.h.b16 %v1042
        %v4218 = vunpack.c.l.b16 %v1043
        %v4219 = vunpack.c.h.b16 %v1043
        %v4220 = vunpack.c.l.b16 %v1044
        %v4221 = vunpack.c.h.b16 %v1044
        %v4222 = vunpack.c.l.b16 %v1045
        %v4223 = vunpack.c.h.b16 %v1045
        %v4224 = vunpack.c.l.b16 %v1046
        %v4225 = vunpack.c.h.b16 %v1046
        %v4226 = vunpack.c.l.b16 %v1047
        %v4227 = vunpack.c.h.b16 %v1047
        %v4228 = vunpack.c.l.b16 %v1048
        %v4229 = vunpack.c.h.b16 %v1048
        %v4230 = vunpack.c.l.b16 %v1049
        %v4231 = vunpack.c.h.b16 %v1049
        %v4232 = vunpack.c.l.b16 %v1050
        %v4233 = vunpack.c.h.b16 %v1050
        %v4234 = vunpack.c.l.b16 %v1051
        %v4235 = vunpack.c.h.b16 %v1051
        %v4236 = vunpack.c.l.b16 %v1052
        %v4237 = vunpack.c.h.b16 %v1052
        %v4238 = vunpack.c.l.b16 %v1053
        %v4239 = vunpack.c.h.b16 %v1053
        %v4240 = vunpack.c.l.b16 %v1054
        %v4241 = vunpack.c.h.b16 %v1054
        %v4242 = vunpack.c.l.b16 %v1055
        %v4243 = vunpack.c.h.b16 %v1055
        %v4244 = vunpack.c.l.b16 %v1056
        %v4245 = vunpack.c.h.b16 %v1056
        %v4246 = vunpack.c.l.b16 %v1057
        %v4247 = vunpack.c.h.b16 %v1057
        %v4248 = vunpack.c.l.b16 %v1058
        %v4249 = vunpack.c.h.b16 %v1058
        %v4250 = vunpack.c.l.b16 %v1059
        %v4251 = vunpack.c.h.b16 %v1059
        %v4252 = vunpack.c.l.b16 %v1060
        %v4253 = vunpack.c.h.b16 %v1060
        %v4254 = vunpack.c.l.b16 %v1061
        %v4255 = vunpack.c.h.b16 %v1061
        %v4256 = vunpack.c.l.b16 %v1062
        %v4257 = vunpack.c.h.b16 %v1062
        %v4258 = vunpack.c.l.b16 %v1063
        %v4259 = vunpack.c.h.b16 %v1063
        %v4260 = vunpack.c.l.b16 %v1064
        %v4261 = vunpack.c.h.b16 %v1064
        %v4262 = vunpack.c.l.b16 %v1065
        %v4263 = vunpack.c.h.b16 %v1065
        %v4264 = vunpack.c.l.b16 %v1066
        %v4265 = vunpack.c.h.b16 %v1066
        %v4266 = vunpack.c.l.b16 %v1067
        %v4267 = vunpack.c.h.b16 %v1067
        %v4268 = vunpack.c.l.b16 %v1068
        %v4269 = vunpack.c.h.b16 %v1068
        %v4270 = vunpack.c.l.b16 %v1069
        %v4271 = vunpack.c.h.b16 %v1069
        %v4272 = vunpack.c.l.b16 %v1070
        %v4273 = vunpack.c.h.b16 %v1070
        %v4274 = vunpack.c.l.b16 %v1071
        %v4275 = vunpack.c.h.b16 %v1071
        %v4276 = vunpack.c.l.b16 %v1072
        %v4277 = vunpack.c.h.b16 %v1072
        %v4278 = vunpack.c.l.b16 %v1073
        %v4279 = vunpack.c.h.b16 %v1073
        %v4280 = vunpack.c.l.b16 %v1074
        %v4281 = vunpack.c.h.b16 %v1074
        %v4282 = vunpack.c.l.b16 %v1075
        %v4283 = vunpack.c.h.b16 %v1075
        %v4284 = vunpack.c.l.b16 %v1076
        %v4285 = vunpack.c.h.b16 %v1076
        %v4286 = vunpack.c.l.b16 %v1077
        %v4287 = vunpack.c.h.b16 %v1077
        %v4288 = vunpack.c.l.b16 %v1078
        %v4289 = vunpack.c.h.b16 %v1078
        %v4290 = vunpack.c.l.b16 %v1079
        %v4291 = vunpack.c.h.b16 %v1079
        %v4292 = vunpack.c.l.b16 %v1080
        %v4293 = vunpack.c.h.b16 %v1080
        %v4294 = vunpack.c.l.b16 %v1081
        %v4295 = vunpack.c.h.b16 %v1081
        %v4296 = vunpack.c.l.b16 %v1082
        %v4297 = vunpack.c.h.b16 %v1082
        %v4298 = vunpack.c.l.b16 %v1083
        %v4299 = vunpack.c.h.b16 %v1083
        %v4300 = vunpack.c.l.b16 %v1084
        %v4301 = vunpack.c.h.b16 %v1084
        %v4302 = vunpack.c.l.b16 %v1085
        %v4303 = vunpack.c.h.b16 %v1085
        %v4304 = vunpack.c.l.b16 %v1086
        %v4305 = vunpack.c.h.b16 %v1086
        %v4306 = vunpack.c.l.b16 %v1087
        %v4307 = vunpack.c.h.b16 %v1087
        %v4308 = vunpack.c.l.b16 %v1088
        %v4309 = vunpack.c.h.b16 %v1088
        %v4310 = vunpack.c.l.b16 %v1089
        %v4311 = vunpack.c.h.b16 %v1089
        %v4312 = vunpack.c.l.b16 %v1090
        %v4313 = vunpack.c.h.b16 %v1090
        %v4314 = vunpack.c.l.b16 %v1091
        %v4315 = vunpack.c.h.b16 %v1091
        %v4316 = vunpack.c.l.b16 %v1092
        %v4317 = vunpack.c.h.b16 %v1092
        %v4318 = vunpack.c.l.b16 %v1093
        %v4319 = vunpack.c.h.b16 %v1093
        %v4320 = vunpack.c.l.b16 %v1094
        %v4321 = vunpack.c.h.b16 %v1094
        %v4322 = vunpack.c.l.b16 %v1095
        %v4323 = vunpack.c.h.b16 %v1095
        %v4324 = vunpack.c.l.b16 %v1096
        %v4325 = vunpack.c.h.b16 %v1096
        %v4326 = vunpack.c.l.b16 %v1097
        %v4327 = vunpack.c.h.b16 %v1097
        %v4328 = vunpack.c.l.b16 %v1098
        %v4329 = vunpack.c.h.b16 %v1098
        %v4330 = vunpack.c.l.b16 %v1099
        %v4331 = vunpack.c.h.b16 %v1099
        %v4332 = vunpack.c.l.b16 %v1100
        %v4333 = vunpack.c.h.b16 %v1100
        %v4334 = vunpack.c.l.b16 %v1101
        %v4335 = vunpack.c.h.b16 %v1101
        %v4336 = vunpack.c.l.b16 %v1102
        %v4337 = vunpack.c.h.b16 %v1102
        %v4338 = vunpack.c.l.b16 %v1103
        %v4339 = vunpack.c.h.b16 %v1103
        %v4340 = vunpack.c.l.b16 %v1104
        %v4341 = vunpack.c.h.b16 %v1104
        %v4342 = vunpack.c.l.b16 %v1105
        %v4343 = vunpack.c.h.b16 %v1105
        %v4344 = vunpack.c.l.b16 %v1106
        %v4345 = vunpack.c.h.b16 %v1106
        %v4346 = vunpack.c.l.b16 %v1107
        %v4347 = vunpack.c.h.b16 %v1107
        %v4348 = vunpack.c.l.b16 %v1108
        %v4349 = vunpack.c.h.b16 %v1108
        %v4350 = vunpack.c.l.b16 %v1109
        %v4351 = vunpack.c.h.b16 %v1109
        %v4352 = vunpack.c.l.b16 %v1110
        %v4353 = vunpack.c.h.b16 %v1110
        %v4354 = vunpack.c.l.b16 %v1111
        %v4355 = vunpack.c.h.b16 %v1111
        %v4356 = vunpack.c.l.b16 %v1112
        %v4357 = vunpack.c.h.b16 %v1112
        %v4358 = vunpack.c.l.b16 %v1113
        %v4359 = vunpack.c.h.b16 %v1113
        %v4360 = vunpack.c.l.b16 %v1114
        %v4361 = vunpack.c.h.b16 %v1114
        %v4362 = vunpack.c.l.b16 %v1115
        %v4363 = vunpack.c.h.b16 %v1115
        %v4364 = vunpack.c.l.b16 %v1116
        %v4365 = vunpack.c.h.b16 %v1116
        %v4366 = vunpack.c.l.b16 %v1117
        %v4367 = vunpack.c.h.b16 %v1117
        %v4368 = vunpack.c.l.b16 %v1118
        %v4369 = vunpack.c.h.b16 %v1118
        %v4370 = vunpack.c.l.b16 %v1119
        %v4371 = vunpack.c.h.b16 %v1119
        %v4372 = vunpack.c.l.b16 %v1120
        %v4373 = vunpack.c.h.b16 %v1120
        %v4374 = vunpack.c.l.b16 %v1121
        %v4375 = vunpack.c.h.b16 %v1121
        %v4376 = vunpack.c.l.b16 %v1122
        %v4377 = vunpack.c.h.b16 %v1122
        %v4378 = vunpack.c.l.b16 %v1123
        %v4379 = vunpack.c.h.b16 %v1123
        %v4380 = vunpack.c.l.b16 %v1124
        %v4381 = vunpack.c.h.b16 %v1124
        %v4382 = vunpack.c.l.b16 %v1125
        %v4383 = vunpack.c.h.b16 %v1125
        %v4384 = vunpack.c.l.b16 %v1126
        %v4385 = vunpack.c.h.b16 %v1126
        %v4386 = vunpack.c.l.b16 %v1127
        %v4387 = vunpack.c.h.b16 %v1127
        %v4388 = vunpack.c.l.b16 %v1128
        %v4389 = vunpack.c.h.b16 %v1128
        %v4390 = vunpack.c.l.b16 %v1129
        %v4391 = vunpack.c.h.b16 %v1129
        %v4392 = vunpack.c.l.b16 %v1130
        %v4393 = vunpack.c.h.b16 %v1130
        %v4394 = vunpack.c.l.b16 %v1131
        %v4395 = vunpack.c.h.b16 %v1131
        %v4396 = vunpack.c.l.b16 %v1132
        %v4397 = vunpack.c.h.b16 %v1132
        %v4398 = vunpack.c.l.b16 %v1133
        %v4399 = vunpack.c.h.b16 %v1133
        %v4400 = vunpack.c.l.b16 %v1134
        %v4401 = vunpack.c.h.b16 %v1134
        %v4402 = vunpack.c.l.b16 %v1135
        %v4403 = vunpack.c.h.b16 %v1135
        %v4404 = vunpack.c.l.b16 %v1136
        %v4405 = vunpack.c.h.b16 %v1136
        %v4406 = vunpack.c.l.b16 %v1137
        %v4407 = vunpack.c.h.b16 %v1137
        %v4408 = vunpack.c.l.b16 %v1138
        %v4409 = vunpack.c.h.b16 %v1138
        %v4410 = vunpack.c.l.b16 %v1139
        %v4411 = vunpack.c.h.b16 %v1139
        %v4412 = vunpack.c.l.b16 %v1140
        %v4413 = vunpack.c.h.b16 %v1140
        %v4414 = vunpack.c.l.b16 %v1141
        %v4415 = vunpack.c.h.b16 %v1141
        %v4416 = vunpack.c.l.b16 %v1142
        %v4417 = vunpack.c.h.b16 %v1142
        %v4418 = vunpack.c.l.b16 %v1143
        %v4419 = vunpack.c.h.b16 %v1143
        %v4420 = vunpack.c.l.b16 %v1144
        %v4421 = vunpack.c.h.b16 %v1144
        %v4422 = vunpack.c.l.b16 %v1145
        %v4423 = vunpack.c.h.b16 %v1145
        %v4424 = vunpack.c.l.b16 %v1146
        %v4425 = vunpack.c.h.b16 %v1146
        %v4426 = vunpack.c.l.b16 %v1147
        %v4427 = vunpack.c.h.b16 %v1147
        %v4428 = vunpack.c.l.b16 %v1148
        %v4429 = vunpack.c.h.b16 %v1148
        %v4430 = vunpack.c.l.b16 %v1149
        %v4431 = vunpack.c.h.b16 %v1149
        %v4432 = vunpack.c.l.b16 %v1150
        %v4433 = vunpack.c.h.b16 %v1150
        %v4434 = vunpack.c.l.b16 %v1151
        %v4435 = vunpack.c.h.b16 %v1151
        %v4436 = vunpack.c.l.b16 %v1152
        %v4437 = vunpack.c.h.b16 %v1152
        %v4438 = vunpack.c.l.b16 %v1153
        %v4439 = vunpack.c.h.b16 %v1153
        %v4440 = vunpack.c.l.b16 %v1154
        %v4441 = vunpack.c.h.b16 %v1154
        %v4442 = vunpack.c.l.b16 %v1155
        %v4443 = vunpack.c.h.b16 %v1155
        %v4444 = vunpack.c.l.b16 %v1156
        %v4445 = vunpack.c.h.b16 %v1156
        %v4446 = vunpack.c.l.b16 %v1157
        %v4447 = vunpack.c.h.b16 %v1157
        %v4448 = vunpack.c.l.b16 %v1158
        %v4449 = vunpack.c.h.b16 %v1158
        %v4450 = vunpack.c.l.b16 %v1159
        %v4451 = vunpack.c.h.b16 %v1159
        %v4452 = vunpack.c.l.b16 %v1160
        %v4453 = vunpack.c.h.b16 %v1160
        %v4454 = vunpack.c.l.b16 %v1161
        %v4455 = vunpack.c.h.b16 %v1161
        %v4456 = vunpack.c.l.b16 %v1162
        %v4457 = vunpack.c.h.b16 %v1162
        %v4458 = vunpack.c.l.b16 %v1163
        %v4459 = vunpack.c.h.b16 %v1163
        %v4460 = vunpack.c.l.b16 %v1164
        %v4461 = vunpack.c.h.b16 %v1164
        %v4462 = vunpack.c.l.b16 %v1165
        %v4463 = vunpack.c.h.b16 %v1165
        %v4464 = vunpack.c.l.b16 %v1166
        %v4465 = vunpack.c.h.b16 %v1166
        %v4466 = vunpack.c.l.b16 %v1167
        %v4467 = vunpack.c.h.b16 %v1167
        %v4468 = vunpack.c.l.b16 %v1168
        %v4469 = vunpack.c.h.b16 %v1168
        %v4470 = vunpack.c.l.b16 %v1169
        %v4471 = vunpack.c.h.b16 %v1169
        %v4472 = vunpack.c.l.b16 %v1170
        %v4473 = vunpack.c.h.b16 %v1170
        %v4474 = vunpack.c.l.b16 %v1171
        %v4475 = vunpack.c.h.b16 %v1171
        %v4476 = vunpack.c.l.b16 %v1172
        %v4477 = vunpack.c.h.b16 %v1172
        %v4478 = vunpack.c.l.b16 %v1173
        %v4479 = vunpack.c.h.b16 %v1173
        %v4480 = vunpack.c.l.b16 %v1174
        %v4481 = vunpack.c.h.b16 %v1174
        %v4482 = vunpack.c.l.b16 %v1175
        %v4483 = vunpack.c.h.b16 %v1175
        %v4484 = vunpack.c.l.b16 %v1176
        %v4485 = vunpack.c.h.b16 %v1176
        %v4486 = vunpack.c.l.b16 %v1177
        %v4487 = vunpack.c.h.b16 %v1177
        %v4488 = vunpack.c.l.b16 %v1178
        %v4489 = vunpack.c.h.b16 %v1178
        %v4490 = vunpack.c.l.b16 %v1179
        %v4491 = vunpack.c.h.b16 %v1179
        %v4492 = vunpack.c.l.b16 %v1180
        %v4493 = vunpack.c.h.b16 %v1180
        %v4494 = vunpack.c.l.b16 %v1181
        %v4495 = vunpack.c.h.b16 %v1181
        %v4496 = vunpack.c.l.b16 %v1182
        %v4497 = vunpack.c.h.b16 %v1182
        %v4498 = vunpack.c.l.b16 %v1183
        %v4499 = vunpack.c.h.b16 %v1183
        %v4500 = vunpack.c.l.b16 %v1184
        %v4501 = vunpack.c.h.b16 %v1184
        %v4502 = vunpack.c.l.b16 %v1185
        %v4503 = vunpack.c.h.b16 %v1185
        %v4504 = vunpack.c.l.b16 %v1186
        %v4505 = vunpack.c.h.b16 %v1186
        %v4506 = vunpack.c.l.b16 %v1187
        %v4507 = vunpack.c.h.b16 %v1187
        %v4508 = vunpack.c.l.b16 %v1188
        %v4509 = vunpack.c.h.b16 %v1188
        %v4510 = vunpack.c.l.b16 %v1189
        %v4511 = vunpack.c.h.b16 %v1189
        %v4512 = vunpack.c.l.b16 %v1190
        %v4513 = vunpack.c.h.b16 %v1190
        %v4514 = vunpack.c.l.b16 %v1191
        %v4515 = vunpack.c.h.b16 %v1191
        %v4516 = vunpack.c.l.b16 %v1192
        %v4517 = vunpack.c.h.b16 %v1192
        %v4518 = vunpack.c.l.b16 %v1193
        %v4519 = vunpack.c.h.b16 %v1193
        %v4520 = vunpack.c.l.b16 %v1194
        %v4521 = vunpack.c.h.b16 %v1194
        %v4522 = vunpack.c.l.b16 %v1195
        %v4523 = vunpack.c.h.b16 %v1195
        %v4524 = vunpack.c.l.b16 %v1196
        %v4525 = vunpack.c.h.b16 %v1196
        %v4526 = vunpack.c.l.b16 %v1197
        %v4527 = vunpack.c.h.b16 %v1197
        %v4528 = vunpack.c.l.b16 %v1198
        %v4529 = vunpack.c.h.b16 %v1198
        %v4530 = vunpack.c.l.b16 %v1199
        %v4531 = vunpack.c.h.b16 %v1199
        %v4532 = vunpack.c.l.b16 %v1200
        %v4533 = vunpack.c.h.b16 %v1200
        %v4534 = vunpack.c.l.b16 %v1201
        %v4535 = vunpack.c.h.b16 %v1201
        %v4536 = vunpack.c.l.b16 %v1202
        %v4537 = vunpack.c.h.b16 %v1202
        %v4538 = vunpack.c.l.b16 %v1203
        %v4539 = vunpack.c.h.b16 %v1203
        %v4540 = vunpack.c.l.b16 %v1204
        %v4541 = vunpack.c.h.b16 %v1204
        %v4542 = vunpack.c.l.b16 %v1205
        %v4543 = vunpack.c.h.b16 %v1205
        %v4544 = vunpack.c.l.b16 %v1206
        %v4545 = vunpack.c.h.b16 %v1206
        %v4546 = vunpack.c.l.b16 %v1207
        %v4547 = vunpack.c.h.b16 %v1207
        %v4548 = vunpack.c.l.b16 %v1208
        %v4549 = vunpack.c.h.b16 %v1208
        %v4550 = vunpack.c.l.b16 %v1209
        %v4551 = vunpack.c.h.b16 %v1209
        %v4552 = vunpack.c.l.b16 %v1210
        %v4553 = vunpack.c.h.b16 %v1210
        %v4554 = vunpack.c.l.b16 %v1211
        %v4555 = vunpack.c.h.b16 %v1211
        %v4556 = vunpack.c.l.b16 %v1212
        %v4557 = vunpack.c.h.b16 %v1212
        %v4558 = vunpack.c.l.b16 %v1213
        %v4559 = vunpack.c.h.b16 %v1213
        %v4560 = vunpack.c.l.b16 %v1214
        %v4561 = vunpack.c.h.b16 %v1214
        %v4562 = vunpack.c.l.b16 %v1215
        %v4563 = vunpack.c.h.b16 %v1215
        %v4564 = vunpack.c.l.b16 %v1216
        %v4565 = vunpack.c.h.b16 %v1216
        %v4566 = vunpack.c.l.b16 %v1217
        %v4567 = vunpack.c.h.b16 %v1217
        %v4568 = vunpack.c.l.b16 %v1218
        %v4569 = vunpack.c.h.b16 %v1218
        %v4570 = vunpack.c.l.b16 %v1219
        %v4571 = vunpack.c.h.b16 %v1219
        %v4572 = vunpack.c.l.b16 %v1220
        %v4573 = vunpack.c.h.b16 %v1220
        %v4574 = vunpack.c.l.b16 %v1221
        %v4575 = vunpack.c.h.b16 %v1221
        %v4576 = vunpack.c.l.b16 %v1222
        %v4577 = vunpack.c.h.b16 %v1222
        %v4578 = vunpack.c.l.b16 %v1223
        %v4579 = vunpack.c.h.b16 %v1223
        %v4580 = vunpack.c.l.b16 %v1224
        %v4581 = vunpack.c.h.b16 %v1224
        %v4582 = vunpack.c.l.b16 %v1225
        %v4583 = vunpack.c.h.b16 %v1225
        %v4584 = vunpack.c.l.b16 %v1226
        %v4585 = vunpack.c.h.b16 %v1226
        %v4586 = vunpack.c.l.b16 %v1227
        %v4587 = vunpack.c.h.b16 %v1227
        %v4588 = vunpack.c.l.b16 %v1228
        %v4589 = vunpack.c.h.b16 %v1228
        %v4590 = vunpack.c.l.b16 %v1229
        %v4591 = vunpack.c.h.b16 %v1229
        %v4592 = vunpack.c.l.b16 %v1230
        %v4593 = vunpack.c.h.b16 %v1230
        %v4594 = vunpack.c.l.b16 %v1231
        %v4595 = vunpack.c.h.b16 %v1231
        %v4596 = vunpack.c.l.b16 %v1232
        %v4597 = vunpack.c.h.b16 %v1232
        %v4598 = vunpack.c.l.b16 %v1233
        %v4599 = vunpack.c.h.b16 %v1233
        %v4600 = vunpack.c.l.b16 %v1234
        %v4601 = vunpack.c.h.b16 %v1234
        %v4602 = vunpack.c.l.b16 %v1235
        %v4603 = vunpack.c.h.b16 %v1235
        %v4604 = vunpack.c.l.b16 %v1236
        %v4605 = vunpack.c.h.b16 %v1236
        %v4606 = vunpack.c.l.b16 %v1237
        %v4607 = vunpack.c.h.b16 %v1237
        %v4608 = vunpack.c.l.b16 %v1238
        %v4609 = vunpack.c.h.b16 %v1238
        %v4610 = vunpack.c.l.b16 %v1239
        %v4611 = vunpack.c.h.b16 %v1239
        %v4612 = vunpack.c.l.b16 %v1240
        %v4613 = vunpack.c.h.b16 %v1240
        %v4614 = vunpack.c.l.b16 %v1241
        %v4615 = vunpack.c.h.b16 %v1241
        %v4616 = vunpack.c.l.b16 %v1242
        %v4617 = vunpack.c.h.b16 %v1242
        %v4618 = vunpack.c.l.b16 %v1243
        %v4619 = vunpack.c.h.b16 %v1243
        %v4620 = vunpack.c.l.b16 %v1244
        %v4621 = vunpack.c.h.b16 %v1244
        %v4622 = vunpack.c.l.b16 %v1245
        %v4623 = vunpack.c.h.b16 %v1245
        %v4624 = vunpack.c.l.b16 %v1246
        %v4625 = vunpack.c.h.b16 %v1246
        %v4626 = vunpack.c.l.b16 %v1247
        %v4627 = vunpack.c.h.b16 %v1247
        %v4628 = vunpack.c.l.b16 %v1248
        %v4629 = vunpack.c.h.b16 %v1248
        %v4630 = vunpack.c.l.b16 %v1249
        %v4631 = vunpack.c.h.b16 %v1249
        %v4632 = vunpack.c.l.b16 %v1250
        %v4633 = vunpack.c.h.b16 %v1250
        %v4634 = vunpack.c.l.b16 %v1251
        %v4635 = vunpack.c.h.b16 %v1251
        %v4636 = vunpack.c.l.b16 %v1252
        %v4637 = vunpack.c.h.b16 %v1252
        %v4638 = vunpack.c.l.b16 %v1253
        %v4639 = vunpack.c.h.b16 %v1253
        %v4640 = vunpack.c.l.b16 %v1254
        %v4641 = vunpack.c.h.b16 %v1254
        %v4642 = vunpack.c.l.b16 %v1255
        %v4643 = vunpack.c.h.b16 %v1255
        %v4644 = vunpack.c.l.b16 %v1256
        %v4645 = vunpack.c.h.b16 %v1256
        %v4646 = vunpack.c.l.b16 %v1257
        %v4647 = vunpack.c.h.b16 %v1257
        %v4648 = vunpack.c.l.b16 %v1258
        %v4649 = vunpack.c.h.b16 %v1258
        %v4650 = vunpack.c.l.b16 %v1259
        %v4651 = vunpack.c.h.b16 %v1259
        %v4652 = vunpack.c.l.b16 %v1260
        %v4653 = vunpack.c.h.b16 %v1260
        %v4654 = vunpack.c.l.b16 %v1261
        %v4655 = vunpack.c.h.b16 %v1261
        %v4656 = vunpack.c.l.b16 %v1262
        %v4657 = vunpack.c.h.b16 %v1262
        %v4658 = vunpack.c.l.b16 %v1263
        %v4659 = vunpack.c.h.b16 %v1263
        %v4660 = vunpack.c.l.b16 %v1264
        %v4661 = vunpack.c.h.b16 %v1264
        %v4662 = vunpack.c.l.b16 %v1265
        %v4663 = vunpack.c.h.b16 %v1265
        %v4664 = vunpack.c.l.b16 %v1266
        %v4665 = vunpack.c.h.b16 %v1266
        %v4666 = vunpack.c.l.b16 %v1267
        %v4667 = vunpack.c.h.b16 %v1267
        %v4668 = vunpack.c.l.b16 %v1268
        %v4669 = vunpack.c.h.b16 %v1268
        %v4670 = vunpack.c.l.b16 %v1269
        %v4671 = vunpack.c.h.b16 %v1269
        %v4672 = vunpack.c.l.b16 %v1270
        %v4673 = vunpack.c.h.b16 %v1270
        %v4674 = vunpack.c.l.b16 %v1271
        %v4675 = vunpack.c.h.b16 %v1271
        %v4676 = vunpack.c.l.b16 %v1272
        %v4677 = vunpack.c.h.b16 %v1272
        %v4678 = vunpack.c.l.b16 %v1273
        %v4679 = vunpack.c.h.b16 %v1273
        %v4680 = vunpack.c.l.b16 %v1274
        %v4681 = vunpack.c.h.b16 %v1274
        %v4682 = vunpack.c.l.b16 %v1275
        %v4683 = vunpack.c.h.b16 %v1275
        %v4684 = vunpack.c.l.b16 %v1276
        %v4685 = vunpack.c.h.b16 %v1276
        %v4686 = vunpack.c.l.b16 %v1277
        %v4687 = vunpack.c.h.b16 %v1277
        %v4688 = vunpack.c.l.b16 %v1278
        %v4689 = vunpack.c.h.b16 %v1278
        %v4690 = vunpack.c.l.b16 %v1279
        %v4691 = vunpack.c.h.b16 %v1279
        %v4692 = vunpack.c.l.b16 %v1280
        %v4693 = vunpack.c.h.b16 %v1280
        %v4694 = vunpack.c.l.b16 %v1281
        %v4695 = vunpack.c.h.b16 %v1281
        %v4696 = vunpack.c.l.b16 %v1282
        %v4697 = vunpack.c.h.b16 %v1282
        %v4698 = vunpack.c.l.b16 %v1283
        %v4699 = vunpack.c.h.b16 %v1283
        %v4700 = vunpack.c.l.b16 %v1284
        %v4701 = vunpack.c.h.b16 %v1284
        %v4702 = vunpack.c.l.b16 %v1285
        %v4703 = vunpack.c.h.b16 %v1285
        %v4704 = vunpack.c.l.b16 %v1286
        %v4705 = vunpack.c.h.b16 %v1286
        %v4706 = vunpack.c.l.b16 %v1287
        %v4707 = vunpack.c.h.b16 %v1287
        %v4708 = vunpack.c.l.b16 %v1288
        %v4709 = vunpack.c.h.b16 %v1288
        %v4710 = vunpack.c.l.b16 %v1289
        %v4711 = vunpack.c.h.b16 %v1289
        %v4712 = vunpack.c.l.b16 %v1290
        %v4713 = vunpack.c.h.b16 %v1290
        %v4714 = vunpack.c.l.b16 %v1291
        %v4715 = vunpack.c.h.b16 %v1291
        %v4716 = vunpack.c.l.b16 %v1292
        %v4717 = vunpack.c.h.b16 %v1292
        %v4718 = vunpack.c.l.b16 %v1293
        %v4719 = vunpack.c.h.b16 %v1293
        %v4720 = vunpack.c.l.b16 %v1294
        %v4721 = vunpack.c.h.b16 %v1294
        %v4722 = vunpack.c.l.b16 %v1295
        %v4723 = vunpack.c.h.b16 %v1295
        %v4724 = vunpack.c.l.b16 %v1296
        %v4725 = vunpack.c.h.b16 %v1296
        %v4726 = vunpack.c.l.b16 %v1297
        %v4727 = vunpack.c.h.b16 %v1297
        %v4728 = vunpack.c.l.b16 %v1298
        %v4729 = vunpack.c.h.b16 %v1298
        %v4730 = vunpack.c.l.b16 %v1299
        %v4731 = vunpack.c.h.b16 %v1299
        %v4732 = vunpack.c.l.b16 %v1300
        %v4733 = vunpack.c.h.b16 %v1300
        %v4734 = vunpack.c.l.b16 %v1301
        %v4735 = vunpack.c.h.b16 %v1301
        %v4736 = vunpack.c.l.b16 %v1302
        %v4737 = vunpack.c.h.b16 %v1302
        %v4738 = vunpack.c.l.b16 %v1303
        %v4739 = vunpack.c.h.b16 %v1303
        %v4740 = vunpack.c.l.b16 %v1304
        %v4741 = vunpack.c.h.b16 %v1304
        %v4742 = vunpack.c.l.b16 %v1305
        %v4743 = vunpack.c.h.b16 %v1305
        %v4744 = vunpack.c.l.b16 %v1306
        %v4745 = vunpack.c.h.b16 %v1306
        %v4746 = vunpack.c.l.b16 %v1307
        %v4747 = vunpack.c.h.b16 %v1307
        %v4748 = vunpack.c.l.b16 %v1308
        %v4749 = vunpack.c.h.b16 %v1308
        %v4750 = vunpack.c.l.b16 %v1309
        %v4751 = vunpack.c.h.b16 %v1309
        %v4752 = vunpack.c.l.b16 %v1310
        %v4753 = vunpack.c.h.b16 %v1310
        %v4754 = vunpack.c.l.b16 %v1311
        %v4755 = vunpack.c.h.b16 %v1311
        %v4756 = vunpack.c.l.b16 %v1312
        %v4757 = vunpack.c.h.b16 %v1312
        %v4758 = vunpack.c.l.b16 %v1313
        %v4759 = vunpack.c.h.b16 %v1313
        %v4760 = vunpack.c.l.b16 %v1314
        %v4761 = vunpack.c.h.b16 %v1314
        %v4762 = vunpack.c.l.b16 %v1315
        %v4763 = vunpack.c.h.b16 %v1315
        %v4764 = vunpack.c.l.b16 %v1316
        %v4765 = vunpack.c.h.b16 %v1316
        %v4766 = vunpack.c.l.b16 %v1317
        %v4767 = vunpack.c.h.b16 %v1317
        %v4768 = vunpack.c.l.b16 %v1318
        %v4769 = vunpack.c.h.b16 %v1318
        %v4770 = vunpack.c.l.b16 %v1319
        %v4771 = vunpack.c.h.b16 %v1319
        %v4772 = vunpack.c.l.b16 %v1320
        %v4773 = vunpack.c.h.b16 %v1320
        %v4774 = vunpack.c.l.b16 %v1321
        %v4775 = vunpack.c.h.b16 %v1321
        %v4776 = vunpack.c.l.b16 %v1322
        %v4777 = vunpack.c.h.b16 %v1322
        %v4778 = vunpack.c.l.b16 %v1323
        %v4779 = vunpack.c.h.b16 %v1323
        %v4780 = vunpack.c.l.b16 %v1324
        %v4781 = vunpack.c.h.b16 %v1324
        %v4782 = vunpack.c.l.b16 %v1325
        %v4783 = vunpack.c.h.b16 %v1325
        %v4784 = vunpack.c.l.b16 %v1326
        %v4785 = vunpack.c.h.b16 %v1326
        %v4786 = vunpack.c.l.b16 %v1327
        %v4787 = vunpack.c.h.b16 %v1327
        %v4788 = vunpack.c.l.b16 %v1328
        %v4789 = vunpack.c.h.b16 %v1328
        %v4790 = vunpack.c.l.b16 %v1329
        %v4791 = vunpack.c.h.b16 %v1329
        %v4792 = vunpack.c.l.b16 %v1330
        %v4793 = vunpack.c.h.b16 %v1330
        %v4794 = vunpack.c.l.b16 %v1331
        %v4795 = vunpack.c.h.b16 %v1331
        %v4796 = vunpack.c.l.b16 %v1332
        %v4797 = vunpack.c.h.b16 %v1332
        %v4798 = vunpack.c.l.b16 %v1333
        %v4799 = vunpack.c.h.b16 %v1333
        %v4800 = vunpack.c.l.b16 %v1334
        %v4801 = vunpack.c.h.b16 %v1334
        %v4802 = vunpack.c.l.b16 %v1335
        %v4803 = vunpack.c.h.b16 %v1335
        %v4804 = vunpack.c.l.b16 %v1336
        %v4805 = vunpack.c.h.b16 %v1336
        %v4806 = vunpack.c.l.b16 %v1337
        %v4807 = vunpack.c.h.b16 %v1337
        %v4808 = vunpack.c.l.b16 %v1338
        %v4809 = vunpack.c.h.b16 %v1338
        %v4810 = vunpack.c.l.b16 %v1339
        %v4811 = vunpack.c.h.b16 %v1339
        %v4812 = vunpack.c.l.b16 %v1340
        %v4813 = vunpack.c.h.b16 %v1340
        %v4814 = vunpack.c.l.b16 %v1341
        %v4815 = vunpack.c.h.b16 %v1341
        %v4816 = vunpack.c.l.b16 %v1342
        %v4817 = vunpack.c.h.b16 %v1342
        %v4818 = vunpack.c.l.b16 %v1343
        %v4819 = vunpack.c.h.b16 %v1343
        %v4820 = vunpack.c.l.b16 %v1344
        %v4821 = vunpack.c.h.b16 %v1344
        %v4822 = vunpack.c.l.b16 %v1345
        %v4823 = vunpack.c.h.b16 %v1345
        %v4824 = vunpack.c.l.b16 %v1346
        %v4825 = vunpack.c.h.b16 %v1346
        %v4826 = vunpack.c.l.b16 %v1347
        %v4827 = vunpack.c.h.b16 %v1347
        %v4828 = vunpack.c.l.b16 %v1348
        %v4829 = vunpack.c.h.b16 %v1348
        %v4830 = vunpack.c.l.b16 %v1349
        %v4831 = vunpack.c.h.b16 %v1349
        %v4832 = vunpack.c.l.b16 %v1350
        %v4833 = vunpack.c.h.b16 %v1350
        %v4834 = vunpack.c.l.b16 %v1351
        %v4835 = vunpack.c.h.b16 %v1351
        %v4836 = vunpack.c.l.b16 %v1352
        %v4837 = vunpack.c.h.b16 %v1352
        %v4838 = vunpack.c.l.b16 %v1353
        %v4839 = vunpack.c.h.b16 %v1353
        %v4840 = vunpack.c.l.b16 %v1354
        %v4841 = vunpack.c.h.b16 %v1354
        %v4842 = vunpack.c.l.b16 %v1355
        %v4843 = vunpack.c.h.b16 %v1355
        %v4844 = vunpack.c.l.b16 %v1356
        %v4845 = vunpack.c.h.b16 %v1356
        %v4846 = vunpack.c.l.b16 %v1357
        %v4847 = vunpack.c.h.b16 %v1357
        %v4848 = vunpack.c.l.b16 %v1358
        %v4849 = vunpack.c.h.b16 %v1358
        %v4850 = vunpack.c.l.b16 %v1359
        %v4851 = vunpack.c.h.b16 %v1359
        %v4852 = vunpack.c.l.b16 %v1360
        %v4853 = vunpack.c.h.b16 %v1360
        %v4854 = vunpack.c.l.b16 %v1361
        %v4855 = vunpack.c.h.b16 %v1361
        %v4856 = vunpack.c.l.b16 %v1362
        %v4857 = vunpack.c.h.b16 %v1362
        %v4858 = vunpack.c.l.b16 %v1363
        %v4859 = vunpack.c.h.b16 %v1363
        %v4860 = vunpack.c.l.b16 %v1364
        %v4861 = vunpack.c.h.b16 %v1364
        %v4862 = vunpack.c.l.b16 %v1365
        %v4863 = vunpack.c.h.b16 %v1365
        %v4864 = vunpack.c.l.b16 %v1366
        %v4865 = vunpack.c.h.b16 %v1366
        %v4866 = vunpack.c.l.b16 %v1367
        %v4867 = vunpack.c.h.b16 %v1367
        %v4868 = vunpack.c.l.b16 %v1368
        %v4869 = vunpack.c.h.b16 %v1368
        %v4870 = vunpack.c.l.b16 %v1369
        %v4871 = vunpack.c.h.b16 %v1369
        %v4872 = vunpack.c.l.b16 %v1370
        %v4873 = vunpack.c.h.b16 %v1370
        %v4874 = vunpack.c.l.b16 %v1371
        %v4875 = vunpack.c.h.b16 %v1371
        %v4876 = vunpack.c.l.b16 %v1372
        %v4877 = vunpack.c.h.b16 %v1372
        %v4878 = vunpack.c.l.b16 %v1373
        %v4879 = vunpack.c.h.b16 %v1373
        %v4880 = vunpack.c.l.b16 %v1374
        %v4881 = vunpack.c.h.b16 %v1374
        %v4882 = vunpack.c.l.b16 %v1375
        %v4883 = vunpack.c.h.b16 %v1375
        %v4884 = vunpack.c.l.b16 %v1376
        %v4885 = vunpack.c.h.b16 %v1376
        %v4886 = vunpack.c.l.b16 %v1377
        %v4887 = vunpack.c.h.b16 %v1377
        %v4888 = vunpack.c.l.b16 %v1378
        %v4889 = vunpack.c.h.b16 %v1378
        %v4890 = vunpack.c.l.b16 %v1379
        %v4891 = vunpack.c.h.b16 %v1379
        %v4892 = vunpack.c.l.b16 %v1380
        %v4893 = vunpack.c.h.b16 %v1380
        %v4894 = vunpack.c.l.b16 %v1381
        %v4895 = vunpack.c.h.b16 %v1381
        %v4896 = vunpack.c.l.b16 %v1382
        %v4897 = vunpack.c.h.b16 %v1382
        %v4898 = vunpack.c.l.b16 %v1383
        %v4899 = vunpack.c.h.b16 %v1383
        %v4900 = vunpack.c.l.b16 %v1384
        %v4901 = vunpack.c.h.b16 %v1384
        %v4902 = vunpack.c.l.b16 %v1385
        %v4903 = vunpack.c.h.b16 %v1385
        %v4904 = vunpack.c.l.b16 %v1386
        %v4905 = vunpack.c.h.b16 %v1386
        %v4906 = vunpack.c.l.b16 %v1387
        %v4907 = vunpack.c.h.b16 %v1387
        %v4908 = vunpack.c.l.b16 %v1388
        %v4909 = vunpack.c.h.b16 %v1388
        %v4910 = vunpack.c.l.b16 %v1389
        %v4911 = vunpack.c.h.b16 %v1389
        %v4912 = vunpack.c.l.b16 %v1390
        %v4913 = vunpack.c.h.b16 %v1390
        %v4914 = vunpack.c.l.b16 %v1391
        %v4915 = vunpack.c.h.b16 %v1391
        %v4916 = vunpack.c.l.b16 %v1392
        %v4917 = vunpack.c.h.b16 %v1392
        %v4918 = vunpack.c.l.b16 %v1393
        %v4919 = vunpack.c.h.b16 %v1393
        %v4920 = vunpack.c.l.b16 %v1394
        %v4921 = vunpack.c.h.b16 %v1394
        %v4922 = vunpack.c.l.b16 %v1395
        %v4923 = vunpack.c.h.b16 %v1395
        %v4924 = vunpack.c.l.b16 %v1396
        %v4925 = vunpack.c.h.b16 %v1396
        %v4926 = vunpack.c.l.b16 %v1397
        %v4927 = vunpack.c.h.b16 %v1397
        %v4928 = vunpack.c.l.b16 %v1398
        %v4929 = vunpack.c.h.b16 %v1398
        %v4930 = vunpack.c.l.b16 %v1399
        %v4931 = vunpack.c.h.b16 %v1399
        %v4932 = vunpack.c.l.b16 %v1400
        %v4933 = vunpack.c.h.b16 %v1400
        %v4934 = vunpack.c.l.b16 %v1401
        %v4935 = vunpack.c.h.b16 %v1401
        %v4936 = vunpack.c.l.b16 %v1402
        %v4937 = vunpack.c.h.b16 %v1402
        %v4938 = vunpack.c.l.b16 %v1403
        %v4939 = vunpack.c.h.b16 %v1403
        %v4940 = vunpack.c.l.b16 %v1404
        %v4941 = vunpack.c.h.b16 %v1404
        %v4942 = vunpack.c.l.b16 %v1405
        %v4943 = vunpack.c.h.b16 %v1405
        %v4944 = vunpack.c.l.b16 %v1406
        %v4945 = vunpack.c.h.b16 %v1406
        %v4946 = vunpack.c.l.b16 %v1407
        %v4947 = vunpack.c.h.b16 %v1407
        %v4948 = vunpack.c.l.b16 %v1408
        %v4949 = vunpack.c.h.b16 %v1408
        %v4950 = vunpack.c.l.b16 %v1409
        %v4951 = vunpack.c.h.b16 %v1409
        %v4952 = vunpack.c.l.b16 %v1410
        %v4953 = vunpack.c.h.b16 %v1410
        %v4954 = vunpack.c.l.b16 %v1411
        %v4955 = vunpack.c.h.b16 %v1411
        %v4956 = vunpack.c.l.b16 %v1412
        %v4957 = vunpack.c.h.b16 %v1412
        %v4958 = vunpack.c.l.b16 %v1413
        %v4959 = vunpack.c.h.b16 %v1413
        %v4960 = vunpack.c.l.b16 %v1414
        %v4961 = vunpack.c.h.b16 %v1414
        %v4962 = vunpack.c.l.b16 %v1415
        %v4963 = vunpack.c.h.b16 %v1415
        %v4964 = vunpack.c.l.b16 %v1416
        %v4965 = vunpack.c.h.b16 %v1416
        %v4966 = vunpack.c.l.b16 %v1417
        %v4967 = vunpack.c.h.b16 %v1417
        %v4968 = vunpack.c.l.b16 %v1418
        %v4969 = vunpack.c.h.b16 %v1418
        %v4970 = vunpack.c.l.b16 %v1419
        %v4971 = vunpack.c.h.b16 %v1419
        %v4972 = vunpack.c.l.b16 %v1420
        %v4973 = vunpack.c.h.b16 %v1420
        %v4974 = vunpack.c.l.b16 %v1421
        %v4975 = vunpack.c.h.b16 %v1421
        %v4976 = vunpack.c.l.b16 %v1422
        %v4977 = vunpack.c.h.b16 %v1422
        %v4978 = vunpack.c.l.b16 %v1423
        %v4979 = vunpack.c.h.b16 %v1423
        %v4980 = vunpack.c.l.b16 %v1424
        %v4981 = vunpack.c.h.b16 %v1424
        %v4982 = vunpack.c.l.b16 %v1425
        %v4983 = vunpack.c.h.b16 %v1425
        %v4984 = vunpack.c.l.b16 %v1426
        %v4985 = vunpack.c.h.b16 %v1426
        %v4986 = vunpack.c.l.b16 %v1427
        %v4987 = vunpack.c.h.b16 %v1427
        %v4988 = vunpack.c.l.b16 %v1428
        %v4989 = vunpack.c.h.b16 %v1428
        %v4990 = vunpack.c.l.b16 %v1429
        %v4991 = vunpack.c.h.b16 %v1429
        %v4992 = vunpack.c.l.b16 %v1430
        %v4993 = vunpack.c.h.b16 %v1430
        %v4994 = vunpack.c.l.b16 %v1431
        %v4995 = vunpack.c.h.b16 %v1431
        %v4996 = vunpack.c.l.b16 %v1432
        %v4997 = vunpack.c.h.b16 %v1432
        %v4998 = vunpack.c.l.b16 %v1433
        %v4999 = vunpack.c.h.b16 %v1433
        %v5000 = vunpack.c.l.b16 %v1434
        %v5001 = vunpack.c.h.b16 %v1434
        %v5002 = vunpack.c.l.b16 %v1435
        %v5003 = vunpack.c.h.b16 %v1435
        %v5004 = vunpack.c.l.b16 %v1436
        %v5005 = vunpack.c.h.b16 %v1436
        %v5006 = vunpack.c.l.b16 %v1437
        %v5007 = vunpack.c.h.b16 %v1437
        %v5008 = vunpack.c.l.b16 %v1438
        %v5009 = vunpack.c.h.b16 %v1438
        %v5010 = vunpack.c.l.b16 %v1439
        %v5011 = vunpack.c.h.b16 %v1439
        %v5012 = vunpack.c.l.b16 %v1440
        %v5013 = vunpack.c.h.b16 %v1440
        %v5014 = vunpack.c.l.b16 %v1441
        %v5015 = vunpack.c.h.b16 %v1441
        %v5016 = vunpack.c.l.b16 %v1442
        %v5017 = vunpack.c.h.b16 %v1442
        %v5018 = vunpack.c.l.b16 %v1443
        %v5019 = vunpack.c.h.b16 %v1443
        %v5020 = vunpack.c.l.b16 %v1444
        %v5021 = vunpack.c.h.b16 %v1444
        %v5022 = vunpack.c.l.b16 %v1445
        %v5023 = vunpack.c.h.b16 %v1445
        %v5024 = vunpack.c.l.b16 %v1446
        %v5025 = vunpack.c.h.b16 %v1446
        %v5026 = vunpack.c.l.b16 %v1447
        %v5027 = vunpack.c.h.b16 %v1447
        %v5028 = vunpack.c.l.b16 %v1448
        %v5029 = vunpack.c.h.b16 %v1448
        %v5030 = vunpack.c.l.b16 %v1449
        %v5031 = vunpack.c.h.b16 %v1449
        %v5032 = vunpack.c.l.b16 %v1450
        %v5033 = vunpack.c.h.b16 %v1450
        %v5034 = vunpack.c.l.b16 %v1451
        %v5035 = vunpack.c.h.b16 %v1451
        %v5036 = vunpack.c.l.b16 %v1452
        %v5037 = vunpack.c.h.b16 %v1452
        %v5038 = vunpack.c.l.b16 %v1453
        %v5039 = vunpack.c.h.b16 %v1453
        %v5040 = vunpack.c.l.b16 %v1454
        %v5041 = vunpack.c.h.b16 %v1454
        %v5042 = vunpack.c.l.b16 %v1455
        %v5043 = vunpack.c.h.b16 %v1455
        %v5044 = vunpack.c.l.b16 %v1456
        %v5045 = vunpack.c.h.b16 %v1456
        %v5046 = vunpack.c.l.b16 %v1457
        %v5047 = vunpack.c.h.b16 %v1457
        %v5048 = vunpack.c.l.b16 %v1458
        %v5049 = vunpack.c.h.b16 %v1458
        %v5050 = vunpack.c.l.b16 %v1459
        %v5051 = vunpack.c.h.b16 %v1459
        %v5052 = vunpack.c.l.b16 %v1460
        %v5053 = vunpack.c.h.b16 %v1460
        %v5054 = vunpack.c.l.b16 %v1461
        %v5055 = vunpack.c.h.b16 %v1461
        %v5056 = vunpack.c.l.b16 %v1462
        %v5057 = vunpack.c.h.b16 %v1462
        %v5058 = vunpack.c.l.b16 %v1463
        %v5059 = vunpack.c.h.b16 %v1463
        %v5060 = vunpack.c.l.b16 %v1464
        %v5061 = vunpack.c.h.b16 %v1464
        %v5062 = vunpack.c.l.b16 %v1465
        %v5063 = vunpack.c.h.b16 %v1465
        %v5064 = vunpack.c.l.b16 %v1466
        %v5065 = vunpack.c.h.b16 %v1466
        %v5066 = vunpack.c.l.b16 %v1467
        %v5067 = vunpack.c.h.b16 %v1467
        %v5068 = vunpack.c.l.b16 %v1468
        %v5069 = vunpack.c.h.b16 %v1468
        %v5070 = vunpack.c.l.b16 %v1469
        %v5071 = vunpack.c.h.b16 %v1469
        %v5072 = vunpack.c.l.b16 %v1470
        %v5073 = vunpack.c.h.b16 %v1470
        %v5074 = vunpack.c.l.b16 %v1471
        %v5075 = vunpack.c.h.b16 %v1471
        %v5076 = vunpack.c.l.b16 %v1472
        %v5077 = vunpack.c.h.b16 %v1472
        %v5078 = vunpack.c.l.b16 %v1473
        %v5079 = vunpack.c.h.b16 %v1473
        %v5080 = vunpack.c.l.b16 %v1474
        %v5081 = vunpack.c.h.b16 %v1474
        %v5082 = vunpack.c.l.b16 %v1475
        %v5083 = vunpack.c.h.b16 %v1475
        %v5084 = vunpack.c.l.b16 %v1476
        %v5085 = vunpack.c.h.b16 %v1476
        %v5086 = vunpack.c.l.b16 %v1477
        %v5087 = vunpack.c.h.b16 %v1477
        %v5088 = vunpack.c.l.b16 %v1478
        %v5089 = vunpack.c.h.b16 %v1478
        %v5090 = vunpack.c.l.b16 %v1479
        %v5091 = vunpack.c.h.b16 %v1479
        %v5092 = vunpack.c.l.b16 %v1480
        %v5093 = vunpack.c.h.b16 %v1480
        %v5094 = vunpack.c.l.b16 %v1481
        %v5095 = vunpack.c.h.b16 %v1481
        %v5096 = vunpack.c.l.b16 %v1482
        %v5097 = vunpack.c.h.b16 %v1482
        %v5098 = vunpack.c.l.b16 %v1483
        %v5099 = vunpack.c.h.b16 %v1483
        %v5100 = vunpack.c.l.b16 %v1484
        %v5101 = vunpack.c.h.b16 %v1484
        %v5102 = vunpack.c.l.b16 %v1485
        %v5103 = vunpack.c.h.b16 %v1485
        %v5104 = vunpack.c.l.b16 %v1486
        %v5105 = vunpack.c.h.b16 %v1486
        %v5106 = vunpack.c.l.b16 %v1487
        %v5107 = vunpack.c.h.b16 %v1487
        %v5108 = vunpack.c.l.b16 %v1488
        %v5109 = vunpack.c.h.b16 %v1488
        %v5110 = vunpack.c.l.b16 %v1489
        %v5111 = vunpack.c.h.b16 %v1489
        %v5112 = vunpack.c.l.b16 %v1490
        %v5113 = vunpack.c.h.b16 %v1490
        %v5114 = vunpack.c.l.b16 %v1491
        %v5115 = vunpack.c.h.b16 %v1491
        %v5116 = vunpack.c.l.b16 %v1492
        %v5117 = vunpack.c.h.b16 %v1492
        %v5118 = vunpack.c.l.b16 %v1493
        %v5119 = vunpack.c.h.b16 %v1493
        %v5120 = vunpack.c.l.b16 %v1494
        %v5121 = vunpack.c.h.b16 %v1494
        %v5122 = vunpack.c.l.b16 %v1495
        %v5123 = vunpack.c.h.b16 %v1495
        %v5124 = vunpack.c.l.b16 %v1496
        %v5125 = vunpack.c.h.b16 %v1496
        %v5126 = vunpack.c.l.b16 %v1497
        %v5127 = vunpack.c.h.b16 %v1497
        %v5128 = vunpack.c.l.b16 %v1498
        %v5129 = vunpack.c.h.b16 %v1498
        %v5130 = vunpack.c.l.b16 %v1499
        %v5131 = vunpack.c.h.b16 %v1499
        %v5132 = vunpack.c.l.b16 %v1500
        %v5133 = vunpack.c.h.b16 %v1500
        %v5134 = vunpack.c.l.b16 %v1501
        %v5135 = vunpack.c.h.b16 %v1501
        %v5136 = vunpack.c.l.b16 %v1502
        %v5137 = vunpack.c.h.b16 %v1502
        %v5138 = vunpack.c.l.b16 %v1503
        %v5139 = vunpack.c.h.b16 %v1503
        %v5140 = vunpack.c.l.b16 %v1504
        %v5141 = vunpack.c.h.b16 %v1504
        %v5142 = vunpack.c.l.b16 %v1505
        %v5143 = vunpack.c.h.b16 %v1505
        %v5144 = vunpack.c.l.b16 %v1506
        %v5145 = vunpack.c.h.b16 %v1506
        %v5146 = vunpack.c.l.b16 %v1507
        %v5147 = vunpack.c.h.b16 %v1507
        %v5148 = vunpack.c.l.b16 %v1508
        %v5149 = vunpack.c.h.b16 %v1508
        %v5150 = vunpack.c.l.b16 %v1509
        %v5151 = vunpack.c.h.b16 %v1509
        %v5152 = vunpack.c.l.b16 %v1510
        %v5153 = vunpack.c.h.b16 %v1510
        %v5154 = vunpack.c.l.b16 %v1511
        %v5155 = vunpack.c.h.b16 %v1511
        %v5156 = vunpack.c.l.b16 %v1512
        %v5157 = vunpack.c.h.b16 %v1512
        %v5158 = vunpack.c.l.b16 %v1513
        %v5159 = vunpack.c.h.b16 %v1513
        %v5160 = vunpack.c.l.b16 %v1514
        %v5161 = vunpack.c.h.b16 %v1514
        %v5162 = vunpack.c.l.b16 %v1515
        %v5163 = vunpack.c.h.b16 %v1515
        %v5164 = vunpack.c.l.b16 %v1516
        %v5165 = vunpack.c.h.b16 %v1516
        %v5166 = vunpack.c.l.b16 %v1517
        %v5167 = vunpack.c.h.b16 %v1517
        %v5168 = vunpack.c.l.b16 %v1518
        %v5169 = vunpack.c.h.b16 %v1518
        %v5170 = vunpack.c.l.b16 %v1519
        %v5171 = vunpack.c.h.b16 %v1519
        %v5172 = vunpack.c.l.b16 %v1520
        %v5173 = vunpack.c.h.b16 %v1520
        %v5174 = vunpack.c.l.b16 %v1521
        %v5175 = vunpack.c.h.b16 %v1521
        %v5176 = vpack.c.b16 %v2848, %v2824
        %v5177 = vpack.c.b16 %v2849, %v2825
        %v5178 = vpack.c.b16 %v2850, %v2826
        %v5179 = vpack.c.b16 %v2851, %v2827
        %v5180 = vpack.c.b16 %v2852, %v2828
        %v5181 = vpack.c.b16 %v2853, %v2829
        %v5182 = vpack.c.b16 %v2854, %v2830
        %v5183 = vpack.c.b16 %v2855, %v2831
        %v5184 = vpack.c.b16 %v2856, %v2832
        %v5185 = vpack.c.b16 %v2857, %v2833
        %v5186 = vpack.c.b16 %v2858, %v2834
        %v5187 = vpack.c.b16 %v2859, %v2835
        %v5188 = vpack.c.b16 %v2860, %v2836
        %v5189 = vpack.c.b16 %v2861, %v2837
        %v5190 = vpack.c.b16 %v2862, %v2838
        %v5191 = vpack.c.b16 %v2863, %v2839
        %v5192 = vpack.c.b16 %v2864, %v2840
        %v5193 = vpack.c.b16 %v2865, %v2841
        %v5194 = vpack.c.b16 %v2866, %v2842
        %v5195 = vpack.c.b16 %v2867, %v2843
        %v5196 = vpack.c.b16 %v2868, %v2844
        %v5197 = vpack.c.b16 %v2869, %v2845
        %v5198 = vpack.c.b16 %v2870, %v2846
        %v5199 = vpack.c.b16 %v2871, %v2847
        %v5200 = vpack.c.b16 %v2896, %v2872
        %v5201 = vpack.c.b16 %v2897, %v2873
        %v5202 = vpack.c.b16 %v2898, %v2874
        %v5203 = vpack.c.b16 %v2899, %v2875
        %v5204 = vpack.c.b16 %v2900, %v2876
        %v5205 = vpack.c.b16 %v2901, %v2877
        %v5206 = vpack.c.b16 %v2902, %v2878
        %v5207 = vpack.c.b16 %v2903, %v2879
        %v5208 = vpack.c.b16 %v2904, %v2880
        %v5209 = vpack.c.b16 %v2905, %v2881
        %v5210 = vpack.c.b16 %v2906, %v2882
        %v5211 = vpack.c.b16 %v2907, %v2883
        %v5212 = vpack.c.b16 %v2908, %v2884
        %v5213 = vpack.c.b16 %v2909, %v2885
        %v5214 = vpack.c.b16 %v2910, %v2886
        %v5215 = vpack.c.b16 %v2911, %v2887
        %v5216 = vpack.c.b16 %v2912, %v2888
        %v5217 = vpack.c.b16 %v2913, %v2889
        %v5218 = vpack.c.b16 %v2914, %v2890
        %v5219 = vpack.c.b16 %v2915, %v2891
        %v5220 = vpack.c.b16 %v2916, %v2892
        %v5221 = vpack.c.b16 %v2917, %v2893
        %v5222 = vpack.c.b16 %v2918, %v2894
        %v5223 = vpack.c.b16 %v2919, %v2895
        %v5224 = vpack.c.b16 %v2944, %v2920
        %v5225 = vpack.c.b16 %v2945, %v2921
        %v5226 = vpack.c.b16 %v2946, %v2922
        %v5227 = vpack.c.b16 %v2947, %v2923
        %v5228 = vpack.c.b16 %v2948, %v2924
        %v5229 = vpack.c.b16 %v2949, %v2925
        %v5230 = vpack.c.b16 %v2950, %v2926
        %v5231 = vpack.c.b16 %v2951, %v2927
        %v5232 = vpack.c.b16 %v2952, %v2928
        %v5233 = vpack.c.b16 %v2953, %v2929
        %v5234 = vpack.c.b16 %v2954, %v2930
        %v5235 = vpack.c.b16 %v2955, %v2931
        %v5236 = vpack.c.b16 %v2956, %v2932
        %v5237 = vpack.c.b16 %v2957, %v2933
        %v5238 = vpack.c.b16 %v2958, %v2934
        %v5239 = vpack.c.b16 %v2959, %v2935
        %v5240 = vpack.c.b16 %v2960, %v2936
        %v5241 = vpack.c.b16 %v2961, %v2937
        %v5242 = vpack.c.b16 %v2962, %v2938
        %v5243 = vpack.c.b16 %v2963, %v2939
        %v5244 = vpack.c.b16 %v2964, %v2940
        %v5245 = vpack.c.b16 %v2965, %v2941
        %v5246 = vpack.c.b16 %v2966, %v2942
        %v5247 = vpack.c.b16 %v2967, %v2943
        %v5248 = vpack.c.b16 %v2992, %v2968
        %v5249 = vpack.c.b16 %v2993, %v2969
        %v5250 = vpack.c.b16 %v2994, %v2970
        %v5251 = vpack.c.b16 %v2995, %v2971
        %v5252 = vpack.c.b16 %v2996, %v2972
        %v5253 = vpack.c.b16 %v2997, %v2973
        %v5254 = vpack.c.b16 %v2998, %v2974
        %v5255 = vpack.c.b16 %v2999, %v2975
        %v5256 = vpack.c.b16 %v3000, %v2976
        %v5257 = vpack.c.b16 %v3001, %v2977
        %v5258 = vpack.c.b16 %v3002, %v2978
        %v5259 = vpack.c.b16 %v3003, %v2979
        %v5260 = vpack.c.b16 %v3004, %v2980
        %v5261 = vpack.c.b16 %v3005, %v2981
        %v5262 = vpack.c.b16 %v3006, %v2982
        %v5263 = vpack.c.b16 %v3007, %v2983
        %v5264 = vpack.c.b16 %v3008, %v2984
        %v5265 = vpack.c.b16 %v3009, %v2985
        %v5266 = vpack.c.b16 %v3010, %v2986
        %v5267 = vpack.c.b16 %v3011, %v2987
        %v5268 = vpack.c.b16 %v3012, %v2988
        %v5269 = vpack.c.b16 %v3013, %v2989
        %v5270 = vpack.c.b16 %v3014, %v2990
        %v5271 = vpack.c.b16 %v3015, %v2991
        %v5272 = vpack.c.b16 %v3040, %v3016
        %v5273 = vpack.c.b16 %v3041, %v3017
        %v5274 = vpack.c.b16 %v3042, %v3018
        %v5275 = vpack.c.b16 %v3043, %v3019
        %v5276 = vpack.c.b16 %v3044, %v3020
        %v5277 = vpack.c.b16 %v3045, %v3021
        %v5278 = vpack.c.b16 %v3046, %v3022
        %v5279 = vpack.c.b16 %v3047, %v3023
        %v5280 = vpack.c.b16 %v3048, %v3024
        %v5281 = vpack.c.b16 %v3049, %v3025
        %v5282 = vpack.c.b16 %v3050, %v3026
        %v5283 = vpack.c.b16 %v3051, %v3027
        %v5284 = vpack.c.b16 %v3052, %v3028
        %v5285 = vpack.c.b16 %v3053, %v3029
        %v5286 = vpack.c.b16 %v3054, %v3030
        %v5287 = vpack.c.b16 %v3055, %v3031
        %v5288 = vpack.c.b16 %v3056, %v3032
        %v5289 = vpack.c.b16 %v3057, %v3033
        %v5290 = vpack.c.b16 %v3058, %v3034
        %v5291 = vpack.c.b16 %v3059, %v3035
        %v5292 = vpack.c.b16 %v3060, %v3036
        %v5293 = vpack.c.b16 %v3061, %v3037
        %v5294 = vpack.c.b16 %v3062, %v3038
        %v5295 = vpack.c.b16 %v3063, %v3039
        %v5296 = vpack.c.b16 %v3088, %v3064
        %v5297 = vpack.c.b16 %v3089, %v3065
        %v5298 = vpack.c.b16 %v3090, %v3066
        %v5299 = vpack.c.b16 %v3091, %v3067
        %v5300 = vpack.c.b16 %v3092, %v3068
        %v5301 = vpack.c.b16 %v3093, %v3069
        %v5302 = vpack.c.b16 %v3094, %v3070
        %v5303 = vpack.c.b16 %v3095, %v3071
        %v5304 = vpack.c.b16 %v3096, %v3072
        %v5305 = vpack.c.b16 %v3097, %v3073
        %v5306 = vpack.c.b16 %v3098, %v3074
        %v5307 = vpack.c.b16 %v3099, %v3075
        %v5308 = vpack.c.b16 %v3100, %v3076
        %v5309 = vpack.c.b16 %v3101, %v3077
        %v5310 = vpack.c.b16 %v3102, %v3078
        %v5311 = vpack.c.b16 %v3103, %v3079
        %v5312 = vpack.c.b16 %v3104, %v3080
        %v5313 = vpack.c.b16 %v3105, %v3081
        %v5314 = vpack.c.b16 %v3106, %v3082
        %v5315 = vpack.c.b16 %v3107, %v3083
        %v5316 = vpack.c.b16 %v3108, %v3084
        %v5317 = vpack.c.b16 %v3109, %v3085
        %v5318 = vpack.c.b16 %v3110, %v3086
        %v5319 = vpack.c.b16 %v3111, %v3087
        %v5320 = vpack.c.b16 %v3136, %v3112
        %v5321 = vpack.c.b16 %v3137, %v3113
        %v5322 = vpack.c.b16 %v3138, %v3114
        %v5323 = vpack.c.b16 %v3139, %v3115
        %v5324 = vpack.c.b16 %v3140, %v3116
        %v5325 = vpack.c.b16 %v3141, %v3117
        %v5326 = vpack.c.b16 %v3142, %v3118
        %v5327 = vpack.c.b16 %v3143, %v3119
        %v5328 = vpack.c.b16 %v3144, %v3120
        %v5329 = vpack.c.b16 %v3145, %v3121
        %v5330 = vpack.c.b16 %v3146, %v3122
        %v5331 = vpack.c.b16 %v3147, %v3123
        %v5332 = vpack.c.b16 %v3148, %v3124
        %v5333 = vpack.c.b16 %v3149, %v3125
        %v5334 = vpack.c.b16 %v3150, %v3126
        %v5335 = vpack.c.b16 %v3151, %v3127
        %v5336 = vpack.c.b16 %v3152, %v3128
        %v5337 = vpack.c.b16 %v3153, %v3129
        %v5338 = vpack.c.b16 %v3154, %v3130
        %v5339 = vpack.c.b16 %v3155, %v3131
        %v5340 = vpack.c.b16 %v3156, %v3132
        %v5341 = vpack.c.b16 %v3157, %v3133
        %v5342 = vpack.c.b16 %v3158, %v3134
        %v5343 = vpack.c.b16 %v3159, %v3135
        %v5344 = vpack.c.b16 %v3184, %v3160
        %v5345 = vpack.c.b16 %v3185, %v3161
        %v5346 = vpack.c.b16 %v3186, %v3162
        %v5347 = vpack.c.b16 %v3187, %v3163
        %v5348 = vpack.c.b16 %v3188, %v3164
        %v5349 = vpack.c.b16 %v3189, %v3165
        %v5350 = vpack.c.b16 %v3190, %v3166
        %v5351 = vpack.c.b16 %v3191, %v3167
        %v5352 = vpack.c.b16 %v3192, %v3168
        %v5353 = vpack.c.b16 %v3193, %v3169
        %v5354 = vpack.c.b16 %v3194, %v3170
        %v5355 = vpack.c.b16 %v3195, %v3171
        %v5356 = vpack.c.b16 %v3196, %v3172
        %v5357 = vpack.c.b16 %v3197, %v3173
        %v5358 = vpack.c.b16 %v3198, %v3174
        %v5359 = vpack.c.b16 %v3199, %v3175
        %v5360 = vpack.c.b16 %v3200, %v3176
        %v5361 = vpack.c.b16 %v3201, %v3177
        %v5362 = vpack.c.b16 %v3202, %v3178
        %v5363 = vpack.c.b16 %v3203, %v3179
        %v5364 = vpack.c.b16 %v3204, %v3180
        %v5365 = vpack.c.b16 %v3205, %v3181
        %v5366 = vpack.c.b16 %v3206, %v3182
        %v5367 = vpack.c.b16 %v3207, %v3183
        %v5368 = vpack.c.b16 %v3232, %v3208
        %v5369 = vpack.c.b16 %v3233, %v3209
        %v5370 = vpack.c.b16 %v3234, %v3210
        %v5371 = vpack.c.b16 %v3235, %v3211
        %v5372 = vpack.c.b16 %v3236, %v3212
        %v5373 = vpack.c.b16 %v3237, %v3213
        %v5374 = vpack.c.b16 %v3238, %v3214
        %v5375 = vpack.c.b16 %v3239, %v3215
        %v5376 = vpack.c.b16 %v3240, %v3216
        %v5377 = vpack.c.b16 %v3241, %v3217
        %v5378 = vpack.c.b16 %v3242, %v3218
        %v5379 = vpack.c.b16 %v3243, %v3219
        %v5380 = vpack.c.b16 %v3244, %v3220
        %v5381 = vpack.c.b16 %v3245, %v3221
        %v5382 = vpack.c.b16 %v3246, %v3222
        %v5383 = vpack.c.b16 %v3247, %v3223
        %v5384 = vpack.c.b16 %v3248, %v3224
        %v5385 = vpack.c.b16 %v3249, %v3225
        %v5386 = vpack.c.b16 %v3250, %v3226
        %v5387 = vpack.c.b16 %v3251, %v3227
        %v5388 = vpack.c.b16 %v3252, %v3228
        %v5389 = vpack.c.b16 %v3253, %v3229
        %v5390 = vpack.c.b16 %v3254, %v3230
        %v5391 = vpack.c.b16 %v3255, %v3231
        %v5392 = vpack.c.b16 %v3280, %v3256
        %v5393 = vpack.c.b16 %v3281, %v3257
        %v5394 = vpack.c.b16 %v3282, %v3258
        %v5395 = vpack.c.b16 %v3283, %v3259
        %v5396 = vpack.c.b16 %v3284, %v3260
        %v5397 = vpack.c.b16 %v3285, %v3261
        %v5398 = vpack.c.b16 %v3286, %v3262
        %v5399 = vpack.c.b16 %v3287, %v3263
        %v5400 = vpack.c.b16 %v3288, %v3264
        %v5401 = vpack.c.b16 %v3289, %v3265
        %v5402 = vpack.c.b16 %v3290, %v3266
        %v5403 = vpack.c.b16 %v3291, %v3267
        %v5404 = vpack.c.b16 %v3292, %v3268
        %v5405 = vpack.c.b16 %v3293, %v3269
        %v5406 = vpack.c.b16 %v3294, %v3270
        %v5407 = vpack.c.b16 %v3295, %v3271
        %v5408 = vpack.c.b16 %v3296, %v3272
        %v5409 = vpack.c.b16 %v3297, %v3273
        %v5410 = vpack.c.b16 %v3298, %v3274
        %v5411 = vpack.c.b16 %v3299, %v3275
        %v5412 = vpack.c.b16 %v3300, %v3276
        %v5413 = vpack.c.b16 %v3301, %v3277
        %v5414 = vpack.c.b16 %v3302, %v3278
        %v5415 = vpack.c.b16 %v3303, %v3279
        %v5416 = vpack.c.b16 %v3328, %v3304
        %v5417 = vpack.c.b16 %v3329, %v3305
        %v5418 = vpack.c.b16 %v3330, %v3306
        %v5419 = vpack.c.b16 %v3331, %v3307
        %v5420 = vpack.c.b16 %v3332, %v3308
        %v5421 = vpack.c.b16 %v3333, %v3309
        %v5422 = vpack.c.b16 %v3334, %v3310
        %v5423 = vpack.c.b16 %v3335, %v3311
        %v5424 = vpack.c.b16 %v3336, %v3312
        %v5425 = vpack.c.b16 %v3337, %v3313
        %v5426 = vpack.c.b16 %v3338, %v3314
        %v5427 = vpack.c.b16 %v3339, %v3315
        %v5428 = vpack.c.b16 %v3340, %v3316
        %v5429 = vpack.c.b16 %v3341, %v3317
        %v5430 = vpack.c.b16 %v3342, %v3318
        %v5431 = vpack.c.b16 %v3343, %v3319
        %v5432 = vpack.c.b16 %v3344, %v3320
        %v5433 = vpack.c.b16 %v3345, %v3321
        %v5434 = vpack.c.b16 %v3346, %v3322
        %v5435 = vpack.c.b16 %v3347, %v3323
        %v5436 = vpack.c.b16 %v3348, %v3324
        %v5437 = vpack.c.b16 %v3349, %v3325
        %v5438 = vpack.c.b16 %v3350, %v3326
        %v5439 = vpack.c.b16 %v3351, %v3327
        %v5440 = vpack.c.b16 %v3376, %v3352
        %v5441 = vpack.c.b16 %v3377, %v3353
        %v5442 = vpack.c.b16 %v3378, %v3354
        %v5443 = vpack.c.b16 %v3379, %v3355
        %v5444 = vpack.c.b16 %v3380, %v3356
        %v5445 = vpack.c.b16 %v3381, %v3357
        %v5446 = vpack.c.b16 %v3382, %v3358
        %v5447 = vpack.c.b16 %v3383, %v3359
        %v5448 = vpack.c.b16 %v3384, %v3360
        %v5449 = vpack.c.b16 %v3385, %v3361
        %v5450 = vpack.c.b16 %v3386, %v3362
        %v5451 = vpack.c.b16 %v3387, %v3363
        %v5452 = vpack.c.b16 %v3388, %v3364
        %v5453 = vpack.c.b16 %v3389, %v3365
        %v5454 = vpack.c.b16 %v3390, %v3366
        %v5455 = vpack.c.b16 %v3391, %v3367
        %v5456 = vpack.c.b16 %v3392, %v3368
        %v5457 = vpack.c.b16 %v3393, %v3369
        %v5458 = vpack.c.b16 %v3394, %v3370
        %v5459 = vpack.c.b16 %v3395, %v3371
        %v5460 = vpack.c.b16 %v3396, %v3372
        %v5461 = vpack.c.b16 %v3397, %v3373
        %v5462 = vpack.c.b16 %v3398, %v3374
        %v5463 = vpack.c.b16 %v3399, %v3375
        %v5464 = vpack.c.b16 %v3424, %v3400
        %v5465 = vpack.c.b16 %v3425, %v3401
        %v5466 = vpack.c.b16 %v3426, %v3402
        %v5467 = vpack.c.b16 %v3427, %v3403
        %v5468 = vpack.c.b16 %v3428, %v3404
        %v5469 = vpack.c.b16 %v3429, %v3405
        %v5470 = vpack.c.b16 %v3430, %v3406
        %v5471 = vpack.c.b16 %v3431, %v3407
        %v5472 = vpack.c.b16 %v3432, %v3408
        %v5473 = vpack.c.b16 %v3433, %v3409
        %v5474 = vpack.c.b16 %v3434, %v3410
        %v5475 = vpack.c.b16 %v3435, %v3411
        %v5476 = vpack.c.b16 %v3436, %v3412
        %v5477 = vpack.c.b16 %v3437, %v3413
        %v5478 = vpack.c.b16 %v3438, %v3414
        %v5479 = vpack.c.b16 %v3439, %v3415
        %v5480 = vpack.c.b16 %v3440, %v3416
        %v5481 = vpack.c.b16 %v3441, %v3417
        %v5482 = vpack.c.b16 %v3442, %v3418
        %v5483 = vpack.c.b16 %v3443, %v3419
        %v5484 = vpack.c.b16 %v3444, %v3420
        %v5485 = vpack.c.b16 %v3445, %v3421
        %v5486 = vpack.c.b16 %v3446, %v3422
        %v5487 = vpack.c.b16 %v3447, %v3423
        %v5488 = vpack.c.b16 %v3472, %v3448
        %v5489 = vpack.c.b16 %v3473, %v3449
        %v5490 = vpack.c.b16 %v3474, %v3450
        %v5491 = vpack.c.b16 %v3475, %v3451
        %v5492 = vpack.c.b16 %v3476, %v3452
        %v5493 = vpack.c.b16 %v3477, %v3453
        %v5494 = vpack.c.b16 %v3478, %v3454
        %v5495 = vpack.c.b16 %v3479, %v3455
        %v5496 = vpack.c.b16 %v3480, %v3456
        %v5497 = vpack.c.b16 %v3481, %v3457
        %v5498 = vpack.c.b16 %v3482, %v3458
        %v5499 = vpack.c.b16 %v3483, %v3459
        %v5500 = vpack.c.b16 %v3484, %v3460
        %v5501 = vpack.c.b16 %v3485, %v3461
        %v5502 = vpack.c.b16 %v3486, %v3462
        %v5503 = vpack.c.b16 %v3487, %v3463
        %v5504 = vpack.c.b16 %v3488, %v3464
        %v5505 = vpack.c.b16 %v3489, %v3465
        %v5506 = vpack.c.b16 %v3490, %v3466
        %v5507 = vpack.c.b16 %v3491, %v3467
        %v5508 = vpack.c.b16 %v3492, %v3468
        %v5509 = vpack.c.b16 %v3493, %v3469
        %v5510 = vpack.c.b16 %v3494, %v3470
        %v5511 = vpack.c.b16 %v3495, %v3471
        %v5512 = vpack.c.b16 %v3520, %v3496
        %v5513 = vpack.c.b16 %v3521, %v3497
        %v5514 = vpack.c.b16 %v3522, %v3498
        %v5515 = vpack.c.b16 %v3523, %v3499
        %v5516 = vpack.c.b16 %v3524, %v3500
        %v5517 = vpack.c.b16 %v3525, %v3501
        %v5518 = vpack.c.b16 %v3526, %v3502
        %v5519 = vpack.c.b16 %v3527, %v3503
        %v5520 = vpack.c.b16 %v3528, %v3504
        %v5521 = vpack.c.b16 %v3529, %v3505
        %v5522 = vpack.c.b16 %v3530, %v3506
        %v5523 = vpack.c.b16 %v3531, %v3507
        %v5524 = vpack.c.b16 %v3532, %v3508
        %v5525 = vpack.c.b16 %v3533, %v3509
        %v5526 = vpack.c.b16 %v3534, %v3510
        %v5527 = vpack.c.b16 %v3535, %v3511
        %v5528 = vpack.c.b16 %v3536, %v3512
        %v5529 = vpack.c.b16 %v3537, %v3513
        %v5530 = vpack.c.b16 %v3538, %v3514
        %v5531 = vpack.c.b16 %v3539, %v3515
        %v5532 = vpack.c.b16 %v3540, %v3516
        %v5533 = vpack.c.b16 %v3541, %v3517
        %v5534 = vpack.c.b16 %v3542, %v3518
        %v5535 = vpack.c.b16 %v3543, %v3519
        %v5536 = vpack.c.b16 %v3568, %v3544
        %v5537 = vpack.c.b16 %v3569, %v3545
        %v5538 = vpack.c.b16 %v3570, %v3546
        %v5539 = vpack.c.b16 %v3571, %v3547
        %v5540 = vpack.c.b16 %v3572, %v3548
        %v5541 = vpack.c.b16 %v3573, %v3549
        %v5542 = vpack.c.b16 %v3574, %v3550
        %v5543 = vpack.c.b16 %v3575, %v3551
        %v5544 = vpack.c.b16 %v3576, %v3552
        %v5545 = vpack.c.b16 %v3577, %v3553
        %v5546 = vpack.c.b16 %v3578, %v3554
        %v5547 = vpack.c.b16 %v3579, %v3555
        %v5548 = vpack.c.b16 %v3580, %v3556
        %v5549 = vpack.c.b16 %v3581, %v3557
        %v5550 = vpack.c.b16 %v3582, %v3558
        %v5551 = vpack.c.b16 %v3583, %v3559
        %v5552 = vpack.c.b16 %v3584, %v3560
        %v5553 = vpack.c.b16 %v3585, %v3561
        %v5554 = vpack.c.b16 %v3586, %v3562
        %v5555 = vpack.c.b16 %v3587, %v3563
        %v5556 = vpack.c.b16 %v3588, %v3564
        %v5557 = vpack.c.b16 %v3589, %v3565
        %v5558 = vpack.c.b16 %v3590, %v3566
        %v5559 = vpack.c.b16 %v3591, %v3567
        %v5560 = vpack.c.b16 %v3616, %v3592
        %v5561 = vpack.c.b16 %v3617, %v3593
        %v5562 = vpack.c.b16 %v3618, %v3594
        %v5563 = vpack.c.b16 %v3619, %v3595
        %v5564 = vpack.c.b16 %v3620, %v3596
        %v5565 = vpack.c.b16 %v3621, %v3597
        %v5566 = vpack.c.b16 %v3622, %v3598
        %v5567 = vpack.c.b16 %v3623, %v3599
        %v5568 = vpack.c.b16 %v3624, %v3600
        %v5569 = vpack.c.b16 %v3625, %v3601
        %v5570 = vpack.c.b16 %v3626, %v3602
        %v5571 = vpack.c.b16 %v3627, %v3603
        %v5572 = vpack.c.b16 %v3628, %v3604
        %v5573 = vpack.c.b16 %v3629, %v3605
        %v5574 = vpack.c.b16 %v3630, %v3606
        %v5575 = vpack.c.b16 %v3631, %v3607
        %v5576 = vpack.c.b16 %v3632, %v3608
        %v5577 = vpack.c.b16 %v3633, %v3609
        %v5578 = vpack.c.b16 %v3634, %v3610
        %v5579 = vpack.c.b16 %v3635, %v3611
        %v5580 = vpack.c.b16 %v3636, %v3612
        %v5581 = vpack.c.b16 %v3637, %v3613
        %v5582 = vpack.c.b16 %v3638, %v3614
        %v5583 = vpack.c.b16 %v3639, %v3615
        %v5584 = vpack.c.b16 %v3664, %v3640
        %v5585 = vpack.c.b16 %v3665, %v3641
        %v5586 = vpack.c.b16 %v3666, %v3642
        %v5587 = vpack.c.b16 %v3667, %v3643
        %v5588 = vpack.c.b16 %v3668, %v3644
        %v5589 = vpack.c.b16 %v3669, %v3645
        %v5590 = vpack.c.b16 %v3670, %v3646
        %v5591 = vpack.c.b16 %v3671, %v3647
        %v5592 = vpack.c.b16 %v3672, %v3648
        %v5593 = vpack.c.b16 %v3673, %v3649
        %v5594 = vpack.c.b16 %v3674, %v3650
        %v5595 = vpack.c.b16 %v3675, %v3651
        %v5596 = vpack.c.b16 %v3676, %v3652
        %v5597 = vpack.c.b16 %v3677, %v3653
        %v5598 = vpack.c.b16 %v3678, %v3654
        %v5599 = vpack.c.b16 %v3679, %v3655
        %v5600 = vpack.c.b16 %v3680, %v3656
        %v5601 = vpack.c.b16 %v3681, %v3657
        %v5602 = vpack.c.b16 %v3682, %v3658
        %v5603 = vpack.c.b16 %v3683, %v3659
        %v5604 = vpack.c.b16 %v3684, %v3660
        %v5605 = vpack.c.b16 %v3685, %v3661
        %v5606 = vpack.c.b16 %v3686, %v3662
        %v5607 = vpack.c.b16 %v3687, %v3663
        %v5608 = vpack.c.b16 %v3712, %v3688
        %v5609 = vpack.c.b16 %v3713, %v3689
        %v5610 = vpack.c.b16 %v3714, %v3690
        %v5611 = vpack.c.b16 %v3715, %v3691
        %v5612 = vpack.c.b16 %v3716, %v3692
        %v5613 = vpack.c.b16 %v3717, %v3693
        %v5614 = vpack.c.b16 %v3718, %v3694
        %v5615 = vpack.c.b16 %v3719, %v3695
        %v5616 = vpack.c.b16 %v3720, %v3696
        %v5617 = vpack.c.b16 %v3721, %v3697
        %v5618 = vpack.c.b16 %v3722, %v3698
        %v5619 = vpack.c.b16 %v3723, %v3699
        %v5620 = vpack.c.b16 %v3724, %v3700
        %v5621 = vpack.c.b16 %v3725, %v3701
        %v5622 = vpack.c.b16 %v3726, %v3702
        %v5623 = vpack.c.b16 %v3727, %v3703
        %v5624 = vpack.c.b16 %v3728, %v3704
        %v5625 = vpack.c.b16 %v3729, %v3705
        %v5626 = vpack.c.b16 %v3730, %v3706
        %v5627 = vpack.c.b16 %v3731, %v3707
        %v5628 = vpack.c.b16 %v3732, %v3708
        %v5629 = vpack.c.b16 %v3733, %v3709
        %v5630 = vpack.c.b16 %v3734, %v3710
        %v5631 = vpack.c.b16 %v3735, %v3711
        %v5632 = vpack.c.b16 %v3760, %v3736
        %v5633 = vpack.c.b16 %v3761, %v3737
        %v5634 = vpack.c.b16 %v3762, %v3738
        %v5635 = vpack.c.b16 %v3763, %v3739
        %v5636 = vpack.c.b16 %v3764, %v3740
        %v5637 = vpack.c.b16 %v3765, %v3741
        %v5638 = vpack.c.b16 %v3766, %v3742
        %v5639 = vpack.c.b16 %v3767, %v3743
        %v5640 = vpack.c.b16 %v3768, %v3744
        %v5641 = vpack.c.b16 %v3769, %v3745
        %v5642 = vpack.c.b16 %v3770, %v3746
        %v5643 = vpack.c.b16 %v3771, %v3747
        %v5644 = vpack.c.b16 %v3772, %v3748
        %v5645 = vpack.c.b16 %v3773, %v3749
        %v5646 = vpack.c.b16 %v3774, %v3750
        %v5647 = vpack.c.b16 %v3775, %v3751
        %v5648 = vpack.c.b16 %v3776, %v3752
        %v5649 = vpack.c.b16 %v3777, %v3753
        %v5650 = vpack.c.b16 %v3778, %v3754
        %v5651 = vpack.c.b16 %v3779, %v3755
        %v5652 = vpack.c.b16 %v3780, %v3756
        %v5653 = vpack.c.b16 %v3781, %v3757
        %v5654 = vpack.c.b16 %v3782, %v3758
        %v5655 = vpack.c.b16 %v3783, %v3759
        %v5656 = vpack.c.b16 %v3808, %v3784
        %v5657 = vpack.c.b16 %v3809, %v3785
        %v5658 = vpack.c.b16 %v3810, %v3786
        %v5659 = vpack.c.b16 %v3811, %v3787
        %v5660 = vpack.c.b16 %v3812, %v3788
        %v5661 = vpack.c.b16 %v3813, %v3789
        %v5662 = vpack.c.b16 %v3814, %v3790
        %v5663 = vpack.c.b16 %v3815, %v3791
        %v5664 = vpack.c.b16 %v3816, %v3792
        %v5665 = vpack.c.b16 %v3817, %v3793
        %v5666 = vpack.c.b16 %v3818, %v3794
        %v5667 = vpack.c.b16 %v3819, %v3795
        %v5668 = vpack.c.b16 %v3820, %v3796
        %v5669 = vpack.c.b16 %v3821, %v3797
        %v5670 = vpack.c.b16 %v3822, %v3798
        %v5671 = vpack.c.b16 %v3823, %v3799
        %v5672 = vpack.c.b16 %v3824, %v3800
        %v5673 = vpack.c.b16 %v3825, %v3801
        %v5674 = vpack.c.b16 %v3826, %v3802
        %v5675 = vpack.c.b16 %v3827, %v3803
        %v5676 = vpack.c.b16 %v3828, %v3804
        %v5677 = vpack.c.b16 %v3829, %v3805
        %v5678 = vpack.c.b16 %v3830, %v3806
        %v5679 = vpack.c.b16 %v3831, %v3807
        %v5680 = vpack.c.b16 %v3856, %v3832
        %v5681 = vpack.c.b16 %v3857, %v3833
        %v5682 = vpack.c.b16 %v3858, %v3834
        %v5683 = vpack.c.b16 %v3859, %v3835
        %v5684 = vpack.c.b16 %v3860, %v3836
        %v5685 = vpack.c.b16 %v3861, %v3837
        %v5686 = vpack.c.b16 %v3862, %v3838
        %v5687 = vpack.c.b16 %v3863, %v3839
        %v5688 = vpack.c.b16 %v3864, %v3840
        %v5689 = vpack.c.b16 %v3865, %v3841
        %v5690 = vpack.c.b16 %v3866, %v3842
        %v5691 = vpack.c.b16 %v3867, %v3843
        %v5692 = vpack.c.b16 %v3868, %v3844
        %v5693 = vpack.c.b16 %v3869, %v3845
        %v5694 = vpack.c.b16 %v3870, %v3846
        %v5695 = vpack.c.b16 %v3871, %v3847
        %v5696 = vpack.c.b16 %v3872, %v3848
        %v5697 = vpack.c.b16 %v3873, %v3849
        %v5698 = vpack.c.b16 %v3874, %v3850
        %v5699 = vpack.c.b16 %v3875, %v3851
        %v5700 = vpack.c.b16 %v3876, %v3852
        %v5701 = vpack.c.b16 %v3877, %v3853
        %v5702 = vpack.c.b16 %v3878, %v3854
        %v5703 = vpack.c.b16 %v3879, %v3855
        %v5704 = vpack.c.b16 %v3904, %v3880
        %v5705 = vpack.c.b16 %v3905, %v3881
        %v5706 = vpack.c.b16 %v3906, %v3882
        %v5707 = vpack.c.b16 %v3907, %v3883
        %v5708 = vpack.c.b16 %v3908, %v3884
        %v5709 = vpack.c.b16 %v3909, %v3885
        %v5710 = vpack.c.b16 %v3910, %v3886
        %v5711 = vpack.c.b16 %v3911, %v3887
        %v5712 = vpack.c.b16 %v3912, %v3888
        %v5713 = vpack.c.b16 %v3913, %v3889
        %v5714 = vpack.c.b16 %v3914, %v3890
        %v5715 = vpack.c.b16 %v3915, %v3891
        %v5716 = vpack.c.b16 %v3916, %v3892
        %v5717 = vpack.c.b16 %v3917, %v3893
        %v5718 = vpack.c.b16 %v3918, %v3894
        %v5719 = vpack.c.b16 %v3919, %v3895
        %v5720 = vpack.c.b16 %v3920, %v3896
        %v5721 = vpack.c.b16 %v3921, %v3897
        %v5722 = vpack.c.b16 %v3922, %v3898
        %v5723 = vpack.c.b16 %v3923, %v3899
        %v5724 = vpack.c.b16 %v3924, %v3900
        %v5725 = vpack.c.b16 %v3925, %v3901
        %v5726 = vpack.c.b16 %v3926, %v3902
        %v5727 = vpack.c.b16 %v3927, %v3903
        %v5728 = vpack.c.b16 %v3952, %v3928
        %v5729 = vpack.c.b16 %v3953, %v3929
        %v5730 = vpack.c.b16 %v3954, %v3930
        %v5731 = vpack.c.b16 %v3955, %v3931
        %v5732 = vpack.c.b16 %v3956, %v3932
        %v5733 = vpack.c.b16 %v3957, %v3933
        %v5734 = vpack.c.b16 %v3958, %v3934
        %v5735 = vpack.c.b16 %v3959, %v3935
        %v5736 = vpack.c.b16 %v3960, %v3936
        %v5737 = vpack.c.b16 %v3961, %v3937
        %v5738 = vpack.c.b16 %v3962, %v3938
        %v5739 = vpack.c.b16 %v3963, %v3939
        %v5740 = vpack.c.b16 %v3964, %v3940
        %v5741 = vpack.c.b16 %v3965, %v3941
        %v5742 = vpack.c.b16 %v3966, %v3942
        %v5743 = vpack.c.b16 %v3967, %v3943
        %v5744 = vpack.c.b16 %v3968, %v3944
        %v5745 = vpack.c.b16 %v3969, %v3945
        %v5746 = vpack.c.b16 %v3970, %v3946
        %v5747 = vpack.c.b16 %v3971, %v3947
        %v5748 = vpack.c.b16 %v3972, %v3948
        %v5749 = vpack.c.b16 %v3973, %v3949
        %v5750 = vpack.c.b16 %v3974, %v3950
        %v5751 = vpack.c.b16 %v3975, %v3951
        %v5752 = vpack.c.b16 %v4000, %v3976
        %v5753 = vpack.c.b16 %v4001, %v3977
        %v5754 = vpack.c.b16 %v4002, %v3978
        %v5755 = vpack.c.b16 %v4003, %v3979
        %v5756 = vpack.c.b16 %v4004, %v3980
        %v5757 = vpack.c.b16 %v4005, %v3981
        %v5758 = vpack.c.b16 %v4006, %v3982
        %v5759 = vpack.c.b16 %v4007, %v3983
        %v5760 = vpack.c.b16 %v4008, %v3984
        %v5761 = vpack.c.b16 %v4009, %v3985
        %v5762 = vpack.c.b16 %v4010, %v3986
        %v5763 = vpack.c.b16 %v4011, %v3987
        %v5764 = vpack.c.b16 %v4012, %v3988
        %v5765 = vpack.c.b16 %v4013, %v3989
        %v5766 = vpack.c.b16 %v4014, %v3990
        %v5767 = vpack.c.b16 %v4015, %v3991
        %v5768 = vpack.c.b16 %v4016, %v3992
        %v5769 = vpack.c.b16 %v4017, %v3993
        %v5770 = vpack.c.b16 %v4018, %v3994
        %v5771 = vpack.c.b16 %v4019, %v3995
        %v5772 = vpack.c.b16 %v4020, %v3996
        %v5773 = vpack.c.b16 %v4021, %v3997
        %v5774 = vpack.c.b16 %v4022, %v3998
        %v5775 = vpack.c.b16 %v4023, %v3999
        %v5776 = vpack.c.b16 %v4048, %v4024
        %v5777 = vpack.c.b16 %v4049, %v4025
        %v5778 = vpack.c.b16 %v4050, %v4026
        %v5779 = vpack.c.b16 %v4051, %v4027
        %v5780 = vpack.c.b16 %v4052, %v4028
        %v5781 = vpack.c.b16 %v4053, %v4029
        %v5782 = vpack.c.b16 %v4054, %v4030
        %v5783 = vpack.c.b16 %v4055, %v4031
        %v5784 = vpack.c.b16 %v4056, %v4032
        %v5785 = vpack.c.b16 %v4057, %v4033
        %v5786 = vpack.c.b16 %v4058, %v4034
        %v5787 = vpack.c.b16 %v4059, %v4035
        %v5788 = vpack.c.b16 %v4060, %v4036
        %v5789 = vpack.c.b16 %v4061, %v4037
        %v5790 = vpack.c.b16 %v4062, %v4038
        %v5791 = vpack.c.b16 %v4063, %v4039
        %v5792 = vpack.c.b16 %v4064, %v4040
        %v5793 = vpack.c.b16 %v4065, %v4041
        %v5794 = vpack.c.b16 %v4066, %v4042
        %v5795 = vpack.c.b16 %v4067, %v4043
        %v5796 = vpack.c.b16 %v4068, %v4044
        %v5797 = vpack.c.b16 %v4069, %v4045
        %v5798 = vpack.c.b16 %v4070, %v4046
        %v5799 = vpack.c.b16 %v4071, %v4047
        %v5800 = vpack.c.b16 %v4096, %v4072
        %v5801 = vpack.c.b16 %v4097, %v4073
        %v5802 = vpack.c.b16 %v4098, %v4074
        %v5803 = vpack.c.b16 %v4099, %v4075
        %v5804 = vpack.c.b16 %v4100, %v4076
        %v5805 = vpack.c.b16 %v4101, %v4077
        %v5806 = vpack.c.b16 %v4102, %v4078
        %v5807 = vpack.c.b16 %v4103, %v4079
        %v5808 = vpack.c.b16 %v4104, %v4080
        %v5809 = vpack.c.b16 %v4105, %v4081
        %v5810 = vpack.c.b16 %v4106, %v4082
        %v5811 = vpack.c.b16 %v4107, %v4083
        %v5812 = vpack.c.b16 %v4108, %v4084
        %v5813 = vpack.c.b16 %v4109, %v4085
        %v5814 = vpack.c.b16 %v4110, %v4086
        %v5815 = vpack.c.b16 %v4111, %v4087
        %v5816 = vpack.c.b16 %v4112, %v4088
        %v5817 = vpack.c.b16 %v4113, %v4089
        %v5818 = vpack.c.b16 %v4114, %v4090
        %v5819 = vpack.c.b16 %v4115, %v4091
        %v5820 = vpack.c.b16 %v4116, %v4092
        %v5821 = vpack.c.b16 %v4117, %v4093
        %v5822 = vpack.c.b16 %v4118, %v4094
        %v5823 = vpack.c.b16 %v4119, %v4095
        %v5824 = vpack.c.b16 %v4144, %v4120
        %v5825 = vpack.c.b16 %v4145, %v4121
        %v5826 = vpack.c.b16 %v4146, %v4122
        %v5827 = vpack.c.b16 %v4147, %v4123
        %v5828 = vpack.c.b16 %v4148, %v4124
        %v5829 = vpack.c.b16 %v4149, %v4125
        %v5830 = vpack.c.b16 %v4150, %v4126
        %v5831 = vpack.c.b16 %v4151, %v4127
        %v5832 = vpack.c.b16 %v4152, %v4128
        %v5833 = vpack.c.b16 %v4153, %v4129
        %v5834 = vpack.c.b16 %v4154, %v4130
        %v5835 = vpack.c.b16 %v4155, %v4131
        %v5836 = vpack.c.b16 %v4156, %v4132
        %v5837 = vpack.c.b16 %v4157, %v4133
        %v5838 = vpack.c.b16 %v4158, %v4134
        %v5839 = vpack.c.b16 %v4159, %v4135
        %v5840 = vpack.c.b16 %v4160, %v4136
        %v5841 = vpack.c.b16 %v4161, %v4137
        %v5842 = vpack.c.b16 %v4162, %v4138
        %v5843 = vpack.c.b16 %v4163, %v4139
        %v5844 = vpack.c.b16 %v4164, %v4140
        %v5845 = vpack.c.b16 %v4165, %v4141
        %v5846 = vpack.c.b16 %v4166, %v4142
        %v5847 = vpack.c.b16 %v4167, %v4143
        %v5848 = vpack.c.b16 %v4192, %v4168
        %v5849 = vpack.c.b16 %v4193, %v4169
        %v5850 = vpack.c.b16 %v4194, %v4170
        %v5851 = vpack.c.b16 %v4195, %v4171
        %v5852 = vpack.c.b16 %v4196, %v4172
        %v5853 = vpack.c.b16 %v4197, %v4173
        %v5854 = vpack.c.b16 %v4198, %v4174
        %v5855 = vpack.c.b16 %v4199, %v4175
        %v5856 = vpack.c.b16 %v4200, %v4176
        %v5857 = vpack.c.b16 %v4201, %v4177
        %v5858 = vpack.c.b16 %v4202, %v4178
        %v5859 = vpack.c.b16 %v4203, %v4179
        %v5860 = vpack.c.b16 %v4204, %v4180
        %v5861 = vpack.c.b16 %v4205, %v4181
        %v5862 = vpack.c.b16 %v4206, %v4182
        %v5863 = vpack.c.b16 %v4207, %v4183
        %v5864 = vpack.c.b16 %v4208, %v4184
        %v5865 = vpack.c.b16 %v4209, %v4185
        %v5866 = vpack.c.b16 %v4210, %v4186
        %v5867 = vpack.c.b16 %v4211, %v4187
        %v5868 = vpack.c.b16 %v4212, %v4188
        %v5869 = vpack.c.b16 %v4213, %v4189
        %v5870 = vpack.c.b16 %v4214, %v4190
        %v5871 = vpack.c.b16 %v4215, %v4191
        %v5872 = vpack.c.b16 %v4240, %v4216
        %v5873 = vpack.c.b16 %v4241, %v4217
        %v5874 = vpack.c.b16 %v4242, %v4218
        %v5875 = vpack.c.b16 %v4243, %v4219
        %v5876 = vpack.c.b16 %v4244, %v4220
        %v5877 = vpack.c.b16 %v4245, %v4221
        %v5878 = vpack.c.b16 %v4246, %v4222
        %v5879 = vpack.c.b16 %v4247, %v4223
        %v5880 = vpack.c.b16 %v4248, %v4224
        %v5881 = vpack.c.b16 %v4249, %v4225
        %v5882 = vpack.c.b16 %v4250, %v4226
        %v5883 = vpack.c.b16 %v4251, %v4227
        %v5884 = vpack.c.b16 %v4252, %v4228
        %v5885 = vpack.c.b16 %v4253, %v4229
        %v5886 = vpack.c.b16 %v4254, %v4230
        %v5887 = vpack.c.b16 %v4255, %v4231
        %v5888 = vpack.c.b16 %v4256, %v4232
        %v5889 = vpack.c.b16 %v4257, %v4233
        %v5890 = vpack.c.b16 %v4258, %v4234
        %v5891 = vpack.c.b16 %v4259, %v4235
        %v5892 = vpack.c.b16 %v4260, %v4236
        %v5893 = vpack.c.b16 %v4261, %v4237
        %v5894 = vpack.c.b16 %v4262, %v4238
        %v5895 = vpack.c.b16 %v4263, %v4239
        %v5896 = vpack.c.b16 %v4288, %v4264
        %v5897 = vpack.c.b16 %v4289, %v4265
        %v5898 = vpack.c.b16 %v4290, %v4266
        %v5899 = vpack.c.b16 %v4291, %v4267
        %v5900 = vpack.c.b16 %v4292, %v4268
        %v5901 = vpack.c.b16 %v4293, %v4269
        %v5902 = vpack.c.b16 %v4294, %v4270
        %v5903 = vpack.c.b16 %v4295, %v4271
        %v5904 = vpack.c.b16 %v4296, %v4272
        %v5905 = vpack.c.b16 %v4297, %v4273
        %v5906 = vpack.c.b16 %v4298, %v4274
        %v5907 = vpack.c.b16 %v4299, %v4275
        %v5908 = vpack.c.b16 %v4300, %v4276
        %v5909 = vpack.c.b16 %v4301, %v4277
        %v5910 = vpack.c.b16 %v4302, %v4278
        %v5911 = vpack.c.b16 %v4303, %v4279
        %v5912 = vpack.c.b16 %v4304, %v4280
        %v5913 = vpack.c.b16 %v4305, %v4281
        %v5914 = vpack.c.b16 %v4306, %v4282
        %v5915 = vpack.c.b16 %v4307, %v4283
        %v5916 = vpack.c.b16 %v4308, %v4284
        %v5917 = vpack.c.b16 %v4309, %v4285
        %v5918 = vpack.c.b16 %v4310, %v4286
        %v5919 = vpack.c.b16 %v4311, %v4287
        %v5920 = vpack.c.b16 %v4336, %v4312
        %v5921 = vpack.c.b16 %v4337, %v4313
        %v5922 = vpack.c.b16 %v4338, %v4314
        %v5923 = vpack.c.b16 %v4339, %v4315
        %v5924 = vpack.c.b16 %v4340, %v4316
        %v5925 = vpack.c.b16 %v4341, %v4317
        %v5926 = vpack.c.b16 %v4342, %v4318
        %v5927 = vpack.c.b16 %v4343, %v4319
        %v5928 = vpack.c.b16 %v4344, %v4320
        %v5929 = vpack.c.b16 %v4345, %v4321
        %v5930 = vpack.c.b16 %v4346, %v4322
        %v5931 = vpack.c.b16 %v4347, %v4323
        %v5932 = vpack.c.b16 %v4348, %v4324
        %v5933 = vpack.c.b16 %v4349, %v4325
        %v5934 = vpack.c.b16 %v4350, %v4326
        %v5935 = vpack.c.b16 %v4351, %v4327
        %v5936 = vpack.c.b16 %v4352, %v4328
        %v5937 = vpack.c.b16 %v4353, %v4329
        %v5938 = vpack.c.b16 %v4354, %v4330
        %v5939 = vpack.c.b16 %v4355, %v4331
        %v5940 = vpack.c.b16 %v4356, %v4332
        %v5941 = vpack.c.b16 %v4357, %v4333
        %v5942 = vpack.c.b16 %v4358, %v4334
        %v5943 = vpack.c.b16 %v4359, %v4335
        %v5944 = vpack.c.b16 %v4384, %v4360
        %v5945 = vpack.c.b16 %v4385, %v4361
        %v5946 = vpack.c.b16 %v4386, %v4362
        %v5947 = vpack.c.b16 %v4387, %v4363
        %v5948 = vpack.c.b16 %v4388, %v4364
        %v5949 = vpack.c.b16 %v4389, %v4365
        %v5950 = vpack.c.b16 %v4390, %v4366
        %v5951 = vpack.c.b16 %v4391, %v4367
        %v5952 = vpack.c.b16 %v4392, %v4368
        %v5953 = vpack.c.b16 %v4393, %v4369
        %v5954 = vpack.c.b16 %v4394, %v4370
        %v5955 = vpack.c.b16 %v4395, %v4371
        %v5956 = vpack.c.b16 %v4396, %v4372
        %v5957 = vpack.c.b16 %v4397, %v4373
        %v5958 = vpack.c.b16 %v4398, %v4374
        %v5959 = vpack.c.b16 %v4399, %v4375
        %v5960 = vpack.c.b16 %v4400, %v4376
        %v5961 = vpack.c.b16 %v4401, %v4377
        %v5962 = vpack.c.b16 %v4402, %v4378
        %v5963 = vpack.c.b16 %v4403, %v4379
        %v5964 = vpack.c.b16 %v4404, %v4380
        %v5965 = vpack.c.b16 %v4405, %v4381
        %v5966 = vpack.c.b16 %v4406, %v4382
        %v5967 = vpack.c.b16 %v4407, %v4383
        %v5968 = vpack.c.b16 %v4432, %v4408
        %v5969 = vpack.c.b16 %v4433, %v4409
        %v5970 = vpack.c.b16 %v4434, %v4410
        %v5971 = vpack.c.b16 %v4435, %v4411
        %v5972 = vpack.c.b16 %v4436, %v4412
        %v5973 = vpack.c.b16 %v4437, %v4413
        %v5974 = vpack.c.b16 %v4438, %v4414
        %v5975 = vpack.c.b16 %v4439, %v4415
        %v5976 = vpack.c.b16 %v4440, %v4416
        %v5977 = vpack.c.b16 %v4441, %v4417
        %v5978 = vpack.c.b16 %v4442, %v4418
        %v5979 = vpack.c.b16 %v4443, %v4419
        %v5980 = vpack.c.b16 %v4444, %v4420
        %v5981 = vpack.c.b16 %v4445, %v4421
        %v5982 = vpack.c.b16 %v4446, %v4422
        %v5983 = vpack.c.b16 %v4447, %v4423
        %v5984 = vpack.c.b16 %v4448, %v4424
        %v5985 = vpack.c.b16 %v4449, %v4425
        %v5986 = vpack.c.b16 %v4450, %v4426
        %v5987 = vpack.c.b16 %v4451, %v4427
        %v5988 = vpack.c.b16 %v4452, %v4428
        %v5989 = vpack.c.b16 %v4453, %v4429
        %v5990 = vpack.c.b16 %v4454, %v4430
        %v5991 = vpack.c.b16 %v4455, %v4431
        %v5992 = vpack.c.b16 %v4480, %v4456
        %v5993 = vpack.c.b16 %v4481, %v4457
        %v5994 = vpack.c.b16 %v4482, %v4458
        %v5995 = vpack.c.b16 %v4483, %v4459
        %v5996 = vpack.c.b16 %v4484, %v4460
        %v5997 = vpack.c.b16 %v4485, %v4461
        %v5998 = vpack.c.b16 %v4486, %v4462
        %v5999 = vpack.c.b16 %v4487, %v4463
        %v6000 = vpack.c.b16 %v4488, %v4464
        %v6001 = vpack.c.b16 %v4489, %v4465
        %v6002 = vpack.c.b16 %v4490, %v4466
        %v6003 = vpack.c.b16 %v4491, %v4467
        %v6004 = vpack.c.b16 %v4492, %v4468
        %v6005 = vpack.c.b16 %v4493, %v4469
        %v6006 = vpack.c.b16 %v4494, %v4470
        %v6007 = vpack.c.b16 %v4495, %v4471
        %v6008 = vpack.c.b16 %v4496, %v4472
        %v6009 = vpack.c.b16 %v4497, %v4473
        %v6010 = vpack.c.b16 %v4498, %v4474
        %v6011 = vpack.c.b16 %v4499, %v4475
        %v6012 = vpack.c.b16 %v4500, %v4476
        %v6013 = vpack.c.b16 %v4501, %v4477
        %v6014 = vpack.c.b16 %v4502, %v4478
        %v6015 = vpack.c.b16 %v4503, %v4479
        %v6016 = vpack.c.b16 %v4528, %v4504
        %v6017 = vpack.c.b16 %v4529, %v4505
        %v6018 = vpack.c.b16 %v4530, %v4506
        %v6019 = vpack.c.b16 %v4531, %v4507
        %v6020 = vpack.c.b16 %v4532, %v4508
        %v6021 = vpack.c.b16 %v4533, %v4509
        %v6022 = vpack.c.b16 %v4534, %v4510
        %v6023 = vpack.c.b16 %v4535, %v4511
        %v6024 = vpack.c.b16 %v4536, %v4512
        %v6025 = vpack.c.b16 %v4537, %v4513
        %v6026 = vpack.c.b16 %v4538, %v4514
        %v6027 = vpack.c.b16 %v4539, %v4515
        %v6028 = vpack.c.b16 %v4540, %v4516
        %v6029 = vpack.c.b16 %v4541, %v4517
        %v6030 = vpack.c.b16 %v4542, %v4518
        %v6031 = vpack.c.b16 %v4543, %v4519
        %v6032 = vpack.c.b16 %v4544, %v4520
        %v6033 = vpack.c.b16 %v4545, %v4521
        %v6034 = vpack.c.b16 %v4546, %v4522
        %v6035 = vpack.c.b16 %v4547, %v4523
        %v6036 = vpack.c.b16 %v4548, %v4524
        %v6037 = vpack.c.b16 %v4549, %v4525
        %v6038 = vpack.c.b16 %v4550, %v4526
        %v6039 = vpack.c.b16 %v4551, %v4527
        %v6040 = vpack.c.b16 %v4576, %v4552
        %v6041 = vpack.c.b16 %v4577, %v4553
        %v6042 = vpack.c.b16 %v4578, %v4554
        %v6043 = vpack.c.b16 %v4579, %v4555
        %v6044 = vpack.c.b16 %v4580, %v4556
        %v6045 = vpack.c.b16 %v4581, %v4557
        %v6046 = vpack.c.b16 %v4582, %v4558
        %v6047 = vpack.c.b16 %v4583, %v4559
        %v6048 = vpack.c.b16 %v4584, %v4560
        %v6049 = vpack.c.b16 %v4585, %v4561
        %v6050 = vpack.c.b16 %v4586, %v4562
        %v6051 = vpack.c.b16 %v4587, %v4563
        %v6052 = vpack.c.b16 %v4588, %v4564
        %v6053 = vpack.c.b16 %v4589, %v4565
        %v6054 = vpack.c.b16 %v4590, %v4566
        %v6055 = vpack.c.b16 %v4591, %v4567
        %v6056 = vpack.c.b16 %v4592, %v4568
        %v6057 = vpack.c.b16 %v4593, %v4569
        %v6058 = vpack.c.b16 %v4594, %v4570
        %v6059 = vpack.c.b16 %v4595, %v4571
        %v6060 = vpack.c.b16 %v4596, %v4572
        %v6061 = vpack.c.b16 %v4597, %v4573
        %v6062 = vpack.c.b16 %v4598, %v4574
        %v6063 = vpack.c.b16 %v4599, %v4575
        %v6064 = vpack.c.b16 %v4624, %v4600
        %v6065 = vpack.c.b16 %v4625, %v4601
        %v6066 = vpack.c.b16 %v4626, %v4602
        %v6067 = vpack.c.b16 %v4627, %v4603
        %v6068 = vpack.c.b16 %v4628, %v4604
        %v6069 = vpack.c.b16 %v4629, %v4605
        %v6070 = vpack.c.b16 %v4630, %v4606
        %v6071 = vpack.c.b16 %v4631, %v4607
        %v6072 = vpack.c.b16 %v4632, %v4608
        %v6073 = vpack.c.b16 %v4633, %v4609
        %v6074 = vpack.c.b16 %v4634, %v4610
        %v6075 = vpack.c.b16 %v4635, %v4611
        %v6076 = vpack.c.b16 %v4636, %v4612
        %v6077 = vpack.c.b16 %v4637, %v4613
        %v6078 = vpack.c.b16 %v4638, %v4614
        %v6079 = vpack.c.b16 %v4639, %v4615
        %v6080 = vpack.c.b16 %v4640, %v4616
        %v6081 = vpack.c.b16 %v4641, %v4617
        %v6082 = vpack.c.b16 %v4642, %v4618
        %v6083 = vpack.c.b16 %v4643, %v4619
        %v6084 = vpack.c.b16 %v4644, %v4620
        %v6085 = vpack.c.b16 %v4645, %v4621
        %v6086 = vpack.c.b16 %v4646, %v4622
        %v6087 = vpack.c.b16 %v4647, %v4623
        %v6088 = vpack.c.b16 %v4672, %v4648
        %v6089 = vpack.c.b16 %v4673, %v4649
        %v6090 = vpack.c.b16 %v4674, %v4650
        %v6091 = vpack.c.b16 %v4675, %v4651
        %v6092 = vpack.c.b16 %v4676, %v4652
        %v6093 = vpack.c.b16 %v4677, %v4653
        %v6094 = vpack.c.b16 %v4678, %v4654
        %v6095 = vpack.c.b16 %v4679, %v4655
        %v6096 = vpack.c.b16 %v4680, %v4656
        %v6097 = vpack.c.b16 %v4681, %v4657
        %v6098 = vpack.c.b16 %v4682, %v4658
        %v6099 = vpack.c.b16 %v4683, %v4659
        %v6100 = vpack.c.b16 %v4684, %v4660
        %v6101 = vpack.c.b16 %v4685, %v4661
        %v6102 = vpack.c.b16 %v4686, %v4662
        %v6103 = vpack.c.b16 %v4687, %v4663
        %v6104 = vpack.c.b16 %v4688, %v4664
        %v6105 = vpack.c.b16 %v4689, %v4665
        %v6106 = vpack.c.b16 %v4690, %v4666
        %v6107 = vpack.c.b16 %v4691, %v4667
        %v6108 = vpack.c.b16 %v4692, %v4668
        %v6109 = vpack.c.b16 %v4693, %v4669
        %v6110 = vpack.c.b16 %v4694, %v4670
        %v6111 = vpack.c.b16 %v4695, %v4671
        %v6112 = vpack.c.b16 %v4720, %v4696
        %v6113 = vpack.c.b16 %v4721, %v4697
        %v6114 = vpack.c.b16 %v4722, %v4698
        %v6115 = vpack.c.b16 %v4723, %v4699
        %v6116 = vpack.c.b16 %v4724, %v4700
        %v6117 = vpack.c.b16 %v4725, %v4701
        %v6118 = vpack.c.b16 %v4726, %v4702
        %v6119 = vpack.c.b16 %v4727, %v4703
        %v6120 = vpack.c.b16 %v4728, %v4704
        %v6121 = vpack.c.b16 %v4729, %v4705
        %v6122 = vpack.c.b16 %v4730, %v4706
        %v6123 = vpack.c.b16 %v4731, %v4707
        %v6124 = vpack.c.b16 %v4732, %v4708
        %v6125 = vpack.c.b16 %v4733, %v4709
        %v6126 = vpack.c.b16 %v4734, %v4710
        %v6127 = vpack.c.b16 %v4735, %v4711
        %v6128 = vpack.c.b16 %v4736, %v4712
        %v6129 = vpack.c.b16 %v4737, %v4713
        %v6130 = vpack.c.b16 %v4738, %v4714
        %v6131 = vpack.c.b16 %v4739, %v4715
        %v6132 = vpack.c.b16 %v4740, %v4716
        %v6133 = vpack.c.b16 %v4741, %v4717
        %v6134 = vpack.c.b16 %v4742, %v4718
        %v6135 = vpack.c.b16 %v4743, %v4719
        %v6136 = vpack.c.b16 %v4768, %v4744
        %v6137 = vpack.c.b16 %v4769, %v4745
        %v6138 = vpack.c.b16 %v4770, %v4746
        %v6139 = vpack.c.b16 %v4771, %v4747
        %v6140 = vpack.c.b16 %v4772, %v4748
        %v6141 = vpack.c.b16 %v4773, %v4749
        %v6142 = vpack.c.b16 %v4774, %v4750
        %v6143 = vpack.c.b16 %v4775, %v4751
        %v6144 = vpack.c.b16 %v4776, %v4752
        %v6145 = vpack.c.b16 %v4777, %v4753
        %v6146 = vpack.c.b16 %v4778, %v4754
        %v6147 = vpack.c.b16 %v4779, %v4755
        %v6148 = vpack.c.b16 %v4780, %v4756
        %v6149 = vpack.c.b16 %v4781, %v4757
        %v6150 = vpack.c.b16 %v4782, %v4758
        %v6151 = vpack.c.b16 %v4783, %v4759
        %v6152 = vpack.c.b16 %v4784, %v4760
        %v6153 = vpack.c.b16 %v4785, %v4761
        %v6154 = vpack.c.b16 %v4786, %v4762
        %v6155 = vpack.c.b16 %v4787, %v4763
        %v6156 = vpack.c.b16 %v4788, %v4764
        %v6157 = vpack.c.b16 %v4789, %v4765
        %v6158 = vpack.c.b16 %v4790, %v4766
        %v6159 = vpack.c.b16 %v4791, %v4767
        %v6160 = vpack.c.b16 %v4816, %v4792
        %v6161 = vpack.c.b16 %v4817, %v4793
        %v6162 = vpack.c.b16 %v4818, %v4794
        %v6163 = vpack.c.b16 %v4819, %v4795
        %v6164 = vpack.c.b16 %v4820, %v4796
        %v6165 = vpack.c.b16 %v4821, %v4797
        %v6166 = vpack.c.b16 %v4822, %v4798
        %v6167 = vpack.c.b16 %v4823, %v4799
        %v6168 = vpack.c.b16 %v4824, %v4800
        %v6169 = vpack.c.b16 %v4825, %v4801
        %v6170 = vpack.c.b16 %v4826, %v4802
        %v6171 = vpack.c.b16 %v4827, %v4803
        %v6172 = vpack.c.b16 %v4828, %v4804
        %v6173 = vpack.c.b16 %v4829, %v4805
        %v6174 = vpack.c.b16 %v4830, %v4806
        %v6175 = vpack.c.b16 %v4831, %v4807
        %v6176 = vpack.c.b16 %v4832, %v4808
        %v6177 = vpack.c.b16 %v4833, %v4809
        %v6178 = vpack.c.b16 %v4834, %v4810
        %v6179 = vpack.c.b16 %v4835, %v4811
        %v6180 = vpack.c.b16 %v4836, %v4812
        %v6181 = vpack.c.b16 %v4837, %v4813
        %v6182 = vpack.c.b16 %v4838, %v4814
        %v6183 = vpack.c.b16 %v4839, %v4815
        %v6184 = vpack.c.b16 %v4864, %v4840
        %v6185 = vpack.c.b16 %v4865, %v4841
        %v6186 = vpack.c.b16 %v4866, %v4842
        %v6187 = vpack.c.b16 %v4867, %v4843
        %v6188 = vpack.c.b16 %v4868, %v4844
        %v6189 = vpack.c.b16 %v4869, %v4845
        %v6190 = vpack.c.b16 %v4870, %v4846
        %v6191 = vpack.c.b16 %v4871, %v4847
        %v6192 = vpack.c.b16 %v4872, %v4848
        %v6193 = vpack.c.b16 %v4873, %v4849
        %v6194 = vpack.c.b16 %v4874, %v4850
        %v6195 = vpack.c.b16 %v4875, %v4851
        %v6196 = vpack.c.b16 %v4876, %v4852
        %v6197 = vpack.c.b16 %v4877, %v4853
        %v6198 = vpack.c.b16 %v4878, %v4854
        %v6199 = vpack.c.b16 %v4879, %v4855
        %v6200 = vpack.c.b16 %v4880, %v4856
        %v6201 = vpack.c.b16 %v4881, %v4857
        %v6202 = vpack.c.b16 %v4882, %v4858
        %v6203 = vpack.c.b16 %v4883, %v4859
        %v6204 = vpack.c.b16 %v4884, %v4860
        %v6205 = vpack.c.b16 %v4885, %v4861
        %v6206 = vpack.c.b16 %v4886, %v4862
        %v6207 = vpack.c.b16 %v4887, %v4863
        %v6208 = vpack.c.b16 %v4912, %v4888
        %v6209 = vpack.c.b16 %v4913, %v4889
        %v6210 = vpack.c.b16 %v4914, %v4890
        %v6211 = vpack.c.b16 %v4915, %v4891
        %v6212 = vpack.c.b16 %v4916, %v4892
        %v6213 = vpack.c.b16 %v4917, %v4893
        %v6214 = vpack.c.b16 %v4918, %v4894
        %v6215 = vpack.c.b16 %v4919, %v4895
        %v6216 = vpack.c.b16 %v4920, %v4896
        %v6217 = vpack.c.b16 %v4921, %v4897
        %v6218 = vpack.c.b16 %v4922, %v4898
        %v6219 = vpack.c.b16 %v4923, %v4899
        %v6220 = vpack.c.b16 %v4924, %v4900
        %v6221 = vpack.c.b16 %v4925, %v4901
        %v6222 = vpack.c.b16 %v4926, %v4902
        %v6223 = vpack.c.b16 %v4927, %v4903
        %v6224 = vpack.c.b16 %v4928, %v4904
        %v6225 = vpack.c.b16 %v4929, %v4905
        %v6226 = vpack.c.b16 %v4930, %v4906
        %v6227 = vpack.c.b16 %v4931, %v4907
        %v6228 = vpack.c.b16 %v4932, %v4908
        %v6229 = vpack.c.b16 %v4933, %v4909
        %v6230 = vpack.c.b16 %v4934, %v4910
        %v6231 = vpack.c.b16 %v4935, %v4911
        %v6232 = vpack.c.b16 %v4960, %v4936
        %v6233 = vpack.c.b16 %v4961, %v4937
        %v6234 = vpack.c.b16 %v4962, %v4938
        %v6235 = vpack.c.b16 %v4963, %v4939
        %v6236 = vpack.c.b16 %v4964, %v4940
        %v6237 = vpack.c.b16 %v4965, %v4941
        %v6238 = vpack.c.b16 %v4966, %v4942
        %v6239 = vpack.c.b16 %v4967, %v4943
        %v6240 = vpack.c.b16 %v4968, %v4944
        %v6241 = vpack.c.b16 %v4969, %v4945
        %v6242 = vpack.c.b16 %v4970, %v4946
        %v6243 = vpack.c.b16 %v4971, %v4947
        %v6244 = vpack.c.b16 %v4972, %v4948
        %v6245 = vpack.c.b16 %v4973, %v4949
        %v6246 = vpack.c.b16 %v4974, %v4950
        %v6247 = vpack.c.b16 %v4975, %v4951
        %v6248 = vpack.c.b16 %v4976, %v4952
        %v6249 = vpack.c.b16 %v4977, %v4953
        %v6250 = vpack.c.b16 %v4978, %v4954
        %v6251 = vpack.c.b16 %v4979, %v4955
        %v6252 = vpack.c.b16 %v4980, %v4956
        %v6253 = vpack.c.b16 %v4981, %v4957
        %v6254 = vpack.c.b16 %v4982, %v4958
        %v6255 = vpack.c.b16 %v4983, %v4959
        %v6256 = vpack.c.b16 %v5008, %v4984
        %v6257 = vpack.c.b16 %v5009, %v4985
        %v6258 = vpack.c.b16 %v5010, %v4986
        %v6259 = vpack.c.b16 %v5011, %v4987
        %v6260 = vpack.c.b16 %v5012, %v4988
        %v6261 = vpack.c.b16 %v5013, %v4989
        %v6262 = vpack.c.b16 %v5014, %v4990
        %v6263 = vpack.c.b16 %v5015, %v4991
        %v6264 = vpack.c.b16 %v5016, %v4992
        %v6265 = vpack.c.b16 %v5017, %v4993
        %v6266 = vpack.c.b16 %v5018, %v4994
        %v6267 = vpack.c.b16 %v5019, %v4995
        %v6268 = vpack.c.b16 %v5020, %v4996
        %v6269 = vpack.c.b16 %v5021, %v4997
        %v6270 = vpack.c.b16 %v5022, %v4998
        %v6271 = vpack.c.b16 %v5023, %v4999
        %v6272 = vpack.c.b16 %v5024, %v5000
        %v6273 = vpack.c.b16 %v5025, %v5001
        %v6274 = vpack.c.b16 %v5026, %v5002
        %v6275 = vpack.c.b16 %v5027, %v5003
        %v6276 = vpack.c.b16 %v5028, %v5004
        %v6277 = vpack.c.b16 %v5029, %v5005
        %v6278 = vpack.c.b16 %v5030, %v5006
        %v6279 = vpack.c.b16 %v5031, %v5007
        %v6280 = vpack.c.b16 %v5056, %v5032
        %v6281 = vpack.c.b16 %v5057, %v5033
        %v6282 = vpack.c.b16 %v5058, %v5034
        %v6283 = vpack.c.b16 %v5059, %v5035
        %v6284 = vpack.c.b16 %v5060, %v5036
        %v6285 = vpack.c.b16 %v5061, %v5037
        %v6286 = vpack.c.b16 %v5062, %v5038
        %v6287 = vpack.c.b16 %v5063, %v5039
        %v6288 = vpack.c.b16 %v5064, %v5040
        %v6289 = vpack.c.b16 %v5065, %v5041
        %v6290 = vpack.c.b16 %v5066, %v5042
        %v6291 = vpack.c.b16 %v5067, %v5043
        %v6292 = vpack.c.b16 %v5068, %v5044
        %v6293 = vpack.c.b16 %v5069, %v5045
        %v6294 = vpack.c.b16 %v5070, %v5046
        %v6295 = vpack.c.b16 %v5071, %v5047
        %v6296 = vpack.c.b16 %v5072, %v5048
        %v6297 = vpack.c.b16 %v5073, %v5049
        %v6298 = vpack.c.b16 %v5074, %v5050
        %v6299 = vpack.c.b16 %v5075, %v5051
        %v6300 = vpack.c.b16 %v5076, %v5052
        %v6301 = vpack.c.b16 %v5077, %v5053
        %v6302 = vpack.c.b16 %v5078, %v5054
        %v6303 = vpack.c.b16 %v5079, %v5055
        %v6304 = vpack.c.b16 %v5104, %v5080
        %v6305 = vpack.c.b16 %v5105, %v5081
        %v6306 = vpack.c.b16 %v5106, %v5082
        %v6307 = vpack.c.b16 %v5107, %v5083
        %v6308 = vpack.c.b16 %v5108, %v5084
        %v6309 = vpack.c.b16 %v5109, %v5085
        %v6310 = vpack.c.b16 %v5110, %v5086
        %v6311 = vpack.c.b16 %v5111, %v5087
        %v6312 = vpack.c.b16 %v5112, %v5088
        %v6313 = vpack.c.b16 %v5113, %v5089
        %v6314 = vpack.c.b16 %v5114, %v5090
        %v6315 = vpack.c.b16 %v5115, %v5091
        %v6316 = vpack.c.b16 %v5116, %v5092
        %v6317 = vpack.c.b16 %v5117, %v5093
        %v6318 = vpack.c.b16 %v5118, %v5094
        %v6319 = vpack.c.b16 %v5119, %v5095
        %v6320 = vpack.c.b16 %v5120, %v5096
        %v6321 = vpack.c.b16 %v5121, %v5097
        %v6322 = vpack.c.b16 %v5122, %v5098
        %v6323 = vpack.c.b16 %v5123, %v5099
        %v6324 = vpack.c.b16 %v5124, %v5100
        %v6325 = vpack.c.b16 %v5125, %v5101
        %v6326 = vpack.c.b16 %v5126, %v5102
        %v6327 = vpack.c.b16 %v5127, %v5103
        %v6328 = vpack.c.b16 %v5152, %v5128
        %v6329 = vpack.c.b16 %v5153, %v5129
        %v6330 = vpack.c.b16 %v5154, %v5130
        %v6331 = vpack.c.b16 %v5155, %v5131
        %v6332 = vpack.c.b16 %v5156, %v5132
        %v6333 = vpack.c.b16 %v5157, %v5133
        %v6334 = vpack.c.b16 %v5158, %v5134
        %v6335 = vpack.c.b16 %v5159, %v5135
        %v6336 = vpack.c.b16 %v5160, %v5136
        %v6337 = vpack.c.b16 %v5161, %v5137
        %v6338 = vpack.c.b16 %v5162, %v5138
        %v6339 = vpack.c.b16 %v5163, %v5139
        %v6340 = vpack.c.b16 %v5164, %v5140
        %v6341 = vpack.c.b16 %v5165, %v5141
        %v6342 = vpack.c.b16 %v5166, %v5142
        %v6343 = vpack.c.b16 %v5167, %v5143
        %v6344 = vpack.c.b16 %v5168, %v5144
        %v6345 = vpack.c.b16 %v5169, %v5145
        %v6346 = vpack.c.b16 %v5170, %v5146
        %v6347 = vpack.c.b16 %v5171, %v5147
        %v6348 = vpack.c.b16 %v5172, %v5148
        %v6349 = vpack.c.b16 %v5173, %v5149
        %v6350 = vpack.c.b16 %v5174, %v5150
        %v6351 = vpack.c.b16 %v5175, %v5151
        %vm7528 = vcmask 130048
        %v7530 = vsel %vm7528, %v345, 0
        %7532 = vmatprep.subr.bf16.mxu0 %v5345
        %7533 = vmatpush1.bf16.msra.mxu0 %v5344
        %7534 = vmatprep.subr.bf16.mxu0 %v5321
        %7535 = vmatpush1.bf16.msra.mxu0 %v5320
        %7536 = vmatprep.subr.bf16.mxu0 %v5297
        %7537 = vmatpush1.bf16.msra.mxu0 %v5296
        %7538 = vmatprep.subr.bf16.mxu0 %v5273
        %7539 = vmatpush1.bf16.msra.mxu0 %v5272
        %7540 = vmatprep.subr.bf16.mxu0 %v5249
        %7541 = vmatpush1.bf16.msra.mxu0 %v5248
        %7542 = vmatprep.subr.bf16.mxu0 %v5225
        %7543 = vmatpush1.bf16.msra.mxu0 %v5224
        %7544 = vmatprep.subr.bf16.mxu0 %v5201
        %7545 = vmatpush1.bf16.msra.mxu0 %v5200
        %7546 = vmatprep.subr.bf16.mxu0 %v5177
        %7547 = vmatpush1.bf16.msra.mxu0 %v5176
        %7548 = vmatprep.subr.bf16.mxu0 %v5537
        %7549 = vmatpush2.bf16.msra.mxu0 %v5536
        %7550 = vmatprep.subr.bf16.mxu0 %v5513
        %7551 = vmatpush2.bf16.msra.mxu0 %v5512
        %7552 = vmatprep.subr.bf16.mxu0 %v5489
        %7553 = vmatpush2.bf16.msra.mxu0 %v5488
        %7554 = vmatprep.subr.bf16.mxu0 %v5465
        %7555 = vmatpush2.bf16.msra.mxu0 %v5464
        %7556 = vmatprep.subr.bf16.mxu0 %v5441
        %7557 = vmatpush2.bf16.msra.mxu0 %v5440
        %7558 = vmatprep.subr.bf16.mxu0 %v5417
        %7559 = vmatpush2.bf16.msra.mxu0 %v5416
        %7560 = vmatprep.subr.bf16.mxu0 %v5393
        %7561 = vmatpush2.bf16.msra.mxu0 %v5392
        %7562 = vmatprep.subr.bf16.mxu0 %v5369
        %7563 = vmatpush2.bf16.msra.mxu0 %v5368
        %7564 = vmatprep.mubr.bf16.mxu0 %v340
        %7565 = vmatmul.mubr.bf16.gmra.mxu0 %v339
        %v7566 = vpop.f32.mrf.mxu0
        %v7567 = vadd.f32 %v1531, %v7566
        %v7568 = vpop.f32.mrf.mxu0
        %v7569 = vadd.f32 %v1535, %v7568
        %v7570 = vpop.f32.mrf.mxu0
        %v7571 = vpop.f32.mrf.mxu0
        %7572 = vdwg.mxu0
        %7573 = vmatprep.subr.bf16.mxu0 %v5729
        %7574 = vmatpush1.bf16.msra.mxu0 %v5728
        %7575 = vmatprep.subr.bf16.mxu0 %v5705
        %7576 = vmatpush1.bf16.msra.mxu0 %v5704
        %7577 = vmatprep.subr.bf16.mxu0 %v5681
        %7578 = vmatpush1.bf16.msra.mxu0 %v5680
        %7579 = vmatprep.subr.bf16.mxu0 %v5657
        %7580 = vmatpush1.bf16.msra.mxu0 %v5656
        %7581 = vmatprep.subr.bf16.mxu0 %v5633
        %7582 = vmatpush1.bf16.msra.mxu0 %v5632
        %7583 = vmatprep.subr.bf16.mxu0 %v5609
        %7584 = vmatpush1.bf16.msra.mxu0 %v5608
        %7585 = vmatprep.subr.bf16.mxu0 %v5585
        %7586 = vmatpush1.bf16.msra.mxu0 %v5584
        %7587 = vmatprep.subr.bf16.mxu0 %v5561
        %7588 = vmatpush1.bf16.msra.mxu0 %v5560
        %7589 = vmatprep.subr.bf16.mxu0 %v5921
        %7590 = vmatpush2.bf16.msra.mxu0 %v5920
        %7591 = vmatprep.subr.bf16.mxu0 %v5897
        %7592 = vmatpush2.bf16.msra.mxu0 %v5896
        %7593 = vmatprep.subr.bf16.mxu0 %v5873
        %7594 = vmatpush2.bf16.msra.mxu0 %v5872
        %7595 = vmatprep.subr.bf16.mxu0 %v5849
        %7596 = vmatpush2.bf16.msra.mxu0 %v5848
        %7597 = vmatprep.subr.bf16.mxu0 %v5825
        %7598 = vmatpush2.bf16.msra.mxu0 %v5824
        %7599 = vmatprep.subr.bf16.mxu0 %v5801
        %7600 = vmatpush2.bf16.msra.mxu0 %v5800
        %7601 = vmatprep.subr.bf16.mxu0 %v5777
        %7602 = vmatpush2.bf16.msra.mxu0 %v5776
        %7603 = vmatprep.subr.bf16.mxu0 %v5753
        %7604 = vmatpush2.bf16.msra.mxu0 %v5752
        %7605 = vmatprep.mubr.bf16.mxu0 %v342
        %7606 = vmatmul.mubr.bf16.gmra.mxu0 %v341
        %v7607 = vpop.f32.mrf.mxu0
        %v7608 = vadd.f32 %v7567, %v7607
        %v7609 = vpop.f32.mrf.mxu0
        %v7610 = vadd.f32 %v7569, %v7609
        %v7611 = vpop.f32.mrf.mxu0
        %v7612 = vpop.f32.mrf.mxu0
        %7613 = vdwg.mxu0
        %7614 = vmatprep.subr.bf16.mxu0 %v6113
        %7615 = vmatpush1.bf16.msra.mxu0 %v6112
        %7616 = vmatprep.subr.bf16.mxu0 %v6089
        %7617 = vmatpush1.bf16.msra.mxu0 %v6088
        %7618 = vmatprep.subr.bf16.mxu0 %v6065
        %7619 = vmatpush1.bf16.msra.mxu0 %v6064
        %7620 = vmatprep.subr.bf16.mxu0 %v6041
        %7621 = vmatpush1.bf16.msra.mxu0 %v6040
        %7622 = vmatprep.subr.bf16.mxu0 %v6017
        %7623 = vmatpush1.bf16.msra.mxu0 %v6016
        %7624 = vmatprep.subr.bf16.mxu0 %v5993
        %7625 = vmatpush1.bf16.msra.mxu0 %v5992
        %7626 = vmatprep.subr.bf16.mxu0 %v5969
        %7627 = vmatpush1.bf16.msra.mxu0 %v5968
        %7628 = vmatprep.subr.bf16.mxu0 %v5945
        %7629 = vmatpush1.bf16.msra.mxu0 %v5944
        %7630 = vmatprep.subr.bf16.mxu0 %v6305
        %7631 = vmatpush2.bf16.msra.mxu0 %v6304
        %7632 = vmatprep.subr.bf16.mxu0 %v6281
        %7633 = vmatpush2.bf16.msra.mxu0 %v6280
        %7634 = vmatprep.subr.bf16.mxu0 %v6257
        %7635 = vmatpush2.bf16.msra.mxu0 %v6256
        %7636 = vmatprep.subr.bf16.mxu0 %v6233
        %7637 = vmatpush2.bf16.msra.mxu0 %v6232
        %7638 = vmatprep.subr.bf16.mxu0 %v6209
        %7639 = vmatpush2.bf16.msra.mxu0 %v6208
        %7640 = vmatprep.subr.bf16.mxu0 %v6185
        %7641 = vmatpush2.bf16.msra.mxu0 %v6184
        %7642 = vmatprep.subr.bf16.mxu0 %v6161
        %7643 = vmatpush2.bf16.msra.mxu0 %v6160
        %7644 = vmatprep.subr.bf16.mxu0 %v6137
        %7645 = vmatpush2.bf16.msra.mxu0 %v6136
        %7646 = vmatprep.mubr.bf16.mxu0 %v344
        %7647 = vmatmul.mubr.bf16.gmra.mxu0 %v343
        %v7648 = vpop.f32.mrf.mxu0
        %v7649 = vadd.f32 %v7608, %v7648
        %v7650 = vpop.f32.mrf.mxu0
        %v7651 = vadd.f32 %v7610, %v7650
        %v7652 = vpop.f32.mrf.mxu0
        %v7653 = vpop.f32.mrf.mxu0
        %7654 = vdwg.mxu0
        %7655 = vmatprep.subr.bf16.mxu0 0
        %7656 = vmatpush1.bf16.msra.mxu0 0
        %7657 = vmatprep.subr.bf16.mxu0 0
        %7658 = vmatpush1.bf16.msra.mxu0 0
        %7659 = vmatprep.subr.bf16.mxu0 0
        %7660 = vmatpush1.bf16.msra.mxu0 0
        %7661 = vmatprep.subr.bf16.mxu0 0
        %7662 = vmatpush1.bf16.msra.mxu0 0
        %7663 = vmatprep.subr.bf16.mxu0 0
        %7664 = vmatpush1.bf16.msra.mxu0 0
        %7665 = vmatprep.subr.bf16.mxu0 0
        %7666 = vmatpush1.bf16.msra.mxu0 0
        %7667 = vmatprep.subr.bf16.mxu0 0
        %7668 = vmatpush1.bf16.msra.mxu0 0
        %7669 = vmatprep.subr.bf16.mxu0 %v6329
        %7670 = vmatpush1.bf16.msra.mxu0 %v6328
        %7671 = vmatprep.subr.bf16.mxu0 0
        %7672 = vmatpush2.bf16.msra.mxu0 0
        %7673 = vmatprep.subr.bf16.mxu0 0
        %7674 = vmatpush2.bf16.msra.mxu0 0
        %7675 = vmatprep.subr.bf16.mxu0 0
        %7676 = vmatpush2.bf16.msra.mxu0 0
        %7677 = vmatprep.subr.bf16.mxu0 0
        %7678 = vmatpush2.bf16.msra.mxu0 0
        %7679 = vmatprep.subr.bf16.mxu0 0
        %7680 = vmatpush2.bf16.msra.mxu0 0
        %7681 = vmatprep.subr.bf16.mxu0 0
        %7682 = vmatpush2.bf16.msra.mxu0 0
        %7683 = vmatprep.subr.bf16.mxu0 0
        %7684 = vmatpush2.bf16.msra.mxu0 0
        %7685 = vmatprep.subr.bf16.mxu0 0
        %7686 = vmatpush2.bf16.msra.mxu0 0
        %7687 = vmatprep.mubr.bf16.mxu0 0
        %7688 = vmatmul.mubr.bf16.gmra.mxu0 %v7530
        %v7689 = vpop.f32.mrf.mxu0
        %v7690 = vadd.f32 %v7649, %v7689
        %v7691 = vpop.f32.mrf.mxu0
        %v7692 = vadd.f32 %v7651, %v7691
        %v7693 = vpop.f32.mrf.mxu0
        %v7694 = vpop.f32.mrf.mxu0
        %7695 = vdwg.mxu0
        %7696 = vmatprep.subr.bf16.mxu0 %v5347
        %7697 = vmatpush1.bf16.msra.mxu0 %v5346
        %7698 = vmatprep.subr.bf16.mxu0 %v5323
        %7699 = vmatpush1.bf16.msra.mxu0 %v5322
        %7700 = vmatprep.subr.bf16.mxu0 %v5299
        %7701 = vmatpush1.bf16.msra.mxu0 %v5298
        %7702 = vmatprep.subr.bf16.mxu0 %v5275
        %7703 = vmatpush1.bf16.msra.mxu0 %v5274
        %7704 = vmatprep.subr.bf16.mxu0 %v5251
        %7705 = vmatpush1.bf16.msra.mxu0 %v5250
        %7706 = vmatprep.subr.bf16.mxu0 %v5227
        %7707 = vmatpush1.bf16.msra.mxu0 %v5226
        %7708 = vmatprep.subr.bf16.mxu0 %v5203
        %7709 = vmatpush1.bf16.msra.mxu0 %v5202
        %7710 = vmatprep.subr.bf16.mxu0 %v5179
        %7711 = vmatpush1.bf16.msra.mxu0 %v5178
        %7712 = vmatprep.subr.bf16.mxu0 %v5539
        %7713 = vmatpush2.bf16.msra.mxu0 %v5538
        %7714 = vmatprep.subr.bf16.mxu0 %v5515
        %7715 = vmatpush2.bf16.msra.mxu0 %v5514
        %7716 = vmatprep.subr.bf16.mxu0 %v5491
        %7717 = vmatpush2.bf16.msra.mxu0 %v5490
        %7718 = vmatprep.subr.bf16.mxu0 %v5467
        %7719 = vmatpush2.bf16.msra.mxu0 %v5466
        %7720 = vmatprep.subr.bf16.mxu0 %v5443
        %7721 = vmatpush2.bf16.msra.mxu0 %v5442
        %7722 = vmatprep.subr.bf16.mxu0 %v5419
        %7723 = vmatpush2.bf16.msra.mxu0 %v5418
        %7724 = vmatprep.subr.bf16.mxu0 %v5395
        %7725 = vmatpush2.bf16.msra.mxu0 %v5394
        %7726 = vmatprep.subr.bf16.mxu0 %v5371
        %7727 = vmatpush2.bf16.msra.mxu0 %v5370
        %7728 = vmatprep.mubr.bf16.mxu0 %v340
        %7729 = vmatmul.mubr.bf16.gmra.mxu0 %v339
        %v7730 = vpop.f32.mrf.mxu0
        %v7731 = vadd.f32 %v1539, %v7730
        %v7732 = vpop.f32.mrf.mxu0
        %v7733 = vadd.f32 %v1543, %v7732
        %v7734 = vpop.f32.mrf.mxu0
        %v7735 = vpop.f32.mrf.mxu0
        %7736 = vdwg.mxu0
        %7737 = vmatprep.subr.bf16.mxu0 %v5731
        %7738 = vmatpush1.bf16.msra.mxu0 %v5730
        %7739 = vmatprep.subr.bf16.mxu0 %v5707
        %7740 = vmatpush1.bf16.msra.mxu0 %v5706
        %7741 = vmatprep.subr.bf16.mxu0 %v5683
        %7742 = vmatpush1.bf16.msra.mxu0 %v5682
        %7743 = vmatprep.subr.bf16.mxu0 %v5659
        %7744 = vmatpush1.bf16.msra.mxu0 %v5658
        %7745 = vmatprep.subr.bf16.mxu0 %v5635
        %7746 = vmatpush1.bf16.msra.mxu0 %v5634
        %7747 = vmatprep.subr.bf16.mxu0 %v5611
        %7748 = vmatpush1.bf16.msra.mxu0 %v5610
        %7749 = vmatprep.subr.bf16.mxu0 %v5587
        %7750 = vmatpush1.bf16.msra.mxu0 %v5586
        %7751 = vmatprep.subr.bf16.mxu0 %v5563
        %7752 = vmatpush1.bf16.msra.mxu0 %v5562
        %7753 = vmatprep.subr.bf16.mxu0 %v5923
        %7754 = vmatpush2.bf16.msra.mxu0 %v5922
        %7755 = vmatprep.subr.bf16.mxu0 %v5899
        %7756 = vmatpush2.bf16.msra.mxu0 %v5898
        %7757 = vmatprep.subr.bf16.mxu0 %v5875
        %7758 = vmatpush2.bf16.msra.mxu0 %v5874
        %7759 = vmatprep.subr.bf16.mxu0 %v5851
        %7760 = vmatpush2.bf16.msra.mxu0 %v5850
        %7761 = vmatprep.subr.bf16.mxu0 %v5827
        %7762 = vmatpush2.bf16.msra.mxu0 %v5826
        %7763 = vmatprep.subr.bf16.mxu0 %v5803
        %7764 = vmatpush2.bf16.msra.mxu0 %v5802
        %7765 = vmatprep.subr.bf16.mxu0 %v5779
        %7766 = vmatpush2.bf16.msra.mxu0 %v5778
        %7767 = vmatprep.subr.bf16.mxu0 %v5755
        %7768 = vmatpush2.bf16.msra.mxu0 %v5754
        %7769 = vmatprep.mubr.bf16.mxu0 %v342
        %7770 = vmatmul.mubr.bf16.gmra.mxu0 %v341
        %v7771 = vpop.f32.mrf.mxu0
        %v7772 = vadd.f32 %v7731, %v7771
        %v7773 = vpop.f32.mrf.mxu0
        %v7774 = vadd.f32 %v7733, %v7773
        %v7775 = vpop.f32.mrf.mxu0
        %v7776 = vpop.f32.mrf.mxu0
        %7777 = vdwg.mxu0
        %7778 = vmatprep.subr.bf16.mxu0 %v6115
        %7779 = vmatpush1.bf16.msra.mxu0 %v6114
        %7780 = vmatprep.subr.bf16.mxu0 %v6091
        %7781 = vmatpush1.bf16.msra.mxu0 %v6090
        %7782 = vmatprep.subr.bf16.mxu0 %v6067
        %7783 = vmatpush1.bf16.msra.mxu0 %v6066
        %7784 = vmatprep.subr.bf16.mxu0 %v6043
        %7785 = vmatpush1.bf16.msra.mxu0 %v6042
        %7786 = vmatprep.subr.bf16.mxu0 %v6019
        %7787 = vmatpush1.bf16.msra.mxu0 %v6018
        %7788 = vmatprep.subr.bf16.mxu0 %v5995
        %7789 = vmatpush1.bf16.msra.mxu0 %v5994
        %7790 = vmatprep.subr.bf16.mxu0 %v5971
        %7791 = vmatpush1.bf16.msra.mxu0 %v5970
        %7792 = vmatprep.subr.bf16.mxu0 %v5947
        %7793 = vmatpush1.bf16.msra.mxu0 %v5946
        %7794 = vmatprep.subr.bf16.mxu0 %v6307
        %7795 = vmatpush2.bf16.msra.mxu0 %v6306
        %7796 = vmatprep.subr.bf16.mxu0 %v6283
        %7797 = vmatpush2.bf16.msra.mxu0 %v6282
        %7798 = vmatprep.subr.bf16.mxu0 %v6259
        %7799 = vmatpush2.bf16.msra.mxu0 %v6258
        %7800 = vmatprep.subr.bf16.mxu0 %v6235
        %7801 = vmatpush2.bf16.msra.mxu0 %v6234
        %7802 = vmatprep.subr.bf16.mxu0 %v6211
        %7803 = vmatpush2.bf16.msra.mxu0 %v6210
        %7804 = vmatprep.subr.bf16.mxu0 %v6187
        %7805 = vmatpush2.bf16.msra.mxu0 %v6186
        %7806 = vmatprep.subr.bf16.mxu0 %v6163
        %7807 = vmatpush2.bf16.msra.mxu0 %v6162
        %7808 = vmatprep.subr.bf16.mxu0 %v6139
        %7809 = vmatpush2.bf16.msra.mxu0 %v6138
        %7810 = vmatprep.mubr.bf16.mxu0 %v344
        %7811 = vmatmul.mubr.bf16.gmra.mxu0 %v343
        %v7812 = vpop.f32.mrf.mxu0
        %v7813 = vadd.f32 %v7772, %v7812
        %v7814 = vpop.f32.mrf.mxu0
        %v7815 = vadd.f32 %v7774, %v7814
        %v7816 = vpop.f32.mrf.mxu0
        %v7817 = vpop.f32.mrf.mxu0
        %7818 = vdwg.mxu0
        %7819 = vmatprep.subr.bf16.mxu0 0
        %7820 = vmatpush1.bf16.msra.mxu0 0
        %7821 = vmatprep.subr.bf16.mxu0 0
        %7822 = vmatpush1.bf16.msra.mxu0 0
        %7823 = vmatprep.subr.bf16.mxu0 0
        %7824 = vmatpush1.bf16.msra.mxu0 0
        %7825 = vmatprep.subr.bf16.mxu0 0
        %7826 = vmatpush1.bf16.msra.mxu0 0
        %7827 = vmatprep.subr.bf16.mxu0 0
        %7828 = vmatpush1.bf16.msra.mxu0 0
        %7829 = vmatprep.subr.bf16.mxu0 0
        %7830 = vmatpush1.bf16.msra.mxu0 0
        %7831 = vmatprep.subr.bf16.mxu0 0
        %7832 = vmatpush1.bf16.msra.mxu0 0
        %7833 = vmatprep.subr.bf16.mxu0 %v6331
        %7834 = vmatpush1.bf16.msra.mxu0 %v6330
        %7835 = vmatprep.subr.bf16.mxu0 0
        %7836 = vmatpush2.bf16.msra.mxu0 0
        %7837 = vmatprep.subr.bf16.mxu0 0
        %7838 = vmatpush2.bf16.msra.mxu0 0
        %7839 = vmatprep.subr.bf16.mxu0 0
        %7840 = vmatpush2.bf16.msra.mxu0 0
        %7841 = vmatprep.subr.bf16.mxu0 0
        %7842 = vmatpush2.bf16.msra.mxu0 0
        %7843 = vmatprep.subr.bf16.mxu0 0
        %7844 = vmatpush2.bf16.msra.mxu0 0
        %7845 = vmatprep.subr.bf16.mxu0 0
        %7846 = vmatpush2.bf16.msra.mxu0 0
        %7847 = vmatprep.subr.bf16.mxu0 0
        %7848 = vmatpush2.bf16.msra.mxu0 0
        %7849 = vmatprep.subr.bf16.mxu0 0
        %7850 = vmatpush2.bf16.msra.mxu0 0
        %7851 = vmatprep.mubr.bf16.mxu0 0
        %7852 = vmatmul.mubr.bf16.gmra.mxu0 %v7530
        %v7853 = vpop.f32.mrf.mxu0
        %v7854 = vadd.f32 %v7813, %v7853
        %v7855 = vpop.f32.mrf.mxu0
        %v7856 = vadd.f32 %v7815, %v7855
        %v7857 = vpop.f32.mrf.mxu0
        %v7858 = vpop.f32.mrf.mxu0
        %7859 = vdwg.mxu0
        %7860 = vmatprep.subr.bf16.mxu0 %v5349
        %7861 = vmatpush1.bf16.msra.mxu0 %v5348
        %7862 = vmatprep.subr.bf16.mxu0 %v5325
        %7863 = vmatpush1.bf16.msra.mxu0 %v5324
        %7864 = vmatprep.subr.bf16.mxu0 %v5301
        %7865 = vmatpush1.bf16.msra.mxu0 %v5300
        %7866 = vmatprep.subr.bf16.mxu0 %v5277
        %7867 = vmatpush1.bf16.msra.mxu0 %v5276
        %7868 = vmatprep.subr.bf16.mxu0 %v5253
        %7869 = vmatpush1.bf16.msra.mxu0 %v5252
        %7870 = vmatprep.subr.bf16.mxu0 %v5229
        %7871 = vmatpush1.bf16.msra.mxu0 %v5228
        %7872 = vmatprep.subr.bf16.mxu0 %v5205
        %7873 = vmatpush1.bf16.msra.mxu0 %v5204
        %7874 = vmatprep.subr.bf16.mxu0 %v5181
        %7875 = vmatpush1.bf16.msra.mxu0 %v5180
        %7876 = vmatprep.subr.bf16.mxu0 %v5541
        %7877 = vmatpush2.bf16.msra.mxu0 %v5540
        %7878 = vmatprep.subr.bf16.mxu0 %v5517
        %7879 = vmatpush2.bf16.msra.mxu0 %v5516
        %7880 = vmatprep.subr.bf16.mxu0 %v5493
        %7881 = vmatpush2.bf16.msra.mxu0 %v5492
        %7882 = vmatprep.subr.bf16.mxu0 %v5469
        %7883 = vmatpush2.bf16.msra.mxu0 %v5468
        %7884 = vmatprep.subr.bf16.mxu0 %v5445
        %7885 = vmatpush2.bf16.msra.mxu0 %v5444
        %7886 = vmatprep.subr.bf16.mxu0 %v5421
        %7887 = vmatpush2.bf16.msra.mxu0 %v5420
        %7888 = vmatprep.subr.bf16.mxu0 %v5397
        %7889 = vmatpush2.bf16.msra.mxu0 %v5396
        %7890 = vmatprep.subr.bf16.mxu0 %v5373
        %7891 = vmatpush2.bf16.msra.mxu0 %v5372
        %7892 = vmatprep.mubr.bf16.mxu0 %v340
        %7893 = vmatmul.mubr.bf16.gmra.mxu0 %v339
        %v7894 = vpop.f32.mrf.mxu0
        %v7895 = vadd.f32 %v1547, %v7894
        %v7896 = vpop.f32.mrf.mxu0
        %v7897 = vadd.f32 %v1551, %v7896
        %v7898 = vpop.f32.mrf.mxu0
        %v7899 = vpop.f32.mrf.mxu0
        %7900 = vdwg.mxu0
        %7901 = vmatprep.subr.bf16.mxu0 %v5733
        %7902 = vmatpush1.bf16.msra.mxu0 %v5732
        %7903 = vmatprep.subr.bf16.mxu0 %v5709
        %7904 = vmatpush1.bf16.msra.mxu0 %v5708
        %7905 = vmatprep.subr.bf16.mxu0 %v5685
        %7906 = vmatpush1.bf16.msra.mxu0 %v5684
        %7907 = vmatprep.subr.bf16.mxu0 %v5661
        %7908 = vmatpush1.bf16.msra.mxu0 %v5660
        %7909 = vmatprep.subr.bf16.mxu0 %v5637
        %7910 = vmatpush1.bf16.msra.mxu0 %v5636
        %7911 = vmatprep.subr.bf16.mxu0 %v5613
        %7912 = vmatpush1.bf16.msra.mxu0 %v5612
        %7913 = vmatprep.subr.bf16.mxu0 %v5589
        %7914 = vmatpush1.bf16.msra.mxu0 %v5588
        %7915 = vmatprep.subr.bf16.mxu0 %v5565
        %7916 = vmatpush1.bf16.msra.mxu0 %v5564
        %7917 = vmatprep.subr.bf16.mxu0 %v5925
        %7918 = vmatpush2.bf16.msra.mxu0 %v5924
        %7919 = vmatprep.subr.bf16.mxu0 %v5901
        %7920 = vmatpush2.bf16.msra.mxu0 %v5900
        %7921 = vmatprep.subr.bf16.mxu0 %v5877
        %7922 = vmatpush2.bf16.msra.mxu0 %v5876
        %7923 = vmatprep.subr.bf16.mxu0 %v5853
        %7924 = vmatpush2.bf16.msra.mxu0 %v5852
        %7925 = vmatprep.subr.bf16.mxu0 %v5829
        %7926 = vmatpush2.bf16.msra.mxu0 %v5828
        %7927 = vmatprep.subr.bf16.mxu0 %v5805
        %7928 = vmatpush2.bf16.msra.mxu0 %v5804
        %7929 = vmatprep.subr.bf16.mxu0 %v5781
        %7930 = vmatpush2.bf16.msra.mxu0 %v5780
        %7931 = vmatprep.subr.bf16.mxu0 %v5757
        %7932 = vmatpush2.bf16.msra.mxu0 %v5756
        %7933 = vmatprep.mubr.bf16.mxu0 %v342
        %7934 = vmatmul.mubr.bf16.gmra.mxu0 %v341
        %v7935 = vpop.f32.mrf.mxu0
        %v7936 = vadd.f32 %v7895, %v7935
        %v7937 = vpop.f32.mrf.mxu0
        %v7938 = vadd.f32 %v7897, %v7937
        %v7939 = vpop.f32.mrf.mxu0
        %v7940 = vpop.f32.mrf.mxu0
        %7941 = vdwg.mxu0
        %7942 = vmatprep.subr.bf16.mxu0 %v6117
        %7943 = vmatpush1.bf16.msra.mxu0 %v6116
        %7944 = vmatprep.subr.bf16.mxu0 %v6093
        %7945 = vmatpush1.bf16.msra.mxu0 %v6092
        %7946 = vmatprep.subr.bf16.mxu0 %v6069
        %7947 = vmatpush1.bf16.msra.mxu0 %v6068
        %7948 = vmatprep.subr.bf16.mxu0 %v6045
        %7949 = vmatpush1.bf16.msra.mxu0 %v6044
        %7950 = vmatprep.subr.bf16.mxu0 %v6021
        %7951 = vmatpush1.bf16.msra.mxu0 %v6020
        %7952 = vmatprep.subr.bf16.mxu0 %v5997
        %7953 = vmatpush1.bf16.msra.mxu0 %v5996
        %7954 = vmatprep.subr.bf16.mxu0 %v5973
        %7955 = vmatpush1.bf16.msra.mxu0 %v5972
        %7956 = vmatprep.subr.bf16.mxu0 %v5949
        %7957 = vmatpush1.bf16.msra.mxu0 %v5948
        %7958 = vmatprep.subr.bf16.mxu0 %v6309
        %7959 = vmatpush2.bf16.msra.mxu0 %v6308
        %7960 = vmatprep.subr.bf16.mxu0 %v6285
        %7961 = vmatpush2.bf16.msra.mxu0 %v6284
        %7962 = vmatprep.subr.bf16.mxu0 %v6261
        %7963 = vmatpush2.bf16.msra.mxu0 %v6260
        %7964 = vmatprep.subr.bf16.mxu0 %v6237
        %7965 = vmatpush2.bf16.msra.mxu0 %v6236
        %7966 = vmatprep.subr.bf16.mxu0 %v6213
        %7967 = vmatpush2.bf16.msra.mxu0 %v6212
        %7968 = vmatprep.subr.bf16.mxu0 %v6189
        %7969 = vmatpush2.bf16.msra.mxu0 %v6188
        %7970 = vmatprep.subr.bf16.mxu0 %v6165
        %7971 = vmatpush2.bf16.msra.mxu0 %v6164
        %7972 = vmatprep.subr.bf16.mxu0 %v6141
        %7973 = vmatpush2.bf16.msra.mxu0 %v6140
        %7974 = vmatprep.mubr.bf16.mxu0 %v344
        %7975 = vmatmul.mubr.bf16.gmra.mxu0 %v343
        %v7976 = vpop.f32.mrf.mxu0
        %v7977 = vadd.f32 %v7936, %v7976
        %v7978 = vpop.f32.mrf.mxu0
        %v7979 = vadd.f32 %v7938, %v7978
        %v7980 = vpop.f32.mrf.mxu0
        %v7981 = vpop.f32.mrf.mxu0
        %7982 = vdwg.mxu0
        %7983 = vmatprep.subr.bf16.mxu0 0
        %7984 = vmatpush1.bf16.msra.mxu0 0
        %7985 = vmatprep.subr.bf16.mxu0 0
        %7986 = vmatpush1.bf16.msra.mxu0 0
        %7987 = vmatprep.subr.bf16.mxu0 0
        %7988 = vmatpush1.bf16.msra.mxu0 0
        %7989 = vmatprep.subr.bf16.mxu0 0
        %7990 = vmatpush1.bf16.msra.mxu0 0
        %7991 = vmatprep.subr.bf16.mxu0 0
        %7992 = vmatpush1.bf16.msra.mxu0 0
        %7993 = vmatprep.subr.bf16.mxu0 0
        %7994 = vmatpush1.bf16.msra.mxu0 0
        %7995 = vmatprep.subr.bf16.mxu0 0
        %7996 = vmatpush1.bf16.msra.mxu0 0
        %7997 = vmatprep.subr.bf16.mxu0 %v6333
        %7998 = vmatpush1.bf16.msra.mxu0 %v6332
        %7999 = vmatprep.subr.bf16.mxu0 0
        %8000 = vmatpush2.bf16.msra.mxu0 0
        %8001 = vmatprep.subr.bf16.mxu0 0
        %8002 = vmatpush2.bf16.msra.mxu0 0
        %8003 = vmatprep.subr.bf16.mxu0 0
        %8004 = vmatpush2.bf16.msra.mxu0 0
        %8005 = vmatprep.subr.bf16.mxu0 0
        %8006 = vmatpush2.bf16.msra.mxu0 0
        %8007 = vmatprep.subr.bf16.mxu0 0
        %8008 = vmatpush2.bf16.msra.mxu0 0
        %8009 = vmatprep.subr.bf16.mxu0 0
        %8010 = vmatpush2.bf16.msra.mxu0 0
        %8011 = vmatprep.subr.bf16.mxu0 0
        %8012 = vmatpush2.bf16.msra.mxu0 0
        %8013 = vmatprep.subr.bf16.mxu0 0
        %8014 = vmatpush2.bf16.msra.mxu0 0
        %8015 = vmatprep.mubr.bf16.mxu0 0
        %8016 = vmatmul.mubr.bf16.gmra.mxu0 %v7530
        %v8017 = vpop.f32.mrf.mxu0
        %v8018 = vadd.f32 %v7977, %v8017
        %v8019 = vpop.f32.mrf.mxu0
        %v8020 = vadd.f32 %v7979, %v8019
        %v8021 = vpop.f32.mrf.mxu0
        %v8022 = vpop.f32.mrf.mxu0
        %8023 = vdwg.mxu0
        %8024 = vmatprep.subr.bf16.mxu0 %v5351
        %8025 = vmatpush1.bf16.msra.mxu0 %v5350
        %8026 = vmatprep.subr.bf16.mxu0 %v5327
        %8027 = vmatpush1.bf16.msra.mxu0 %v5326
        %8028 = vmatprep.subr.bf16.mxu0 %v5303
        %8029 = vmatpush1.bf16.msra.mxu0 %v5302
        %8030 = vmatprep.subr.bf16.mxu0 %v5279
        %8031 = vmatpush1.bf16.msra.mxu0 %v5278
        %8032 = vmatprep.subr.bf16.mxu0 %v5255
        %8033 = vmatpush1.bf16.msra.mxu0 %v5254
        %8034 = vmatprep.subr.bf16.mxu0 %v5231
        %8035 = vmatpush1.bf16.msra.mxu0 %v5230
        %8036 = vmatprep.subr.bf16.mxu0 %v5207
        %8037 = vmatpush1.bf16.msra.mxu0 %v5206
        %8038 = vmatprep.subr.bf16.mxu0 %v5183
        %8039 = vmatpush1.bf16.msra.mxu0 %v5182
        %8040 = vmatprep.subr.bf16.mxu0 %v5543
        %8041 = vmatpush2.bf16.msra.mxu0 %v5542
        %8042 = vmatprep.subr.bf16.mxu0 %v5519
        %8043 = vmatpush2.bf16.msra.mxu0 %v5518
        %8044 = vmatprep.subr.bf16.mxu0 %v5495
        %8045 = vmatpush2.bf16.msra.mxu0 %v5494
        %8046 = vmatprep.subr.bf16.mxu0 %v5471
        %8047 = vmatpush2.bf16.msra.mxu0 %v5470
        %8048 = vmatprep.subr.bf16.mxu0 %v5447
        %8049 = vmatpush2.bf16.msra.mxu0 %v5446
        %8050 = vmatprep.subr.bf16.mxu0 %v5423
        %8051 = vmatpush2.bf16.msra.mxu0 %v5422
        %8052 = vmatprep.subr.bf16.mxu0 %v5399
        %8053 = vmatpush2.bf16.msra.mxu0 %v5398
        %8054 = vmatprep.subr.bf16.mxu0 %v5375
        %8055 = vmatpush2.bf16.msra.mxu0 %v5374
        %8056 = vmatprep.mubr.bf16.mxu0 %v340
        %8057 = vmatmul.mubr.bf16.gmra.mxu0 %v339
        %v8058 = vpop.f32.mrf.mxu0
        %v8059 = vadd.f32 %v1555, %v8058
        %v8060 = vpop.f32.mrf.mxu0
        %v8061 = vadd.f32 %v1559, %v8060
        %v8062 = vpop.f32.mrf.mxu0
        %v8063 = vpop.f32.mrf.mxu0
        %8064 = vdwg.mxu0
        %8065 = vmatprep.subr.bf16.mxu0 %v5735
        %8066 = vmatpush1.bf16.msra.mxu0 %v5734
        %8067 = vmatprep.subr.bf16.mxu0 %v5711
        %8068 = vmatpush1.bf16.msra.mxu0 %v5710
        %8069 = vmatprep.subr.bf16.mxu0 %v5687
        %8070 = vmatpush1.bf16.msra.mxu0 %v5686
        %8071 = vmatprep.subr.bf16.mxu0 %v5663
        %8072 = vmatpush1.bf16.msra.mxu0 %v5662
        %8073 = vmatprep.subr.bf16.mxu0 %v5639
        %8074 = vmatpush1.bf16.msra.mxu0 %v5638
        %8075 = vmatprep.subr.bf16.mxu0 %v5615
        %8076 = vmatpush1.bf16.msra.mxu0 %v5614
        %8077 = vmatprep.subr.bf16.mxu0 %v5591
        %8078 = vmatpush1.bf16.msra.mxu0 %v5590
        %8079 = vmatprep.subr.bf16.mxu0 %v5567
        %8080 = vmatpush1.bf16.msra.mxu0 %v5566
        %8081 = vmatprep.subr.bf16.mxu0 %v5927
        %8082 = vmatpush2.bf16.msra.mxu0 %v5926
        %8083 = vmatprep.subr.bf16.mxu0 %v5903
        %8084 = vmatpush2.bf16.msra.mxu0 %v5902
        %8085 = vmatprep.subr.bf16.mxu0 %v5879
        %8086 = vmatpush2.bf16.msra.mxu0 %v5878
        %8087 = vmatprep.subr.bf16.mxu0 %v5855
        %8088 = vmatpush2.bf16.msra.mxu0 %v5854
        %8089 = vmatprep.subr.bf16.mxu0 %v5831
        %8090 = vmatpush2.bf16.msra.mxu0 %v5830
        %8091 = vmatprep.subr.bf16.mxu0 %v5807
        %8092 = vmatpush2.bf16.msra.mxu0 %v5806
        %8093 = vmatprep.subr.bf16.mxu0 %v5783
        %8094 = vmatpush2.bf16.msra.mxu0 %v5782
        %8095 = vmatprep.subr.bf16.mxu0 %v5759
        %8096 = vmatpush2.bf16.msra.mxu0 %v5758
        %8097 = vmatprep.mubr.bf16.mxu0 %v342
        %8098 = vmatmul.mubr.bf16.gmra.mxu0 %v341
        %v8099 = vpop.f32.mrf.mxu0
        %v8100 = vadd.f32 %v8059, %v8099
        %v8101 = vpop.f32.mrf.mxu0
        %v8102 = vadd.f32 %v8061, %v8101
        %v8103 = vpop.f32.mrf.mxu0
        %v8104 = vpop.f32.mrf.mxu0
        %8105 = vdwg.mxu0
        %8106 = vmatprep.subr.bf16.mxu0 %v6119
        %8107 = vmatpush1.bf16.msra.mxu0 %v6118
        %8108 = vmatprep.subr.bf16.mxu0 %v6095
        %8109 = vmatpush1.bf16.msra.mxu0 %v6094
        %8110 = vmatprep.subr.bf16.mxu0 %v6071
        %8111 = vmatpush1.bf16.msra.mxu0 %v6070
        %8112 = vmatprep.subr.bf16.mxu0 %v6047
        %8113 = vmatpush1.bf16.msra.mxu0 %v6046
        %8114 = vmatprep.subr.bf16.mxu0 %v6023
        %8115 = vmatpush1.bf16.msra.mxu0 %v6022
        %8116 = vmatprep.subr.bf16.mxu0 %v5999
        %8117 = vmatpush1.bf16.msra.mxu0 %v5998
        %8118 = vmatprep.subr.bf16.mxu0 %v5975
        %8119 = vmatpush1.bf16.msra.mxu0 %v5974
        %8120 = vmatprep.subr.bf16.mxu0 %v5951
        %8121 = vmatpush1.bf16.msra.mxu0 %v5950
        %8122 = vmatprep.subr.bf16.mxu0 %v6311
        %8123 = vmatpush2.bf16.msra.mxu0 %v6310
        %8124 = vmatprep.subr.bf16.mxu0 %v6287
        %8125 = vmatpush2.bf16.msra.mxu0 %v6286
        %8126 = vmatprep.subr.bf16.mxu0 %v6263
        %8127 = vmatpush2.bf16.msra.mxu0 %v6262
        %8128 = vmatprep.subr.bf16.mxu0 %v6239
        %8129 = vmatpush2.bf16.msra.mxu0 %v6238
        %8130 = vmatprep.subr.bf16.mxu0 %v6215
        %8131 = vmatpush2.bf16.msra.mxu0 %v6214
        %8132 = vmatprep.subr.bf16.mxu0 %v6191
        %8133 = vmatpush2.bf16.msra.mxu0 %v6190
        %8134 = vmatprep.subr.bf16.mxu0 %v6167
        %8135 = vmatpush2.bf16.msra.mxu0 %v6166
        %8136 = vmatprep.subr.bf16.mxu0 %v6143
        %8137 = vmatpush2.bf16.msra.mxu0 %v6142
        %8138 = vmatprep.mubr.bf16.mxu0 %v344
        %8139 = vmatmul.mubr.bf16.gmra.mxu0 %v343
        %v8140 = vpop.f32.mrf.mxu0
        %v8141 = vadd.f32 %v8100, %v8140
        %v8142 = vpop.f32.mrf.mxu0
        %v8143 = vadd.f32 %v8102, %v8142
        %v8144 = vpop.f32.mrf.mxu0
        %v8145 = vpop.f32.mrf.mxu0
        %8146 = vdwg.mxu0
        %8147 = vmatprep.subr.bf16.mxu0 0
        %8148 = vmatpush1.bf16.msra.mxu0 0
        %8149 = vmatprep.subr.bf16.mxu0 0
        %8150 = vmatpush1.bf16.msra.mxu0 0
        %8151 = vmatprep.subr.bf16.mxu0 0
        %8152 = vmatpush1.bf16.msra.mxu0 0
        %8153 = vmatprep.subr.bf16.mxu0 0
        %8154 = vmatpush1.bf16.msra.mxu0 0
        %8155 = vmatprep.subr.bf16.mxu0 0
        %8156 = vmatpush1.bf16.msra.mxu0 0
        %8157 = vmatprep.subr.bf16.mxu0 0
        %8158 = vmatpush1.bf16.msra.mxu0 0
        %8159 = vmatprep.subr.bf16.mxu0 0
        %8160 = vmatpush1.bf16.msra.mxu0 0
        %8161 = vmatprep.subr.bf16.mxu0 %v6335
        %8162 = vmatpush1.bf16.msra.mxu0 %v6334
        %8163 = vmatprep.subr.bf16.mxu0 0
        %8164 = vmatpush2.bf16.msra.mxu0 0
        %8165 = vmatprep.subr.bf16.mxu0 0
        %8166 = vmatpush2.bf16.msra.mxu0 0
        %8167 = vmatprep.subr.bf16.mxu0 0
        %8168 = vmatpush2.bf16.msra.mxu0 0
        %8169 = vmatprep.subr.bf16.mxu0 0
        %8170 = vmatpush2.bf16.msra.mxu0 0
        %8171 = vmatprep.subr.bf16.mxu0 0
        %8172 = vmatpush2.bf16.msra.mxu0 0
        %8173 = vmatprep.subr.bf16.mxu0 0
        %8174 = vmatpush2.bf16.msra.mxu0 0
        %8175 = vmatprep.subr.bf16.mxu0 0
        %8176 = vmatpush2.bf16.msra.mxu0 0
        %8177 = vmatprep.subr.bf16.mxu0 0
        %8178 = vmatpush2.bf16.msra.mxu0 0
        %8179 = vmatprep.mubr.bf16.mxu0 0
        %8180 = vmatmul.mubr.bf16.gmra.mxu0 %v7530
        %v8181 = vpop.f32.mrf.mxu0
        %v8182 = vadd.f32 %v8141, %v8181
        %v8183 = vpop.f32.mrf.mxu0
        %v8184 = vadd.f32 %v8143, %v8183
        %v8185 = vpop.f32.mrf.mxu0
        %v8186 = vpop.f32.mrf.mxu0
        %8187 = vdwg.mxu0
        %8188 = vmatprep.subr.bf16.mxu0 %v5353
        %8189 = vmatpush1.bf16.msra.mxu0 %v5352
        %8190 = vmatprep.subr.bf16.mxu0 %v5329
        %8191 = vmatpush1.bf16.msra.mxu0 %v5328
        %8192 = vmatprep.subr.bf16.mxu0 %v5305
        %8193 = vmatpush1.bf16.msra.mxu0 %v5304
        %8194 = vmatprep.subr.bf16.mxu0 %v5281
        %8195 = vmatpush1.bf16.msra.mxu0 %v5280
        %8196 = vmatprep.subr.bf16.mxu0 %v5257
        %8197 = vmatpush1.bf16.msra.mxu0 %v5256
        %8198 = vmatprep.subr.bf16.mxu0 %v5233
        %8199 = vmatpush1.bf16.msra.mxu0 %v5232
        %8200 = vmatprep.subr.bf16.mxu0 %v5209
        %8201 = vmatpush1.bf16.msra.mxu0 %v5208
        %8202 = vmatprep.subr.bf16.mxu0 %v5185
        %8203 = vmatpush1.bf16.msra.mxu0 %v5184
        %8204 = vmatprep.subr.bf16.mxu0 %v5545
        %8205 = vmatpush2.bf16.msra.mxu0 %v5544
        %8206 = vmatprep.subr.bf16.mxu0 %v5521
        %8207 = vmatpush2.bf16.msra.mxu0 %v5520
        %8208 = vmatprep.subr.bf16.mxu0 %v5497
        %8209 = vmatpush2.bf16.msra.mxu0 %v5496
        %8210 = vmatprep.subr.bf16.mxu0 %v5473
        %8211 = vmatpush2.bf16.msra.mxu0 %v5472
        %8212 = vmatprep.subr.bf16.mxu0 %v5449
        %8213 = vmatpush2.bf16.msra.mxu0 %v5448
        %8214 = vmatprep.subr.bf16.mxu0 %v5425
        %8215 = vmatpush2.bf16.msra.mxu0 %v5424
        %8216 = vmatprep.subr.bf16.mxu0 %v5401
        %8217 = vmatpush2.bf16.msra.mxu0 %v5400
        %8218 = vmatprep.subr.bf16.mxu0 %v5377
        %8219 = vmatpush2.bf16.msra.mxu0 %v5376
        %8220 = vmatprep.mubr.bf16.mxu0 %v340
        %8221 = vmatmul.mubr.bf16.gmra.mxu0 %v339
        %v8222 = vpop.f32.mrf.mxu0
        %v8223 = vadd.f32 %v1563, %v8222
        %v8224 = vpop.f32.mrf.mxu0
        %v8225 = vadd.f32 %v1567, %v8224
        %v8226 = vpop.f32.mrf.mxu0
        %v8227 = vpop.f32.mrf.mxu0
        %8228 = vdwg.mxu0
        %8229 = vmatprep.subr.bf16.mxu0 %v5737
        %8230 = vmatpush1.bf16.msra.mxu0 %v5736
        %8231 = vmatprep.subr.bf16.mxu0 %v5713
        %8232 = vmatpush1.bf16.msra.mxu0 %v5712
        %8233 = vmatprep.subr.bf16.mxu0 %v5689
        %8234 = vmatpush1.bf16.msra.mxu0 %v5688
        %8235 = vmatprep.subr.bf16.mxu0 %v5665
        %8236 = vmatpush1.bf16.msra.mxu0 %v5664
        %8237 = vmatprep.subr.bf16.mxu0 %v5641
        %8238 = vmatpush1.bf16.msra.mxu0 %v5640
        %8239 = vmatprep.subr.bf16.mxu0 %v5617
        %8240 = vmatpush1.bf16.msra.mxu0 %v5616
        %8241 = vmatprep.subr.bf16.mxu0 %v5593
        %8242 = vmatpush1.bf16.msra.mxu0 %v5592
        %8243 = vmatprep.subr.bf16.mxu0 %v5569
        %8244 = vmatpush1.bf16.msra.mxu0 %v5568
        %8245 = vmatprep.subr.bf16.mxu0 %v5929
        %8246 = vmatpush2.bf16.msra.mxu0 %v5928
        %8247 = vmatprep.subr.bf16.mxu0 %v5905
        %8248 = vmatpush2.bf16.msra.mxu0 %v5904
        %8249 = vmatprep.subr.bf16.mxu0 %v5881
        %8250 = vmatpush2.bf16.msra.mxu0 %v5880
        %8251 = vmatprep.subr.bf16.mxu0 %v5857
        %8252 = vmatpush2.bf16.msra.mxu0 %v5856
        %8253 = vmatprep.subr.bf16.mxu0 %v5833
        %8254 = vmatpush2.bf16.msra.mxu0 %v5832
        %8255 = vmatprep.subr.bf16.mxu0 %v5809
        %8256 = vmatpush2.bf16.msra.mxu0 %v5808
        %8257 = vmatprep.subr.bf16.mxu0 %v5785
        %8258 = vmatpush2.bf16.msra.mxu0 %v5784
        %8259 = vmatprep.subr.bf16.mxu0 %v5761
        %8260 = vmatpush2.bf16.msra.mxu0 %v5760
        %8261 = vmatprep.mubr.bf16.mxu0 %v342
        %8262 = vmatmul.mubr.bf16.gmra.mxu0 %v341
        %v8263 = vpop.f32.mrf.mxu0
        %v8264 = vadd.f32 %v8223, %v8263
        %v8265 = vpop.f32.mrf.mxu0
        %v8266 = vadd.f32 %v8225, %v8265
        %v8267 = vpop.f32.mrf.mxu0
        %v8268 = vpop.f32.mrf.mxu0
        %8269 = vdwg.mxu0
        %8270 = vmatprep.subr.bf16.mxu0 %v6121
        %8271 = vmatpush1.bf16.msra.mxu0 %v6120
        %8272 = vmatprep.subr.bf16.mxu0 %v6097
        %8273 = vmatpush1.bf16.msra.mxu0 %v6096
        %8274 = vmatprep.subr.bf16.mxu0 %v6073
        %8275 = vmatpush1.bf16.msra.mxu0 %v6072
        %8276 = vmatprep.subr.bf16.mxu0 %v6049
        %8277 = vmatpush1.bf16.msra.mxu0 %v6048
        %8278 = vmatprep.subr.bf16.mxu0 %v6025
        %8279 = vmatpush1.bf16.msra.mxu0 %v6024
        %8280 = vmatprep.subr.bf16.mxu0 %v6001
        %8281 = vmatpush1.bf16.msra.mxu0 %v6000
        %8282 = vmatprep.subr.bf16.mxu0 %v5977
        %8283 = vmatpush1.bf16.msra.mxu0 %v5976
        %8284 = vmatprep.subr.bf16.mxu0 %v5953
        %8285 = vmatpush1.bf16.msra.mxu0 %v5952
        %8286 = vmatprep.subr.bf16.mxu0 %v6313
        %8287 = vmatpush2.bf16.msra.mxu0 %v6312
        %8288 = vmatprep.subr.bf16.mxu0 %v6289
        %8289 = vmatpush2.bf16.msra.mxu0 %v6288
        %8290 = vmatprep.subr.bf16.mxu0 %v6265
        %8291 = vmatpush2.bf16.msra.mxu0 %v6264
        %8292 = vmatprep.subr.bf16.mxu0 %v6241
        %8293 = vmatpush2.bf16.msra.mxu0 %v6240
        %8294 = vmatprep.subr.bf16.mxu0 %v6217
        %8295 = vmatpush2.bf16.msra.mxu0 %v6216
        %8296 = vmatprep.subr.bf16.mxu0 %v6193
        %8297 = vmatpush2.bf16.msra.mxu0 %v6192
        %8298 = vmatprep.subr.bf16.mxu0 %v6169
        %8299 = vmatpush2.bf16.msra.mxu0 %v6168
        %8300 = vmatprep.subr.bf16.mxu0 %v6145
        %8301 = vmatpush2.bf16.msra.mxu0 %v6144
        %8302 = vmatprep.mubr.bf16.mxu0 %v344
        %8303 = vmatmul.mubr.bf16.gmra.mxu0 %v343
        %v8304 = vpop.f32.mrf.mxu0
        %v8305 = vadd.f32 %v8264, %v8304
        %v8306 = vpop.f32.mrf.mxu0
        %v8307 = vadd.f32 %v8266, %v8306
        %v8308 = vpop.f32.mrf.mxu0
        %v8309 = vpop.f32.mrf.mxu0
        %8310 = vdwg.mxu0
        %8311 = vmatprep.subr.bf16.mxu0 0
        %8312 = vmatpush1.bf16.msra.mxu0 0
        %8313 = vmatprep.subr.bf16.mxu0 0
        %8314 = vmatpush1.bf16.msra.mxu0 0
        %8315 = vmatprep.subr.bf16.mxu0 0
        %8316 = vmatpush1.bf16.msra.mxu0 0
        %8317 = vmatprep.subr.bf16.mxu0 0
        %8318 = vmatpush1.bf16.msra.mxu0 0
        %8319 = vmatprep.subr.bf16.mxu0 0
        %8320 = vmatpush1.bf16.msra.mxu0 0
        %8321 = vmatprep.subr.bf16.mxu0 0
        %8322 = vmatpush1.bf16.msra.mxu0 0
        %8323 = vmatprep.subr.bf16.mxu0 0
        %8324 = vmatpush1.bf16.msra.mxu0 0
        %8325 = vmatprep.subr.bf16.mxu0 %v6337
        %8326 = vmatpush1.bf16.msra.mxu0 %v6336
        %8327 = vmatprep.subr.bf16.mxu0 0
        %8328 = vmatpush2.bf16.msra.mxu0 0
        %8329 = vmatprep.subr.bf16.mxu0 0
        %8330 = vmatpush2.bf16.msra.mxu0 0
        %8331 = vmatprep.subr.bf16.mxu0 0
        %8332 = vmatpush2.bf16.msra.mxu0 0
        %8333 = vmatprep.subr.bf16.mxu0 0
        %8334 = vmatpush2.bf16.msra.mxu0 0
        %8335 = vmatprep.subr.bf16.mxu0 0
        %8336 = vmatpush2.bf16.msra.mxu0 0
        %8337 = vmatprep.subr.bf16.mxu0 0
        %8338 = vmatpush2.bf16.msra.mxu0 0
        %8339 = vmatprep.subr.bf16.mxu0 0
        %8340 = vmatpush2.bf16.msra.mxu0 0
        %8341 = vmatprep.subr.bf16.mxu0 0
        %8342 = vmatpush2.bf16.msra.mxu0 0
        %8343 = vmatprep.mubr.bf16.mxu0 0
        %8344 = vmatmul.mubr.bf16.gmra.mxu0 %v7530
        %v8345 = vpop.f32.mrf.mxu0
        %v8346 = vadd.f32 %v8305, %v8345
        %v8347 = vpop.f32.mrf.mxu0
        %v8348 = vadd.f32 %v8307, %v8347
        %v8349 = vpop.f32.mrf.mxu0
        %v8350 = vpop.f32.mrf.mxu0
        %8351 = vdwg.mxu0
        %8352 = vmatprep.subr.bf16.mxu0 %v5355
        %8353 = vmatpush1.bf16.msra.mxu0 %v5354
        %8354 = vmatprep.subr.bf16.mxu0 %v5331
        %8355 = vmatpush1.bf16.msra.mxu0 %v5330
        %8356 = vmatprep.subr.bf16.mxu0 %v5307
        %8357 = vmatpush1.bf16.msra.mxu0 %v5306
        %8358 = vmatprep.subr.bf16.mxu0 %v5283
        %8359 = vmatpush1.bf16.msra.mxu0 %v5282
        %8360 = vmatprep.subr.bf16.mxu0 %v5259
        %8361 = vmatpush1.bf16.msra.mxu0 %v5258
        %8362 = vmatprep.subr.bf16.mxu0 %v5235
        %8363 = vmatpush1.bf16.msra.mxu0 %v5234
        %8364 = vmatprep.subr.bf16.mxu0 %v5211
        %8365 = vmatpush1.bf16.msra.mxu0 %v5210
        %8366 = vmatprep.subr.bf16.mxu0 %v5187
        %8367 = vmatpush1.bf16.msra.mxu0 %v5186
        %8368 = vmatprep.subr.bf16.mxu0 %v5547
        %8369 = vmatpush2.bf16.msra.mxu0 %v5546
        %8370 = vmatprep.subr.bf16.mxu0 %v5523
        %8371 = vmatpush2.bf16.msra.mxu0 %v5522
        %8372 = vmatprep.subr.bf16.mxu0 %v5499
        %8373 = vmatpush2.bf16.msra.mxu0 %v5498
        %8374 = vmatprep.subr.bf16.mxu0 %v5475
        %8375 = vmatpush2.bf16.msra.mxu0 %v5474
        %8376 = vmatprep.subr.bf16.mxu0 %v5451
        %8377 = vmatpush2.bf16.msra.mxu0 %v5450
        %8378 = vmatprep.subr.bf16.mxu0 %v5427
        %8379 = vmatpush2.bf16.msra.mxu0 %v5426
        %8380 = vmatprep.subr.bf16.mxu0 %v5403
        %8381 = vmatpush2.bf16.msra.mxu0 %v5402
        %8382 = vmatprep.subr.bf16.mxu0 %v5379
        %8383 = vmatpush2.bf16.msra.mxu0 %v5378
        %8384 = vmatprep.mubr.bf16.mxu0 %v340
        %8385 = vmatmul.mubr.bf16.gmra.mxu0 %v339
        %v8386 = vpop.f32.mrf.mxu0
        %v8387 = vadd.f32 %v1571, %v8386
        %v8388 = vpop.f32.mrf.mxu0
        %v8389 = vadd.f32 %v1575, %v8388
        %v8390 = vpop.f32.mrf.mxu0
        %v8391 = vpop.f32.mrf.mxu0
        %8392 = vdwg.mxu0
        %8393 = vmatprep.subr.bf16.mxu0 %v5739
        %8394 = vmatpush1.bf16.msra.mxu0 %v5738
        %8395 = vmatprep.subr.bf16.mxu0 %v5715
        %8396 = vmatpush1.bf16.msra.mxu0 %v5714
        %8397 = vmatprep.subr.bf16.mxu0 %v5691
        %8398 = vmatpush1.bf16.msra.mxu0 %v5690
        %8399 = vmatprep.subr.bf16.mxu0 %v5667
        %8400 = vmatpush1.bf16.msra.mxu0 %v5666
        %8401 = vmatprep.subr.bf16.mxu0 %v5643
        %8402 = vmatpush1.bf16.msra.mxu0 %v5642
        %8403 = vmatprep.subr.bf16.mxu0 %v5619
        %8404 = vmatpush1.bf16.msra.mxu0 %v5618
        %8405 = vmatprep.subr.bf16.mxu0 %v5595
        %8406 = vmatpush1.bf16.msra.mxu0 %v5594
        %8407 = vmatprep.subr.bf16.mxu0 %v5571
        %8408 = vmatpush1.bf16.msra.mxu0 %v5570
        %8409 = vmatprep.subr.bf16.mxu0 %v5931
        %8410 = vmatpush2.bf16.msra.mxu0 %v5930
        %8411 = vmatprep.subr.bf16.mxu0 %v5907
        %8412 = vmatpush2.bf16.msra.mxu0 %v5906
        %8413 = vmatprep.subr.bf16.mxu0 %v5883
        %8414 = vmatpush2.bf16.msra.mxu0 %v5882
        %8415 = vmatprep.subr.bf16.mxu0 %v5859
        %8416 = vmatpush2.bf16.msra.mxu0 %v5858
        %8417 = vmatprep.subr.bf16.mxu0 %v5835
        %8418 = vmatpush2.bf16.msra.mxu0 %v5834
        %8419 = vmatprep.subr.bf16.mxu0 %v5811
        %8420 = vmatpush2.bf16.msra.mxu0 %v5810
        %8421 = vmatprep.subr.bf16.mxu0 %v5787
        %8422 = vmatpush2.bf16.msra.mxu0 %v5786
        %8423 = vmatprep.subr.bf16.mxu0 %v5763
        %8424 = vmatpush2.bf16.msra.mxu0 %v5762
        %8425 = vmatprep.mubr.bf16.mxu0 %v342
        %8426 = vmatmul.mubr.bf16.gmra.mxu0 %v341
        %v8427 = vpop.f32.mrf.mxu0
        %v8428 = vadd.f32 %v8387, %v8427
        %v8429 = vpop.f32.mrf.mxu0
        %v8430 = vadd.f32 %v8389, %v8429
        %v8431 = vpop.f32.mrf.mxu0
        %v8432 = vpop.f32.mrf.mxu0
        %8433 = vdwg.mxu0
        %8434 = vmatprep.subr.bf16.mxu0 %v6123
        %8435 = vmatpush1.bf16.msra.mxu0 %v6122
        %8436 = vmatprep.subr.bf16.mxu0 %v6099
        %8437 = vmatpush1.bf16.msra.mxu0 %v6098
        %8438 = vmatprep.subr.bf16.mxu0 %v6075
        %8439 = vmatpush1.bf16.msra.mxu0 %v6074
        %8440 = vmatprep.subr.bf16.mxu0 %v6051
        %8441 = vmatpush1.bf16.msra.mxu0 %v6050
        %8442 = vmatprep.subr.bf16.mxu0 %v6027
        %8443 = vmatpush1.bf16.msra.mxu0 %v6026
        %8444 = vmatprep.subr.bf16.mxu0 %v6003
        %8445 = vmatpush1.bf16.msra.mxu0 %v6002
        %8446 = vmatprep.subr.bf16.mxu0 %v5979
        %8447 = vmatpush1.bf16.msra.mxu0 %v5978
        %8448 = vmatprep.subr.bf16.mxu0 %v5955
        %8449 = vmatpush1.bf16.msra.mxu0 %v5954
        %8450 = vmatprep.subr.bf16.mxu0 %v6315
        %8451 = vmatpush2.bf16.msra.mxu0 %v6314
        %8452 = vmatprep.subr.bf16.mxu0 %v6291
        %8453 = vmatpush2.bf16.msra.mxu0 %v6290
        %8454 = vmatprep.subr.bf16.mxu0 %v6267
        %8455 = vmatpush2.bf16.msra.mxu0 %v6266
        %8456 = vmatprep.subr.bf16.mxu0 %v6243
        %8457 = vmatpush2.bf16.msra.mxu0 %v6242
        %8458 = vmatprep.subr.bf16.mxu0 %v6219
        %8459 = vmatpush2.bf16.msra.mxu0 %v6218
        %8460 = vmatprep.subr.bf16.mxu0 %v6195
        %8461 = vmatpush2.bf16.msra.mxu0 %v6194
        %8462 = vmatprep.subr.bf16.mxu0 %v6171
        %8463 = vmatpush2.bf16.msra.mxu0 %v6170
        %8464 = vmatprep.subr.bf16.mxu0 %v6147
        %8465 = vmatpush2.bf16.msra.mxu0 %v6146
        %8466 = vmatprep.mubr.bf16.mxu0 %v344
        %8467 = vmatmul.mubr.bf16.gmra.mxu0 %v343
        %v8468 = vpop.f32.mrf.mxu0
        %v8469 = vadd.f32 %v8428, %v8468
        %v8470 = vpop.f32.mrf.mxu0
        %v8471 = vadd.f32 %v8430, %v8470
        %v8472 = vpop.f32.mrf.mxu0
        %v8473 = vpop.f32.mrf.mxu0
        %8474 = vdwg.mxu0
        %8475 = vmatprep.subr.bf16.mxu0 0
        %8476 = vmatpush1.bf16.msra.mxu0 0
        %8477 = vmatprep.subr.bf16.mxu0 0
        %8478 = vmatpush1.bf16.msra.mxu0 0
        %8479 = vmatprep.subr.bf16.mxu0 0
        %8480 = vmatpush1.bf16.msra.mxu0 0
        %8481 = vmatprep.subr.bf16.mxu0 0
        %8482 = vmatpush1.bf16.msra.mxu0 0
        %8483 = vmatprep.subr.bf16.mxu0 0
        %8484 = vmatpush1.bf16.msra.mxu0 0
        %8485 = vmatprep.subr.bf16.mxu0 0
        %8486 = vmatpush1.bf16.msra.mxu0 0
        %8487 = vmatprep.subr.bf16.mxu0 0
        %8488 = vmatpush1.bf16.msra.mxu0 0
        %8489 = vmatprep.subr.bf16.mxu0 %v6339
        %8490 = vmatpush1.bf16.msra.mxu0 %v6338
        %8491 = vmatprep.subr.bf16.mxu0 0
        %8492 = vmatpush2.bf16.msra.mxu0 0
        %8493 = vmatprep.subr.bf16.mxu0 0
        %8494 = vmatpush2.bf16.msra.mxu0 0
        %8495 = vmatprep.subr.bf16.mxu0 0
        %8496 = vmatpush2.bf16.msra.mxu0 0
        %8497 = vmatprep.subr.bf16.mxu0 0
        %8498 = vmatpush2.bf16.msra.mxu0 0
        %8499 = vmatprep.subr.bf16.mxu0 0
        %8500 = vmatpush2.bf16.msra.mxu0 0
        %8501 = vmatprep.subr.bf16.mxu0 0
        %8502 = vmatpush2.bf16.msra.mxu0 0
        %8503 = vmatprep.subr.bf16.mxu0 0
        %8504 = vmatpush2.bf16.msra.mxu0 0
        %8505 = vmatprep.subr.bf16.mxu0 0
        %8506 = vmatpush2.bf16.msra.mxu0 0
        %8507 = vmatprep.mubr.bf16.mxu0 0
        %8508 = vmatmul.mubr.bf16.gmra.mxu0 %v7530
        %v8509 = vpop.f32.mrf.mxu0
        %v8510 = vadd.f32 %v8469, %v8509
        %v8511 = vpop.f32.mrf.mxu0
        %v8512 = vadd.f32 %v8471, %v8511
        %v8513 = vpop.f32.mrf.mxu0
        %v8514 = vpop.f32.mrf.mxu0
        %8515 = vdwg.mxu0
        %8516 = vmatprep.subr.bf16.mxu0 %v5357
        %8517 = vmatpush1.bf16.msra.mxu0 %v5356
        %8518 = vmatprep.subr.bf16.mxu0 %v5333
        %8519 = vmatpush1.bf16.msra.mxu0 %v5332
        %8520 = vmatprep.subr.bf16.mxu0 %v5309
        %8521 = vmatpush1.bf16.msra.mxu0 %v5308
        %8522 = vmatprep.subr.bf16.mxu0 %v5285
        %8523 = vmatpush1.bf16.msra.mxu0 %v5284
        %8524 = vmatprep.subr.bf16.mxu0 %v5261
        %8525 = vmatpush1.bf16.msra.mxu0 %v5260
        %8526 = vmatprep.subr.bf16.mxu0 %v5237
        %8527 = vmatpush1.bf16.msra.mxu0 %v5236
        %8528 = vmatprep.subr.bf16.mxu0 %v5213
        %8529 = vmatpush1.bf16.msra.mxu0 %v5212
        %8530 = vmatprep.subr.bf16.mxu0 %v5189
        %8531 = vmatpush1.bf16.msra.mxu0 %v5188
        %8532 = vmatprep.subr.bf16.mxu0 %v5549
        %8533 = vmatpush2.bf16.msra.mxu0 %v5548
        %8534 = vmatprep.subr.bf16.mxu0 %v5525
        %8535 = vmatpush2.bf16.msra.mxu0 %v5524
        %8536 = vmatprep.subr.bf16.mxu0 %v5501
        %8537 = vmatpush2.bf16.msra.mxu0 %v5500
        %8538 = vmatprep.subr.bf16.mxu0 %v5477
        %8539 = vmatpush2.bf16.msra.mxu0 %v5476
        %8540 = vmatprep.subr.bf16.mxu0 %v5453
        %8541 = vmatpush2.bf16.msra.mxu0 %v5452
        %8542 = vmatprep.subr.bf16.mxu0 %v5429
        %8543 = vmatpush2.bf16.msra.mxu0 %v5428
        %8544 = vmatprep.subr.bf16.mxu0 %v5405
        %8545 = vmatpush2.bf16.msra.mxu0 %v5404
        %8546 = vmatprep.subr.bf16.mxu0 %v5381
        %8547 = vmatpush2.bf16.msra.mxu0 %v5380
        %8548 = vmatprep.mubr.bf16.mxu0 %v340
        %8549 = vmatmul.mubr.bf16.gmra.mxu0 %v339
        %v8550 = vpop.f32.mrf.mxu0
        %v8551 = vadd.f32 %v1579, %v8550
        %v8552 = vpop.f32.mrf.mxu0
        %v8553 = vadd.f32 %v1583, %v8552
        %v8554 = vpop.f32.mrf.mxu0
        %v8555 = vpop.f32.mrf.mxu0
        %8556 = vdwg.mxu0
        %8557 = vmatprep.subr.bf16.mxu0 %v5741
        %8558 = vmatpush1.bf16.msra.mxu0 %v5740
        %8559 = vmatprep.subr.bf16.mxu0 %v5717
        %8560 = vmatpush1.bf16.msra.mxu0 %v5716
        %8561 = vmatprep.subr.bf16.mxu0 %v5693
        %8562 = vmatpush1.bf16.msra.mxu0 %v5692
        %8563 = vmatprep.subr.bf16.mxu0 %v5669
        %8564 = vmatpush1.bf16.msra.mxu0 %v5668
        %8565 = vmatprep.subr.bf16.mxu0 %v5645
        %8566 = vmatpush1.bf16.msra.mxu0 %v5644
        %8567 = vmatprep.subr.bf16.mxu0 %v5621
        %8568 = vmatpush1.bf16.msra.mxu0 %v5620
        %8569 = vmatprep.subr.bf16.mxu0 %v5597
        %8570 = vmatpush1.bf16.msra.mxu0 %v5596
        %8571 = vmatprep.subr.bf16.mxu0 %v5573
        %8572 = vmatpush1.bf16.msra.mxu0 %v5572
        %8573 = vmatprep.subr.bf16.mxu0 %v5933
        %8574 = vmatpush2.bf16.msra.mxu0 %v5932
        %8575 = vmatprep.subr.bf16.mxu0 %v5909
        %8576 = vmatpush2.bf16.msra.mxu0 %v5908
        %8577 = vmatprep.subr.bf16.mxu0 %v5885
        %8578 = vmatpush2.bf16.msra.mxu0 %v5884
        %8579 = vmatprep.subr.bf16.mxu0 %v5861
        %8580 = vmatpush2.bf16.msra.mxu0 %v5860
        %8581 = vmatprep.subr.bf16.mxu0 %v5837
        %8582 = vmatpush2.bf16.msra.mxu0 %v5836
        %8583 = vmatprep.subr.bf16.mxu0 %v5813
        %8584 = vmatpush2.bf16.msra.mxu0 %v5812
        %8585 = vmatprep.subr.bf16.mxu0 %v5789
        %8586 = vmatpush2.bf16.msra.mxu0 %v5788
        %8587 = vmatprep.subr.bf16.mxu0 %v5765
        %8588 = vmatpush2.bf16.msra.mxu0 %v5764
        %8589 = vmatprep.mubr.bf16.mxu0 %v342
        %8590 = vmatmul.mubr.bf16.gmra.mxu0 %v341
        %v8591 = vpop.f32.mrf.mxu0
        %v8592 = vadd.f32 %v8551, %v8591
        %v8593 = vpop.f32.mrf.mxu0
        %v8594 = vadd.f32 %v8553, %v8593
        %v8595 = vpop.f32.mrf.mxu0
        %v8596 = vpop.f32.mrf.mxu0
        %8597 = vdwg.mxu0
        %8598 = vmatprep.subr.bf16.mxu0 %v6125
        %8599 = vmatpush1.bf16.msra.mxu0 %v6124
        %8600 = vmatprep.subr.bf16.mxu0 %v6101
        %8601 = vmatpush1.bf16.msra.mxu0 %v6100
        %8602 = vmatprep.subr.bf16.mxu0 %v6077
        %8603 = vmatpush1.bf16.msra.mxu0 %v6076
        %8604 = vmatprep.subr.bf16.mxu0 %v6053
        %8605 = vmatpush1.bf16.msra.mxu0 %v6052
        %8606 = vmatprep.subr.bf16.mxu0 %v6029
        %8607 = vmatpush1.bf16.msra.mxu0 %v6028
        %8608 = vmatprep.subr.bf16.mxu0 %v6005
        %8609 = vmatpush1.bf16.msra.mxu0 %v6004
        %8610 = vmatprep.subr.bf16.mxu0 %v5981
        %8611 = vmatpush1.bf16.msra.mxu0 %v5980
        %8612 = vmatprep.subr.bf16.mxu0 %v5957
        %8613 = vmatpush1.bf16.msra.mxu0 %v5956
        %8614 = vmatprep.subr.bf16.mxu0 %v6317
        %8615 = vmatpush2.bf16.msra.mxu0 %v6316
        %8616 = vmatprep.subr.bf16.mxu0 %v6293
        %8617 = vmatpush2.bf16.msra.mxu0 %v6292
        %8618 = vmatprep.subr.bf16.mxu0 %v6269
        %8619 = vmatpush2.bf16.msra.mxu0 %v6268
        %8620 = vmatprep.subr.bf16.mxu0 %v6245
        %8621 = vmatpush2.bf16.msra.mxu0 %v6244
        %8622 = vmatprep.subr.bf16.mxu0 %v6221
        %8623 = vmatpush2.bf16.msra.mxu0 %v6220
        %8624 = vmatprep.subr.bf16.mxu0 %v6197
        %8625 = vmatpush2.bf16.msra.mxu0 %v6196
        %8626 = vmatprep.subr.bf16.mxu0 %v6173
        %8627 = vmatpush2.bf16.msra.mxu0 %v6172
        %8628 = vmatprep.subr.bf16.mxu0 %v6149
        %8629 = vmatpush2.bf16.msra.mxu0 %v6148
        %8630 = vmatprep.mubr.bf16.mxu0 %v344
        %8631 = vmatmul.mubr.bf16.gmra.mxu0 %v343
        %v8632 = vpop.f32.mrf.mxu0
        %v8633 = vadd.f32 %v8592, %v8632
        %v8634 = vpop.f32.mrf.mxu0
        %v8635 = vadd.f32 %v8594, %v8634
        %v8636 = vpop.f32.mrf.mxu0
        %v8637 = vpop.f32.mrf.mxu0
        %8638 = vdwg.mxu0
        %8639 = vmatprep.subr.bf16.mxu0 0
        %8640 = vmatpush1.bf16.msra.mxu0 0
        %8641 = vmatprep.subr.bf16.mxu0 0
        %8642 = vmatpush1.bf16.msra.mxu0 0
        %8643 = vmatprep.subr.bf16.mxu0 0
        %8644 = vmatpush1.bf16.msra.mxu0 0
        %8645 = vmatprep.subr.bf16.mxu0 0
        %8646 = vmatpush1.bf16.msra.mxu0 0
        %8647 = vmatprep.subr.bf16.mxu0 0
        %8648 = vmatpush1.bf16.msra.mxu0 0
        %8649 = vmatprep.subr.bf16.mxu0 0
        %8650 = vmatpush1.bf16.msra.mxu0 0
        %8651 = vmatprep.subr.bf16.mxu0 0
        %8652 = vmatpush1.bf16.msra.mxu0 0
        %8653 = vmatprep.subr.bf16.mxu0 %v6341
        %8654 = vmatpush1.bf16.msra.mxu0 %v6340
        %8655 = vmatprep.subr.bf16.mxu0 0
        %8656 = vmatpush2.bf16.msra.mxu0 0
        %8657 = vmatprep.subr.bf16.mxu0 0
        %8658 = vmatpush2.bf16.msra.mxu0 0
        %8659 = vmatprep.subr.bf16.mxu0 0
        %8660 = vmatpush2.bf16.msra.mxu0 0
        %8661 = vmatprep.subr.bf16.mxu0 0
        %8662 = vmatpush2.bf16.msra.mxu0 0
        %8663 = vmatprep.subr.bf16.mxu0 0
        %8664 = vmatpush2.bf16.msra.mxu0 0
        %8665 = vmatprep.subr.bf16.mxu0 0
        %8666 = vmatpush2.bf16.msra.mxu0 0
        %8667 = vmatprep.subr.bf16.mxu0 0
        %8668 = vmatpush2.bf16.msra.mxu0 0
        %8669 = vmatprep.subr.bf16.mxu0 0
        %8670 = vmatpush2.bf16.msra.mxu0 0
        %8671 = vmatprep.mubr.bf16.mxu0 0
        %8672 = vmatmul.mubr.bf16.gmra.mxu0 %v7530
        %v8673 = vpop.f32.mrf.mxu0
        %v8674 = vadd.f32 %v8633, %v8673
        %v8675 = vpop.f32.mrf.mxu0
        %v8676 = vadd.f32 %v8635, %v8675
        %v8677 = vpop.f32.mrf.mxu0
        %v8678 = vpop.f32.mrf.mxu0
        %8679 = vdwg.mxu0
        %8680 = vmatprep.subr.bf16.mxu0 %v5359
        %8681 = vmatpush1.bf16.msra.mxu0 %v5358
        %8682 = vmatprep.subr.bf16.mxu0 %v5335
        %8683 = vmatpush1.bf16.msra.mxu0 %v5334
        %8684 = vmatprep.subr.bf16.mxu0 %v5311
        %8685 = vmatpush1.bf16.msra.mxu0 %v5310
        %8686 = vmatprep.subr.bf16.mxu0 %v5287
        %8687 = vmatpush1.bf16.msra.mxu0 %v5286
        %8688 = vmatprep.subr.bf16.mxu0 %v5263
        %8689 = vmatpush1.bf16.msra.mxu0 %v5262
        %8690 = vmatprep.subr.bf16.mxu0 %v5239
        %8691 = vmatpush1.bf16.msra.mxu0 %v5238
        %8692 = vmatprep.subr.bf16.mxu0 %v5215
        %8693 = vmatpush1.bf16.msra.mxu0 %v5214
        %8694 = vmatprep.subr.bf16.mxu0 %v5191
        %8695 = vmatpush1.bf16.msra.mxu0 %v5190
        %8696 = vmatprep.subr.bf16.mxu0 %v5551
        %8697 = vmatpush2.bf16.msra.mxu0 %v5550
        %8698 = vmatprep.subr.bf16.mxu0 %v5527
        %8699 = vmatpush2.bf16.msra.mxu0 %v5526
        %8700 = vmatprep.subr.bf16.mxu0 %v5503
        %8701 = vmatpush2.bf16.msra.mxu0 %v5502
        %8702 = vmatprep.subr.bf16.mxu0 %v5479
        %8703 = vmatpush2.bf16.msra.mxu0 %v5478
        %8704 = vmatprep.subr.bf16.mxu0 %v5455
        %8705 = vmatpush2.bf16.msra.mxu0 %v5454
        %8706 = vmatprep.subr.bf16.mxu0 %v5431
        %8707 = vmatpush2.bf16.msra.mxu0 %v5430
        %8708 = vmatprep.subr.bf16.mxu0 %v5407
        %8709 = vmatpush2.bf16.msra.mxu0 %v5406
        %8710 = vmatprep.subr.bf16.mxu0 %v5383
        %8711 = vmatpush2.bf16.msra.mxu0 %v5382
        %8712 = vmatprep.mubr.bf16.mxu0 %v340
        %8713 = vmatmul.mubr.bf16.gmra.mxu0 %v339
        %v8714 = vpop.f32.mrf.mxu0
        %v8715 = vadd.f32 %v1587, %v8714
        %v8716 = vpop.f32.mrf.mxu0
        %v8717 = vadd.f32 %v1591, %v8716
        %v8718 = vpop.f32.mrf.mxu0
        %v8719 = vpop.f32.mrf.mxu0
        %8720 = vdwg.mxu0
        %8721 = vmatprep.subr.bf16.mxu0 %v5743
        %8722 = vmatpush1.bf16.msra.mxu0 %v5742
        %8723 = vmatprep.subr.bf16.mxu0 %v5719
        %8724 = vmatpush1.bf16.msra.mxu0 %v5718
        %8725 = vmatprep.subr.bf16.mxu0 %v5695
        %8726 = vmatpush1.bf16.msra.mxu0 %v5694
        %8727 = vmatprep.subr.bf16.mxu0 %v5671
        %8728 = vmatpush1.bf16.msra.mxu0 %v5670
        %8729 = vmatprep.subr.bf16.mxu0 %v5647
        %8730 = vmatpush1.bf16.msra.mxu0 %v5646
        %8731 = vmatprep.subr.bf16.mxu0 %v5623
        %8732 = vmatpush1.bf16.msra.mxu0 %v5622
        %8733 = vmatprep.subr.bf16.mxu0 %v5599
        %8734 = vmatpush1.bf16.msra.mxu0 %v5598
        %8735 = vmatprep.subr.bf16.mxu0 %v5575
        %8736 = vmatpush1.bf16.msra.mxu0 %v5574
        %8737 = vmatprep.subr.bf16.mxu0 %v5935
        %8738 = vmatpush2.bf16.msra.mxu0 %v5934
        %8739 = vmatprep.subr.bf16.mxu0 %v5911
        %8740 = vmatpush2.bf16.msra.mxu0 %v5910
        %8741 = vmatprep.subr.bf16.mxu0 %v5887
        %8742 = vmatpush2.bf16.msra.mxu0 %v5886
        %8743 = vmatprep.subr.bf16.mxu0 %v5863
        %8744 = vmatpush2.bf16.msra.mxu0 %v5862
        %8745 = vmatprep.subr.bf16.mxu0 %v5839
        %8746 = vmatpush2.bf16.msra.mxu0 %v5838
        %8747 = vmatprep.subr.bf16.mxu0 %v5815
        %8748 = vmatpush2.bf16.msra.mxu0 %v5814
        %8749 = vmatprep.subr.bf16.mxu0 %v5791
        %8750 = vmatpush2.bf16.msra.mxu0 %v5790
        %8751 = vmatprep.subr.bf16.mxu0 %v5767
        %8752 = vmatpush2.bf16.msra.mxu0 %v5766
        %8753 = vmatprep.mubr.bf16.mxu0 %v342
        %8754 = vmatmul.mubr.bf16.gmra.mxu0 %v341
        %v8755 = vpop.f32.mrf.mxu0
        %v8756 = vadd.f32 %v8715, %v8755
        %v8757 = vpop.f32.mrf.mxu0
        %v8758 = vadd.f32 %v8717, %v8757
        %v8759 = vpop.f32.mrf.mxu0
        %v8760 = vpop.f32.mrf.mxu0
        %8761 = vdwg.mxu0
        %8762 = vmatprep.subr.bf16.mxu0 %v6127
        %8763 = vmatpush1.bf16.msra.mxu0 %v6126
        %8764 = vmatprep.subr.bf16.mxu0 %v6103
        %8765 = vmatpush1.bf16.msra.mxu0 %v6102
        %8766 = vmatprep.subr.bf16.mxu0 %v6079
        %8767 = vmatpush1.bf16.msra.mxu0 %v6078
        %8768 = vmatprep.subr.bf16.mxu0 %v6055
        %8769 = vmatpush1.bf16.msra.mxu0 %v6054
        %8770 = vmatprep.subr.bf16.mxu0 %v6031
        %8771 = vmatpush1.bf16.msra.mxu0 %v6030
        %8772 = vmatprep.subr.bf16.mxu0 %v6007
        %8773 = vmatpush1.bf16.msra.mxu0 %v6006
        %8774 = vmatprep.subr.bf16.mxu0 %v5983
        %8775 = vmatpush1.bf16.msra.mxu0 %v5982
        %8776 = vmatprep.subr.bf16.mxu0 %v5959
        %8777 = vmatpush1.bf16.msra.mxu0 %v5958
        %8778 = vmatprep.subr.bf16.mxu0 %v6319
        %8779 = vmatpush2.bf16.msra.mxu0 %v6318
        %8780 = vmatprep.subr.bf16.mxu0 %v6295
        %8781 = vmatpush2.bf16.msra.mxu0 %v6294
        %8782 = vmatprep.subr.bf16.mxu0 %v6271
        %8783 = vmatpush2.bf16.msra.mxu0 %v6270
        %8784 = vmatprep.subr.bf16.mxu0 %v6247
        %8785 = vmatpush2.bf16.msra.mxu0 %v6246
        %8786 = vmatprep.subr.bf16.mxu0 %v6223
        %8787 = vmatpush2.bf16.msra.mxu0 %v6222
        %8788 = vmatprep.subr.bf16.mxu0 %v6199
        %8789 = vmatpush2.bf16.msra.mxu0 %v6198
        %8790 = vmatprep.subr.bf16.mxu0 %v6175
        %8791 = vmatpush2.bf16.msra.mxu0 %v6174
        %8792 = vmatprep.subr.bf16.mxu0 %v6151
        %8793 = vmatpush2.bf16.msra.mxu0 %v6150
        %8794 = vmatprep.mubr.bf16.mxu0 %v344
        %8795 = vmatmul.mubr.bf16.gmra.mxu0 %v343
        %v8796 = vpop.f32.mrf.mxu0
        %v8797 = vadd.f32 %v8756, %v8796
        %v8798 = vpop.f32.mrf.mxu0
        %v8799 = vadd.f32 %v8758, %v8798
        %v8800 = vpop.f32.mrf.mxu0
        %v8801 = vpop.f32.mrf.mxu0
        %8802 = vdwg.mxu0
        %8803 = vmatprep.subr.bf16.mxu0 0
        %8804 = vmatpush1.bf16.msra.mxu0 0
        %8805 = vmatprep.subr.bf16.mxu0 0
        %8806 = vmatpush1.bf16.msra.mxu0 0
        %8807 = vmatprep.subr.bf16.mxu0 0
        %8808 = vmatpush1.bf16.msra.mxu0 0
        %8809 = vmatprep.subr.bf16.mxu0 0
        %8810 = vmatpush1.bf16.msra.mxu0 0
        %8811 = vmatprep.subr.bf16.mxu0 0
        %8812 = vmatpush1.bf16.msra.mxu0 0
        %8813 = vmatprep.subr.bf16.mxu0 0
        %8814 = vmatpush1.bf16.msra.mxu0 0
        %8815 = vmatprep.subr.bf16.mxu0 0
        %8816 = vmatpush1.bf16.msra.mxu0 0
        %8817 = vmatprep.subr.bf16.mxu0 %v6343
        %8818 = vmatpush1.bf16.msra.mxu0 %v6342
        %8819 = vmatprep.subr.bf16.mxu0 0
        %8820 = vmatpush2.bf16.msra.mxu0 0
        %8821 = vmatprep.subr.bf16.mxu0 0
        %8822 = vmatpush2.bf16.msra.mxu0 0
        %8823 = vmatprep.subr.bf16.mxu0 0
        %8824 = vmatpush2.bf16.msra.mxu0 0
        %8825 = vmatprep.subr.bf16.mxu0 0
        %8826 = vmatpush2.bf16.msra.mxu0 0
        %8827 = vmatprep.subr.bf16.mxu0 0
        %8828 = vmatpush2.bf16.msra.mxu0 0
        %8829 = vmatprep.subr.bf16.mxu0 0
        %8830 = vmatpush2.bf16.msra.mxu0 0
        %8831 = vmatprep.subr.bf16.mxu0 0
        %8832 = vmatpush2.bf16.msra.mxu0 0
        %8833 = vmatprep.subr.bf16.mxu0 0
        %8834 = vmatpush2.bf16.msra.mxu0 0
        %8835 = vmatprep.mubr.bf16.mxu0 0
        %8836 = vmatmul.mubr.bf16.gmra.mxu0 %v7530
        %v8837 = vpop.f32.mrf.mxu0
        %v8838 = vadd.f32 %v8797, %v8837
        %v8839 = vpop.f32.mrf.mxu0
        %v8840 = vadd.f32 %v8799, %v8839
        %v8841 = vpop.f32.mrf.mxu0
        %v8842 = vpop.f32.mrf.mxu0
        %8843 = vdwg.mxu0
        %8844 = vmatprep.subr.bf16.mxu0 %v5361
        %8845 = vmatpush1.bf16.msra.mxu0 %v5360
        %8846 = vmatprep.subr.bf16.mxu0 %v5337
        %8847 = vmatpush1.bf16.msra.mxu0 %v5336
        %8848 = vmatprep.subr.bf16.mxu0 %v5313
        %8849 = vmatpush1.bf16.msra.mxu0 %v5312
        %8850 = vmatprep.subr.bf16.mxu0 %v5289
        %8851 = vmatpush1.bf16.msra.mxu0 %v5288
        %8852 = vmatprep.subr.bf16.mxu0 %v5265
        %8853 = vmatpush1.bf16.msra.mxu0 %v5264
        %8854 = vmatprep.subr.bf16.mxu0 %v5241
        %8855 = vmatpush1.bf16.msra.mxu0 %v5240
        %8856 = vmatprep.subr.bf16.mxu0 %v5217
        %8857 = vmatpush1.bf16.msra.mxu0 %v5216
        %8858 = vmatprep.subr.bf16.mxu0 %v5193
        %8859 = vmatpush1.bf16.msra.mxu0 %v5192
        %8860 = vmatprep.subr.bf16.mxu0 %v5553
        %8861 = vmatpush2.bf16.msra.mxu0 %v5552
        %8862 = vmatprep.subr.bf16.mxu0 %v5529
        %8863 = vmatpush2.bf16.msra.mxu0 %v5528
        %8864 = vmatprep.subr.bf16.mxu0 %v5505
        %8865 = vmatpush2.bf16.msra.mxu0 %v5504
        %8866 = vmatprep.subr.bf16.mxu0 %v5481
        %8867 = vmatpush2.bf16.msra.mxu0 %v5480
        %8868 = vmatprep.subr.bf16.mxu0 %v5457
        %8869 = vmatpush2.bf16.msra.mxu0 %v5456
        %8870 = vmatprep.subr.bf16.mxu0 %v5433
        %8871 = vmatpush2.bf16.msra.mxu0 %v5432
        %8872 = vmatprep.subr.bf16.mxu0 %v5409
        %8873 = vmatpush2.bf16.msra.mxu0 %v5408
        %8874 = vmatprep.subr.bf16.mxu0 %v5385
        %8875 = vmatpush2.bf16.msra.mxu0 %v5384
        %8876 = vmatprep.mubr.bf16.mxu0 %v340
        %8877 = vmatmul.mubr.bf16.gmra.mxu0 %v339
        %v8878 = vpop.f32.mrf.mxu0
        %v8879 = vadd.f32 %v1595, %v8878
        %v8880 = vpop.f32.mrf.mxu0
        %v8881 = vadd.f32 %v1599, %v8880
        %v8882 = vpop.f32.mrf.mxu0
        %v8883 = vpop.f32.mrf.mxu0
        %8884 = vdwg.mxu0
        %8885 = vmatprep.subr.bf16.mxu0 %v5745
        %8886 = vmatpush1.bf16.msra.mxu0 %v5744
        %8887 = vmatprep.subr.bf16.mxu0 %v5721
        %8888 = vmatpush1.bf16.msra.mxu0 %v5720
        %8889 = vmatprep.subr.bf16.mxu0 %v5697
        %8890 = vmatpush1.bf16.msra.mxu0 %v5696
        %8891 = vmatprep.subr.bf16.mxu0 %v5673
        %8892 = vmatpush1.bf16.msra.mxu0 %v5672
        %8893 = vmatprep.subr.bf16.mxu0 %v5649
        %8894 = vmatpush1.bf16.msra.mxu0 %v5648
        %8895 = vmatprep.subr.bf16.mxu0 %v5625
        %8896 = vmatpush1.bf16.msra.mxu0 %v5624
        %8897 = vmatprep.subr.bf16.mxu0 %v5601
        %8898 = vmatpush1.bf16.msra.mxu0 %v5600
        %8899 = vmatprep.subr.bf16.mxu0 %v5577
        %8900 = vmatpush1.bf16.msra.mxu0 %v5576
        %8901 = vmatprep.subr.bf16.mxu0 %v5937
        %8902 = vmatpush2.bf16.msra.mxu0 %v5936
        %8903 = vmatprep.subr.bf16.mxu0 %v5913
        %8904 = vmatpush2.bf16.msra.mxu0 %v5912
        %8905 = vmatprep.subr.bf16.mxu0 %v5889
        %8906 = vmatpush2.bf16.msra.mxu0 %v5888
        %8907 = vmatprep.subr.bf16.mxu0 %v5865
        %8908 = vmatpush2.bf16.msra.mxu0 %v5864
        %8909 = vmatprep.subr.bf16.mxu0 %v5841
        %8910 = vmatpush2.bf16.msra.mxu0 %v5840
        %8911 = vmatprep.subr.bf16.mxu0 %v5817
        %8912 = vmatpush2.bf16.msra.mxu0 %v5816
        %8913 = vmatprep.subr.bf16.mxu0 %v5793
        %8914 = vmatpush2.bf16.msra.mxu0 %v5792
        %8915 = vmatprep.subr.bf16.mxu0 %v5769
        %8916 = vmatpush2.bf16.msra.mxu0 %v5768
        %8917 = vmatprep.mubr.bf16.mxu0 %v342
        %8918 = vmatmul.mubr.bf16.gmra.mxu0 %v341
        %v8919 = vpop.f32.mrf.mxu0
        %v8920 = vadd.f32 %v8879, %v8919
        %v8921 = vpop.f32.mrf.mxu0
        %v8922 = vadd.f32 %v8881, %v8921
        %v8923 = vpop.f32.mrf.mxu0
        %v8924 = vpop.f32.mrf.mxu0
        %8925 = vdwg.mxu0
        %8926 = vmatprep.subr.bf16.mxu0 %v6129
        %8927 = vmatpush1.bf16.msra.mxu0 %v6128
        %8928 = vmatprep.subr.bf16.mxu0 %v6105
        %8929 = vmatpush1.bf16.msra.mxu0 %v6104
        %8930 = vmatprep.subr.bf16.mxu0 %v6081
        %8931 = vmatpush1.bf16.msra.mxu0 %v6080
        %8932 = vmatprep.subr.bf16.mxu0 %v6057
        %8933 = vmatpush1.bf16.msra.mxu0 %v6056
        %8934 = vmatprep.subr.bf16.mxu0 %v6033
        %8935 = vmatpush1.bf16.msra.mxu0 %v6032
        %8936 = vmatprep.subr.bf16.mxu0 %v6009
        %8937 = vmatpush1.bf16.msra.mxu0 %v6008
        %8938 = vmatprep.subr.bf16.mxu0 %v5985
        %8939 = vmatpush1.bf16.msra.mxu0 %v5984
        %8940 = vmatprep.subr.bf16.mxu0 %v5961
        %8941 = vmatpush1.bf16.msra.mxu0 %v5960
        %8942 = vmatprep.subr.bf16.mxu0 %v6321
        %8943 = vmatpush2.bf16.msra.mxu0 %v6320
        %8944 = vmatprep.subr.bf16.mxu0 %v6297
        %8945 = vmatpush2.bf16.msra.mxu0 %v6296
        %8946 = vmatprep.subr.bf16.mxu0 %v6273
        %8947 = vmatpush2.bf16.msra.mxu0 %v6272
        %8948 = vmatprep.subr.bf16.mxu0 %v6249
        %8949 = vmatpush2.bf16.msra.mxu0 %v6248
        %8950 = vmatprep.subr.bf16.mxu0 %v6225
        %8951 = vmatpush2.bf16.msra.mxu0 %v6224
        %8952 = vmatprep.subr.bf16.mxu0 %v6201
        %8953 = vmatpush2.bf16.msra.mxu0 %v6200
        %8954 = vmatprep.subr.bf16.mxu0 %v6177
        %8955 = vmatpush2.bf16.msra.mxu0 %v6176
        %8956 = vmatprep.subr.bf16.mxu0 %v6153
        %8957 = vmatpush2.bf16.msra.mxu0 %v6152
        %8958 = vmatprep.mubr.bf16.mxu0 %v344
        %8959 = vmatmul.mubr.bf16.gmra.mxu0 %v343
        %v8960 = vpop.f32.mrf.mxu0
        %v8961 = vadd.f32 %v8920, %v8960
        %v8962 = vpop.f32.mrf.mxu0
        %v8963 = vadd.f32 %v8922, %v8962
        %v8964 = vpop.f32.mrf.mxu0
        %v8965 = vpop.f32.mrf.mxu0
        %8966 = vdwg.mxu0
        %8967 = vmatprep.subr.bf16.mxu0 0
        %8968 = vmatpush1.bf16.msra.mxu0 0
        %8969 = vmatprep.subr.bf16.mxu0 0
        %8970 = vmatpush1.bf16.msra.mxu0 0
        %8971 = vmatprep.subr.bf16.mxu0 0
        %8972 = vmatpush1.bf16.msra.mxu0 0
        %8973 = vmatprep.subr.bf16.mxu0 0
        %8974 = vmatpush1.bf16.msra.mxu0 0
        %8975 = vmatprep.subr.bf16.mxu0 0
        %8976 = vmatpush1.bf16.msra.mxu0 0
        %8977 = vmatprep.subr.bf16.mxu0 0
        %8978 = vmatpush1.bf16.msra.mxu0 0
        %8979 = vmatprep.subr.bf16.mxu0 0
        %8980 = vmatpush1.bf16.msra.mxu0 0
        %8981 = vmatprep.subr.bf16.mxu0 %v6345
        %8982 = vmatpush1.bf16.msra.mxu0 %v6344
        %8983 = vmatprep.subr.bf16.mxu0 0
        %8984 = vmatpush2.bf16.msra.mxu0 0
        %8985 = vmatprep.subr.bf16.mxu0 0
        %8986 = vmatpush2.bf16.msra.mxu0 0
        %8987 = vmatprep.subr.bf16.mxu0 0
        %8988 = vmatpush2.bf16.msra.mxu0 0
        %8989 = vmatprep.subr.bf16.mxu0 0
        %8990 = vmatpush2.bf16.msra.mxu0 0
        %8991 = vmatprep.subr.bf16.mxu0 0
        %8992 = vmatpush2.bf16.msra.mxu0 0
        %8993 = vmatprep.subr.bf16.mxu0 0
        %8994 = vmatpush2.bf16.msra.mxu0 0
        %8995 = vmatprep.subr.bf16.mxu0 0
        %8996 = vmatpush2.bf16.msra.mxu0 0
        %8997 = vmatprep.subr.bf16.mxu0 0
        %8998 = vmatpush2.bf16.msra.mxu0 0
        %8999 = vmatprep.mubr.bf16.mxu0 0
        %9000 = vmatmul.mubr.bf16.gmra.mxu0 %v7530
        %v9001 = vpop.f32.mrf.mxu0
        %v9002 = vadd.f32 %v8961, %v9001
        %v9003 = vpop.f32.mrf.mxu0
        %v9004 = vadd.f32 %v8963, %v9003
        %v9005 = vpop.f32.mrf.mxu0
        %v9006 = vpop.f32.mrf.mxu0
        %9007 = vdwg.mxu0
        %9008 = vmatprep.subr.bf16.mxu0 %v5363
        %9009 = vmatpush1.bf16.msra.mxu0 %v5362
        %9010 = vmatprep.subr.bf16.mxu0 %v5339
        %9011 = vmatpush1.bf16.msra.mxu0 %v5338
        %9012 = vmatprep.subr.bf16.mxu0 %v5315
        %9013 = vmatpush1.bf16.msra.mxu0 %v5314
        %9014 = vmatprep.subr.bf16.mxu0 %v5291
        %9015 = vmatpush1.bf16.msra.mxu0 %v5290
        %9016 = vmatprep.subr.bf16.mxu0 %v5267
        %9017 = vmatpush1.bf16.msra.mxu0 %v5266
        %9018 = vmatprep.subr.bf16.mxu0 %v5243
        %9019 = vmatpush1.bf16.msra.mxu0 %v5242
        %9020 = vmatprep.subr.bf16.mxu0 %v5219
        %9021 = vmatpush1.bf16.msra.mxu0 %v5218
        %9022 = vmatprep.subr.bf16.mxu0 %v5195
        %9023 = vmatpush1.bf16.msra.mxu0 %v5194
        %9024 = vmatprep.subr.bf16.mxu0 %v5555
        %9025 = vmatpush2.bf16.msra.mxu0 %v5554
        %9026 = vmatprep.subr.bf16.mxu0 %v5531
        %9027 = vmatpush2.bf16.msra.mxu0 %v5530
        %9028 = vmatprep.subr.bf16.mxu0 %v5507
        %9029 = vmatpush2.bf16.msra.mxu0 %v5506
        %9030 = vmatprep.subr.bf16.mxu0 %v5483
        %9031 = vmatpush2.bf16.msra.mxu0 %v5482
        %9032 = vmatprep.subr.bf16.mxu0 %v5459
        %9033 = vmatpush2.bf16.msra.mxu0 %v5458
        %9034 = vmatprep.subr.bf16.mxu0 %v5435
        %9035 = vmatpush2.bf16.msra.mxu0 %v5434
        %9036 = vmatprep.subr.bf16.mxu0 %v5411
        %9037 = vmatpush2.bf16.msra.mxu0 %v5410
        %9038 = vmatprep.subr.bf16.mxu0 %v5387
        %9039 = vmatpush2.bf16.msra.mxu0 %v5386
        %9040 = vmatprep.mubr.bf16.mxu0 %v340
        %9041 = vmatmul.mubr.bf16.gmra.mxu0 %v339
        %v9042 = vpop.f32.mrf.mxu0
        %v9043 = vadd.f32 %v1603, %v9042
        %v9044 = vpop.f32.mrf.mxu0
        %v9045 = vadd.f32 %v1607, %v9044
        %v9046 = vpop.f32.mrf.mxu0
        %v9047 = vpop.f32.mrf.mxu0
        %9048 = vdwg.mxu0
        %9049 = vmatprep.subr.bf16.mxu0 %v5747
        %9050 = vmatpush1.bf16.msra.mxu0 %v5746
        %9051 = vmatprep.subr.bf16.mxu0 %v5723
        %9052 = vmatpush1.bf16.msra.mxu0 %v5722
        %9053 = vmatprep.subr.bf16.mxu0 %v5699
        %9054 = vmatpush1.bf16.msra.mxu0 %v5698
        %9055 = vmatprep.subr.bf16.mxu0 %v5675
        %9056 = vmatpush1.bf16.msra.mxu0 %v5674
        %9057 = vmatprep.subr.bf16.mxu0 %v5651
        %9058 = vmatpush1.bf16.msra.mxu0 %v5650
        %9059 = vmatprep.subr.bf16.mxu0 %v5627
        %9060 = vmatpush1.bf16.msra.mxu0 %v5626
        %9061 = vmatprep.subr.bf16.mxu0 %v5603
        %9062 = vmatpush1.bf16.msra.mxu0 %v5602
        %9063 = vmatprep.subr.bf16.mxu0 %v5579
        %9064 = vmatpush1.bf16.msra.mxu0 %v5578
        %9065 = vmatprep.subr.bf16.mxu0 %v5939
        %9066 = vmatpush2.bf16.msra.mxu0 %v5938
        %9067 = vmatprep.subr.bf16.mxu0 %v5915
        %9068 = vmatpush2.bf16.msra.mxu0 %v5914
        %9069 = vmatprep.subr.bf16.mxu0 %v5891
        %9070 = vmatpush2.bf16.msra.mxu0 %v5890
        %9071 = vmatprep.subr.bf16.mxu0 %v5867
        %9072 = vmatpush2.bf16.msra.mxu0 %v5866
        %9073 = vmatprep.subr.bf16.mxu0 %v5843
        %9074 = vmatpush2.bf16.msra.mxu0 %v5842
        %9075 = vmatprep.subr.bf16.mxu0 %v5819
        %9076 = vmatpush2.bf16.msra.mxu0 %v5818
        %9077 = vmatprep.subr.bf16.mxu0 %v5795
        %9078 = vmatpush2.bf16.msra.mxu0 %v5794
        %9079 = vmatprep.subr.bf16.mxu0 %v5771
        %9080 = vmatpush2.bf16.msra.mxu0 %v5770
        %9081 = vmatprep.mubr.bf16.mxu0 %v342
        %9082 = vmatmul.mubr.bf16.gmra.mxu0 %v341
        %v9083 = vpop.f32.mrf.mxu0
        %v9084 = vadd.f32 %v9043, %v9083
        %v9085 = vpop.f32.mrf.mxu0
        %v9086 = vadd.f32 %v9045, %v9085
        %v9087 = vpop.f32.mrf.mxu0
        %v9088 = vpop.f32.mrf.mxu0
        %9089 = vdwg.mxu0
        %9090 = vmatprep.subr.bf16.mxu0 %v6131
        %9091 = vmatpush1.bf16.msra.mxu0 %v6130
        %9092 = vmatprep.subr.bf16.mxu0 %v6107
        %9093 = vmatpush1.bf16.msra.mxu0 %v6106
        %9094 = vmatprep.subr.bf16.mxu0 %v6083
        %9095 = vmatpush1.bf16.msra.mxu0 %v6082
        %9096 = vmatprep.subr.bf16.mxu0 %v6059
        %9097 = vmatpush1.bf16.msra.mxu0 %v6058
        %9098 = vmatprep.subr.bf16.mxu0 %v6035
        %9099 = vmatpush1.bf16.msra.mxu0 %v6034
        %9100 = vmatprep.subr.bf16.mxu0 %v6011
        %9101 = vmatpush1.bf16.msra.mxu0 %v6010
        %9102 = vmatprep.subr.bf16.mxu0 %v5987
        %9103 = vmatpush1.bf16.msra.mxu0 %v5986
        %9104 = vmatprep.subr.bf16.mxu0 %v5963
        %9105 = vmatpush1.bf16.msra.mxu0 %v5962
        %9106 = vmatprep.subr.bf16.mxu0 %v6323
        %9107 = vmatpush2.bf16.msra.mxu0 %v6322
        %9108 = vmatprep.subr.bf16.mxu0 %v6299
        %9109 = vmatpush2.bf16.msra.mxu0 %v6298
        %9110 = vmatprep.subr.bf16.mxu0 %v6275
        %9111 = vmatpush2.bf16.msra.mxu0 %v6274
        %9112 = vmatprep.subr.bf16.mxu0 %v6251
        %9113 = vmatpush2.bf16.msra.mxu0 %v6250
        %9114 = vmatprep.subr.bf16.mxu0 %v6227
        %9115 = vmatpush2.bf16.msra.mxu0 %v6226
        %9116 = vmatprep.subr.bf16.mxu0 %v6203
        %9117 = vmatpush2.bf16.msra.mxu0 %v6202
        %9118 = vmatprep.subr.bf16.mxu0 %v6179
        %9119 = vmatpush2.bf16.msra.mxu0 %v6178
        %9120 = vmatprep.subr.bf16.mxu0 %v6155
        %9121 = vmatpush2.bf16.msra.mxu0 %v6154
        %9122 = vmatprep.mubr.bf16.mxu0 %v344
        %9123 = vmatmul.mubr.bf16.gmra.mxu0 %v343
        %v9124 = vpop.f32.mrf.mxu0
        %v9125 = vadd.f32 %v9084, %v9124
        %v9126 = vpop.f32.mrf.mxu0
        %v9127 = vadd.f32 %v9086, %v9126
        %v9128 = vpop.f32.mrf.mxu0
        %v9129 = vpop.f32.mrf.mxu0
        %9130 = vdwg.mxu0
        %9131 = vmatprep.subr.bf16.mxu0 0
        %9132 = vmatpush1.bf16.msra.mxu0 0
        %9133 = vmatprep.subr.bf16.mxu0 0
        %9134 = vmatpush1.bf16.msra.mxu0 0
        %9135 = vmatprep.subr.bf16.mxu0 0
        %9136 = vmatpush1.bf16.msra.mxu0 0
        %9137 = vmatprep.subr.bf16.mxu0 0
        %9138 = vmatpush1.bf16.msra.mxu0 0
        %9139 = vmatprep.subr.bf16.mxu0 0
        %9140 = vmatpush1.bf16.msra.mxu0 0
        %9141 = vmatprep.subr.bf16.mxu0 0
        %9142 = vmatpush1.bf16.msra.mxu0 0
        %9143 = vmatprep.subr.bf16.mxu0 0
        %9144 = vmatpush1.bf16.msra.mxu0 0
        %9145 = vmatprep.subr.bf16.mxu0 %v6347
        %9146 = vmatpush1.bf16.msra.mxu0 %v6346
        %9147 = vmatprep.subr.bf16.mxu0 0
        %9148 = vmatpush2.bf16.msra.mxu0 0
        %9149 = vmatprep.subr.bf16.mxu0 0
        %9150 = vmatpush2.bf16.msra.mxu0 0
        %9151 = vmatprep.subr.bf16.mxu0 0
        %9152 = vmatpush2.bf16.msra.mxu0 0
        %9153 = vmatprep.subr.bf16.mxu0 0
        %9154 = vmatpush2.bf16.msra.mxu0 0
        %9155 = vmatprep.subr.bf16.mxu0 0
        %9156 = vmatpush2.bf16.msra.mxu0 0
        %9157 = vmatprep.subr.bf16.mxu0 0
        %9158 = vmatpush2.bf16.msra.mxu0 0
        %9159 = vmatprep.subr.bf16.mxu0 0
        %9160 = vmatpush2.bf16.msra.mxu0 0
        %9161 = vmatprep.subr.bf16.mxu0 0
        %9162 = vmatpush2.bf16.msra.mxu0 0
        %9163 = vmatprep.mubr.bf16.mxu0 0
        %9164 = vmatmul.mubr.bf16.gmra.mxu0 %v7530
        %v9165 = vpop.f32.mrf.mxu0
        %v9166 = vadd.f32 %v9125, %v9165
        %v9167 = vpop.f32.mrf.mxu0
        %v9168 = vadd.f32 %v9127, %v9167
        %v9169 = vpop.f32.mrf.mxu0
        %v9170 = vpop.f32.mrf.mxu0
        %9171 = vdwg.mxu0
        %9172 = vmatprep.subr.bf16.mxu0 %v5365
        %9173 = vmatpush1.bf16.msra.mxu0 %v5364
        %9174 = vmatprep.subr.bf16.mxu0 %v5341
        %9175 = vmatpush1.bf16.msra.mxu0 %v5340
        %9176 = vmatprep.subr.bf16.mxu0 %v5317
        %9177 = vmatpush1.bf16.msra.mxu0 %v5316
        %9178 = vmatprep.subr.bf16.mxu0 %v5293
        %9179 = vmatpush1.bf16.msra.mxu0 %v5292
        %9180 = vmatprep.subr.bf16.mxu0 %v5269
        %9181 = vmatpush1.bf16.msra.mxu0 %v5268
        %9182 = vmatprep.subr.bf16.mxu0 %v5245
        %9183 = vmatpush1.bf16.msra.mxu0 %v5244
        %9184 = vmatprep.subr.bf16.mxu0 %v5221
        %9185 = vmatpush1.bf16.msra.mxu0 %v5220
        %9186 = vmatprep.subr.bf16.mxu0 %v5197
        %9187 = vmatpush1.bf16.msra.mxu0 %v5196
        %9188 = vmatprep.subr.bf16.mxu0 %v5557
        %9189 = vmatpush2.bf16.msra.mxu0 %v5556
        %9190 = vmatprep.subr.bf16.mxu0 %v5533
        %9191 = vmatpush2.bf16.msra.mxu0 %v5532
        %9192 = vmatprep.subr.bf16.mxu0 %v5509
        %9193 = vmatpush2.bf16.msra.mxu0 %v5508
        %9194 = vmatprep.subr.bf16.mxu0 %v5485
        %9195 = vmatpush2.bf16.msra.mxu0 %v5484
        %9196 = vmatprep.subr.bf16.mxu0 %v5461
        %9197 = vmatpush2.bf16.msra.mxu0 %v5460
        %9198 = vmatprep.subr.bf16.mxu0 %v5437
        %9199 = vmatpush2.bf16.msra.mxu0 %v5436
        %9200 = vmatprep.subr.bf16.mxu0 %v5413
        %9201 = vmatpush2.bf16.msra.mxu0 %v5412
        %9202 = vmatprep.subr.bf16.mxu0 %v5389
        %9203 = vmatpush2.bf16.msra.mxu0 %v5388
        %9204 = vmatprep.mubr.bf16.mxu0 %v340
        %9205 = vmatmul.mubr.bf16.gmra.mxu0 %v339
        %v9206 = vpop.f32.mrf.mxu0
        %v9207 = vadd.f32 %v1611, %v9206
        %v9208 = vpop.f32.mrf.mxu0
        %v9209 = vadd.f32 %v1615, %v9208
        %v9210 = vpop.f32.mrf.mxu0
        %v9211 = vpop.f32.mrf.mxu0
        %9212 = vdwg.mxu0
        %9213 = vmatprep.subr.bf16.mxu0 %v5749
        %9214 = vmatpush1.bf16.msra.mxu0 %v5748
        %9215 = vmatprep.subr.bf16.mxu0 %v5725
        %9216 = vmatpush1.bf16.msra.mxu0 %v5724
        %9217 = vmatprep.subr.bf16.mxu0 %v5701
        %9218 = vmatpush1.bf16.msra.mxu0 %v5700
        %9219 = vmatprep.subr.bf16.mxu0 %v5677
        %9220 = vmatpush1.bf16.msra.mxu0 %v5676
        %9221 = vmatprep.subr.bf16.mxu0 %v5653
        %9222 = vmatpush1.bf16.msra.mxu0 %v5652
        %9223 = vmatprep.subr.bf16.mxu0 %v5629
        %9224 = vmatpush1.bf16.msra.mxu0 %v5628
        %9225 = vmatprep.subr.bf16.mxu0 %v5605
        %9226 = vmatpush1.bf16.msra.mxu0 %v5604
        %9227 = vmatprep.subr.bf16.mxu0 %v5581
        %9228 = vmatpush1.bf16.msra.mxu0 %v5580
        %9229 = vmatprep.subr.bf16.mxu0 %v5941
        %9230 = vmatpush2.bf16.msra.mxu0 %v5940
        %9231 = vmatprep.subr.bf16.mxu0 %v5917
        %9232 = vmatpush2.bf16.msra.mxu0 %v5916
        %9233 = vmatprep.subr.bf16.mxu0 %v5893
        %9234 = vmatpush2.bf16.msra.mxu0 %v5892
        %9235 = vmatprep.subr.bf16.mxu0 %v5869
        %9236 = vmatpush2.bf16.msra.mxu0 %v5868
        %9237 = vmatprep.subr.bf16.mxu0 %v5845
        %9238 = vmatpush2.bf16.msra.mxu0 %v5844
        %9239 = vmatprep.subr.bf16.mxu0 %v5821
        %9240 = vmatpush2.bf16.msra.mxu0 %v5820
        %9241 = vmatprep.subr.bf16.mxu0 %v5797
        %9242 = vmatpush2.bf16.msra.mxu0 %v5796
        %9243 = vmatprep.subr.bf16.mxu0 %v5773
        %9244 = vmatpush2.bf16.msra.mxu0 %v5772
        %9245 = vmatprep.mubr.bf16.mxu0 %v342
        %9246 = vmatmul.mubr.bf16.gmra.mxu0 %v341
        %v9247 = vpop.f32.mrf.mxu0
        %v9248 = vadd.f32 %v9207, %v9247
        %v9249 = vpop.f32.mrf.mxu0
        %v9250 = vadd.f32 %v9209, %v9249
        %v9251 = vpop.f32.mrf.mxu0
        %v9252 = vpop.f32.mrf.mxu0
        %9253 = vdwg.mxu0
        %9254 = vmatprep.subr.bf16.mxu0 %v6133
        %9255 = vmatpush1.bf16.msra.mxu0 %v6132
        %9256 = vmatprep.subr.bf16.mxu0 %v6109
        %9257 = vmatpush1.bf16.msra.mxu0 %v6108
        %9258 = vmatprep.subr.bf16.mxu0 %v6085
        %9259 = vmatpush1.bf16.msra.mxu0 %v6084
        %9260 = vmatprep.subr.bf16.mxu0 %v6061
        %9261 = vmatpush1.bf16.msra.mxu0 %v6060
        %9262 = vmatprep.subr.bf16.mxu0 %v6037
        %9263 = vmatpush1.bf16.msra.mxu0 %v6036
        %9264 = vmatprep.subr.bf16.mxu0 %v6013
        %9265 = vmatpush1.bf16.msra.mxu0 %v6012
        %9266 = vmatprep.subr.bf16.mxu0 %v5989
        %9267 = vmatpush1.bf16.msra.mxu0 %v5988
        %9268 = vmatprep.subr.bf16.mxu0 %v5965
        %9269 = vmatpush1.bf16.msra.mxu0 %v5964
        %9270 = vmatprep.subr.bf16.mxu0 %v6325
        %9271 = vmatpush2.bf16.msra.mxu0 %v6324
        %9272 = vmatprep.subr.bf16.mxu0 %v6301
        %9273 = vmatpush2.bf16.msra.mxu0 %v6300
        %9274 = vmatprep.subr.bf16.mxu0 %v6277
        %9275 = vmatpush2.bf16.msra.mxu0 %v6276
        %9276 = vmatprep.subr.bf16.mxu0 %v6253
        %9277 = vmatpush2.bf16.msra.mxu0 %v6252
        %9278 = vmatprep.subr.bf16.mxu0 %v6229
        %9279 = vmatpush2.bf16.msra.mxu0 %v6228
        %9280 = vmatprep.subr.bf16.mxu0 %v6205
        %9281 = vmatpush2.bf16.msra.mxu0 %v6204
        %9282 = vmatprep.subr.bf16.mxu0 %v6181
        %9283 = vmatpush2.bf16.msra.mxu0 %v6180
        %9284 = vmatprep.subr.bf16.mxu0 %v6157
        %9285 = vmatpush2.bf16.msra.mxu0 %v6156
        %9286 = vmatprep.mubr.bf16.mxu0 %v344
        %9287 = vmatmul.mubr.bf16.gmra.mxu0 %v343
        %v9288 = vpop.f32.mrf.mxu0
        %v9289 = vadd.f32 %v9248, %v9288
        %v9290 = vpop.f32.mrf.mxu0
        %v9291 = vadd.f32 %v9250, %v9290
        %v9292 = vpop.f32.mrf.mxu0
        %v9293 = vpop.f32.mrf.mxu0
        %9294 = vdwg.mxu0
        %9295 = vmatprep.subr.bf16.mxu0 0
        %9296 = vmatpush1.bf16.msra.mxu0 0
        %9297 = vmatprep.subr.bf16.mxu0 0
        %9298 = vmatpush1.bf16.msra.mxu0 0
        %9299 = vmatprep.subr.bf16.mxu0 0
        %9300 = vmatpush1.bf16.msra.mxu0 0
        %9301 = vmatprep.subr.bf16.mxu0 0
        %9302 = vmatpush1.bf16.msra.mxu0 0
        %9303 = vmatprep.subr.bf16.mxu0 0
        %9304 = vmatpush1.bf16.msra.mxu0 0
        %9305 = vmatprep.subr.bf16.mxu0 0
        %9306 = vmatpush1.bf16.msra.mxu0 0
        %9307 = vmatprep.subr.bf16.mxu0 0
        %9308 = vmatpush1.bf16.msra.mxu0 0
        %9309 = vmatprep.subr.bf16.mxu0 %v6349
        %9310 = vmatpush1.bf16.msra.mxu0 %v6348
        %9311 = vmatprep.subr.bf16.mxu0 0
        %9312 = vmatpush2.bf16.msra.mxu0 0
        %9313 = vmatprep.subr.bf16.mxu0 0
        %9314 = vmatpush2.bf16.msra.mxu0 0
        %9315 = vmatprep.subr.bf16.mxu0 0
        %9316 = vmatpush2.bf16.msra.mxu0 0
        %9317 = vmatprep.subr.bf16.mxu0 0
        %9318 = vmatpush2.bf16.msra.mxu0 0
        %9319 = vmatprep.subr.bf16.mxu0 0
        %9320 = vmatpush2.bf16.msra.mxu0 0
        %9321 = vmatprep.subr.bf16.mxu0 0
        %9322 = vmatpush2.bf16.msra.mxu0 0
        %9323 = vmatprep.subr.bf16.mxu0 0
        %9324 = vmatpush2.bf16.msra.mxu0 0
        %9325 = vmatprep.subr.bf16.mxu0 0
        %9326 = vmatpush2.bf16.msra.mxu0 0
        %9327 = vmatprep.mubr.bf16.mxu0 0
        %9328 = vmatmul.mubr.bf16.gmra.mxu0 %v7530
        %v9329 = vpop.f32.mrf.mxu0
        %v9330 = vadd.f32 %v9289, %v9329
        %v9331 = vpop.f32.mrf.mxu0
        %v9332 = vadd.f32 %v9291, %v9331
        %v9333 = vpop.f32.mrf.mxu0
        %v9334 = vpop.f32.mrf.mxu0
        %9335 = vdwg.mxu0
        %9336 = vmatprep.subr.bf16.mxu0 %v5367
        %9337 = vmatpush1.bf16.msra.mxu0 %v5366
        %9338 = vmatprep.subr.bf16.mxu0 %v5343
        %9339 = vmatpush1.bf16.msra.mxu0 %v5342
        %9340 = vmatprep.subr.bf16.mxu0 %v5319
        %9341 = vmatpush1.bf16.msra.mxu0 %v5318
        %9342 = vmatprep.subr.bf16.mxu0 %v5295
        %9343 = vmatpush1.bf16.msra.mxu0 %v5294
        %9344 = vmatprep.subr.bf16.mxu0 %v5271
        %9345 = vmatpush1.bf16.msra.mxu0 %v5270
        %9346 = vmatprep.subr.bf16.mxu0 %v5247
        %9347 = vmatpush1.bf16.msra.mxu0 %v5246
        %9348 = vmatprep.subr.bf16.mxu0 %v5223
        %9349 = vmatpush1.bf16.msra.mxu0 %v5222
        %9350 = vmatprep.subr.bf16.mxu0 %v5199
        %9351 = vmatpush1.bf16.msra.mxu0 %v5198
        %9352 = vmatprep.subr.bf16.mxu0 %v5559
        %9353 = vmatpush2.bf16.msra.mxu0 %v5558
        %9354 = vmatprep.subr.bf16.mxu0 %v5535
        %9355 = vmatpush2.bf16.msra.mxu0 %v5534
        %9356 = vmatprep.subr.bf16.mxu0 %v5511
        %9357 = vmatpush2.bf16.msra.mxu0 %v5510
        %9358 = vmatprep.subr.bf16.mxu0 %v5487
        %9359 = vmatpush2.bf16.msra.mxu0 %v5486
        %9360 = vmatprep.subr.bf16.mxu0 %v5463
        %9361 = vmatpush2.bf16.msra.mxu0 %v5462
        %9362 = vmatprep.subr.bf16.mxu0 %v5439
        %9363 = vmatpush2.bf16.msra.mxu0 %v5438
        %9364 = vmatprep.subr.bf16.mxu0 %v5415
        %9365 = vmatpush2.bf16.msra.mxu0 %v5414
        %9366 = vmatprep.subr.bf16.mxu0 %v5391
        %9367 = vmatpush2.bf16.msra.mxu0 %v5390
        %9368 = vmatprep.mubr.bf16.mxu0 %v340
        %9369 = vmatmul.mubr.bf16.gmra.mxu0 %v339
        %v9370 = vpop.f32.mrf.mxu0
        %v9371 = vadd.f32 %v1619, %v9370
        %v9372 = vpop.f32.mrf.mxu0
        %v9373 = vadd.f32 %v1623, %v9372
        %v9374 = vpop.f32.mrf.mxu0
        %v9375 = vpop.f32.mrf.mxu0
        %9376 = vdwg.mxu0
        %9377 = vmatprep.subr.bf16.mxu0 %v5751
        %9378 = vmatpush1.bf16.msra.mxu0 %v5750
        %9379 = vmatprep.subr.bf16.mxu0 %v5727
        %9380 = vmatpush1.bf16.msra.mxu0 %v5726
        %9381 = vmatprep.subr.bf16.mxu0 %v5703
        %9382 = vmatpush1.bf16.msra.mxu0 %v5702
        %9383 = vmatprep.subr.bf16.mxu0 %v5679
        %9384 = vmatpush1.bf16.msra.mxu0 %v5678
        %9385 = vmatprep.subr.bf16.mxu0 %v5655
        %9386 = vmatpush1.bf16.msra.mxu0 %v5654
        %9387 = vmatprep.subr.bf16.mxu0 %v5631
        %9388 = vmatpush1.bf16.msra.mxu0 %v5630
        %9389 = vmatprep.subr.bf16.mxu0 %v5607
        %9390 = vmatpush1.bf16.msra.mxu0 %v5606
        %9391 = vmatprep.subr.bf16.mxu0 %v5583
        %9392 = vmatpush1.bf16.msra.mxu0 %v5582
        %9393 = vmatprep.subr.bf16.mxu0 %v5943
        %9394 = vmatpush2.bf16.msra.mxu0 %v5942
        %9395 = vmatprep.subr.bf16.mxu0 %v5919
        %9396 = vmatpush2.bf16.msra.mxu0 %v5918
        %9397 = vmatprep.subr.bf16.mxu0 %v5895
        %9398 = vmatpush2.bf16.msra.mxu0 %v5894
        %9399 = vmatprep.subr.bf16.mxu0 %v5871
        %9400 = vmatpush2.bf16.msra.mxu0 %v5870
        %9401 = vmatprep.subr.bf16.mxu0 %v5847
        %9402 = vmatpush2.bf16.msra.mxu0 %v5846
        %9403 = vmatprep.subr.bf16.mxu0 %v5823
        %9404 = vmatpush2.bf16.msra.mxu0 %v5822
        %9405 = vmatprep.subr.bf16.mxu0 %v5799
        %9406 = vmatpush2.bf16.msra.mxu0 %v5798
        %9407 = vmatprep.subr.bf16.mxu0 %v5775
        %9408 = vmatpush2.bf16.msra.mxu0 %v5774
        %9409 = vmatprep.mubr.bf16.mxu0 %v342
        %9410 = vmatmul.mubr.bf16.gmra.mxu0 %v341
        %v9411 = vpop.f32.mrf.mxu0
        %v9412 = vadd.f32 %v9371, %v9411
        %v9413 = vpop.f32.mrf.mxu0
        %v9414 = vadd.f32 %v9373, %v9413
        %v9415 = vpop.f32.mrf.mxu0
        %v9416 = vpop.f32.mrf.mxu0
        %9417 = vdwg.mxu0
        %9418 = vmatprep.subr.bf16.mxu0 %v6135
        %9419 = vmatpush1.bf16.msra.mxu0 %v6134
        %9420 = vmatprep.subr.bf16.mxu0 %v6111
        %9421 = vmatpush1.bf16.msra.mxu0 %v6110
        %9422 = vmatprep.subr.bf16.mxu0 %v6087
        %9423 = vmatpush1.bf16.msra.mxu0 %v6086
        %9424 = vmatprep.subr.bf16.mxu0 %v6063
        %9425 = vmatpush1.bf16.msra.mxu0 %v6062
        %9426 = vmatprep.subr.bf16.mxu0 %v6039
        %9427 = vmatpush1.bf16.msra.mxu0 %v6038
        %9428 = vmatprep.subr.bf16.mxu0 %v6015
        %9429 = vmatpush1.bf16.msra.mxu0 %v6014
        %9430 = vmatprep.subr.bf16.mxu0 %v5991
        %9431 = vmatpush1.bf16.msra.mxu0 %v5990
        %9432 = vmatprep.subr.bf16.mxu0 %v5967
        %9433 = vmatpush1.bf16.msra.mxu0 %v5966
        %9434 = vmatprep.subr.bf16.mxu0 %v6327
        %9435 = vmatpush2.bf16.msra.mxu0 %v6326
        %9436 = vmatprep.subr.bf16.mxu0 %v6303
        %9437 = vmatpush2.bf16.msra.mxu0 %v6302
        %9438 = vmatprep.subr.bf16.mxu0 %v6279
        %9439 = vmatpush2.bf16.msra.mxu0 %v6278
        %9440 = vmatprep.subr.bf16.mxu0 %v6255
        %9441 = vmatpush2.bf16.msra.mxu0 %v6254
        %9442 = vmatprep.subr.bf16.mxu0 %v6231
        %9443 = vmatpush2.bf16.msra.mxu0 %v6230
        %9444 = vmatprep.subr.bf16.mxu0 %v6207
        %9445 = vmatpush2.bf16.msra.mxu0 %v6206
        %9446 = vmatprep.subr.bf16.mxu0 %v6183
        %9447 = vmatpush2.bf16.msra.mxu0 %v6182
        %9448 = vmatprep.subr.bf16.mxu0 %v6159
        %9449 = vmatpush2.bf16.msra.mxu0 %v6158
        %9450 = vmatprep.mubr.bf16.mxu0 %v344
        %9451 = vmatmul.mubr.bf16.gmra.mxu0 %v343
        %v9452 = vpop.f32.mrf.mxu0
        %v9453 = vadd.f32 %v9412, %v9452
        %v9454 = vpop.f32.mrf.mxu0
        %v9455 = vadd.f32 %v9414, %v9454
        %v9456 = vpop.f32.mrf.mxu0
        %v9457 = vpop.f32.mrf.mxu0
        %9458 = vdwg.mxu0
        %9459 = vmatprep.subr.bf16.mxu0 0
        %9460 = vmatpush1.bf16.msra.mxu0 0
        %9461 = vmatprep.subr.bf16.mxu0 0
        %9462 = vmatpush1.bf16.msra.mxu0 0
        %9463 = vmatprep.subr.bf16.mxu0 0
        %9464 = vmatpush1.bf16.msra.mxu0 0
        %9465 = vmatprep.subr.bf16.mxu0 0
        %9466 = vmatpush1.bf16.msra.mxu0 0
        %9467 = vmatprep.subr.bf16.mxu0 0
        %9468 = vmatpush1.bf16.msra.mxu0 0
        %9469 = vmatprep.subr.bf16.mxu0 0
        %9470 = vmatpush1.bf16.msra.mxu0 0
        %9471 = vmatprep.subr.bf16.mxu0 0
        %9472 = vmatpush1.bf16.msra.mxu0 0
        %9473 = vmatprep.subr.bf16.mxu0 %v6351
        %9474 = vmatpush1.bf16.msra.mxu0 %v6350
        %9475 = vmatprep.subr.bf16.mxu0 0
        %9476 = vmatpush2.bf16.msra.mxu0 0
        %9477 = vmatprep.subr.bf16.mxu0 0
        %9478 = vmatpush2.bf16.msra.mxu0 0
        %9479 = vmatprep.subr.bf16.mxu0 0
        %9480 = vmatpush2.bf16.msra.mxu0 0
        %9481 = vmatprep.subr.bf16.mxu0 0
        %9482 = vmatpush2.bf16.msra.mxu0 0
        %9483 = vmatprep.subr.bf16.mxu0 0
        %9484 = vmatpush2.bf16.msra.mxu0 0
        %9485 = vmatprep.subr.bf16.mxu0 0
        %9486 = vmatpush2.bf16.msra.mxu0 0
        %9487 = vmatprep.subr.bf16.mxu0 0
        %9488 = vmatpush2.bf16.msra.mxu0 0
        %9489 = vmatprep.subr.bf16.mxu0 0
        %9490 = vmatpush2.bf16.msra.mxu0 0
        %9491 = vmatprep.mubr.bf16.mxu0 0
        %9492 = vmatmul.mubr.bf16.gmra.mxu0 %v7530
        %v9493 = vpop.f32.mrf.mxu0
        %v9494 = vadd.f32 %v9453, %v9493
        %v9495 = vpop.f32.mrf.mxu0
        %v9496 = vadd.f32 %v9455, %v9495
        %v9497 = vpop.f32.mrf.mxu0
        %v9498 = vpop.f32.mrf.mxu0
        %9499 = vdwg.mxu0
        %v9500 = vmax.f32 %v7690, 0.0
        %v9501 = vmax.f32 %v7692, 0.0
        %v9502 = vmax.f32 %v7854, 0.0
        %v9503 = vmax.f32 %v7856, 0.0
        %v9504 = vmax.f32 %v8018, 0.0
        %v9505 = vmax.f32 %v8020, 0.0
        %v9506 = vmax.f32 %v8182, 0.0
        %v9507 = vmax.f32 %v8184, 0.0
        %v9508 = vmax.f32 %v8346, 0.0
        %v9509 = vmax.f32 %v8348, 0.0
        %v9510 = vmax.f32 %v8510, 0.0
        %v9511 = vmax.f32 %v8512, 0.0
        %v9512 = vmax.f32 %v8674, 0.0
        %v9513 = vmax.f32 %v8676, 0.0
        %v9514 = vmax.f32 %v8838, 0.0
        %v9515 = vmax.f32 %v8840, 0.0
        %v9516 = vmax.f32 %v9002, 0.0
        %v9517 = vmax.f32 %v9004, 0.0
        %v9518 = vmax.f32 %v9166, 0.0
        %v9519 = vmax.f32 %v9168, 0.0
        %v9520 = vmax.f32 %v9330, 0.0
        %v9521 = vmax.f32 %v9332, 0.0
        %v9522 = vmax.f32 %v9494, 0.0
        %v9523 = vmax.f32 %v9496, 0.0
        %v9524 = vmax.f32 %v9500, %v9506
        %v9525 = vmax.f32 %v9501, %v9507
        %v9526 = vmax.f32 %v9502, %v9508
        %v9527 = vmax.f32 %v9503, %v9509
        %v9528 = vmax.f32 %v9504, %v9510
        %v9529 = vmax.f32 %v9505, %v9511
        %v9530 = vmax.f32 %v9512, %v9518
        %v9531 = vmax.f32 %v9513, %v9519
        %v9532 = vmax.f32 %v9514, %v9520
        %v9533 = vmax.f32 %v9515, %v9521
        %v9534 = vmax.f32 %v9516, %v9522
        %v9535 = vmax.f32 %v9517, %v9523
        %v9536 = vmax.f32 %v9524, %v9530
        %v9537 = vmax.f32 %v9525, %v9531
        %v9538 = vmax.f32 %v9526, %v9532
        %v9539 = vmax.f32 %v9527, %v9533
        %v9540 = vmax.f32 %v9528, %v9534
        %v9541 = vmax.f32 %v9529, %v9535
        %v9542 = vpack.c.bf16 %v9536, %v9536
        %v9543 = vpack.c.bf16 %v9537, %v9537
        %v9544 = vpack.c.bf16 %v9538, %v9538
        %v9545 = vpack.c.bf16 %v9539, %v9539
        %v9546 = vpack.c.bf16 %v9540, %v9540
        %v9547 = vpack.c.bf16 %v9541, %v9541
        %v9548 = vld [vmem:[%s3] sm:$0xff]
        %v9549 = vld [vmem:[%s3 + $0x8] sm:$0xff]
        %v9550 = vld [vmem:[%s3 + $0x10] sm:$0xff]
        %v9551 = vld [vmem:[%s3 + $0x18] sm:$0xff]
        %v9552 = vld [vmem:[%s3 + $0x20] sm:$0xff]
        %v9553 = vld [vmem:[%s3 + $0x28] sm:$0xff]
        %v9554 = vld [vmem:[%s3 + $0x30] sm:$0xff]
        %v9555 = vld [vmem:[%s3 + $0x38] sm:$0xff]
        %v9556 = vld [vmem:[%s3 + $0x40] sm:$0xff]
        %v9557 = vld [vmem:[%s3 + $0x48] sm:$0xff]
        %v9558 = vld [vmem:[%s3 + $0x50] sm:$0xff]
        %v9559 = vld [vmem:[%s3 + $0x58] sm:$0xff]
        %v9560 = vld [vmem:[%s3 + $0x60] sm:$0xff]
        %v9561 = vld [vmem:[%s3 + $0x68] sm:$0xff]
        %v9562 = vld [vmem:[%s3 + $0x70] sm:$0xff]
        %v9563 = vld [vmem:[%s3 + $0x78] sm:$0xff]
        %v9564 = vld [vmem:[%s3 + $0x80] sm:$0xff]
        %v9565 = vld [vmem:[%s3 + $0x88] sm:$0xff]
        %v9566 = vld [vmem:[%s3 + $0x90] sm:$0xff]
        %v9567 = vld [vmem:[%s3 + $0x98] sm:$0xff]
        %v9568 = vld [vmem:[%s3 + $0xa0] sm:$0xff]
        %v9569 = vld [vmem:[%s3 + $0xa8] sm:$0xff]
        %v9570 = vld [vmem:[%s3 + $0xb0] sm:$0xff]
        %v9571 = vld [vmem:[%s3 + $0xb8] sm:$0xff]
        %v9572 = vld [vmem:[%s3 + $0xc0] sm:$0xff]
        %v9573 = vld [vmem:[%s3 + $0xc8] sm:$0xff]
        %v9574 = vld [vmem:[%s3 + $0xd0] sm:$0xff]
        %v9575 = vld [vmem:[%s3 + $0xd8] sm:$0xff]
        %v9576 = vld [vmem:[%s3 + $0xe0] sm:$0xff]
        %v9577 = vld [vmem:[%s3 + $0xe8] sm:$0xff]
        %v9578 = vld [vmem:[%s3 + $0xf0] sm:$0xff]
        %v9579 = vld [vmem:[%s3 + $0xf8] sm:$0xff]
        %v9580 = vld [vmem:[%s3 + $0x100] sm:$0xff]
        %v9581 = vld [vmem:[%s3 + $0x108] sm:$0xff]
        %v9582 = vld [vmem:[%s3 + $0x110] sm:$0xff]
        %v9583 = vld [vmem:[%s3 + $0x118] sm:$0xff]
        %v9584 = vld [vmem:[%s3 + $0x120] sm:$0xff]
        %v9585 = vld [vmem:[%s3 + $0x128] sm:$0xff]
        %v9586 = vld [vmem:[%s3 + $0x130] sm:$0xff]
        %v9587 = vld [vmem:[%s3 + $0x138] sm:$0xff]
        %v9588 = vld [vmem:[%s3 + $0x140] sm:$0xff]
        %v9589 = vld [vmem:[%s3 + $0x148] sm:$0xff]
        %v9590 = vld [vmem:[%s3 + $0x150] sm:$0xff]
        %v9591 = vld [vmem:[%s3 + $0x158] sm:$0xff]
        %v9592 = vld [vmem:[%s3 + $0x160] sm:$0xff]
        %v9593 = vld [vmem:[%s3 + $0x168] sm:$0xff]
        %v9594 = vld [vmem:[%s3 + $0x170] sm:$0xff]
        %v9595 = vld [vmem:[%s3 + $0x178] sm:$0xff]
        %v9596 = vld [vmem:[%s3 + $0x180] sm:$0xff]
        %v9597 = vld [vmem:[%s3 + $0x188] sm:$0xff]
        %v9598 = vld [vmem:[%s3 + $0x190] sm:$0xff]
        %v9599 = vld [vmem:[%s3 + $0x198] sm:$0xff]
        %v9600 = vld [vmem:[%s3 + $0x1a0] sm:$0xff]
        %v9601 = vld [vmem:[%s3 + $0x1a8] sm:$0xff]
        %v9602 = vld [vmem:[%s3 + $0x1b0] sm:$0xff]
        %v9603 = vld [vmem:[%s3 + $0x1b8] sm:$0xff]
        %v9604 = vld [vmem:[%s3 + $0x1c0] sm:$0xff]
        %v9605 = vld [vmem:[%s3 + $0x1c8] sm:$0xff]
        %v9606 = vld [vmem:[%s3 + $0x1d0] sm:$0xff]
        %v9607 = vld [vmem:[%s3 + $0x1d8] sm:$0xff]
        %v9608 = vld [vmem:[%s3 + $0x1e0] sm:$0xff]
        %v9609 = vld [vmem:[%s3 + $0x1e8] sm:$0xff]
        %v9610 = vld [vmem:[%s3 + $0x1f0] sm:$0xff]
        %v9611 = vld [vmem:[%s3 + $0x1f8] sm:$0xff]
        %v9612 = vld [vmem:[%s3 + $0x200] sm:$0xff]
        %v9613 = vld [vmem:[%s3 + $0x208] sm:$0xff]
        %v9614 = vld [vmem:[%s3 + $0x210] sm:$0xff]
        %v9615 = vld [vmem:[%s3 + $0x218] sm:$0xff]
        %v9616 = vld [vmem:[%s3 + $0x220] sm:$0xff]
        %v9617 = vld [vmem:[%s3 + $0x228] sm:$0xff]
        %v9618 = vld [vmem:[%s3 + $0x230] sm:$0xff]
        %v9619 = vld [vmem:[%s3 + $0x238] sm:$0xff]
        %v9620 = vld [vmem:[%s3 + $0x240] sm:$0xff]
        %v9621 = vld [vmem:[%s3 + $0x248] sm:$0xff]
        %v9622 = vld [vmem:[%s3 + $0x250] sm:$0xff]
        %v9623 = vld [vmem:[%s3 + $0x258] sm:$0xff]
        %v9624 = vld [vmem:[%s3 + $0x260] sm:$0xff]
        %v9625 = vld [vmem:[%s3 + $0x268] sm:$0xff]
        %v9626 = vld [vmem:[%s3 + $0x270] sm:$0xff]
        %v9627 = vld [vmem:[%s3 + $0x278] sm:$0xff]
        %v9628 = vld [vmem:[%s3 + $0x280] sm:$0xff]
        %v9629 = vld [vmem:[%s3 + $0x288] sm:$0xff]
        %v9630 = vld [vmem:[%s3 + $0x290] sm:$0xff]
        %v9631 = vld [vmem:[%s3 + $0x298] sm:$0xff]
        %v9632 = vld [vmem:[%s3 + $0x2a0] sm:$0xff]
        %v9633 = vld [vmem:[%s3 + $0x2a8] sm:$0xff]
        %v9634 = vld [vmem:[%s3 + $0x2b0] sm:$0xff]
        %v9635 = vld [vmem:[%s3 + $0x2b8] sm:$0xff]
        %v9636 = vld [vmem:[%s3 + $0x2c0] sm:$0xff]
        %v9637 = vld [vmem:[%s3 + $0x2c8] sm:$0xff]
        %v9638 = vld [vmem:[%s3 + $0x2d0] sm:$0xff]
        %v9639 = vld [vmem:[%s3 + $0x2d8] sm:$0xff]
        %v9640 = vld [vmem:[%s3 + $0x2e0] sm:$0xff]
        %v9641 = vld [vmem:[%s3 + $0x2e8] sm:$0xff]
        %v9642 = vld [vmem:[%s3 + $0x2f0] sm:$0xff]
        %v9643 = vld [vmem:[%s3 + $0x2f8] sm:$0xff]
        %v9644 = vld [vmem:[%s3 + $0x300] sm:$0xff]
        %v9645 = vld [vmem:[%s3 + $0x308] sm:$0xff]
        %v9646 = vld [vmem:[%s3 + $0x310] sm:$0xff]
        %v9647 = vld [vmem:[%s3 + $0x318] sm:$0xff]
        %v9648 = vld [vmem:[%s3 + $0x320] sm:$0xff]
        %v9649 = vld [vmem:[%s3 + $0x328] sm:$0xff]
        %v9650 = vld [vmem:[%s3 + $0x330] sm:$0xff]
        %v9651 = vld [vmem:[%s3 + $0x338] sm:$0xff]
        %v9652 = vld [vmem:[%s3 + $0x340] sm:$0xff]
        %v9653 = vld [vmem:[%s3 + $0x348] sm:$0xff]
        %v9654 = vld [vmem:[%s3 + $0x350] sm:$0xff]
        %v9655 = vld [vmem:[%s3 + $0x358] sm:$0xff]
        %v9656 = vld [vmem:[%s3 + $0x360] sm:$0xff]
        %v9657 = vld [vmem:[%s3 + $0x368] sm:$0xff]
        %v9658 = vld [vmem:[%s3 + $0x370] sm:$0xff]
        %v9659 = vld [vmem:[%s3 + $0x378] sm:$0xff]
        %v9660 = vld [vmem:[%s3 + $0x380] sm:$0xff]
        %v9661 = vld [vmem:[%s3 + $0x388] sm:$0xff]
        %v9662 = vld [vmem:[%s3 + $0x390] sm:$0xff]
        %v9663 = vld [vmem:[%s3 + $0x398] sm:$0xff]
        %v9664 = vld [vmem:[%s3 + $0x3a0] sm:$0xff]
        %v9665 = vld [vmem:[%s3 + $0x3a8] sm:$0xff]
        %v9666 = vld [vmem:[%s3 + $0x3b0] sm:$0xff]
        %v9667 = vld [vmem:[%s3 + $0x3b8] sm:$0xff]
        %v9668 = vld [vmem:[%s3 + $0x3c0] sm:$0xff]
        %v9669 = vld [vmem:[%s3 + $0x3c8] sm:$0xff]
        %v9670 = vld [vmem:[%s3 + $0x3d0] sm:$0xff]
        %v9671 = vld [vmem:[%s3 + $0x3d8] sm:$0xff]
        %v9672 = vld [vmem:[%s3 + $0x3e0] sm:$0xff]
        %v9673 = vld [vmem:[%s3 + $0x3e8] sm:$0xff]
        %v9674 = vld [vmem:[%s3 + $0x3f0] sm:$0xff]
        %v9675 = vld [vmem:[%s3 + $0x3f8] sm:$0xff]
        %v9676 = vld [vmem:[%s3 + $0x400] sm:$0xff]
        %v9677 = vld [vmem:[%s3 + $0x408] sm:$0xff]
        %v9678 = vld [vmem:[%s3 + $0x410] sm:$0xff]
        %v9679 = vld [vmem:[%s3 + $0x418] sm:$0xff]
        %v9680 = vld [vmem:[%s3 + $0x420] sm:$0xff]
        %v9681 = vld [vmem:[%s3 + $0x428] sm:$0xff]
        %v9682 = vld [vmem:[%s3 + $0x430] sm:$0xff]
        %v9683 = vld [vmem:[%s3 + $0x438] sm:$0xff]
        %v9684 = vld [vmem:[%s3 + $0x440] sm:$0xff]
        %v9685 = vld [vmem:[%s3 + $0x448] sm:$0xff]
        %v9686 = vld [vmem:[%s3 + $0x450] sm:$0xff]
        %v9687 = vld [vmem:[%s3 + $0x458] sm:$0xff]
        %v9688 = vld [vmem:[%s3 + $0x460] sm:$0xff]
        %v9689 = vld [vmem:[%s3 + $0x468] sm:$0xff]
        %v9690 = vld [vmem:[%s3 + $0x470] sm:$0xff]
        %v9691 = vld [vmem:[%s3 + $0x478] sm:$0xff]
        %v9692 = vld [vmem:[%s3 + $0x480] sm:$0xff]
        %v9693 = vld [vmem:[%s3 + $0x488] sm:$0xff]
        %v9694 = vld [vmem:[%s3 + $0x490] sm:$0xff]
        %v9695 = vld [vmem:[%s3 + $0x498] sm:$0xff]
        %v9696 = vld [vmem:[%s3 + $0x4a0] sm:$0xff]
        %v9697 = vld [vmem:[%s3 + $0x4a8] sm:$0xff]
        %v9698 = vld [vmem:[%s3 + $0x4b0] sm:$0xff]
        %v9699 = vld [vmem:[%s3 + $0x4b8] sm:$0xff]
        %v9700 = vld [vmem:[%s3 + $0x4c0] sm:$0xff]
        %v9701 = vld [vmem:[%s3 + $0x4c8] sm:$0xff]
        %v9702 = vld [vmem:[%s3 + $0x4d0] sm:$0xff]
        %v9703 = vld [vmem:[%s3 + $0x4d8] sm:$0xff]
        %v9704 = vld [vmem:[%s3 + $0x4e0] sm:$0xff]
        %v9705 = vld [vmem:[%s3 + $0x4e8] sm:$0xff]
        %v9706 = vld [vmem:[%s3 + $0x4f0] sm:$0xff]
        %v9707 = vld [vmem:[%s3 + $0x4f8] sm:$0xff]
        %v9708 = vld [vmem:[%s3 + $0x500] sm:$0xff]
        %v9709 = vld [vmem:[%s3 + $0x508] sm:$0xff]
        %v9710 = vld [vmem:[%s3 + $0x510] sm:$0xff]
        %v9711 = vld [vmem:[%s3 + $0x518] sm:$0xff]
        %v9712 = vld [vmem:[%s3 + $0x520] sm:$0xff]
        %v9713 = vld [vmem:[%s3 + $0x528] sm:$0xff]
        %v9714 = vld [vmem:[%s3 + $0x530] sm:$0xff]
        %v9715 = vld [vmem:[%s3 + $0x538] sm:$0xff]
        %v9716 = vld [vmem:[%s3 + $0x540] sm:$0xff]
        %v9717 = vld [vmem:[%s3 + $0x548] sm:$0xff]
        %v9718 = vld [vmem:[%s3 + $0x550] sm:$0xff]
        %v9719 = vld [vmem:[%s3 + $0x558] sm:$0xff]
        %v9720 = vld [vmem:[%s3 + $0x560] sm:$0xff]
        %v9721 = vld [vmem:[%s3 + $0x568] sm:$0xff]
        %v9722 = vld [vmem:[%s3 + $0x570] sm:$0xff]
        %v9723 = vld [vmem:[%s3 + $0x578] sm:$0xff]
        %v9724 = vld [vmem:[%s3 + $0x580] sm:$0xff]
        %v9725 = vld [vmem:[%s3 + $0x588] sm:$0xff]
        %v9726 = vld [vmem:[%s3 + $0x590] sm:$0xff]
        %v9727 = vld [vmem:[%s3 + $0x598] sm:$0xff]
        %v9728 = vld [vmem:[%s3 + $0x5a0] sm:$0xff]
        %v9729 = vld [vmem:[%s3 + $0x5a8] sm:$0xff]
        %v9730 = vld [vmem:[%s3 + $0x5b0] sm:$0xff]
        %v9731 = vld [vmem:[%s3 + $0x5b8] sm:$0xff]
        %v9732 = vld [vmem:[%s3 + $0x5c0] sm:$0xff]
        %v9733 = vld [vmem:[%s3 + $0x5c8] sm:$0xff]
        %v9734 = vld [vmem:[%s3 + $0x5d0] sm:$0xff]
        %v9735 = vld [vmem:[%s3 + $0x5d8] sm:$0xff]
        %v9736 = vld [vmem:[%s3 + $0x5e0] sm:$0xff]
        %v9737 = vld [vmem:[%s3 + $0x5e8] sm:$0xff]
        %v9738 = vld [vmem:[%s3 + $0x5f0] sm:$0xff]
        %v9739 = vld [vmem:[%s3 + $0x5f8] sm:$0xff]
        %v9740 = vld [vmem:[%s4] sm:$0xf]
        %v9742 = vlaneseq
        %v9743 = vshrl.u32 %v9742, 7
        %v9744 = vsub.s32 0, %v9743
        %v9745 = vrot.slane %v9740, %v9744
        %v9746 = vlaneseq
        %v9747 = vshrl.u32 %v9746, 7
        %v9748 = vsub.s32 1, %v9747
        %v9749 = vrot.slane %v9740, %v9748
        %v9750 = vlaneseq
        %v9751 = vshrl.u32 %v9750, 7
        %v9752 = vsub.s32 2, %v9751
        %v9753 = vrot.slane %v9740, %v9752
        %v9754 = vlaneseq
        %v9755 = vshrl.u32 %v9754, 7
        %v9756 = vsub.s32 3, %v9755
        %v9757 = vrot.slane %v9740, %v9756
        %v9954 = vunpack.c.l.b16 %v9548
        %v9955 = vunpack.c.h.b16 %v9548
        %v9956 = vunpack.c.l.b16 %v9549
        %v9957 = vunpack.c.h.b16 %v9549
        %v9958 = vunpack.c.l.b16 %v9550
        %v9959 = vunpack.c.h.b16 %v9550
        %v9960 = vunpack.c.l.b16 %v9551
        %v9961 = vunpack.c.h.b16 %v9551
        %v9962 = vunpack.c.l.b16 %v9552
        %v9963 = vunpack.c.h.b16 %v9552
        %v9964 = vunpack.c.l.b16 %v9553
        %v9965 = vunpack.c.h.b16 %v9553
        %v9966 = vunpack.c.l.b16 %v9554
        %v9967 = vunpack.c.h.b16 %v9554
        %v9968 = vunpack.c.l.b16 %v9555
        %v9969 = vunpack.c.h.b16 %v9555
        %v9970 = vunpack.c.l.b16 %v9556
        %v9971 = vunpack.c.h.b16 %v9556
        %v9972 = vunpack.c.l.b16 %v9557
        %v9973 = vunpack.c.h.b16 %v9557
        %v9974 = vunpack.c.l.b16 %v9558
        %v9975 = vunpack.c.h.b16 %v9558
        %v9976 = vunpack.c.l.b16 %v9559
        %v9977 = vunpack.c.h.b16 %v9559
        %v9978 = vunpack.c.l.b16 %v9560
        %v9979 = vunpack.c.h.b16 %v9560
        %v9980 = vunpack.c.l.b16 %v9561
        %v9981 = vunpack.c.h.b16 %v9561
        %v9982 = vunpack.c.l.b16 %v9562
        %v9983 = vunpack.c.h.b16 %v9562
        %v9984 = vunpack.c.l.b16 %v9563
        %v9985 = vunpack.c.h.b16 %v9563
        %v9986 = vunpack.c.l.b16 %v9564
        %v9987 = vunpack.c.h.b16 %v9564
        %v9988 = vunpack.c.l.b16 %v9565
        %v9989 = vunpack.c.h.b16 %v9565
        %v9990 = vunpack.c.l.b16 %v9566
        %v9991 = vunpack.c.h.b16 %v9566
        %v9992 = vunpack.c.l.b16 %v9567
        %v9993 = vunpack.c.h.b16 %v9567
        %v9994 = vunpack.c.l.b16 %v9568
        %v9995 = vunpack.c.h.b16 %v9568
        %v9996 = vunpack.c.l.b16 %v9569
        %v9997 = vunpack.c.h.b16 %v9569
        %v9998 = vunpack.c.l.b16 %v9570
        %v9999 = vunpack.c.h.b16 %v9570
        %v10000 = vunpack.c.l.b16 %v9571
        %v10001 = vunpack.c.h.b16 %v9571
        %v10002 = vunpack.c.l.b16 %v9572
        %v10003 = vunpack.c.h.b16 %v9572
        %v10004 = vunpack.c.l.b16 %v9573
        %v10005 = vunpack.c.h.b16 %v9573
        %v10006 = vunpack.c.l.b16 %v9574
        %v10007 = vunpack.c.h.b16 %v9574
        %v10008 = vunpack.c.l.b16 %v9575
        %v10009 = vunpack.c.h.b16 %v9575
        %v10010 = vunpack.c.l.b16 %v9576
        %v10011 = vunpack.c.h.b16 %v9576
        %v10012 = vunpack.c.l.b16 %v9577
        %v10013 = vunpack.c.h.b16 %v9577
        %v10014 = vunpack.c.l.b16 %v9578
        %v10015 = vunpack.c.h.b16 %v9578
        %v10016 = vunpack.c.l.b16 %v9579
        %v10017 = vunpack.c.h.b16 %v9579
        %v10018 = vunpack.c.l.b16 %v9580
        %v10019 = vunpack.c.h.b16 %v9580
        %v10020 = vunpack.c.l.b16 %v9581
        %v10021 = vunpack.c.h.b16 %v9581
        %v10022 = vunpack.c.l.b16 %v9582
        %v10023 = vunpack.c.h.b16 %v9582
        %v10024 = vunpack.c.l.b16 %v9583
        %v10025 = vunpack.c.h.b16 %v9583
        %v10026 = vunpack.c.l.b16 %v9584
        %v10027 = vunpack.c.h.b16 %v9584
        %v10028 = vunpack.c.l.b16 %v9585
        %v10029 = vunpack.c.h.b16 %v9585
        %v10030 = vunpack.c.l.b16 %v9586
        %v10031 = vunpack.c.h.b16 %v9586
        %v10032 = vunpack.c.l.b16 %v9587
        %v10033 = vunpack.c.h.b16 %v9587
        %v10034 = vunpack.c.l.b16 %v9588
        %v10035 = vunpack.c.h.b16 %v9588
        %v10036 = vunpack.c.l.b16 %v9589
        %v10037 = vunpack.c.h.b16 %v9589
        %v10038 = vunpack.c.l.b16 %v9590
        %v10039 = vunpack.c.h.b16 %v9590
        %v10040 = vunpack.c.l.b16 %v9591
        %v10041 = vunpack.c.h.b16 %v9591
        %v10042 = vunpack.c.l.b16 %v9592
        %v10043 = vunpack.c.h.b16 %v9592
        %v10044 = vunpack.c.l.b16 %v9593
        %v10045 = vunpack.c.h.b16 %v9593
        %v10046 = vunpack.c.l.b16 %v9594
        %v10047 = vunpack.c.h.b16 %v9594
        %v10048 = vunpack.c.l.b16 %v9595
        %v10049 = vunpack.c.h.b16 %v9595
        %v10050 = vunpack.c.l.b16 %v9596
        %v10051 = vunpack.c.h.b16 %v9596
        %v10052 = vunpack.c.l.b16 %v9597
        %v10053 = vunpack.c.h.b16 %v9597
        %v10054 = vunpack.c.l.b16 %v9598
        %v10055 = vunpack.c.h.b16 %v9598
        %v10056 = vunpack.c.l.b16 %v9599
        %v10057 = vunpack.c.h.b16 %v9599
        %v10058 = vunpack.c.l.b16 %v9600
        %v10059 = vunpack.c.h.b16 %v9600
        %v10060 = vunpack.c.l.b16 %v9601
        %v10061 = vunpack.c.h.b16 %v9601
        %v10062 = vunpack.c.l.b16 %v9602
        %v10063 = vunpack.c.h.b16 %v9602
        %v10064 = vunpack.c.l.b16 %v9603
        %v10065 = vunpack.c.h.b16 %v9603
        %v10066 = vunpack.c.l.b16 %v9604
        %v10067 = vunpack.c.h.b16 %v9604
        %v10068 = vunpack.c.l.b16 %v9605
        %v10069 = vunpack.c.h.b16 %v9605
        %v10070 = vunpack.c.l.b16 %v9606
        %v10071 = vunpack.c.h.b16 %v9606
        %v10072 = vunpack.c.l.b16 %v9607
        %v10073 = vunpack.c.h.b16 %v9607
        %v10074 = vunpack.c.l.b16 %v9608
        %v10075 = vunpack.c.h.b16 %v9608
        %v10076 = vunpack.c.l.b16 %v9609
        %v10077 = vunpack.c.h.b16 %v9609
        %v10078 = vunpack.c.l.b16 %v9610
        %v10079 = vunpack.c.h.b16 %v9610
        %v10080 = vunpack.c.l.b16 %v9611
        %v10081 = vunpack.c.h.b16 %v9611
        %v10082 = vunpack.c.l.b16 %v9612
        %v10083 = vunpack.c.h.b16 %v9612
        %v10084 = vunpack.c.l.b16 %v9613
        %v10085 = vunpack.c.h.b16 %v9613
        %v10086 = vunpack.c.l.b16 %v9614
        %v10087 = vunpack.c.h.b16 %v9614
        %v10088 = vunpack.c.l.b16 %v9615
        %v10089 = vunpack.c.h.b16 %v9615
        %v10090 = vunpack.c.l.b16 %v9616
        %v10091 = vunpack.c.h.b16 %v9616
        %v10092 = vunpack.c.l.b16 %v9617
        %v10093 = vunpack.c.h.b16 %v9617
        %v10094 = vunpack.c.l.b16 %v9618
        %v10095 = vunpack.c.h.b16 %v9618
        %v10096 = vunpack.c.l.b16 %v9619
        %v10097 = vunpack.c.h.b16 %v9619
        %v10098 = vunpack.c.l.b16 %v9620
        %v10099 = vunpack.c.h.b16 %v9620
        %v10100 = vunpack.c.l.b16 %v9621
        %v10101 = vunpack.c.h.b16 %v9621
        %v10102 = vunpack.c.l.b16 %v9622
        %v10103 = vunpack.c.h.b16 %v9622
        %v10104 = vunpack.c.l.b16 %v9623
        %v10105 = vunpack.c.h.b16 %v9623
        %v10106 = vunpack.c.l.b16 %v9624
        %v10107 = vunpack.c.h.b16 %v9624
        %v10108 = vunpack.c.l.b16 %v9625
        %v10109 = vunpack.c.h.b16 %v9625
        %v10110 = vunpack.c.l.b16 %v9626
        %v10111 = vunpack.c.h.b16 %v9626
        %v10112 = vunpack.c.l.b16 %v9627
        %v10113 = vunpack.c.h.b16 %v9627
        %v10114 = vunpack.c.l.b16 %v9628
        %v10115 = vunpack.c.h.b16 %v9628
        %v10116 = vunpack.c.l.b16 %v9629
        %v10117 = vunpack.c.h.b16 %v9629
        %v10118 = vunpack.c.l.b16 %v9630
        %v10119 = vunpack.c.h.b16 %v9630
        %v10120 = vunpack.c.l.b16 %v9631
        %v10121 = vunpack.c.h.b16 %v9631
        %v10122 = vunpack.c.l.b16 %v9632
        %v10123 = vunpack.c.h.b16 %v9632
        %v10124 = vunpack.c.l.b16 %v9633
        %v10125 = vunpack.c.h.b16 %v9633
        %v10126 = vunpack.c.l.b16 %v9634
        %v10127 = vunpack.c.h.b16 %v9634
        %v10128 = vunpack.c.l.b16 %v9635
        %v10129 = vunpack.c.h.b16 %v9635
        %v10130 = vunpack.c.l.b16 %v9636
        %v10131 = vunpack.c.h.b16 %v9636
        %v10132 = vunpack.c.l.b16 %v9637
        %v10133 = vunpack.c.h.b16 %v9637
        %v10134 = vunpack.c.l.b16 %v9638
        %v10135 = vunpack.c.h.b16 %v9638
        %v10136 = vunpack.c.l.b16 %v9639
        %v10137 = vunpack.c.h.b16 %v9639
        %v10138 = vunpack.c.l.b16 %v9640
        %v10139 = vunpack.c.h.b16 %v9640
        %v10140 = vunpack.c.l.b16 %v9641
        %v10141 = vunpack.c.h.b16 %v9641
        %v10142 = vunpack.c.l.b16 %v9642
        %v10143 = vunpack.c.h.b16 %v9642
        %v10144 = vunpack.c.l.b16 %v9643
        %v10145 = vunpack.c.h.b16 %v9643
        %v10146 = vunpack.c.l.b16 %v9644
        %v10147 = vunpack.c.h.b16 %v9644
        %v10148 = vunpack.c.l.b16 %v9645
        %v10149 = vunpack.c.h.b16 %v9645
        %v10150 = vunpack.c.l.b16 %v9646
        %v10151 = vunpack.c.h.b16 %v9646
        %v10152 = vunpack.c.l.b16 %v9647
        %v10153 = vunpack.c.h.b16 %v9647
        %v10154 = vunpack.c.l.b16 %v9648
        %v10155 = vunpack.c.h.b16 %v9648
        %v10156 = vunpack.c.l.b16 %v9649
        %v10157 = vunpack.c.h.b16 %v9649
        %v10158 = vunpack.c.l.b16 %v9650
        %v10159 = vunpack.c.h.b16 %v9650
        %v10160 = vunpack.c.l.b16 %v9651
        %v10161 = vunpack.c.h.b16 %v9651
        %v10162 = vunpack.c.l.b16 %v9652
        %v10163 = vunpack.c.h.b16 %v9652
        %v10164 = vunpack.c.l.b16 %v9653
        %v10165 = vunpack.c.h.b16 %v9653
        %v10166 = vunpack.c.l.b16 %v9654
        %v10167 = vunpack.c.h.b16 %v9654
        %v10168 = vunpack.c.l.b16 %v9655
        %v10169 = vunpack.c.h.b16 %v9655
        %v10170 = vunpack.c.l.b16 %v9656
        %v10171 = vunpack.c.h.b16 %v9656
        %v10172 = vunpack.c.l.b16 %v9657
        %v10173 = vunpack.c.h.b16 %v9657
        %v10174 = vunpack.c.l.b16 %v9658
        %v10175 = vunpack.c.h.b16 %v9658
        %v10176 = vunpack.c.l.b16 %v9659
        %v10177 = vunpack.c.h.b16 %v9659
        %v10178 = vunpack.c.l.b16 %v9660
        %v10179 = vunpack.c.h.b16 %v9660
        %v10180 = vunpack.c.l.b16 %v9661
        %v10181 = vunpack.c.h.b16 %v9661
        %v10182 = vunpack.c.l.b16 %v9662
        %v10183 = vunpack.c.h.b16 %v9662
        %v10184 = vunpack.c.l.b16 %v9663
        %v10185 = vunpack.c.h.b16 %v9663
        %v10186 = vunpack.c.l.b16 %v9664
        %v10187 = vunpack.c.h.b16 %v9664
        %v10188 = vunpack.c.l.b16 %v9665
        %v10189 = vunpack.c.h.b16 %v9665
        %v10190 = vunpack.c.l.b16 %v9666
        %v10191 = vunpack.c.h.b16 %v9666
        %v10192 = vunpack.c.l.b16 %v9667
        %v10193 = vunpack.c.h.b16 %v9667
        %v10194 = vunpack.c.l.b16 %v9668
        %v10195 = vunpack.c.h.b16 %v9668
        %v10196 = vunpack.c.l.b16 %v9669
        %v10197 = vunpack.c.h.b16 %v9669
        %v10198 = vunpack.c.l.b16 %v9670
        %v10199 = vunpack.c.h.b16 %v9670
        %v10200 = vunpack.c.l.b16 %v9671
        %v10201 = vunpack.c.h.b16 %v9671
        %v10202 = vunpack.c.l.b16 %v9672
        %v10203 = vunpack.c.h.b16 %v9672
        %v10204 = vunpack.c.l.b16 %v9673
        %v10205 = vunpack.c.h.b16 %v9673
        %v10206 = vunpack.c.l.b16 %v9674
        %v10207 = vunpack.c.h.b16 %v9674
        %v10208 = vunpack.c.l.b16 %v9675
        %v10209 = vunpack.c.h.b16 %v9675
        %v10210 = vunpack.c.l.b16 %v9676
        %v10211 = vunpack.c.h.b16 %v9676
        %v10212 = vunpack.c.l.b16 %v9677
        %v10213 = vunpack.c.h.b16 %v9677
        %v10214 = vunpack.c.l.b16 %v9678
        %v10215 = vunpack.c.h.b16 %v9678
        %v10216 = vunpack.c.l.b16 %v9679
        %v10217 = vunpack.c.h.b16 %v9679
        %v10218 = vunpack.c.l.b16 %v9680
        %v10219 = vunpack.c.h.b16 %v9680
        %v10220 = vunpack.c.l.b16 %v9681
        %v10221 = vunpack.c.h.b16 %v9681
        %v10222 = vunpack.c.l.b16 %v9682
        %v10223 = vunpack.c.h.b16 %v9682
        %v10224 = vunpack.c.l.b16 %v9683
        %v10225 = vunpack.c.h.b16 %v9683
        %v10226 = vunpack.c.l.b16 %v9684
        %v10227 = vunpack.c.h.b16 %v9684
        %v10228 = vunpack.c.l.b16 %v9685
        %v10229 = vunpack.c.h.b16 %v9685
        %v10230 = vunpack.c.l.b16 %v9686
        %v10231 = vunpack.c.h.b16 %v9686
        %v10232 = vunpack.c.l.b16 %v9687
        %v10233 = vunpack.c.h.b16 %v9687
        %v10234 = vunpack.c.l.b16 %v9688
        %v10235 = vunpack.c.h.b16 %v9688
        %v10236 = vunpack.c.l.b16 %v9689
        %v10237 = vunpack.c.h.b16 %v9689
        %v10238 = vunpack.c.l.b16 %v9690
        %v10239 = vunpack.c.h.b16 %v9690
        %v10240 = vunpack.c.l.b16 %v9691
        %v10241 = vunpack.c.h.b16 %v9691
        %v10242 = vunpack.c.l.b16 %v9692
        %v10243 = vunpack.c.h.b16 %v9692
        %v10244 = vunpack.c.l.b16 %v9693
        %v10245 = vunpack.c.h.b16 %v9693
        %v10246 = vunpack.c.l.b16 %v9694
        %v10247 = vunpack.c.h.b16 %v9694
        %v10248 = vunpack.c.l.b16 %v9695
        %v10249 = vunpack.c.h.b16 %v9695
        %v10250 = vunpack.c.l.b16 %v9696
        %v10251 = vunpack.c.h.b16 %v9696
        %v10252 = vunpack.c.l.b16 %v9697
        %v10253 = vunpack.c.h.b16 %v9697
        %v10254 = vunpack.c.l.b16 %v9698
        %v10255 = vunpack.c.h.b16 %v9698
        %v10256 = vunpack.c.l.b16 %v9699
        %v10257 = vunpack.c.h.b16 %v9699
        %v10258 = vunpack.c.l.b16 %v9700
        %v10259 = vunpack.c.h.b16 %v9700
        %v10260 = vunpack.c.l.b16 %v9701
        %v10261 = vunpack.c.h.b16 %v9701
        %v10262 = vunpack.c.l.b16 %v9702
        %v10263 = vunpack.c.h.b16 %v9702
        %v10264 = vunpack.c.l.b16 %v9703
        %v10265 = vunpack.c.h.b16 %v9703
        %v10266 = vunpack.c.l.b16 %v9704
        %v10267 = vunpack.c.h.b16 %v9704
        %v10268 = vunpack.c.l.b16 %v9705
        %v10269 = vunpack.c.h.b16 %v9705
        %v10270 = vunpack.c.l.b16 %v9706
        %v10271 = vunpack.c.h.b16 %v9706
        %v10272 = vunpack.c.l.b16 %v9707
        %v10273 = vunpack.c.h.b16 %v9707
        %v10274 = vunpack.c.l.b16 %v9708
        %v10275 = vunpack.c.h.b16 %v9708
        %v10276 = vunpack.c.l.b16 %v9709
        %v10277 = vunpack.c.h.b16 %v9709
        %v10278 = vunpack.c.l.b16 %v9710
        %v10279 = vunpack.c.h.b16 %v9710
        %v10280 = vunpack.c.l.b16 %v9711
        %v10281 = vunpack.c.h.b16 %v9711
        %v10282 = vunpack.c.l.b16 %v9712
        %v10283 = vunpack.c.h.b16 %v9712
        %v10284 = vunpack.c.l.b16 %v9713
        %v10285 = vunpack.c.h.b16 %v9713
        %v10286 = vunpack.c.l.b16 %v9714
        %v10287 = vunpack.c.h.b16 %v9714
        %v10288 = vunpack.c.l.b16 %v9715
        %v10289 = vunpack.c.h.b16 %v9715
        %v10290 = vunpack.c.l.b16 %v9716
        %v10291 = vunpack.c.h.b16 %v9716
        %v10292 = vunpack.c.l.b16 %v9717
        %v10293 = vunpack.c.h.b16 %v9717
        %v10294 = vunpack.c.l.b16 %v9718
        %v10295 = vunpack.c.h.b16 %v9718
        %v10296 = vunpack.c.l.b16 %v9719
        %v10297 = vunpack.c.h.b16 %v9719
        %v10298 = vunpack.c.l.b16 %v9720
        %v10299 = vunpack.c.h.b16 %v9720
        %v10300 = vunpack.c.l.b16 %v9721
        %v10301 = vunpack.c.h.b16 %v9721
        %v10302 = vunpack.c.l.b16 %v9722
        %v10303 = vunpack.c.h.b16 %v9722
        %v10304 = vunpack.c.l.b16 %v9723
        %v10305 = vunpack.c.h.b16 %v9723
        %v10306 = vunpack.c.l.b16 %v9724
        %v10307 = vunpack.c.h.b16 %v9724
        %v10308 = vunpack.c.l.b16 %v9725
        %v10309 = vunpack.c.h.b16 %v9725
        %v10310 = vunpack.c.l.b16 %v9726
        %v10311 = vunpack.c.h.b16 %v9726
        %v10312 = vunpack.c.l.b16 %v9727
        %v10313 = vunpack.c.h.b16 %v9727
        %v10314 = vunpack.c.l.b16 %v9728
        %v10315 = vunpack.c.h.b16 %v9728
        %v10316 = vunpack.c.l.b16 %v9729
        %v10317 = vunpack.c.h.b16 %v9729
        %v10318 = vunpack.c.l.b16 %v9730
        %v10319 = vunpack.c.h.b16 %v9730
        %v10320 = vunpack.c.l.b16 %v9731
        %v10321 = vunpack.c.h.b16 %v9731
        %v10322 = vunpack.c.l.b16 %v9732
        %v10323 = vunpack.c.h.b16 %v9732
        %v10324 = vunpack.c.l.b16 %v9733
        %v10325 = vunpack.c.h.b16 %v9733
        %v10326 = vunpack.c.l.b16 %v9734
        %v10327 = vunpack.c.h.b16 %v9734
        %v10328 = vunpack.c.l.b16 %v9735
        %v10329 = vunpack.c.h.b16 %v9735
        %v10330 = vunpack.c.l.b16 %v9736
        %v10331 = vunpack.c.h.b16 %v9736
        %v10332 = vunpack.c.l.b16 %v9737
        %v10333 = vunpack.c.h.b16 %v9737
        %v10334 = vunpack.c.l.b16 %v9738
        %v10335 = vunpack.c.h.b16 %v9738
        %v10336 = vunpack.c.l.b16 %v9739
        %v10337 = vunpack.c.h.b16 %v9739
        %v10338 = vpack.c.b16 %v9958, %v9954
        %v10339 = vpack.c.b16 %v9959, %v9955
        %v10340 = vpack.c.b16 %v9960, %v9956
        %v10341 = vpack.c.b16 %v9961, %v9957
        %v10342 = vpack.c.b16 %v9966, %v9962
        %v10343 = vpack.c.b16 %v9967, %v9963
        %v10344 = vpack.c.b16 %v9968, %v9964
        %v10345 = vpack.c.b16 %v9969, %v9965
        %v10346 = vpack.c.b16 %v9974, %v9970
        %v10347 = vpack.c.b16 %v9975, %v9971
        %v10348 = vpack.c.b16 %v9976, %v9972
        %v10349 = vpack.c.b16 %v9977, %v9973
        %v10350 = vpack.c.b16 %v9982, %v9978
        %v10351 = vpack.c.b16 %v9983, %v9979
        %v10352 = vpack.c.b16 %v9984, %v9980
        %v10353 = vpack.c.b16 %v9985, %v9981
        %v10354 = vpack.c.b16 %v9990, %v9986
        %v10355 = vpack.c.b16 %v9991, %v9987
        %v10356 = vpack.c.b16 %v9992, %v9988
        %v10357 = vpack.c.b16 %v9993, %v9989
        %v10358 = vpack.c.b16 %v9998, %v9994
        %v10359 = vpack.c.b16 %v9999, %v9995
        %v10360 = vpack.c.b16 %v10000, %v9996
        %v10361 = vpack.c.b16 %v10001, %v9997
        %v10362 = vpack.c.b16 %v10006, %v10002
        %v10363 = vpack.c.b16 %v10007, %v10003
        %v10364 = vpack.c.b16 %v10008, %v10004
        %v10365 = vpack.c.b16 %v10009, %v10005
        %v10366 = vpack.c.b16 %v10014, %v10010
        %v10367 = vpack.c.b16 %v10015, %v10011
        %v10368 = vpack.c.b16 %v10016, %v10012
        %v10369 = vpack.c.b16 %v10017, %v10013
        %v10370 = vpack.c.b16 %v10022, %v10018
        %v10371 = vpack.c.b16 %v10023, %v10019
        %v10372 = vpack.c.b16 %v10024, %v10020
        %v10373 = vpack.c.b16 %v10025, %v10021
        %v10374 = vpack.c.b16 %v10030, %v10026
        %v10375 = vpack.c.b16 %v10031, %v10027
        %v10376 = vpack.c.b16 %v10032, %v10028
        %v10377 = vpack.c.b16 %v10033, %v10029
        %v10378 = vpack.c.b16 %v10038, %v10034
        %v10379 = vpack.c.b16 %v10039, %v10035
        %v10380 = vpack.c.b16 %v10040, %v10036
        %v10381 = vpack.c.b16 %v10041, %v10037
        %v10382 = vpack.c.b16 %v10046, %v10042
        %v10383 = vpack.c.b16 %v10047, %v10043
        %v10384 = vpack.c.b16 %v10048, %v10044
        %v10385 = vpack.c.b16 %v10049, %v10045
        %v10386 = vpack.c.b16 %v10054, %v10050
        %v10387 = vpack.c.b16 %v10055, %v10051
        %v10388 = vpack.c.b16 %v10056, %v10052
        %v10389 = vpack.c.b16 %v10057, %v10053
        %v10390 = vpack.c.b16 %v10062, %v10058
        %v10391 = vpack.c.b16 %v10063, %v10059
        %v10392 = vpack.c.b16 %v10064, %v10060
        %v10393 = vpack.c.b16 %v10065, %v10061
        %v10394 = vpack.c.b16 %v10070, %v10066
        %v10395 = vpack.c.b16 %v10071, %v10067
        %v10396 = vpack.c.b16 %v10072, %v10068
        %v10397 = vpack.c.b16 %v10073, %v10069
        %v10398 = vpack.c.b16 %v10078, %v10074
        %v10399 = vpack.c.b16 %v10079, %v10075
        %v10400 = vpack.c.b16 %v10080, %v10076
        %v10401 = vpack.c.b16 %v10081, %v10077
        %v10402 = vpack.c.b16 %v10086, %v10082
        %v10403 = vpack.c.b16 %v10087, %v10083
        %v10404 = vpack.c.b16 %v10088, %v10084
        %v10405 = vpack.c.b16 %v10089, %v10085
        %v10406 = vpack.c.b16 %v10094, %v10090
        %v10407 = vpack.c.b16 %v10095, %v10091
        %v10408 = vpack.c.b16 %v10096, %v10092
        %v10409 = vpack.c.b16 %v10097, %v10093
        %v10410 = vpack.c.b16 %v10102, %v10098
        %v10411 = vpack.c.b16 %v10103, %v10099
        %v10412 = vpack.c.b16 %v10104, %v10100
        %v10413 = vpack.c.b16 %v10105, %v10101
        %v10414 = vpack.c.b16 %v10110, %v10106
        %v10415 = vpack.c.b16 %v10111, %v10107
        %v10416 = vpack.c.b16 %v10112, %v10108
        %v10417 = vpack.c.b16 %v10113, %v10109
        %v10418 = vpack.c.b16 %v10118, %v10114
        %v10419 = vpack.c.b16 %v10119, %v10115
        %v10420 = vpack.c.b16 %v10120, %v10116
        %v10421 = vpack.c.b16 %v10121, %v10117
        %v10422 = vpack.c.b16 %v10126, %v10122
        %v10423 = vpack.c.b16 %v10127, %v10123
        %v10424 = vpack.c.b16 %v10128, %v10124
        %v10425 = vpack.c.b16 %v10129, %v10125
        %v10426 = vpack.c.b16 %v10134, %v10130
        %v10427 = vpack.c.b16 %v10135, %v10131
        %v10428 = vpack.c.b16 %v10136, %v10132
        %v10429 = vpack.c.b16 %v10137, %v10133
        %v10430 = vpack.c.b16 %v10142, %v10138
        %v10431 = vpack.c.b16 %v10143, %v10139
        %v10432 = vpack.c.b16 %v10144, %v10140
        %v10433 = vpack.c.b16 %v10145, %v10141
        %v10434 = vpack.c.b16 %v10150, %v10146
        %v10435 = vpack.c.b16 %v10151, %v10147
        %v10436 = vpack.c.b16 %v10152, %v10148
        %v10437 = vpack.c.b16 %v10153, %v10149
        %v10438 = vpack.c.b16 %v10158, %v10154
        %v10439 = vpack.c.b16 %v10159, %v10155
        %v10440 = vpack.c.b16 %v10160, %v10156
        %v10441 = vpack.c.b16 %v10161, %v10157
        %v10442 = vpack.c.b16 %v10166, %v10162
        %v10443 = vpack.c.b16 %v10167, %v10163
        %v10444 = vpack.c.b16 %v10168, %v10164
        %v10445 = vpack.c.b16 %v10169, %v10165
        %v10446 = vpack.c.b16 %v10174, %v10170
        %v10447 = vpack.c.b16 %v10175, %v10171
        %v10448 = vpack.c.b16 %v10176, %v10172
        %v10449 = vpack.c.b16 %v10177, %v10173
        %v10450 = vpack.c.b16 %v10182, %v10178
        %v10451 = vpack.c.b16 %v10183, %v10179
        %v10452 = vpack.c.b16 %v10184, %v10180
        %v10453 = vpack.c.b16 %v10185, %v10181
        %v10454 = vpack.c.b16 %v10190, %v10186
        %v10455 = vpack.c.b16 %v10191, %v10187
        %v10456 = vpack.c.b16 %v10192, %v10188
        %v10457 = vpack.c.b16 %v10193, %v10189
        %v10458 = vpack.c.b16 %v10198, %v10194
        %v10459 = vpack.c.b16 %v10199, %v10195
        %v10460 = vpack.c.b16 %v10200, %v10196
        %v10461 = vpack.c.b16 %v10201, %v10197
        %v10462 = vpack.c.b16 %v10206, %v10202
        %v10463 = vpack.c.b16 %v10207, %v10203
        %v10464 = vpack.c.b16 %v10208, %v10204
        %v10465 = vpack.c.b16 %v10209, %v10205
        %v10466 = vpack.c.b16 %v10214, %v10210
        %v10467 = vpack.c.b16 %v10215, %v10211
        %v10468 = vpack.c.b16 %v10216, %v10212
        %v10469 = vpack.c.b16 %v10217, %v10213
        %v10470 = vpack.c.b16 %v10222, %v10218
        %v10471 = vpack.c.b16 %v10223, %v10219
        %v10472 = vpack.c.b16 %v10224, %v10220
        %v10473 = vpack.c.b16 %v10225, %v10221
        %v10474 = vpack.c.b16 %v10230, %v10226
        %v10475 = vpack.c.b16 %v10231, %v10227
        %v10476 = vpack.c.b16 %v10232, %v10228
        %v10477 = vpack.c.b16 %v10233, %v10229
        %v10478 = vpack.c.b16 %v10238, %v10234
        %v10479 = vpack.c.b16 %v10239, %v10235
        %v10480 = vpack.c.b16 %v10240, %v10236
        %v10481 = vpack.c.b16 %v10241, %v10237
        %v10482 = vpack.c.b16 %v10246, %v10242
        %v10483 = vpack.c.b16 %v10247, %v10243
        %v10484 = vpack.c.b16 %v10248, %v10244
        %v10485 = vpack.c.b16 %v10249, %v10245
        %v10486 = vpack.c.b16 %v10254, %v10250
        %v10487 = vpack.c.b16 %v10255, %v10251
        %v10488 = vpack.c.b16 %v10256, %v10252
        %v10489 = vpack.c.b16 %v10257, %v10253
        %v10490 = vpack.c.b16 %v10262, %v10258
        %v10491 = vpack.c.b16 %v10263, %v10259
        %v10492 = vpack.c.b16 %v10264, %v10260
        %v10493 = vpack.c.b16 %v10265, %v10261
        %v10494 = vpack.c.b16 %v10270, %v10266
        %v10495 = vpack.c.b16 %v10271, %v10267
        %v10496 = vpack.c.b16 %v10272, %v10268
        %v10497 = vpack.c.b16 %v10273, %v10269
        %v10498 = vpack.c.b16 %v10278, %v10274
        %v10499 = vpack.c.b16 %v10279, %v10275
        %v10500 = vpack.c.b16 %v10280, %v10276
        %v10501 = vpack.c.b16 %v10281, %v10277
        %v10502 = vpack.c.b16 %v10286, %v10282
        %v10503 = vpack.c.b16 %v10287, %v10283
        %v10504 = vpack.c.b16 %v10288, %v10284
        %v10505 = vpack.c.b16 %v10289, %v10285
        %v10506 = vpack.c.b16 %v10294, %v10290
        %v10507 = vpack.c.b16 %v10295, %v10291
        %v10508 = vpack.c.b16 %v10296, %v10292
        %v10509 = vpack.c.b16 %v10297, %v10293
        %v10510 = vpack.c.b16 %v10302, %v10298
        %v10511 = vpack.c.b16 %v10303, %v10299
        %v10512 = vpack.c.b16 %v10304, %v10300
        %v10513 = vpack.c.b16 %v10305, %v10301
        %v10514 = vpack.c.b16 %v10310, %v10306
        %v10515 = vpack.c.b16 %v10311, %v10307
        %v10516 = vpack.c.b16 %v10312, %v10308
        %v10517 = vpack.c.b16 %v10313, %v10309
        %v10518 = vpack.c.b16 %v10318, %v10314
        %v10519 = vpack.c.b16 %v10319, %v10315
        %v10520 = vpack.c.b16 %v10320, %v10316
        %v10521 = vpack.c.b16 %v10321, %v10317
        %v10522 = vpack.c.b16 %v10326, %v10322
        %v10523 = vpack.c.b16 %v10327, %v10323
        %v10524 = vpack.c.b16 %v10328, %v10324
        %v10525 = vpack.c.b16 %v10329, %v10325
        %v10526 = vpack.c.b16 %v10334, %v10330
        %v10527 = vpack.c.b16 %v10335, %v10331
        %v10528 = vpack.c.b16 %v10336, %v10332
        %v10529 = vpack.c.b16 %v10337, %v10333
        %10722 = vmatprep.subr.bf16.mxu0 %v10367
        %10723 = vmatpush1.bf16.msra.mxu0 %v10366
        %10724 = vmatprep.subr.bf16.mxu0 %v10363
        %10725 = vmatpush1.bf16.msra.mxu0 %v10362
        %10726 = vmatprep.subr.bf16.mxu0 %v10359
        %10727 = vmatpush1.bf16.msra.mxu0 %v10358
        %10728 = vmatprep.subr.bf16.mxu0 %v10355
        %10729 = vmatpush1.bf16.msra.mxu0 %v10354
        %10730 = vmatprep.subr.bf16.mxu0 %v10351
        %10731 = vmatpush1.bf16.msra.mxu0 %v10350
        %10732 = vmatprep.subr.bf16.mxu0 %v10347
        %10733 = vmatpush1.bf16.msra.mxu0 %v10346
        %10734 = vmatprep.subr.bf16.mxu0 %v10343
        %10735 = vmatpush1.bf16.msra.mxu0 %v10342
        %10736 = vmatprep.subr.bf16.mxu0 %v10339
        %10737 = vmatpush1.bf16.msra.mxu0 %v10338
        %10738 = vmatprep.subr.bf16.mxu0 %v10399
        %10739 = vmatpush2.bf16.msra.mxu0 %v10398
        %10740 = vmatprep.subr.bf16.mxu0 %v10395
        %10741 = vmatpush2.bf16.msra.mxu0 %v10394
        %10742 = vmatprep.subr.bf16.mxu0 %v10391
        %10743 = vmatpush2.bf16.msra.mxu0 %v10390
        %10744 = vmatprep.subr.bf16.mxu0 %v10387
        %10745 = vmatpush2.bf16.msra.mxu0 %v10386
        %10746 = vmatprep.subr.bf16.mxu0 %v10383
        %10747 = vmatpush2.bf16.msra.mxu0 %v10382
        %10748 = vmatprep.subr.bf16.mxu0 %v10379
        %10749 = vmatpush2.bf16.msra.mxu0 %v10378
        %10750 = vmatprep.subr.bf16.mxu0 %v10375
        %10751 = vmatpush2.bf16.msra.mxu0 %v10374
        %10752 = vmatprep.subr.bf16.mxu0 %v10371
        %10753 = vmatpush2.bf16.msra.mxu0 %v10370
        %10754 = vmatprep.mubr.bf16.mxu0 %v9543
        %10755 = vmatmul.mubr.bf16.gmra.mxu0 %v9542
        %v10756 = vpop.f32.mrf.mxu0
        %v10757 = vadd.f32 %v9745, %v10756
        %v10758 = vpop.f32.mrf.mxu0
        %v10759 = vadd.f32 %v9749, %v10758
        %v10760 = vpop.f32.mrf.mxu0
        %v10761 = vpop.f32.mrf.mxu0
        %10762 = vdwg.mxu0
        %10763 = vmatprep.subr.bf16.mxu0 %v10431
        %10764 = vmatpush1.bf16.msra.mxu0 %v10430
        %10765 = vmatprep.subr.bf16.mxu0 %v10427
        %10766 = vmatpush1.bf16.msra.mxu0 %v10426
        %10767 = vmatprep.subr.bf16.mxu0 %v10423
        %10768 = vmatpush1.bf16.msra.mxu0 %v10422
        %10769 = vmatprep.subr.bf16.mxu0 %v10419
        %10770 = vmatpush1.bf16.msra.mxu0 %v10418
        %10771 = vmatprep.subr.bf16.mxu0 %v10415
        %10772 = vmatpush1.bf16.msra.mxu0 %v10414
        %10773 = vmatprep.subr.bf16.mxu0 %v10411
        %10774 = vmatpush1.bf16.msra.mxu0 %v10410
        %10775 = vmatprep.subr.bf16.mxu0 %v10407
        %10776 = vmatpush1.bf16.msra.mxu0 %v10406
        %10777 = vmatprep.subr.bf16.mxu0 %v10403
        %10778 = vmatpush1.bf16.msra.mxu0 %v10402
        %10779 = vmatprep.subr.bf16.mxu0 %v10463
        %10780 = vmatpush2.bf16.msra.mxu0 %v10462
        %10781 = vmatprep.subr.bf16.mxu0 %v10459
        %10782 = vmatpush2.bf16.msra.mxu0 %v10458
        %10783 = vmatprep.subr.bf16.mxu0 %v10455
        %10784 = vmatpush2.bf16.msra.mxu0 %v10454
        %10785 = vmatprep.subr.bf16.mxu0 %v10451
        %10786 = vmatpush2.bf16.msra.mxu0 %v10450
        %10787 = vmatprep.subr.bf16.mxu0 %v10447
        %10788 = vmatpush2.bf16.msra.mxu0 %v10446
        %10789 = vmatprep.subr.bf16.mxu0 %v10443
        %10790 = vmatpush2.bf16.msra.mxu0 %v10442
        %10791 = vmatprep.subr.bf16.mxu0 %v10439
        %10792 = vmatpush2.bf16.msra.mxu0 %v10438
        %10793 = vmatprep.subr.bf16.mxu0 %v10435
        %10794 = vmatpush2.bf16.msra.mxu0 %v10434
        %10795 = vmatprep.mubr.bf16.mxu0 %v9545
        %10796 = vmatmul.mubr.bf16.gmra.mxu0 %v9544
        %v10797 = vpop.f32.mrf.mxu0
        %v10798 = vadd.f32 %v10757, %v10797
        %v10799 = vpop.f32.mrf.mxu0
        %v10800 = vadd.f32 %v10759, %v10799
        %v10801 = vpop.f32.mrf.mxu0
        %v10802 = vpop.f32.mrf.mxu0
        %10803 = vdwg.mxu0
        %10804 = vmatprep.subr.bf16.mxu0 %v10495
        %10805 = vmatpush1.bf16.msra.mxu0 %v10494
        %10806 = vmatprep.subr.bf16.mxu0 %v10491
        %10807 = vmatpush1.bf16.msra.mxu0 %v10490
        %10808 = vmatprep.subr.bf16.mxu0 %v10487
        %10809 = vmatpush1.bf16.msra.mxu0 %v10486
        %10810 = vmatprep.subr.bf16.mxu0 %v10483
        %10811 = vmatpush1.bf16.msra.mxu0 %v10482
        %10812 = vmatprep.subr.bf16.mxu0 %v10479
        %10813 = vmatpush1.bf16.msra.mxu0 %v10478
        %10814 = vmatprep.subr.bf16.mxu0 %v10475
        %10815 = vmatpush1.bf16.msra.mxu0 %v10474
        %10816 = vmatprep.subr.bf16.mxu0 %v10471
        %10817 = vmatpush1.bf16.msra.mxu0 %v10470
        %10818 = vmatprep.subr.bf16.mxu0 %v10467
        %10819 = vmatpush1.bf16.msra.mxu0 %v10466
        %10820 = vmatprep.subr.bf16.mxu0 %v10527
        %10821 = vmatpush2.bf16.msra.mxu0 %v10526
        %10822 = vmatprep.subr.bf16.mxu0 %v10523
        %10823 = vmatpush2.bf16.msra.mxu0 %v10522
        %10824 = vmatprep.subr.bf16.mxu0 %v10519
        %10825 = vmatpush2.bf16.msra.mxu0 %v10518
        %10826 = vmatprep.subr.bf16.mxu0 %v10515
        %10827 = vmatpush2.bf16.msra.mxu0 %v10514
        %10828 = vmatprep.subr.bf16.mxu0 %v10511
        %10829 = vmatpush2.bf16.msra.mxu0 %v10510
        %10830 = vmatprep.subr.bf16.mxu0 %v10507
        %10831 = vmatpush2.bf16.msra.mxu0 %v10506
        %10832 = vmatprep.subr.bf16.mxu0 %v10503
        %10833 = vmatpush2.bf16.msra.mxu0 %v10502
        %10834 = vmatprep.subr.bf16.mxu0 %v10499
        %10835 = vmatpush2.bf16.msra.mxu0 %v10498
        %10836 = vmatprep.mubr.bf16.mxu0 %v9547
        %10837 = vmatmul.mubr.bf16.gmra.mxu0 %v9546
        %v10838 = vpop.f32.mrf.mxu0
        %v10839 = vadd.f32 %v10798, %v10838
        %v10840 = vpop.f32.mrf.mxu0
        %v10841 = vadd.f32 %v10800, %v10840
        %v10842 = vpop.f32.mrf.mxu0
        %v10843 = vpop.f32.mrf.mxu0
        %10844 = vdwg.mxu0
        %10845 = vmatprep.subr.bf16.mxu0 %v10369
        %10846 = vmatpush1.bf16.msra.mxu0 %v10368
        %10847 = vmatprep.subr.bf16.mxu0 %v10365
        %10848 = vmatpush1.bf16.msra.mxu0 %v10364
        %10849 = vmatprep.subr.bf16.mxu0 %v10361
        %10850 = vmatpush1.bf16.msra.mxu0 %v10360
        %10851 = vmatprep.subr.bf16.mxu0 %v10357
        %10852 = vmatpush1.bf16.msra.mxu0 %v10356
        %10853 = vmatprep.subr.bf16.mxu0 %v10353
        %10854 = vmatpush1.bf16.msra.mxu0 %v10352
        %10855 = vmatprep.subr.bf16.mxu0 %v10349
        %10856 = vmatpush1.bf16.msra.mxu0 %v10348
        %10857 = vmatprep.subr.bf16.mxu0 %v10345
        %10858 = vmatpush1.bf16.msra.mxu0 %v10344
        %10859 = vmatprep.subr.bf16.mxu0 %v10341
        %10860 = vmatpush1.bf16.msra.mxu0 %v10340
        %10861 = vmatprep.subr.bf16.mxu0 %v10401
        %10862 = vmatpush2.bf16.msra.mxu0 %v10400
        %10863 = vmatprep.subr.bf16.mxu0 %v10397
        %10864 = vmatpush2.bf16.msra.mxu0 %v10396
        %10865 = vmatprep.subr.bf16.mxu0 %v10393
        %10866 = vmatpush2.bf16.msra.mxu0 %v10392
        %10867 = vmatprep.subr.bf16.mxu0 %v10389
        %10868 = vmatpush2.bf16.msra.mxu0 %v10388
        %10869 = vmatprep.subr.bf16.mxu0 %v10385
        %10870 = vmatpush2.bf16.msra.mxu0 %v10384
        %10871 = vmatprep.subr.bf16.mxu0 %v10381
        %10872 = vmatpush2.bf16.msra.mxu0 %v10380
        %10873 = vmatprep.subr.bf16.mxu0 %v10377
        %10874 = vmatpush2.bf16.msra.mxu0 %v10376
        %10875 = vmatprep.subr.bf16.mxu0 %v10373
        %10876 = vmatpush2.bf16.msra.mxu0 %v10372
        %10877 = vmatprep.mubr.bf16.mxu0 %v9543
        %10878 = vmatmul.mubr.bf16.gmra.mxu0 %v9542
        %v10879 = vpop.f32.mrf.mxu0
        %v10880 = vadd.f32 %v9753, %v10879
        %v10881 = vpop.f32.mrf.mxu0
        %v10882 = vadd.f32 %v9757, %v10881
        %v10883 = vpop.f32.mrf.mxu0
        %v10884 = vpop.f32.mrf.mxu0
        %10885 = vdwg.mxu0
        %10886 = vmatprep.subr.bf16.mxu0 %v10433
        %10887 = vmatpush1.bf16.msra.mxu0 %v10432
        %10888 = vmatprep.subr.bf16.mxu0 %v10429
        %10889 = vmatpush1.bf16.msra.mxu0 %v10428
        %10890 = vmatprep.subr.bf16.mxu0 %v10425
        %10891 = vmatpush1.bf16.msra.mxu0 %v10424
        %10892 = vmatprep.subr.bf16.mxu0 %v10421
        %10893 = vmatpush1.bf16.msra.mxu0 %v10420
        %10894 = vmatprep.subr.bf16.mxu0 %v10417
        %10895 = vmatpush1.bf16.msra.mxu0 %v10416
        %10896 = vmatprep.subr.bf16.mxu0 %v10413
        %10897 = vmatpush1.bf16.msra.mxu0 %v10412
        %10898 = vmatprep.subr.bf16.mxu0 %v10409
        %10899 = vmatpush1.bf16.msra.mxu0 %v10408
        %10900 = vmatprep.subr.bf16.mxu0 %v10405
        %10901 = vmatpush1.bf16.msra.mxu0 %v10404
        %10902 = vmatprep.subr.bf16.mxu0 %v10465
        %10903 = vmatpush2.bf16.msra.mxu0 %v10464
        %10904 = vmatprep.subr.bf16.mxu0 %v10461
        %10905 = vmatpush2.bf16.msra.mxu0 %v10460
        %10906 = vmatprep.subr.bf16.mxu0 %v10457
        %10907 = vmatpush2.bf16.msra.mxu0 %v10456
        %10908 = vmatprep.subr.bf16.mxu0 %v10453
        %10909 = vmatpush2.bf16.msra.mxu0 %v10452
        %10910 = vmatprep.subr.bf16.mxu0 %v10449
        %10911 = vmatpush2.bf16.msra.mxu0 %v10448
        %10912 = vmatprep.subr.bf16.mxu0 %v10445
        %10913 = vmatpush2.bf16.msra.mxu0 %v10444
        %10914 = vmatprep.subr.bf16.mxu0 %v10441
        %10915 = vmatpush2.bf16.msra.mxu0 %v10440
        %10916 = vmatprep.subr.bf16.mxu0 %v10437
        %10917 = vmatpush2.bf16.msra.mxu0 %v10436
        %10918 = vmatprep.mubr.bf16.mxu0 %v9545
        %10919 = vmatmul.mubr.bf16.gmra.mxu0 %v9544
        %v10920 = vpop.f32.mrf.mxu0
        %v10921 = vadd.f32 %v10880, %v10920
        %v10922 = vpop.f32.mrf.mxu0
        %v10923 = vadd.f32 %v10882, %v10922
        %v10924 = vpop.f32.mrf.mxu0
        %v10925 = vpop.f32.mrf.mxu0
        %10926 = vdwg.mxu0
        %10927 = vmatprep.subr.bf16.mxu0 %v10497
        %10928 = vmatpush1.bf16.msra.mxu0 %v10496
        %10929 = vmatprep.subr.bf16.mxu0 %v10493
        %10930 = vmatpush1.bf16.msra.mxu0 %v10492
        %10931 = vmatprep.subr.bf16.mxu0 %v10489
        %10932 = vmatpush1.bf16.msra.mxu0 %v10488
        %10933 = vmatprep.subr.bf16.mxu0 %v10485
        %10934 = vmatpush1.bf16.msra.mxu0 %v10484
        %10935 = vmatprep.subr.bf16.mxu0 %v10481
        %10936 = vmatpush1.bf16.msra.mxu0 %v10480
        %10937 = vmatprep.subr.bf16.mxu0 %v10477
        %10938 = vmatpush1.bf16.msra.mxu0 %v10476
        %10939 = vmatprep.subr.bf16.mxu0 %v10473
        %10940 = vmatpush1.bf16.msra.mxu0 %v10472
        %10941 = vmatprep.subr.bf16.mxu0 %v10469
        %10942 = vmatpush1.bf16.msra.mxu0 %v10468
        %10943 = vmatprep.subr.bf16.mxu0 %v10529
        %10944 = vmatpush2.bf16.msra.mxu0 %v10528
        %10945 = vmatprep.subr.bf16.mxu0 %v10525
        %10946 = vmatpush2.bf16.msra.mxu0 %v10524
        %10947 = vmatprep.subr.bf16.mxu0 %v10521
        %10948 = vmatpush2.bf16.msra.mxu0 %v10520
        %10949 = vmatprep.subr.bf16.mxu0 %v10517
        %10950 = vmatpush2.bf16.msra.mxu0 %v10516
        %10951 = vmatprep.subr.bf16.mxu0 %v10513
        %10952 = vmatpush2.bf16.msra.mxu0 %v10512
        %10953 = vmatprep.subr.bf16.mxu0 %v10509
        %10954 = vmatpush2.bf16.msra.mxu0 %v10508
        %10955 = vmatprep.subr.bf16.mxu0 %v10505
        %10956 = vmatpush2.bf16.msra.mxu0 %v10504
        %10957 = vmatprep.subr.bf16.mxu0 %v10501
        %10958 = vmatpush2.bf16.msra.mxu0 %v10500
        %10959 = vmatprep.mubr.bf16.mxu0 %v9547
        %10960 = vmatmul.mubr.bf16.gmra.mxu0 %v9546
        %v10961 = vpop.f32.mrf.mxu0
        %v10962 = vadd.f32 %v10921, %v10961
        %v10963 = vpop.f32.mrf.mxu0
        %v10964 = vadd.f32 %v10923, %v10963
        %v10965 = vpop.f32.mrf.mxu0
        %v10966 = vpop.f32.mrf.mxu0
        %10967 = vdwg.mxu0
        %v10968 = vmax.f32 %v10839, 0.0
        %v10969 = vmax.f32 %v10841, 0.0
        %v10970 = vmax.f32 %v10962, 0.0
        %v10971 = vmax.f32 %v10964, 0.0
        %v10972 = vmax.f32 %v10968, %v10969
        %v10973 = vmax.f32 %v10970, %v10971
        %v10974 = vmax.f32 %v10972, %v10973
        %v10975 = vpack.c.bf16 %v10974, %v10974
        %v10976 = vld [vmem:[%s5] sm:$0xf]
        %v10977 = vld [vmem:[%s5 + $0x4] sm:$0xf]
        %v10978 = vld [vmem:[%s5 + $0x8] sm:$0xf]
        %v10979 = vld [vmem:[%s5 + $0xc] sm:$0xf]
        %v10980 = vld [vmem:[%s5 + $0x10] sm:$0xf]
        %v10981 = vld [vmem:[%s5 + $0x14] sm:$0xf]
        %v10982 = vld [vmem:[%s5 + $0x18] sm:$0xf]
        %v10983 = vld [vmem:[%s5 + $0x1c] sm:$0xf]
        %v10984 = vld [vmem:[%s5 + $0x20] sm:$0xf]
        %v10985 = vld [vmem:[%s5 + $0x24] sm:$0xf]
        %v10986 = vld [vmem:[%s5 + $0x28] sm:$0xf]
        %v10987 = vld [vmem:[%s5 + $0x2c] sm:$0xf]
        %v10988 = vld [vmem:[%s5 + $0x30] sm:$0xf]
        %v10989 = vld [vmem:[%s5 + $0x34] sm:$0xf]
        %v10990 = vld [vmem:[%s5 + $0x38] sm:$0xf]
        %v10991 = vld [vmem:[%s5 + $0x3c] sm:$0xf]
        %v10992 = vld [vmem:[%s6] sm:$0x1]
        %v10994 = vlaneseq
        %v10995 = vshrl.u32 %v10994, 7
        %v10996 = vsub.s32 0, %v10995
        %v10997 = vrot.slane %v10992, %v10996
        %v11015 = vunpack.c.l.b16 %v10976
        %v11016 = vunpack.c.l.b16 %v10977
        %v11017 = vunpack.c.l.b16 %v10978
        %v11018 = vunpack.c.l.b16 %v10979
        %v11019 = vunpack.c.l.b16 %v10980
        %v11020 = vunpack.c.l.b16 %v10981
        %v11021 = vunpack.c.l.b16 %v10982
        %v11022 = vunpack.c.l.b16 %v10983
        %v11023 = vunpack.c.l.b16 %v10984
        %v11024 = vunpack.c.l.b16 %v10985
        %v11025 = vunpack.c.l.b16 %v10986
        %v11026 = vunpack.c.l.b16 %v10987
        %v11027 = vunpack.c.l.b16 %v10988
        %v11028 = vunpack.c.l.b16 %v10989
        %v11029 = vunpack.c.l.b16 %v10990
        %v11030 = vunpack.c.l.b16 %v10991
        %v11031 = vpack.c.b16 %v11016, %v11015
        %v11032 = vpack.c.b16 %v11018, %v11017
        %v11033 = vpack.c.b16 %v11020, %v11019
        %v11034 = vpack.c.b16 %v11022, %v11021
        %v11035 = vpack.c.b16 %v11024, %v11023
        %v11036 = vpack.c.b16 %v11026, %v11025
        %v11037 = vpack.c.b16 %v11028, %v11027
        %v11038 = vpack.c.b16 %v11030, %v11029
        %11047 = vmatprep.subr.bf16.mxu0 0
        %11048 = vmatpush1.bf16.msra.mxu0 %v11038
        %11049 = vmatprep.subr.bf16.mxu0 0
        %11050 = vmatpush1.bf16.msra.mxu0 %v11037
        %11051 = vmatprep.subr.bf16.mxu0 0
        %11052 = vmatpush1.bf16.msra.mxu0 %v11036
        %11053 = vmatprep.subr.bf16.mxu0 0
        %11054 = vmatpush1.bf16.msra.mxu0 %v11035
        %11055 = vmatprep.subr.bf16.mxu0 0
        %11056 = vmatpush1.bf16.msra.mxu0 %v11034
        %11057 = vmatprep.subr.bf16.mxu0 0
        %11058 = vmatpush1.bf16.msra.mxu0 %v11033
        %11059 = vmatprep.subr.bf16.mxu0 0
        %11060 = vmatpush1.bf16.msra.mxu0 %v11032
        %11061 = vmatprep.subr.bf16.mxu0 0
        %11062 = vmatpush1.bf16.msra.mxu0 %v11031
        %11063 = vmatprep.subr.bf16.mxu0 0
        %11064 = vmatpush2.bf16.msra.mxu0 0
        %11065 = vmatprep.subr.bf16.mxu0 0
        %11066 = vmatpush2.bf16.msra.mxu0 0
        %11067 = vmatprep.subr.bf16.mxu0 0
        %11068 = vmatpush2.bf16.msra.mxu0 0
        %11069 = vmatprep.subr.bf16.mxu0 0
        %11070 = vmatpush2.bf16.msra.mxu0 0
        %11071 = vmatprep.subr.bf16.mxu0 0
        %11072 = vmatpush2.bf16.msra.mxu0 0
        %11073 = vmatprep.subr.bf16.mxu0 0
        %11074 = vmatpush2.bf16.msra.mxu0 0
        %11075 = vmatprep.subr.bf16.mxu0 0
        %11076 = vmatpush2.bf16.msra.mxu0 0
        %11077 = vmatprep.subr.bf16.mxu0 0
        %11078 = vmatpush2.bf16.msra.mxu0 0
        %11079 = vmatprep.mubr.bf16.mxu0 0
        %11080 = vmatmul.mubr.bf16.gmra.mxu0 %v10975
        %v11081 = vpop.f32.mrf.mxu0
        %v11082 = vadd.f32 %v10997, %v11081
        %v11083 = vpop.f32.mrf.mxu0
        %v11084 = vpop.f32.mrf.mxu0
        %v11085 = vpop.f32.mrf.mxu0
        %11086 = vdwg.mxu0
        %v11087 = vmax.f32 %v11082, 0.0
        %v11088 = vpack.c.bf16 %v11087, %v11087
        %v11089 = vld [vmem:[%s7] sm:$0xf]
        %v11090 = vld [vmem:[%s7 + $0x4] sm:$0xf]
        %v11091 = vld [vmem:[%s7 + $0x8] sm:$0xf]
        %v11092 = vld [vmem:[%s7 + $0xc] sm:$0xf]
        %v11093 = vld [vmem:[%s7 + $0x10] sm:$0xf]
        %v11094 = vld [vmem:[%s8] sm:$0x1]
        %v11096 = vlaneseq
        %v11097 = vshrl.u32 %v11096, 7
        %v11098 = vsub.s32 0, %v11097
        %v11099 = vrot.slane %v11094, %v11098
        %v11106 = vunpack.c.l.b16 %v11089
        %v11107 = vunpack.c.l.b16 %v11090
        %v11108 = vunpack.c.l.b16 %v11091
        %v11109 = vunpack.c.l.b16 %v11092
        %v11110 = vunpack.c.l.b16 %v11093
        %v11111 = vpack.c.b16 %v11107, %v11106
        %v11112 = vpack.c.b16 %v11109, %v11108
        %v11113 = vpack.c.b16 %v11110, %v11110
        %vm11116 = vcmask 326656
        %v11118 = vsel %vm11116, %v11088, 0
        %vm11120 = vcmask 1043456
        %v11122 = vsel %vm11120, %v11113, 0
        %11124 = vmatprep.subr.bf16.mxu0 0
        %11125 = vmatpush1.bf16.msra.mxu0 0
        %11126 = vmatprep.subr.bf16.mxu0 0
        %11127 = vmatpush1.bf16.msra.mxu0 0
        %11128 = vmatprep.subr.bf16.mxu0 0
        %11129 = vmatpush1.bf16.msra.mxu0 0
        %11130 = vmatprep.subr.bf16.mxu0 0
        %11131 = vmatpush1.bf16.msra.mxu0 0
        %11132 = vmatprep.subr.bf16.mxu0 0
        %11133 = vmatpush1.bf16.msra.mxu0 0
        %11134 = vmatprep.subr.bf16.mxu0 0
        %11135 = vmatpush1.bf16.msra.mxu0 %v11122
        %11136 = vmatprep.subr.bf16.mxu0 0
        %11137 = vmatpush1.bf16.msra.mxu0 %v11112
        %11138 = vmatprep.subr.bf16.mxu0 0
        %11139 = vmatpush1.bf16.msra.mxu0 %v11111
        %11140 = vmatprep.subr.bf16.mxu0 0
        %11141 = vmatpush2.bf16.msra.mxu0 0
        %11142 = vmatprep.subr.bf16.mxu0 0
        %11143 = vmatpush2.bf16.msra.mxu0 0
        %11144 = vmatprep.subr.bf16.mxu0 0
        %11145 = vmatpush2.bf16.msra.mxu0 0
        %11146 = vmatprep.subr.bf16.mxu0 0
        %11147 = vmatpush2.bf16.msra.mxu0 0
        %11148 = vmatprep.subr.bf16.mxu0 0
        %11149 = vmatpush2.bf16.msra.mxu0 0
        %11150 = vmatprep.subr.bf16.mxu0 0
        %11151 = vmatpush2.bf16.msra.mxu0 0
        %11152 = vmatprep.subr.bf16.mxu0 0
        %11153 = vmatpush2.bf16.msra.mxu0 0
        %11154 = vmatprep.subr.bf16.mxu0 0
        %11155 = vmatpush2.bf16.msra.mxu0 0
        %11156 = vmatprep.mubr.bf16.mxu0 0
        %11157 = vmatmul.mubr.bf16.gmra.mxu0 %v11118
        %v11158 = vpop.f32.mrf.mxu0
        %v11159 = vadd.f32 %v11099, %v11158
        %v11160 = vpop.f32.mrf.mxu0
        %v11161 = vpop.f32.mrf.mxu0
        %v11162 = vpop.f32.mrf.mxu0
        %11163 = vdwg.mxu0
        %v11164 = vmax.f32 %v11159, 0.0
        %vm11165 = vcmask 80896
        %v11166 = vsel %vm11165, %v11164, -inf
        %11167 = vmax.xlane.f32.xlu0 %v11166
        %v11168 = vpop.xlane.xlu0 %11167
        %v11169 = vsub.f32 %v11164, %v11168
        %v11170 = vmul.f32 %v11169, 1.442695
        %v11171 = vpow.pop %v11170
        %v11172 = vsel %vm11165, %v11171, 0.0
        %11173 = vadd.xlane.f32.xlu0 %v11172
        %v11174 = vpop.xlane.xlu0 %11173
        %v11175 = vrcp.pop %v11174
        %v11176 = vmul.f32 %v11171, %v11175
        %11177 = vst.msk [vmem:[%s325] sm:$0xff] %vm11165, %v11176
        %s11178 = sand.u32 %s225, 1
        %s11179 = scalar_lea.sflag [#allocation3], %s11178
        %s11180 = sand.u32 %s225, 1
        %s11181 = smul.addr %s11180, 8
        %s11182 = scalar_lea.vmem [#allocation2], %s11181
        // Predicated region
        $region57: #{net_forward.1} parent=55 // pred_check
          %p11183 = pneg %p235
        $region58: #{net_forward.1} parent=55 // pred_check_branch
          %11185 = sbr.rel (%p11183) target = $region60
        $region59: #{net_forward.1} parent=55 // pred_region
          %s11187 = ssub.s32 128, 128
          %11188 = vsyncadd %s11179, %s11187
          %s11189 = smul.addr %s23, 128
          %s11190 = scalar_lea.hbm %s9, %s11189
          %s11192 = sshll.u32 %s11182, 4
          %s11193 = int_to_ptr.vmem [resolvable:$true] %s11192
          %11195 = dma.vmem_to_hbm [thread:$0]  %s11193, 128, %s11190, %s11179
        $region60: #{net_forward.1} parent=55 // pred_fallthru
          _
      $region56: #{net_forward.1} parent=5 // pred_fallthru
        _
      %p11196 = scmp.le.s32.totalorder 2, %s18
      // Predicated region
      $region61: #{net_forward.1} parent=5 // pred_check
        %p11197 = pneg %p11196
      $region62: #{net_forward.1} parent=5 // pred_check_branch
        %11199 = sbr.rel (%p11197) target = $region64
      $region63: #{net_forward.1} parent=5 // pred_region
        %s11200 = ssub.s32 %s18, 2
        // Predicated region
        $region65: #{net_forward.1} parent=63 // pred_check
          %p11201 = pneg %p241
        $region66: #{net_forward.1} parent=63 // pred_check_branch
          %11203 = sbr.rel (%p11201) target = $region68
        $region67: #{net_forward.1} parent=63 // pred_region
          %s11204 = sand.u32 %s226, 1
          %s11205 = scalar_lea.sflag [#allocation3], %s11204
          %s11206 = sand.u32 %s226, 1
          %s11207 = smul.addr %s11206, 8
          %s11208 = scalar_lea.vmem [#allocation2], %s11207
          %11209 = dma.done %s11205, 128
        $region68: #{net_forward.1} parent=63 // pred_fallthru
          _
      $region64: #{net_forward.1} parent=5 // pred_fallthru
        _
    $region6: #{net_forward.1} parent=1 // loop_footer
      %s22 = sadd.s32 1, %s18
    $region7: #{net_forward.1} parent=1 // loop_footer_branch
      %17 = sbr.rel target = $region3
    $region8: #{net_forward.1} parent=1 // loop_exit
      _
    %11210 = vsyncpa [#allocation3], 1
    %s11211 = scalar_lea.sflag [#allocation3], 1
    %11212 = vsyncpa %s11211, 1

</llo_original>
